<compile_context>
chip_gen: v5e
topology: v5e:2x2
jax: 0.10.0
libtpu: 0.0.40
codegen_flags: <defaults>
</compile_context>

<pallas_src>
import functools

import jax
import jax.numpy as jnp
from jax.experimental import pallas as pl
from jax.experimental.pallas import tpu as pltpu


def _round_up(x, m):
    return (x + m - 1) // m * m


# ----------------------------- Pallas kernel --------------------------------
def _composite_kernel(img_ref,      # (BT, H+2, W+2, C)    bf16 zero-padded NHWC tile
                      wconv_ref,    # (K_PAD, HID2_PAD)    bf16 fused conv weight [A | B]
                      wfc_ref,      # (HID2_PAD, NCLS_PAD) bf16 fused FC weight, alpha-pre-scaled
                      bias_ref,     # (1, NCLS_PAD)        f32  pre-mixed FC bias
                      out_ref,      # (BT, NCLS_PAD)       f32  mixed logits (padded)
                      *, h, w, c, bt, k_pad):
    hw = h * w
    img = img_ref[...].astype(jnp.float32)               # (bt, h+2, w+2, c)

    # ---- in-VMEM im2col: 9 shifted taps, one lane-axis concat, one reshape --
    taps = [img[:, di:di + h, dj:dj + w, :]
            for di in range(3) for dj in range(3)]       # each (bt, h, w, c)
    if k_pad > 9 * c:
        taps.append(jnp.zeros((bt, h, w, k_pad - 9 * c), jnp.float32))
    patches = jnp.concatenate(taps, axis=-1)             # (bt, h, w, k_pad)
    patches = patches.reshape(bt * hw, k_pad).astype(jnp.bfloat16)

    # ---- fused two-branch conv as ONE bf16 MXU matmul, f32 accumulation ----
    feat = jnp.dot(patches, wconv_ref[...],
                   preferred_element_type=jnp.float32)   # (bt*hw, HID2_PAD)
    feat = jnp.maximum(feat, 0.0)                        # ReLU (VPU, f32)

    # ---- global average pool: per-image sublane-sum reduction (no MXU) -----
    pooled = jnp.concatenate(
        [jnp.sum(feat[b * hw:(b + 1) * hw, :], axis=0, keepdims=True)
         for b in range(bt)],
        axis=0) * (1.0 / hw)                             # (bt, HID2_PAD) f32

    # ---- fused, alpha-pre-scaled FC head (bf16 x bf16 -> f32) + mixed bias --
    logits = jnp.dot(pooled.astype(jnp.bfloat16), wfc_ref[...],
                     preferred_element_type=jnp.float32)  # (bt, NCLS_PAD)
    out_ref[...] = logits + bias_ref[...]                 # lane-dense 128-wide store


# ------------------------------ JAX glue -------------------------------------
def composite_model_wrapper_forward(x_nchw, params, *, batch_tile=None):
    """Equivalent of CompositeModelWrapper.forward(images) -> first output."""
    wca, wcb, wfa, wfb, bfa, bfb, alpha = params
    B, C, H, W = x_nchw.shape
    K = 9 * C
    HID = wca.shape[1]
    NCLS = wfa.shape[1]

    # Lane-dense padded sizes.
    K_PAD = _round_up(K, 128)
    HID2_PAD = _round_up(2 * HID, 128)
    NCLS_PAD = _round_up(NCLS, 128)

    # Batch tile: several images per grid step (amortizes ~0.35us/step), but
    # once B >= 16 keep >= 2 steps so pipelining overlaps DMA with compute and
    # v7x's second TensorCore has work.
    if batch_tile is None:
        batch_tile = min(_round_up(B, 8), 32)
        if B >= 16:
            batch_tile = min(batch_tile,
                             _round_up(max(_round_up(B, 8) // 2, 8), 8))
    BT = batch_tile
    B_PAD = _round_up(B, BT)
    n_steps = B_PAD // BT

    # ---- input prep: NCHW -> NHWC, spatial zero-pad 1, batch pad, bf16 ------
    x_nhwc = jnp.transpose(x_nchw, (0, 2, 3, 1)).astype(jnp.float32)
    x_p = jnp.pad(x_nhwc, ((0, B_PAD - B), (1, 1), (1, 1), (0, 0)))
    x_p = x_p.astype(jnp.bfloat16)                       # (B_PAD, H+2, W+2, C)

    # ---- parameter prep (tiny, grid-invariant) -------------------------------
    a = jax.nn.sigmoid(alpha.reshape(()).astype(jnp.float32))

    # Fused conv weight: columns [0:HID) = branch A, [HID:2*HID) = branch B.
    wconv_cat = jnp.zeros((K_PAD, HID2_PAD), jnp.float32)
    wconv_cat = wconv_cat.at[:K, :HID].set(wca).at[:K, HID:2 * HID].set(wcb)
    wconv_cat = wconv_cat.astype(jnp.bfloat16)

    # Fused FC weight with sigmoid(alpha) mixing folded in:
    # rows [0:HID) = a * W_A, rows [HID:2*HID) = (1-a) * W_B.
    wfc_cat = jnp.zeros((HID2_PAD, NCLS_PAD), jnp.float32)
    wfc_cat = wfc_cat.at[:HID, :NCLS].set(a * wfa)
    wfc_cat = wfc_cat.at[HID:2 * HID, :NCLS].set((1.0 - a) * wfb)
    wfc_cat = wfc_cat.astype(jnp.bfloat16)

    bias_mix = jnp.zeros((1, NCLS_PAD), jnp.float32)
    bias_mix = bias_mix.at[:, :NCLS].set(a * bfa + (1.0 - a) * bfb)

    kernel = functools.partial(_composite_kernel,
                               h=H, w=W, c=C, bt=BT, k_pad=K_PAD)

    out_pad = pl.pallas_call(
        kernel,
        out_shape=jax.ShapeDtypeStruct((B_PAD, NCLS_PAD), jnp.float32),
        grid_spec=pltpu.PrefetchScalarGridSpec(
            num_scalar_prefetch=0,
            grid=(n_steps,),
            in_specs=[
                pl.BlockSpec((BT, H + 2, W + 2, C), lambda i: (i, 0, 0, 0)),  # image tile
                pl.BlockSpec((K_PAD, HID2_PAD), lambda i: (0, 0)),            # fused conv W
                pl.BlockSpec((HID2_PAD, NCLS_PAD), lambda i: (0, 0)),         # fused FC W
                pl.BlockSpec((1, NCLS_PAD), lambda i: (0, 0)),                # mixed bias
            ],
            out_specs=pl.BlockSpec((BT, NCLS_PAD), lambda i: (i, 0)),
        ),
        compiler_params=pltpu.CompilerParams(
            dimension_semantics=("parallel",)),
    )(x_p, wconv_cat, wfc_cat, bias_mix)

    return out_pad[:B, :NCLS]


# -------------------------- pure-JAX reference --------------------------------
def _im2col_3x3(x_nhwc):
    """3x3, stride 1, pad 1 im2col.  (B,H,W,C) -> (B, H*W, 9*C)."""
    B, H, W, C = x_nhwc.shape
    xp = jnp.pad(x_nhwc, ((0, 0), (1, 1), (1, 1), (0, 0)))
    taps = []
    for di in range(3):
        for dj in range(3):
            taps.append(xp[:, di:di + H, dj:dj + W, :])
    patches = jnp.stack(taps, axis=-2)                 # (B, H, W, 9, C)
    return patches.reshape(B, H * W, 9 * C)


def _reference(x_nchw, params):
    wca, wcb, wfa, wfb, bfa, bfb, alpha = params
    x = jnp.transpose(x_nchw, (0, 2, 3, 1)).astype(jnp.float32)
    patches = _im2col_3x3(x)

    def branch(wc, wf, bf):
        feat = jax.nn.relu(jnp.einsum('bpk,kh->bph', patches, wc))
        pooled = feat.mean(axis=1)
        return pooled @ wf + bf

    la = branch(wca, wfa, bfa)
    lb = branch(wcb, wfb, bfb)
    a = jax.nn.sigmoid(alpha[0, 0])
    return a * la + (1.0 - a) * lb


# --------------------------------- main ---------------------------------------
if __name__ == "__main__":
    # Small shapes: batch=2, channels=4, spatial=16x16, hidden=32, classes=10
    B, C, H, W = 2, 4, 16, 16
    HID, NCLS = 32, 10
    K = 9 * C

    key = jax.random.PRNGKey(0)
    kx, k1, k2, k3, k4, k5, k6 = jax.random.split(key, 7)

    x = jax.random.normal(kx, (B, C, H, W), dtype=jnp.float32)

    # Deterministic synthetic parameters (no checkpoint loading).
    wca = 0.1 * jax.random.normal(k1, (K, HID), dtype=jnp.float32)
    wcb = 0.1 * jax.random.normal(k2, (K, HID), dtype=jnp.float32)
    wfa = 0.1 * jax.random.normal(k3, (HID, NCLS), dtype=jnp.float32)
    wfb = 0.1 * jax.random.normal(k4, (HID, NCLS), dtype=jnp.float32)
    bfa = 0.1 * jax.random.normal(k5, (1, NCLS), dtype=jnp.float32)
    bfb = 0.1 * jax.random.normal(k6, (1, NCLS), dtype=jnp.float32)
    alpha = jnp.full((1, 1), 0.5, dtype=jnp.float32)   # raw mixing logit

    params = (wca, wcb, wfa, wfb, bfa, bfb, alpha)

    out = composite_model_wrapper_forward(x, params)
    out = jax.block_until_ready(out)

    ref = _reference(x, params)
    assert out.shape == (B, NCLS)
    # Tolerance loosened for bf16 matmul operands (f32 accumulation).
    assert jnp.allclose(out, ref, atol=2e-2, rtol=2e-2), "mismatch vs reference"

    # TODO(synk): DataParallel replication and train()/eval()/scale_alpha mode
    # plumbing are framework glue with no kernel-level equivalent; forward
    # semantics only.
    print("KERNEL_OK")
</pallas_src>

<mosaic_0001>
module attributes {stable_mosaic.version = 11 : i64} {
  func.func @_composite_kernel(%arg0: i32, %arg1: memref<8x18x18x4xbf16, #tpu.memory_space<vmem>>, %arg2: memref<128x128xbf16, #tpu.memory_space<vmem>>, %arg3: memref<128x128xbf16, #tpu.memory_space<vmem>>, %arg4: memref<1x128xf32, #tpu.memory_space<vmem>>, %arg5: memref<8x128xf32, #tpu.memory_space<vmem>>) attributes {dimension_semantics = [#tpu.dimension_semantics<parallel>], iteration_bounds = array<i64: 1>, scalar_prefetch = 0 : i64, scratch_operands = 0 : i64, tpu.core_type = #tpu.core_type<tc>, window_params = [{transform_indices = @transform_0, window_bounds = array<i64: 8, 18, 18, 4>}, {pipeline_mode = #tpu.pipeline_mode<synchronous>, transform_indices = @transform_1, window_bounds = array<i64: 128, 128>}, {pipeline_mode = #tpu.pipeline_mode<synchronous>, transform_indices = @transform_2, window_bounds = array<i64: 128, 128>}, {pipeline_mode = #tpu.pipeline_mode<synchronous>, transform_indices = @transform_3, window_bounds = array<i64: 1, 128>}, {transform_indices = @transform_4, window_bounds = array<i64: 8, 128>}]} {
    %c0 = arith.constant 0 : index
    %c0_0 = arith.constant 0 : index
    %c0_1 = arith.constant 0 : index
    %c0_2 = arith.constant 0 : index
    %0 = vector.load %arg1[%c0, %c0_0, %c0_1, %c0_2] : memref<8x18x18x4xbf16, #tpu.memory_space<vmem>>, vector<8x18x18x4xbf16>
    %1 = arith.extf %0 : vector<8x18x18x4xbf16> to vector<8x18x18x4xf32>
    %2 = vector.extract_strided_slice %1 {offsets = [0, 0, 0, 0], sizes = [8, 16, 16, 4], strides = [1, 1, 1, 1]} : vector<8x18x18x4xf32> to vector<8x16x16x4xf32>
    %3 = vector.extract_strided_slice %1 {offsets = [0, 0, 1, 0], sizes = [8, 16, 16, 4], strides = [1, 1, 1, 1]} : vector<8x18x18x4xf32> to vector<8x16x16x4xf32>
    %4 = vector.extract_strided_slice %1 {offsets = [0, 0, 2, 0], sizes = [8, 16, 16, 4], strides = [1, 1, 1, 1]} : vector<8x18x18x4xf32> to vector<8x16x16x4xf32>
    %5 = vector.extract_strided_slice %1 {offsets = [0, 1, 0, 0], sizes = [8, 16, 16, 4], strides = [1, 1, 1, 1]} : vector<8x18x18x4xf32> to vector<8x16x16x4xf32>
    %6 = vector.extract_strided_slice %1 {offsets = [0, 1, 1, 0], sizes = [8, 16, 16, 4], strides = [1, 1, 1, 1]} : vector<8x18x18x4xf32> to vector<8x16x16x4xf32>
    %7 = vector.extract_strided_slice %1 {offsets = [0, 1, 2, 0], sizes = [8, 16, 16, 4], strides = [1, 1, 1, 1]} : vector<8x18x18x4xf32> to vector<8x16x16x4xf32>
    %8 = vector.extract_strided_slice %1 {offsets = [0, 2, 0, 0], sizes = [8, 16, 16, 4], strides = [1, 1, 1, 1]} : vector<8x18x18x4xf32> to vector<8x16x16x4xf32>
    %9 = vector.extract_strided_slice %1 {offsets = [0, 2, 1, 0], sizes = [8, 16, 16, 4], strides = [1, 1, 1, 1]} : vector<8x18x18x4xf32> to vector<8x16x16x4xf32>
    %10 = vector.extract_strided_slice %1 {offsets = [0, 2, 2, 0], sizes = [8, 16, 16, 4], strides = [1, 1, 1, 1]} : vector<8x18x18x4xf32> to vector<8x16x16x4xf32>
    %cst = arith.constant 0.000000e+00 : f32
    %11 = vector.broadcast %cst : f32 to vector<8x16x16x92xf32>
    %12 = tpu.concatenate %2, %3, %4, %5, %6, %7, %8, %9, %10, %11 in 3 : vector<8x16x16x4xf32>, vector<8x16x16x4xf32>, vector<8x16x16x4xf32>, vector<8x16x16x4xf32>, vector<8x16x16x4xf32>, vector<8x16x16x4xf32>, vector<8x16x16x4xf32>, vector<8x16x16x4xf32>, vector<8x16x16x4xf32>, vector<8x16x16x92xf32> -> vector<8x16x16x128xf32>
    %13 = vector.shape_cast %12 : vector<8x16x16x128xf32> to vector<2048x128xf32>
    %14 = arith.truncf %13 : vector<2048x128xf32> to vector<2048x128xbf16>
    %c0_3 = arith.constant 0 : index
    %c0_4 = arith.constant 0 : index
    %15 = vector.load %arg2[%c0_3, %c0_4] : memref<128x128xbf16, #tpu.memory_space<vmem>>, vector<128x128xbf16>
    %cst_5 = arith.constant dense<0.000000e+00> : vector<2048x128xf32>
    %16 = tpu.matmul %14, %15, %cst_5 {dimension_numbers = #tpu.dot_dimension_numbers<[1], [0], [0], [1], [0, 0, 1, 1], [], []>} : vector<2048x128xbf16>, vector<128x128xbf16>, vector<2048x128xf32> -> vector<2048x128xf32>
    %cst_6 = arith.constant 0.000000e+00 : f32
    %17 = vector.broadcast %cst_6 : f32 to vector<2048x128xf32>
    %18 = arith.maximumf %16, %17 : vector<2048x128xf32>
    %19 = vector.extract_strided_slice %18 {offsets = [0, 0], sizes = [256, 128], strides = [1, 1]} : vector<2048x128xf32> to vector<256x128xf32>
    %cst_7 = arith.constant dense<0.000000e+00> : vector<128xf32>
    %20 = vector.multi_reduction <add>, %19, %cst_7 [0] : vector<256x128xf32> to vector<128xf32>
    %21 = vector.shape_cast %20 : vector<128xf32> to vector<1x128xf32>
    %22 = vector.extract_strided_slice %18 {offsets = [256, 0], sizes = [256, 128], strides = [1, 1]} : vector<2048x128xf32> to vector<256x128xf32>
    %cst_8 = arith.constant dense<0.000000e+00> : vector<128xf32>
    %23 = vector.multi_reduction <add>, %22, %cst_8 [0] : vector<256x128xf32> to vector<128xf32>
    %24 = vector.shape_cast %23 : vector<128xf32> to vector<1x128xf32>
    %25 = vector.extract_strided_slice %18 {offsets = [512, 0], sizes = [256, 128], strides = [1, 1]} : vector<2048x128xf32> to vector<256x128xf32>
    %cst_9 = arith.constant dense<0.000000e+00> : vector<128xf32>
    %26 = vector.multi_reduction <add>, %25, %cst_9 [0] : vector<256x128xf32> to vector<128xf32>
    %27 = vector.shape_cast %26 : vector<128xf32> to vector<1x128xf32>
    %28 = vector.extract_strided_slice %18 {offsets = [768, 0], sizes = [256, 128], strides = [1, 1]} : vector<2048x128xf32> to vector<256x128xf32>
    %cst_10 = arith.constant dense<0.000000e+00> : vector<128xf32>
    %29 = vector.multi_reduction <add>, %28, %cst_10 [0] : vector<256x128xf32> to vector<128xf32>
    %30 = vector.shape_cast %29 : vector<128xf32> to vector<1x128xf32>
    %31 = vector.extract_strided_slice %18 {offsets = [1024, 0], sizes = [256, 128], strides = [1, 1]} : vector<2048x128xf32> to vector<256x128xf32>
    %cst_11 = arith.constant dense<0.000000e+00> : vector<128xf32>
    %32 = vector.multi_reduction <add>, %31, %cst_11 [0] : vector<256x128xf32> to vector<128xf32>
    %33 = vector.shape_cast %32 : vector<128xf32> to vector<1x128xf32>
    %34 = vector.extract_strided_slice %18 {offsets = [1280, 0], sizes = [256, 128], strides = [1, 1]} : vector<2048x128xf32> to vector<256x128xf32>
    %cst_12 = arith.constant dense<0.000000e+00> : vector<128xf32>
    %35 = vector.multi_reduction <add>, %34, %cst_12 [0] : vector<256x128xf32> to vector<128xf32>
    %36 = vector.shape_cast %35 : vector<128xf32> to vector<1x128xf32>
    %37 = vector.extract_strided_slice %18 {offsets = [1536, 0], sizes = [256, 128], strides = [1, 1]} : vector<2048x128xf32> to vector<256x128xf32>
    %cst_13 = arith.constant dense<0.000000e+00> : vector<128xf32>
    %38 = vector.multi_reduction <add>, %37, %cst_13 [0] : vector<256x128xf32> to vector<128xf32>
    %39 = vector.shape_cast %38 : vector<128xf32> to vector<1x128xf32>
    %40 = vector.extract_strided_slice %18 {offsets = [1792, 0], sizes = [256, 128], strides = [1, 1]} : vector<2048x128xf32> to vector<256x128xf32>
    %cst_14 = arith.constant dense<0.000000e+00> : vector<128xf32>
    %41 = vector.multi_reduction <add>, %40, %cst_14 [0] : vector<256x128xf32> to vector<128xf32>
    %42 = vector.shape_cast %41 : vector<128xf32> to vector<1x128xf32>
    %43 = tpu.concatenate %21, %24, %27, %30, %33, %36, %39, %42 in 0 : vector<1x128xf32>, vector<1x128xf32>, vector<1x128xf32>, vector<1x128xf32>, vector<1x128xf32>, vector<1x128xf32>, vector<1x128xf32>, vector<1x128xf32> -> vector<8x128xf32>
    %cst_15 = arith.constant 3.906250e-03 : f32
    %44 = vector.broadcast %cst_15 : f32 to vector<8x128xf32>
    %45 = arith.mulf %43, %44 : vector<8x128xf32>
    %46 = arith.truncf %45 : vector<8x128xf32> to vector<8x128xbf16>
    %c0_16 = arith.constant 0 : index
    %c0_17 = arith.constant 0 : index
    %47 = vector.load %arg3[%c0_16, %c0_17] : memref<128x128xbf16, #tpu.memory_space<vmem>>, vector<128x128xbf16>
    %cst_18 = arith.constant dense<0.000000e+00> : vector<8x128xf32>
    %48 = tpu.matmul %46, %47, %cst_18 {dimension_numbers = #tpu.dot_dimension_numbers<[1], [0], [0], [1], [0, 0, 1, 1], [], []>} : vector<8x128xbf16>, vector<128x128xbf16>, vector<8x128xf32> -> vector<8x128xf32>
    %c0_19 = arith.constant 0 : index
    %c0_20 = arith.constant 0 : index
    %49 = vector.load %arg4[%c0_19, %c0_20] : memref<1x128xf32, #tpu.memory_space<vmem>>, vector<1x128xf32>
    %50 = vector.broadcast %49 : vector<1x128xf32> to vector<8x128xf32>
    %51 = arith.addf %48, %50 : vector<8x128xf32>
    %c0_21 = arith.constant 0 : index
    %c0_22 = arith.constant 0 : index
    %52 = vector.load %arg5[%c0_21, %c0_22] : memref<8x128xf32, #tpu.memory_space<vmem>>, vector<8x128xf32>
    tpu.vector_store %arg5[%c0_21, %c0_22], %51 {strides = array<i32>} : memref<8x128xf32, #tpu.memory_space<vmem>>, vector<8x128xf32>,
    return
  }
  func.func @transform_0(%arg0: i32) -> (i32, i32, i32, i32) {
    %c0_i32 = arith.constant 0 : i32
    %c0_i32_0 = arith.constant 0 : i32
    %c0_i32_1 = arith.constant 0 : i32
    %c0_i32_2 = arith.constant 0 : i32
    return %arg0, %c0_i32, %c0_i32_0, %c0_i32_1 : i32, i32, i32, i32
  }
  func.func @transform_1(%arg0: i32) -> (i32, i32) {
    %c0_i32 = arith.constant 0 : i32
    %c0_i32_0 = arith.constant 0 : i32
    %c0_i32_1 = arith.constant 0 : i32
    return %c0_i32, %c0_i32_0 : i32, i32
  }
  func.func @transform_2(%arg0: i32) -> (i32, i32) {
    %c0_i32 = arith.constant 0 : i32
    %c0_i32_0 = arith.constant 0 : i32
    %c0_i32_1 = arith.constant 0 : i32
    return %c0_i32, %c0_i32_0 : i32, i32
  }
  func.func @transform_3(%arg0: i32) -> (i32, i32) {
    %c0_i32 = arith.constant 0 : i32
    %c0_i32_0 = arith.constant 0 : i32
    %c0_i32_1 = arith.constant 0 : i32
    return %c0_i32, %c0_i32_0 : i32, i32
  }
  func.func @transform_4(%arg0: i32) -> (i32, i32) {
    %c0_i32 = arith.constant 0 : i32
    %c0_i32_0 = arith.constant 0 : i32
    return %arg0, %c0_i32 : i32, i32
  }
}

</mosaic_0001>

<llo_original>
// kernel: tpu_custom_call.1
$region0: #{tpu_custom_call.1}
  #allocation0 [shape = 'u32[]', space=smem, size = 0x4, offset = 0x4, fixed_abs, tag = 'smem constant byte address 0x4 - core index']
  #allocation1 [shape = 'u32[72,128]{1,0:T(1,128)}', space=vmem, size = 0x9000, scoped, tag = 'internal scratch']
  %s0 = inlined_call_operand.vmem [shape: bf16[8,18,18,4], index: 0, kind: input, shape index: {}]
  %s1 = inlined_call_operand.vmem [shape: bf16[128,128], index: 1, kind: input, shape index: {}]
  %s2 = inlined_call_operand.vmem [shape: bf16[128,128], index: 2, kind: input, shape index: {}]
  %s3 = inlined_call_operand.vmem [shape: f32[1,128], index: 3, kind: input, shape index: {}]
  %s4 = inlined_call_operand.hbm [shape: f32[8,128], index: 4, kind: output, shape index: {}]
  %s5 = sld [smem:[#allocation0]]
  $region26: #{tpu_custom_call.1} parent=0
    _
  %s7 = ssub.s32 1, %s5
  %s8 = scalar_select 0, %s7, %s5
  $region1: #{tpu_custom_call.1} parent=0
    #allocation2 [shape = 'u8[4096]{0}', space=vmem, size = 0x1000, scoped, tag = 'output window, operand 0, single buffered']
    #allocation3 [shape = 's32[1]{0}', space=sflag, size = 0x4, scoped, tag = 'scoped memory for tpu_custom_call.1']
    %9 = vsyncpa [#allocation3], 0
    // Predicated region
    $region2: #{tpu_custom_call.1} parent=1 // pred_check
      _
    $region3: #{tpu_custom_call.1} parent=1 // pred_check_branch
      %11 = sbr.rel (0) target = $region5
    $region4: #{tpu_custom_call.1} parent=1 // pred_region
      _
    $region5: #{tpu_custom_call.1} parent=1 // pred_fallthru
      _
    // Predicated region
    $region6: #{tpu_custom_call.1} parent=1 // pred_check
      _
    $region7: #{tpu_custom_call.1} parent=1 // pred_check_branch
      %13 = sbr.rel (0) target = $region9
    $region8: #{tpu_custom_call.1} parent=1 // pred_region
      _
    $region9: #{tpu_custom_call.1} parent=1 // pred_fallthru
      _
    // Predicated region
    $region10: #{tpu_custom_call.1} parent=1 // pred_check
      _
    $region11: #{tpu_custom_call.1} parent=1 // pred_check_branch
      %15 = sbr.rel (0) target = $region13
    $region12: #{tpu_custom_call.1} parent=1 // pred_region
      _
    $region13: #{tpu_custom_call.1} parent=1 // pred_fallthru
      _
    // Predicated region
    $region14: #{tpu_custom_call.1} parent=1 // pred_check
      _
    $region15: #{tpu_custom_call.1} parent=1 // pred_check_branch
      %17 = sbr.rel (0) target = $region17
    $region16: #{tpu_custom_call.1} parent=1 // pred_region
      _
    $region17: #{tpu_custom_call.1} parent=1 // pred_fallthru
      _
    %v18 = vld [vmem:[%s0] sm:$0xf]
    %v19 = vld [vmem:[%s0 + $0x4] sm:$0xf]
    %v20 = vld [vmem:[%s0 + $0x8] sm:$0x1]
    %v21 = vld [vmem:[%s0 + $0xc] sm:$0xf]
    %v22 = vld [vmem:[%s0 + $0x10] sm:$0xf]
    %v23 = vld [vmem:[%s0 + $0x14] sm:$0x1]
    %v24 = vld [vmem:[%s0 + $0x18] sm:$0xf]
    %v25 = vld [vmem:[%s0 + $0x1c] sm:$0xf]
    %v26 = vld [vmem:[%s0 + $0x20] sm:$0x1]
    %v27 = vld [vmem:[%s0 + $0x24] sm:$0xf]
    %v28 = vld [vmem:[%s0 + $0x28] sm:$0xf]
    %v29 = vld [vmem:[%s0 + $0x2c] sm:$0x1]
    %v30 = vld [vmem:[%s0 + $0x30] sm:$0xf]
    %v31 = vld [vmem:[%s0 + $0x34] sm:$0xf]
    %v32 = vld [vmem:[%s0 + $0x38] sm:$0x1]
    %v33 = vld [vmem:[%s0 + $0x3c] sm:$0xf]
    %v34 = vld [vmem:[%s0 + $0x40] sm:$0xf]
    %v35 = vld [vmem:[%s0 + $0x44] sm:$0x1]
    %v36 = vld [vmem:[%s0 + $0x48] sm:$0xf]
    %v37 = vld [vmem:[%s0 + $0x4c] sm:$0xf]
    %v38 = vld [vmem:[%s0 + $0x50] sm:$0x1]
    %v39 = vld [vmem:[%s0 + $0x54] sm:$0xf]
    %v40 = vld [vmem:[%s0 + $0x58] sm:$0xf]
    %v41 = vld [vmem:[%s0 + $0x5c] sm:$0x1]
    %v42 = vld [vmem:[%s0 + $0x60] sm:$0xf]
    %v43 = vld [vmem:[%s0 + $0x64] sm:$0xf]
    %v44 = vld [vmem:[%s0 + $0x68] sm:$0x1]
    %v45 = vld [vmem:[%s0 + $0x6c] sm:$0xf]
    %v46 = vld [vmem:[%s0 + $0x70] sm:$0xf]
    %v47 = vld [vmem:[%s0 + $0x74] sm:$0x1]
    %v48 = vld [vmem:[%s0 + $0x78] sm:$0xf]
    %v49 = vld [vmem:[%s0 + $0x7c] sm:$0xf]
    %v50 = vld [vmem:[%s0 + $0x80] sm:$0x1]
    %v51 = vld [vmem:[%s0 + $0x84] sm:$0xf]
    %v52 = vld [vmem:[%s0 + $0x88] sm:$0xf]
    %v53 = vld [vmem:[%s0 + $0x8c] sm:$0x1]
    %v54 = vld [vmem:[%s0 + $0x90] sm:$0xf]
    %v55 = vld [vmem:[%s0 + $0x94] sm:$0xf]
    %v56 = vld [vmem:[%s0 + $0x98] sm:$0x1]
    %v57 = vld [vmem:[%s0 + $0x9c] sm:$0xf]
    %v58 = vld [vmem:[%s0 + $0xa0] sm:$0xf]
    %v59 = vld [vmem:[%s0 + $0xa4] sm:$0x1]
    %v60 = vld [vmem:[%s0 + $0xa8] sm:$0xf]
    %v61 = vld [vmem:[%s0 + $0xac] sm:$0xf]
    %v62 = vld [vmem:[%s0 + $0xb0] sm:$0x1]
    %v63 = vld [vmem:[%s0 + $0xb4] sm:$0xf]
    %v64 = vld [vmem:[%s0 + $0xb8] sm:$0xf]
    %v65 = vld [vmem:[%s0 + $0xbc] sm:$0x1]
    %v66 = vld [vmem:[%s0 + $0xc0] sm:$0xf]
    %v67 = vld [vmem:[%s0 + $0xc4] sm:$0xf]
    %v68 = vld [vmem:[%s0 + $0xc8] sm:$0x1]
    %v69 = vld [vmem:[%s0 + $0xcc] sm:$0xf]
    %v70 = vld [vmem:[%s0 + $0xd0] sm:$0xf]
    %v71 = vld [vmem:[%s0 + $0xd4] sm:$0x1]
    %v72 = vld [vmem:[%s0 + $0xd8] sm:$0xf]
    %v73 = vld [vmem:[%s0 + $0xdc] sm:$0xf]
    %v74 = vld [vmem:[%s0 + $0xe0] sm:$0x1]
    %v75 = vld [vmem:[%s0 + $0xe4] sm:$0xf]
    %v76 = vld [vmem:[%s0 + $0xe8] sm:$0xf]
    %v77 = vld [vmem:[%s0 + $0xec] sm:$0x1]
    %v78 = vld [vmem:[%s0 + $0xf0] sm:$0xf]
    %v79 = vld [vmem:[%s0 + $0xf4] sm:$0xf]
    %v80 = vld [vmem:[%s0 + $0xf8] sm:$0x1]
    %v81 = vld [vmem:[%s0 + $0xfc] sm:$0xf]
    %v82 = vld [vmem:[%s0 + $0x100] sm:$0xf]
    %v83 = vld [vmem:[%s0 + $0x104] sm:$0x1]
    %v84 = vld [vmem:[%s0 + $0x108] sm:$0xf]
    %v85 = vld [vmem:[%s0 + $0x10c] sm:$0xf]
    %v86 = vld [vmem:[%s0 + $0x110] sm:$0x1]
    %v87 = vld [vmem:[%s0 + $0x114] sm:$0xf]
    %v88 = vld [vmem:[%s0 + $0x118] sm:$0xf]
    %v89 = vld [vmem:[%s0 + $0x11c] sm:$0x1]
    %v90 = vld [vmem:[%s0 + $0x120] sm:$0xf]
    %v91 = vld [vmem:[%s0 + $0x124] sm:$0xf]
    %v92 = vld [vmem:[%s0 + $0x128] sm:$0x1]
    %v93 = vld [vmem:[%s0 + $0x12c] sm:$0xf]
    %v94 = vld [vmem:[%s0 + $0x130] sm:$0xf]
    %v95 = vld [vmem:[%s0 + $0x134] sm:$0x1]
    %v96 = vld [vmem:[%s0 + $0x138] sm:$0xf]
    %v97 = vld [vmem:[%s0 + $0x13c] sm:$0xf]
    %v98 = vld [vmem:[%s0 + $0x140] sm:$0x1]
    %v99 = vld [vmem:[%s0 + $0x144] sm:$0xf]
    %v100 = vld [vmem:[%s0 + $0x148] sm:$0xf]
    %v101 = vld [vmem:[%s0 + $0x14c] sm:$0x1]
    %v102 = vld [vmem:[%s0 + $0x150] sm:$0xf]
    %v103 = vld [vmem:[%s0 + $0x154] sm:$0xf]
    %v104 = vld [vmem:[%s0 + $0x158] sm:$0x1]
    %v105 = vld [vmem:[%s0 + $0x15c] sm:$0xf]
    %v106 = vld [vmem:[%s0 + $0x160] sm:$0xf]
    %v107 = vld [vmem:[%s0 + $0x164] sm:$0x1]
    %v108 = vld [vmem:[%s0 + $0x168] sm:$0xf]
    %v109 = vld [vmem:[%s0 + $0x16c] sm:$0xf]
    %v110 = vld [vmem:[%s0 + $0x170] sm:$0x1]
    %v111 = vld [vmem:[%s0 + $0x174] sm:$0xf]
    %v112 = vld [vmem:[%s0 + $0x178] sm:$0xf]
    %v113 = vld [vmem:[%s0 + $0x17c] sm:$0x1]
    %v114 = vld [vmem:[%s0 + $0x180] sm:$0xf]
    %v115 = vld [vmem:[%s0 + $0x184] sm:$0xf]
    %v116 = vld [vmem:[%s0 + $0x188] sm:$0x1]
    %v117 = vld [vmem:[%s0 + $0x18c] sm:$0xf]
    %v118 = vld [vmem:[%s0 + $0x190] sm:$0xf]
    %v119 = vld [vmem:[%s0 + $0x194] sm:$0x1]
    %v120 = vld [vmem:[%s0 + $0x198] sm:$0xf]
    %v121 = vld [vmem:[%s0 + $0x19c] sm:$0xf]
    %v122 = vld [vmem:[%s0 + $0x1a0] sm:$0x1]
    %v123 = vld [vmem:[%s0 + $0x1a4] sm:$0xf]
    %v124 = vld [vmem:[%s0 + $0x1a8] sm:$0xf]
    %v125 = vld [vmem:[%s0 + $0x1ac] sm:$0x1]
    %v126 = vld [vmem:[%s0 + $0x1b0] sm:$0xf]
    %v127 = vld [vmem:[%s0 + $0x1b4] sm:$0xf]
    %v128 = vld [vmem:[%s0 + $0x1b8] sm:$0x1]
    %v129 = vld [vmem:[%s0 + $0x1bc] sm:$0xf]
    %v130 = vld [vmem:[%s0 + $0x1c0] sm:$0xf]
    %v131 = vld [vmem:[%s0 + $0x1c4] sm:$0x1]
    %v132 = vld [vmem:[%s0 + $0x1c8] sm:$0xf]
    %v133 = vld [vmem:[%s0 + $0x1cc] sm:$0xf]
    %v134 = vld [vmem:[%s0 + $0x1d0] sm:$0x1]
    %v135 = vld [vmem:[%s0 + $0x1d4] sm:$0xf]
    %v136 = vld [vmem:[%s0 + $0x1d8] sm:$0xf]
    %v137 = vld [vmem:[%s0 + $0x1dc] sm:$0x1]
    %v138 = vld [vmem:[%s0 + $0x1e0] sm:$0xf]
    %v139 = vld [vmem:[%s0 + $0x1e4] sm:$0xf]
    %v140 = vld [vmem:[%s0 + $0x1e8] sm:$0x1]
    %v141 = vld [vmem:[%s0 + $0x1ec] sm:$0xf]
    %v142 = vld [vmem:[%s0 + $0x1f0] sm:$0xf]
    %v143 = vld [vmem:[%s0 + $0x1f4] sm:$0x1]
    %v144 = vld [vmem:[%s0 + $0x1f8] sm:$0xf]
    %v145 = vld [vmem:[%s0 + $0x1fc] sm:$0xf]
    %v146 = vld [vmem:[%s0 + $0x200] sm:$0x1]
    %v147 = vld [vmem:[%s0 + $0x204] sm:$0xf]
    %v148 = vld [vmem:[%s0 + $0x208] sm:$0xf]
    %v149 = vld [vmem:[%s0 + $0x20c] sm:$0x1]
    %v150 = vld [vmem:[%s0 + $0x210] sm:$0xf]
    %v151 = vld [vmem:[%s0 + $0x214] sm:$0xf]
    %v152 = vld [vmem:[%s0 + $0x218] sm:$0x1]
    %v153 = vld [vmem:[%s0 + $0x21c] sm:$0xf]
    %v154 = vld [vmem:[%s0 + $0x220] sm:$0xf]
    %v155 = vld [vmem:[%s0 + $0x224] sm:$0x1]
    %v156 = vld [vmem:[%s0 + $0x228] sm:$0xf]
    %v157 = vld [vmem:[%s0 + $0x22c] sm:$0xf]
    %v158 = vld [vmem:[%s0 + $0x230] sm:$0x1]
    %v159 = vld [vmem:[%s0 + $0x234] sm:$0xf]
    %v160 = vld [vmem:[%s0 + $0x238] sm:$0xf]
    %v161 = vld [vmem:[%s0 + $0x23c] sm:$0x1]
    %v162 = vld [vmem:[%s0 + $0x240] sm:$0xf]
    %v163 = vld [vmem:[%s0 + $0x244] sm:$0xf]
    %v164 = vld [vmem:[%s0 + $0x248] sm:$0x1]
    %v165 = vld [vmem:[%s0 + $0x24c] sm:$0xf]
    %v166 = vld [vmem:[%s0 + $0x250] sm:$0xf]
    %v167 = vld [vmem:[%s0 + $0x254] sm:$0x1]
    %v168 = vld [vmem:[%s0 + $0x258] sm:$0xf]
    %v169 = vld [vmem:[%s0 + $0x25c] sm:$0xf]
    %v170 = vld [vmem:[%s0 + $0x260] sm:$0x1]
    %v171 = vld [vmem:[%s0 + $0x264] sm:$0xf]
    %v172 = vld [vmem:[%s0 + $0x268] sm:$0xf]
    %v173 = vld [vmem:[%s0 + $0x26c] sm:$0x1]
    %v174 = vld [vmem:[%s0 + $0x270] sm:$0xf]
    %v175 = vld [vmem:[%s0 + $0x274] sm:$0xf]
    %v176 = vld [vmem:[%s0 + $0x278] sm:$0x1]
    %v177 = vld [vmem:[%s0 + $0x27c] sm:$0xf]
    %v178 = vld [vmem:[%s0 + $0x280] sm:$0xf]
    %v179 = vld [vmem:[%s0 + $0x284] sm:$0x1]
    %v180 = vld [vmem:[%s0 + $0x288] sm:$0xf]
    %v181 = vld [vmem:[%s0 + $0x28c] sm:$0xf]
    %v182 = vld [vmem:[%s0 + $0x290] sm:$0x1]
    %v183 = vld [vmem:[%s0 + $0x294] sm:$0xf]
    %v184 = vld [vmem:[%s0 + $0x298] sm:$0xf]
    %v185 = vld [vmem:[%s0 + $0x29c] sm:$0x1]
    %v186 = vld [vmem:[%s0 + $0x2a0] sm:$0xf]
    %v187 = vld [vmem:[%s0 + $0x2a4] sm:$0xf]
    %v188 = vld [vmem:[%s0 + $0x2a8] sm:$0x1]
    %v189 = vld [vmem:[%s0 + $0x2ac] sm:$0xf]
    %v190 = vld [vmem:[%s0 + $0x2b0] sm:$0xf]
    %v191 = vld [vmem:[%s0 + $0x2b4] sm:$0x1]
    %v192 = vld [vmem:[%s0 + $0x2b8] sm:$0xf]
    %v193 = vld [vmem:[%s0 + $0x2bc] sm:$0xf]
    %v194 = vld [vmem:[%s0 + $0x2c0] sm:$0x1]
    %v195 = vld [vmem:[%s0 + $0x2c4] sm:$0xf]
    %v196 = vld [vmem:[%s0 + $0x2c8] sm:$0xf]
    %v197 = vld [vmem:[%s0 + $0x2cc] sm:$0x1]
    %v198 = vld [vmem:[%s0 + $0x2d0] sm:$0xf]
    %v199 = vld [vmem:[%s0 + $0x2d4] sm:$0xf]
    %v200 = vld [vmem:[%s0 + $0x2d8] sm:$0x1]
    %v201 = vld [vmem:[%s0 + $0x2dc] sm:$0xf]
    %v202 = vld [vmem:[%s0 + $0x2e0] sm:$0xf]
    %v203 = vld [vmem:[%s0 + $0x2e4] sm:$0x1]
    %v204 = vld [vmem:[%s0 + $0x2e8] sm:$0xf]
    %v205 = vld [vmem:[%s0 + $0x2ec] sm:$0xf]
    %v206 = vld [vmem:[%s0 + $0x2f0] sm:$0x1]
    %v207 = vld [vmem:[%s0 + $0x2f4] sm:$0xf]
    %v208 = vld [vmem:[%s0 + $0x2f8] sm:$0xf]
    %v209 = vld [vmem:[%s0 + $0x2fc] sm:$0x1]
    %v210 = vld [vmem:[%s0 + $0x300] sm:$0xf]
    %v211 = vld [vmem:[%s0 + $0x304] sm:$0xf]
    %v212 = vld [vmem:[%s0 + $0x308] sm:$0x1]
    %v213 = vld [vmem:[%s0 + $0x30c] sm:$0xf]
    %v214 = vld [vmem:[%s0 + $0x310] sm:$0xf]
    %v215 = vld [vmem:[%s0 + $0x314] sm:$0x1]
    %v216 = vld [vmem:[%s0 + $0x318] sm:$0xf]
    %v217 = vld [vmem:[%s0 + $0x31c] sm:$0xf]
    %v218 = vld [vmem:[%s0 + $0x320] sm:$0x1]
    %v219 = vld [vmem:[%s0 + $0x324] sm:$0xf]
    %v220 = vld [vmem:[%s0 + $0x328] sm:$0xf]
    %v221 = vld [vmem:[%s0 + $0x32c] sm:$0x1]
    %v222 = vld [vmem:[%s0 + $0x330] sm:$0xf]
    %v223 = vld [vmem:[%s0 + $0x334] sm:$0xf]
    %v224 = vld [vmem:[%s0 + $0x338] sm:$0x1]
    %v225 = vld [vmem:[%s0 + $0x33c] sm:$0xf]
    %v226 = vld [vmem:[%s0 + $0x340] sm:$0xf]
    %v227 = vld [vmem:[%s0 + $0x344] sm:$0x1]
    %v228 = vld [vmem:[%s0 + $0x348] sm:$0xf]
    %v229 = vld [vmem:[%s0 + $0x34c] sm:$0xf]
    %v230 = vld [vmem:[%s0 + $0x350] sm:$0x1]
    %v231 = vld [vmem:[%s0 + $0x354] sm:$0xf]
    %v232 = vld [vmem:[%s0 + $0x358] sm:$0xf]
    %v233 = vld [vmem:[%s0 + $0x35c] sm:$0x1]
    %v234 = vld [vmem:[%s0 + $0x360] sm:$0xf]
    %v235 = vld [vmem:[%s0 + $0x364] sm:$0xf]
    %v236 = vld [vmem:[%s0 + $0x368] sm:$0x1]
    %v237 = vld [vmem:[%s0 + $0x36c] sm:$0xf]
    %v238 = vld [vmem:[%s0 + $0x370] sm:$0xf]
    %v239 = vld [vmem:[%s0 + $0x374] sm:$0x1]
    %v240 = vld [vmem:[%s0 + $0x378] sm:$0xf]
    %v241 = vld [vmem:[%s0 + $0x37c] sm:$0xf]
    %v242 = vld [vmem:[%s0 + $0x380] sm:$0x1]
    %v243 = vld [vmem:[%s0 + $0x384] sm:$0xf]
    %v244 = vld [vmem:[%s0 + $0x388] sm:$0xf]
    %v245 = vld [vmem:[%s0 + $0x38c] sm:$0x1]
    %v246 = vld [vmem:[%s0 + $0x390] sm:$0xf]
    %v247 = vld [vmem:[%s0 + $0x394] sm:$0xf]
    %v248 = vld [vmem:[%s0 + $0x398] sm:$0x1]
    %v249 = vld [vmem:[%s0 + $0x39c] sm:$0xf]
    %v250 = vld [vmem:[%s0 + $0x3a0] sm:$0xf]
    %v251 = vld [vmem:[%s0 + $0x3a4] sm:$0x1]
    %v252 = vld [vmem:[%s0 + $0x3a8] sm:$0xf]
    %v253 = vld [vmem:[%s0 + $0x3ac] sm:$0xf]
    %v254 = vld [vmem:[%s0 + $0x3b0] sm:$0x1]
    %v255 = vld [vmem:[%s0 + $0x3b4] sm:$0xf]
    %v256 = vld [vmem:[%s0 + $0x3b8] sm:$0xf]
    %v257 = vld [vmem:[%s0 + $0x3bc] sm:$0x1]
    %v258 = vld [vmem:[%s0 + $0x3c0] sm:$0xf]
    %v259 = vld [vmem:[%s0 + $0x3c4] sm:$0xf]
    %v260 = vld [vmem:[%s0 + $0x3c8] sm:$0x1]
    %v261 = vld [vmem:[%s0 + $0x3cc] sm:$0xf]
    %v262 = vld [vmem:[%s0 + $0x3d0] sm:$0xf]
    %v263 = vld [vmem:[%s0 + $0x3d4] sm:$0x1]
    %v264 = vld [vmem:[%s0 + $0x3d8] sm:$0xf]
    %v265 = vld [vmem:[%s0 + $0x3dc] sm:$0xf]
    %v266 = vld [vmem:[%s0 + $0x3e0] sm:$0x1]
    %v267 = vld [vmem:[%s0 + $0x3e4] sm:$0xf]
    %v268 = vld [vmem:[%s0 + $0x3e8] sm:$0xf]
    %v269 = vld [vmem:[%s0 + $0x3ec] sm:$0x1]
    %v270 = vld [vmem:[%s0 + $0x3f0] sm:$0xf]
    %v271 = vld [vmem:[%s0 + $0x3f4] sm:$0xf]
    %v272 = vld [vmem:[%s0 + $0x3f8] sm:$0x1]
    %v273 = vld [vmem:[%s0 + $0x3fc] sm:$0xf]
    %v274 = vld [vmem:[%s0 + $0x400] sm:$0xf]
    %v275 = vld [vmem:[%s0 + $0x404] sm:$0x1]
    %v276 = vld [vmem:[%s0 + $0x408] sm:$0xf]
    %v277 = vld [vmem:[%s0 + $0x40c] sm:$0xf]
    %v278 = vld [vmem:[%s0 + $0x410] sm:$0x1]
    %v279 = vld [vmem:[%s0 + $0x414] sm:$0xf]
    %v280 = vld [vmem:[%s0 + $0x418] sm:$0xf]
    %v281 = vld [vmem:[%s0 + $0x41c] sm:$0x1]
    %v282 = vld [vmem:[%s0 + $0x420] sm:$0xf]
    %v283 = vld [vmem:[%s0 + $0x424] sm:$0xf]
    %v284 = vld [vmem:[%s0 + $0x428] sm:$0x1]
    %v285 = vld [vmem:[%s0 + $0x42c] sm:$0xf]
    %v286 = vld [vmem:[%s0 + $0x430] sm:$0xf]
    %v287 = vld [vmem:[%s0 + $0x434] sm:$0x1]
    %v288 = vld [vmem:[%s0 + $0x438] sm:$0xf]
    %v289 = vld [vmem:[%s0 + $0x43c] sm:$0xf]
    %v290 = vld [vmem:[%s0 + $0x440] sm:$0x1]
    %v291 = vld [vmem:[%s0 + $0x444] sm:$0xf]
    %v292 = vld [vmem:[%s0 + $0x448] sm:$0xf]
    %v293 = vld [vmem:[%s0 + $0x44c] sm:$0x1]
    %v294 = vld [vmem:[%s0 + $0x450] sm:$0xf]
    %v295 = vld [vmem:[%s0 + $0x454] sm:$0xf]
    %v296 = vld [vmem:[%s0 + $0x458] sm:$0x1]
    %v297 = vld [vmem:[%s0 + $0x45c] sm:$0xf]
    %v298 = vld [vmem:[%s0 + $0x460] sm:$0xf]
    %v299 = vld [vmem:[%s0 + $0x464] sm:$0x1]
    %v300 = vld [vmem:[%s0 + $0x468] sm:$0xf]
    %v301 = vld [vmem:[%s0 + $0x46c] sm:$0xf]
    %v302 = vld [vmem:[%s0 + $0x470] sm:$0x1]
    %v303 = vld [vmem:[%s0 + $0x474] sm:$0xf]
    %v304 = vld [vmem:[%s0 + $0x478] sm:$0xf]
    %v305 = vld [vmem:[%s0 + $0x47c] sm:$0x1]
    %v306 = vld [vmem:[%s0 + $0x480] sm:$0xf]
    %v307 = vld [vmem:[%s0 + $0x484] sm:$0xf]
    %v308 = vld [vmem:[%s0 + $0x488] sm:$0x1]
    %v309 = vld [vmem:[%s0 + $0x48c] sm:$0xf]
    %v310 = vld [vmem:[%s0 + $0x490] sm:$0xf]
    %v311 = vld [vmem:[%s0 + $0x494] sm:$0x1]
    %v312 = vld [vmem:[%s0 + $0x498] sm:$0xf]
    %v313 = vld [vmem:[%s0 + $0x49c] sm:$0xf]
    %v314 = vld [vmem:[%s0 + $0x4a0] sm:$0x1]
    %v315 = vld [vmem:[%s0 + $0x4a4] sm:$0xf]
    %v316 = vld [vmem:[%s0 + $0x4a8] sm:$0xf]
    %v317 = vld [vmem:[%s0 + $0x4ac] sm:$0x1]
    %v318 = vld [vmem:[%s0 + $0x4b0] sm:$0xf]
    %v319 = vld [vmem:[%s0 + $0x4b4] sm:$0xf]
    %v320 = vld [vmem:[%s0 + $0x4b8] sm:$0x1]
    %v321 = vld [vmem:[%s0 + $0x4bc] sm:$0xf]
    %v322 = vld [vmem:[%s0 + $0x4c0] sm:$0xf]
    %v323 = vld [vmem:[%s0 + $0x4c4] sm:$0x1]
    %v324 = vld [vmem:[%s0 + $0x4c8] sm:$0xf]
    %v325 = vld [vmem:[%s0 + $0x4cc] sm:$0xf]
    %v326 = vld [vmem:[%s0 + $0x4d0] sm:$0x1]
    %v327 = vld [vmem:[%s0 + $0x4d4] sm:$0xf]
    %v328 = vld [vmem:[%s0 + $0x4d8] sm:$0xf]
    %v329 = vld [vmem:[%s0 + $0x4dc] sm:$0x1]
    %v330 = vld [vmem:[%s0 + $0x4e0] sm:$0xf]
    %v331 = vld [vmem:[%s0 + $0x4e4] sm:$0xf]
    %v332 = vld [vmem:[%s0 + $0x4e8] sm:$0x1]
    %v333 = vld [vmem:[%s0 + $0x4ec] sm:$0xf]
    %v334 = vld [vmem:[%s0 + $0x4f0] sm:$0xf]
    %v335 = vld [vmem:[%s0 + $0x4f4] sm:$0x1]
    %v336 = vld [vmem:[%s0 + $0x4f8] sm:$0xf]
    %v337 = vld [vmem:[%s0 + $0x4fc] sm:$0xf]
    %v338 = vld [vmem:[%s0 + $0x500] sm:$0x1]
    %v339 = vld [vmem:[%s0 + $0x504] sm:$0xf]
    %v340 = vld [vmem:[%s0 + $0x508] sm:$0xf]
    %v341 = vld [vmem:[%s0 + $0x50c] sm:$0x1]
    %v342 = vld [vmem:[%s0 + $0x510] sm:$0xf]
    %v343 = vld [vmem:[%s0 + $0x514] sm:$0xf]
    %v344 = vld [vmem:[%s0 + $0x518] sm:$0x1]
    %v345 = vld [vmem:[%s0 + $0x51c] sm:$0xf]
    %v346 = vld [vmem:[%s0 + $0x520] sm:$0xf]
    %v347 = vld [vmem:[%s0 + $0x524] sm:$0x1]
    %v348 = vld [vmem:[%s0 + $0x528] sm:$0xf]
    %v349 = vld [vmem:[%s0 + $0x52c] sm:$0xf]
    %v350 = vld [vmem:[%s0 + $0x530] sm:$0x1]
    %v351 = vld [vmem:[%s0 + $0x534] sm:$0xf]
    %v352 = vld [vmem:[%s0 + $0x538] sm:$0xf]
    %v353 = vld [vmem:[%s0 + $0x53c] sm:$0x1]
    %v354 = vld [vmem:[%s0 + $0x540] sm:$0xf]
    %v355 = vld [vmem:[%s0 + $0x544] sm:$0xf]
    %v356 = vld [vmem:[%s0 + $0x548] sm:$0x1]
    %v357 = vld [vmem:[%s0 + $0x54c] sm:$0xf]
    %v358 = vld [vmem:[%s0 + $0x550] sm:$0xf]
    %v359 = vld [vmem:[%s0 + $0x554] sm:$0x1]
    %v360 = vld [vmem:[%s0 + $0x558] sm:$0xf]
    %v361 = vld [vmem:[%s0 + $0x55c] sm:$0xf]
    %v362 = vld [vmem:[%s0 + $0x560] sm:$0x1]
    %v363 = vld [vmem:[%s0 + $0x564] sm:$0xf]
    %v364 = vld [vmem:[%s0 + $0x568] sm:$0xf]
    %v365 = vld [vmem:[%s0 + $0x56c] sm:$0x1]
    %v366 = vld [vmem:[%s0 + $0x570] sm:$0xf]
    %v367 = vld [vmem:[%s0 + $0x574] sm:$0xf]
    %v368 = vld [vmem:[%s0 + $0x578] sm:$0x1]
    %v369 = vld [vmem:[%s0 + $0x57c] sm:$0xf]
    %v370 = vld [vmem:[%s0 + $0x580] sm:$0xf]
    %v371 = vld [vmem:[%s0 + $0x584] sm:$0x1]
    %v372 = vld [vmem:[%s0 + $0x588] sm:$0xf]
    %v373 = vld [vmem:[%s0 + $0x58c] sm:$0xf]
    %v374 = vld [vmem:[%s0 + $0x590] sm:$0x1]
    %v375 = vld [vmem:[%s0 + $0x594] sm:$0xf]
    %v376 = vld [vmem:[%s0 + $0x598] sm:$0xf]
    %v377 = vld [vmem:[%s0 + $0x59c] sm:$0x1]
    %v378 = vld [vmem:[%s0 + $0x5a0] sm:$0xf]
    %v379 = vld [vmem:[%s0 + $0x5a4] sm:$0xf]
    %v380 = vld [vmem:[%s0 + $0x5a8] sm:$0x1]
    %v381 = vld [vmem:[%s0 + $0x5ac] sm:$0xf]
    %v382 = vld [vmem:[%s0 + $0x5b0] sm:$0xf]
    %v383 = vld [vmem:[%s0 + $0x5b4] sm:$0x1]
    %v384 = vld [vmem:[%s0 + $0x5b8] sm:$0xf]
    %v385 = vld [vmem:[%s0 + $0x5bc] sm:$0xf]
    %v386 = vld [vmem:[%s0 + $0x5c0] sm:$0x1]
    %v387 = vld [vmem:[%s0 + $0x5c4] sm:$0xf]
    %v388 = vld [vmem:[%s0 + $0x5c8] sm:$0xf]
    %v389 = vld [vmem:[%s0 + $0x5cc] sm:$0x1]
    %v390 = vld [vmem:[%s0 + $0x5d0] sm:$0xf]
    %v391 = vld [vmem:[%s0 + $0x5d4] sm:$0xf]
    %v392 = vld [vmem:[%s0 + $0x5d8] sm:$0x1]
    %v393 = vld [vmem:[%s0 + $0x5dc] sm:$0xf]
    %v394 = vld [vmem:[%s0 + $0x5e0] sm:$0xf]
    %v395 = vld [vmem:[%s0 + $0x5e4] sm:$0x1]
    %v396 = vld [vmem:[%s0 + $0x5e8] sm:$0xf]
    %v397 = vld [vmem:[%s0 + $0x5ec] sm:$0xf]
    %v398 = vld [vmem:[%s0 + $0x5f0] sm:$0x1]
    %v399 = vld [vmem:[%s0 + $0x5f4] sm:$0xf]
    %v400 = vld [vmem:[%s0 + $0x5f8] sm:$0xf]
    %v401 = vld [vmem:[%s0 + $0x5fc] sm:$0x1]
    %v402 = vld [vmem:[%s0 + $0x600] sm:$0xf]
    %v403 = vld [vmem:[%s0 + $0x604] sm:$0xf]
    %v404 = vld [vmem:[%s0 + $0x608] sm:$0x1]
    %v405 = vld [vmem:[%s0 + $0x60c] sm:$0xf]
    %v406 = vld [vmem:[%s0 + $0x610] sm:$0xf]
    %v407 = vld [vmem:[%s0 + $0x614] sm:$0x1]
    %v408 = vld [vmem:[%s0 + $0x618] sm:$0xf]
    %v409 = vld [vmem:[%s0 + $0x61c] sm:$0xf]
    %v410 = vld [vmem:[%s0 + $0x620] sm:$0x1]
    %v411 = vld [vmem:[%s0 + $0x624] sm:$0xf]
    %v412 = vld [vmem:[%s0 + $0x628] sm:$0xf]
    %v413 = vld [vmem:[%s0 + $0x62c] sm:$0x1]
    %v414 = vld [vmem:[%s0 + $0x630] sm:$0xf]
    %v415 = vld [vmem:[%s0 + $0x634] sm:$0xf]
    %v416 = vld [vmem:[%s0 + $0x638] sm:$0x1]
    %v417 = vld [vmem:[%s0 + $0x63c] sm:$0xf]
    %v418 = vld [vmem:[%s0 + $0x640] sm:$0xf]
    %v419 = vld [vmem:[%s0 + $0x644] sm:$0x1]
    %v420 = vld [vmem:[%s0 + $0x648] sm:$0xf]
    %v421 = vld [vmem:[%s0 + $0x64c] sm:$0xf]
    %v422 = vld [vmem:[%s0 + $0x650] sm:$0x1]
    %v423 = vld [vmem:[%s0 + $0x654] sm:$0xf]
    %v424 = vld [vmem:[%s0 + $0x658] sm:$0xf]
    %v425 = vld [vmem:[%s0 + $0x65c] sm:$0x1]
    %v426 = vld [vmem:[%s0 + $0x660] sm:$0xf]
    %v427 = vld [vmem:[%s0 + $0x664] sm:$0xf]
    %v428 = vld [vmem:[%s0 + $0x668] sm:$0x1]
    %v429 = vld [vmem:[%s0 + $0x66c] sm:$0xf]
    %v430 = vld [vmem:[%s0 + $0x670] sm:$0xf]
    %v431 = vld [vmem:[%s0 + $0x674] sm:$0x1]
    %v432 = vld [vmem:[%s0 + $0x678] sm:$0xf]
    %v433 = vld [vmem:[%s0 + $0x67c] sm:$0xf]
    %v434 = vld [vmem:[%s0 + $0x680] sm:$0x1]
    %v435 = vld [vmem:[%s0 + $0x684] sm:$0xf]
    %v436 = vld [vmem:[%s0 + $0x688] sm:$0xf]
    %v437 = vld [vmem:[%s0 + $0x68c] sm:$0x1]
    %v438 = vld [vmem:[%s0 + $0x690] sm:$0xf]
    %v439 = vld [vmem:[%s0 + $0x694] sm:$0xf]
    %v440 = vld [vmem:[%s0 + $0x698] sm:$0x1]
    %v441 = vld [vmem:[%s0 + $0x69c] sm:$0xf]
    %v442 = vld [vmem:[%s0 + $0x6a0] sm:$0xf]
    %v443 = vld [vmem:[%s0 + $0x6a4] sm:$0x1]
    %v444 = vld [vmem:[%s0 + $0x6a8] sm:$0xf]
    %v445 = vld [vmem:[%s0 + $0x6ac] sm:$0xf]
    %v446 = vld [vmem:[%s0 + $0x6b0] sm:$0x1]
    %v447 = vld [vmem:[%s0 + $0x6b4] sm:$0xf]
    %v448 = vld [vmem:[%s0 + $0x6b8] sm:$0xf]
    %v449 = vld [vmem:[%s0 + $0x6bc] sm:$0x1]
    %v450 = vunpack.c.l.bf16 %v18
    %v451 = vunpack.c.l.bf16 %v19
    %v452 = vunpack.c.l.bf16 %v20
    %v453 = vunpack.c.l.bf16 %v21
    %v454 = vunpack.c.l.bf16 %v22
    %v455 = vunpack.c.l.bf16 %v23
    %v456 = vunpack.c.l.bf16 %v24
    %v457 = vunpack.c.l.bf16 %v25
    %v458 = vunpack.c.l.bf16 %v26
    %v459 = vunpack.c.l.bf16 %v27
    %v460 = vunpack.c.l.bf16 %v28
    %v461 = vunpack.c.l.bf16 %v29
    %v462 = vunpack.c.l.bf16 %v30
    %v463 = vunpack.c.l.bf16 %v31
    %v464 = vunpack.c.l.bf16 %v32
    %v465 = vunpack.c.l.bf16 %v33
    %v466 = vunpack.c.l.bf16 %v34
    %v467 = vunpack.c.l.bf16 %v35
    %v468 = vunpack.c.l.bf16 %v36
    %v469 = vunpack.c.l.bf16 %v37
    %v470 = vunpack.c.l.bf16 %v38
    %v471 = vunpack.c.l.bf16 %v39
    %v472 = vunpack.c.l.bf16 %v40
    %v473 = vunpack.c.l.bf16 %v41
    %v474 = vunpack.c.l.bf16 %v42
    %v475 = vunpack.c.l.bf16 %v43
    %v476 = vunpack.c.l.bf16 %v44
    %v477 = vunpack.c.l.bf16 %v45
    %v478 = vunpack.c.l.bf16 %v46
    %v479 = vunpack.c.l.bf16 %v47
    %v480 = vunpack.c.l.bf16 %v48
    %v481 = vunpack.c.l.bf16 %v49
    %v482 = vunpack.c.l.bf16 %v50
    %v483 = vunpack.c.l.bf16 %v51
    %v484 = vunpack.c.l.bf16 %v52
    %v485 = vunpack.c.l.bf16 %v53
    %v486 = vunpack.c.l.bf16 %v54
    %v487 = vunpack.c.l.bf16 %v55
    %v488 = vunpack.c.l.bf16 %v56
    %v489 = vunpack.c.l.bf16 %v57
    %v490 = vunpack.c.l.bf16 %v58
    %v491 = vunpack.c.l.bf16 %v59
    %v492 = vunpack.c.l.bf16 %v60
    %v493 = vunpack.c.l.bf16 %v61
    %v494 = vunpack.c.l.bf16 %v62
    %v495 = vunpack.c.l.bf16 %v63
    %v496 = vunpack.c.l.bf16 %v64
    %v497 = vunpack.c.l.bf16 %v65
    %v498 = vunpack.c.l.bf16 %v66
    %v499 = vunpack.c.l.bf16 %v67
    %v500 = vunpack.c.l.bf16 %v68
    %v501 = vunpack.c.l.bf16 %v69
    %v502 = vunpack.c.l.bf16 %v70
    %v503 = vunpack.c.l.bf16 %v71
    %v504 = vunpack.c.l.bf16 %v72
    %v505 = vunpack.c.l.bf16 %v73
    %v506 = vunpack.c.l.bf16 %v74
    %v507 = vunpack.c.l.bf16 %v75
    %v508 = vunpack.c.l.bf16 %v76
    %v509 = vunpack.c.l.bf16 %v77
    %v510 = vunpack.c.l.bf16 %v78
    %v511 = vunpack.c.l.bf16 %v79
    %v512 = vunpack.c.l.bf16 %v80
    %v513 = vunpack.c.l.bf16 %v81
    %v514 = vunpack.c.l.bf16 %v82
    %v515 = vunpack.c.l.bf16 %v83
    %v516 = vunpack.c.l.bf16 %v84
    %v517 = vunpack.c.l.bf16 %v85
    %v518 = vunpack.c.l.bf16 %v86
    %v519 = vunpack.c.l.bf16 %v87
    %v520 = vunpack.c.l.bf16 %v88
    %v521 = vunpack.c.l.bf16 %v89
    %v522 = vunpack.c.l.bf16 %v90
    %v523 = vunpack.c.l.bf16 %v91
    %v524 = vunpack.c.l.bf16 %v92
    %v525 = vunpack.c.l.bf16 %v93
    %v526 = vunpack.c.l.bf16 %v94
    %v527 = vunpack.c.l.bf16 %v95
    %v528 = vunpack.c.l.bf16 %v96
    %v529 = vunpack.c.l.bf16 %v97
    %v530 = vunpack.c.l.bf16 %v98
    %v531 = vunpack.c.l.bf16 %v99
    %v532 = vunpack.c.l.bf16 %v100
    %v533 = vunpack.c.l.bf16 %v101
    %v534 = vunpack.c.l.bf16 %v102
    %v535 = vunpack.c.l.bf16 %v103
    %v536 = vunpack.c.l.bf16 %v104
    %v537 = vunpack.c.l.bf16 %v105
    %v538 = vunpack.c.l.bf16 %v106
    %v539 = vunpack.c.l.bf16 %v107
    %v540 = vunpack.c.l.bf16 %v108
    %v541 = vunpack.c.l.bf16 %v109
    %v542 = vunpack.c.l.bf16 %v110
    %v543 = vunpack.c.l.bf16 %v111
    %v544 = vunpack.c.l.bf16 %v112
    %v545 = vunpack.c.l.bf16 %v113
    %v546 = vunpack.c.l.bf16 %v114
    %v547 = vunpack.c.l.bf16 %v115
    %v548 = vunpack.c.l.bf16 %v116
    %v549 = vunpack.c.l.bf16 %v117
    %v550 = vunpack.c.l.bf16 %v118
    %v551 = vunpack.c.l.bf16 %v119
    %v552 = vunpack.c.l.bf16 %v120
    %v553 = vunpack.c.l.bf16 %v121
    %v554 = vunpack.c.l.bf16 %v122
    %v555 = vunpack.c.l.bf16 %v123
    %v556 = vunpack.c.l.bf16 %v124
    %v557 = vunpack.c.l.bf16 %v125
    %v558 = vunpack.c.l.bf16 %v126
    %v559 = vunpack.c.l.bf16 %v127
    %v560 = vunpack.c.l.bf16 %v128
    %v561 = vunpack.c.l.bf16 %v129
    %v562 = vunpack.c.l.bf16 %v130
    %v563 = vunpack.c.l.bf16 %v131
    %v564 = vunpack.c.l.bf16 %v132
    %v565 = vunpack.c.l.bf16 %v133
    %v566 = vunpack.c.l.bf16 %v134
    %v567 = vunpack.c.l.bf16 %v135
    %v568 = vunpack.c.l.bf16 %v136
    %v569 = vunpack.c.l.bf16 %v137
    %v570 = vunpack.c.l.bf16 %v138
    %v571 = vunpack.c.l.bf16 %v139
    %v572 = vunpack.c.l.bf16 %v140
    %v573 = vunpack.c.l.bf16 %v141
    %v574 = vunpack.c.l.bf16 %v142
    %v575 = vunpack.c.l.bf16 %v143
    %v576 = vunpack.c.l.bf16 %v144
    %v577 = vunpack.c.l.bf16 %v145
    %v578 = vunpack.c.l.bf16 %v146
    %v579 = vunpack.c.l.bf16 %v147
    %v580 = vunpack.c.l.bf16 %v148
    %v581 = vunpack.c.l.bf16 %v149
    %v582 = vunpack.c.l.bf16 %v150
    %v583 = vunpack.c.l.bf16 %v151
    %v584 = vunpack.c.l.bf16 %v152
    %v585 = vunpack.c.l.bf16 %v153
    %v586 = vunpack.c.l.bf16 %v154
    %v587 = vunpack.c.l.bf16 %v155
    %v588 = vunpack.c.l.bf16 %v156
    %v589 = vunpack.c.l.bf16 %v157
    %v590 = vunpack.c.l.bf16 %v158
    %v591 = vunpack.c.l.bf16 %v159
    %v592 = vunpack.c.l.bf16 %v160
    %v593 = vunpack.c.l.bf16 %v161
    %v594 = vunpack.c.l.bf16 %v162
    %v595 = vunpack.c.l.bf16 %v163
    %v596 = vunpack.c.l.bf16 %v164
    %v597 = vunpack.c.l.bf16 %v165
    %v598 = vunpack.c.l.bf16 %v166
    %v599 = vunpack.c.l.bf16 %v167
    %v600 = vunpack.c.l.bf16 %v168
    %v601 = vunpack.c.l.bf16 %v169
    %v602 = vunpack.c.l.bf16 %v170
    %v603 = vunpack.c.l.bf16 %v171
    %v604 = vunpack.c.l.bf16 %v172
    %v605 = vunpack.c.l.bf16 %v173
    %v606 = vunpack.c.l.bf16 %v174
    %v607 = vunpack.c.l.bf16 %v175
    %v608 = vunpack.c.l.bf16 %v176
    %v609 = vunpack.c.l.bf16 %v177
    %v610 = vunpack.c.l.bf16 %v178
    %v611 = vunpack.c.l.bf16 %v179
    %v612 = vunpack.c.l.bf16 %v180
    %v613 = vunpack.c.l.bf16 %v181
    %v614 = vunpack.c.l.bf16 %v182
    %v615 = vunpack.c.l.bf16 %v183
    %v616 = vunpack.c.l.bf16 %v184
    %v617 = vunpack.c.l.bf16 %v185
    %v618 = vunpack.c.l.bf16 %v186
    %v619 = vunpack.c.l.bf16 %v187
    %v620 = vunpack.c.l.bf16 %v188
    %v621 = vunpack.c.l.bf16 %v189
    %v622 = vunpack.c.l.bf16 %v190
    %v623 = vunpack.c.l.bf16 %v191
    %v624 = vunpack.c.l.bf16 %v192
    %v625 = vunpack.c.l.bf16 %v193
    %v626 = vunpack.c.l.bf16 %v194
    %v627 = vunpack.c.l.bf16 %v195
    %v628 = vunpack.c.l.bf16 %v196
    %v629 = vunpack.c.l.bf16 %v197
    %v630 = vunpack.c.l.bf16 %v198
    %v631 = vunpack.c.l.bf16 %v199
    %v632 = vunpack.c.l.bf16 %v200
    %v633 = vunpack.c.l.bf16 %v201
    %v634 = vunpack.c.l.bf16 %v202
    %v635 = vunpack.c.l.bf16 %v203
    %v636 = vunpack.c.l.bf16 %v204
    %v637 = vunpack.c.l.bf16 %v205
    %v638 = vunpack.c.l.bf16 %v206
    %v639 = vunpack.c.l.bf16 %v207
    %v640 = vunpack.c.l.bf16 %v208
    %v641 = vunpack.c.l.bf16 %v209
    %v642 = vunpack.c.l.bf16 %v210
    %v643 = vunpack.c.l.bf16 %v211
    %v644 = vunpack.c.l.bf16 %v212
    %v645 = vunpack.c.l.bf16 %v213
    %v646 = vunpack.c.l.bf16 %v214
    %v647 = vunpack.c.l.bf16 %v215
    %v648 = vunpack.c.l.bf16 %v216
    %v649 = vunpack.c.l.bf16 %v217
    %v650 = vunpack.c.l.bf16 %v218
    %v651 = vunpack.c.l.bf16 %v219
    %v652 = vunpack.c.l.bf16 %v220
    %v653 = vunpack.c.l.bf16 %v221
    %v654 = vunpack.c.l.bf16 %v222
    %v655 = vunpack.c.l.bf16 %v223
    %v656 = vunpack.c.l.bf16 %v224
    %v657 = vunpack.c.l.bf16 %v225
    %v658 = vunpack.c.l.bf16 %v226
    %v659 = vunpack.c.l.bf16 %v227
    %v660 = vunpack.c.l.bf16 %v228
    %v661 = vunpack.c.l.bf16 %v229
    %v662 = vunpack.c.l.bf16 %v230
    %v663 = vunpack.c.l.bf16 %v231
    %v664 = vunpack.c.l.bf16 %v232
    %v665 = vunpack.c.l.bf16 %v233
    %v666 = vunpack.c.l.bf16 %v234
    %v667 = vunpack.c.l.bf16 %v235
    %v668 = vunpack.c.l.bf16 %v236
    %v669 = vunpack.c.l.bf16 %v237
    %v670 = vunpack.c.l.bf16 %v238
    %v671 = vunpack.c.l.bf16 %v239
    %v672 = vunpack.c.l.bf16 %v240
    %v673 = vunpack.c.l.bf16 %v241
    %v674 = vunpack.c.l.bf16 %v242
    %v675 = vunpack.c.l.bf16 %v243
    %v676 = vunpack.c.l.bf16 %v244
    %v677 = vunpack.c.l.bf16 %v245
    %v678 = vunpack.c.l.bf16 %v246
    %v679 = vunpack.c.l.bf16 %v247
    %v680 = vunpack.c.l.bf16 %v248
    %v681 = vunpack.c.l.bf16 %v249
    %v682 = vunpack.c.l.bf16 %v250
    %v683 = vunpack.c.l.bf16 %v251
    %v684 = vunpack.c.l.bf16 %v252
    %v685 = vunpack.c.l.bf16 %v253
    %v686 = vunpack.c.l.bf16 %v254
    %v687 = vunpack.c.l.bf16 %v255
    %v688 = vunpack.c.l.bf16 %v256
    %v689 = vunpack.c.l.bf16 %v257
    %v690 = vunpack.c.l.bf16 %v258
    %v691 = vunpack.c.l.bf16 %v259
    %v692 = vunpack.c.l.bf16 %v260
    %v693 = vunpack.c.l.bf16 %v261
    %v694 = vunpack.c.l.bf16 %v262
    %v695 = vunpack.c.l.bf16 %v263
    %v696 = vunpack.c.l.bf16 %v264
    %v697 = vunpack.c.l.bf16 %v265
    %v698 = vunpack.c.l.bf16 %v266
    %v699 = vunpack.c.l.bf16 %v267
    %v700 = vunpack.c.l.bf16 %v268
    %v701 = vunpack.c.l.bf16 %v269
    %v702 = vunpack.c.l.bf16 %v270
    %v703 = vunpack.c.l.bf16 %v271
    %v704 = vunpack.c.l.bf16 %v272
    %v705 = vunpack.c.l.bf16 %v273
    %v706 = vunpack.c.l.bf16 %v274
    %v707 = vunpack.c.l.bf16 %v275
    %v708 = vunpack.c.l.bf16 %v276
    %v709 = vunpack.c.l.bf16 %v277
    %v710 = vunpack.c.l.bf16 %v278
    %v711 = vunpack.c.l.bf16 %v279
    %v712 = vunpack.c.l.bf16 %v280
    %v713 = vunpack.c.l.bf16 %v281
    %v714 = vunpack.c.l.bf16 %v282
    %v715 = vunpack.c.l.bf16 %v283
    %v716 = vunpack.c.l.bf16 %v284
    %v717 = vunpack.c.l.bf16 %v285
    %v718 = vunpack.c.l.bf16 %v286
    %v719 = vunpack.c.l.bf16 %v287
    %v720 = vunpack.c.l.bf16 %v288
    %v721 = vunpack.c.l.bf16 %v289
    %v722 = vunpack.c.l.bf16 %v290
    %v723 = vunpack.c.l.bf16 %v291
    %v724 = vunpack.c.l.bf16 %v292
    %v725 = vunpack.c.l.bf16 %v293
    %v726 = vunpack.c.l.bf16 %v294
    %v727 = vunpack.c.l.bf16 %v295
    %v728 = vunpack.c.l.bf16 %v296
    %v729 = vunpack.c.l.bf16 %v297
    %v730 = vunpack.c.l.bf16 %v298
    %v731 = vunpack.c.l.bf16 %v299
    %v732 = vunpack.c.l.bf16 %v300
    %v733 = vunpack.c.l.bf16 %v301
    %v734 = vunpack.c.l.bf16 %v302
    %v735 = vunpack.c.l.bf16 %v303
    %v736 = vunpack.c.l.bf16 %v304
    %v737 = vunpack.c.l.bf16 %v305
    %v738 = vunpack.c.l.bf16 %v306
    %v739 = vunpack.c.l.bf16 %v307
    %v740 = vunpack.c.l.bf16 %v308
    %v741 = vunpack.c.l.bf16 %v309
    %v742 = vunpack.c.l.bf16 %v310
    %v743 = vunpack.c.l.bf16 %v311
    %v744 = vunpack.c.l.bf16 %v312
    %v745 = vunpack.c.l.bf16 %v313
    %v746 = vunpack.c.l.bf16 %v314
    %v747 = vunpack.c.l.bf16 %v315
    %v748 = vunpack.c.l.bf16 %v316
    %v749 = vunpack.c.l.bf16 %v317
    %v750 = vunpack.c.l.bf16 %v318
    %v751 = vunpack.c.l.bf16 %v319
    %v752 = vunpack.c.l.bf16 %v320
    %v753 = vunpack.c.l.bf16 %v321
    %v754 = vunpack.c.l.bf16 %v322
    %v755 = vunpack.c.l.bf16 %v323
    %v756 = vunpack.c.l.bf16 %v324
    %v757 = vunpack.c.l.bf16 %v325
    %v758 = vunpack.c.l.bf16 %v326
    %v759 = vunpack.c.l.bf16 %v327
    %v760 = vunpack.c.l.bf16 %v328
    %v761 = vunpack.c.l.bf16 %v329
    %v762 = vunpack.c.l.bf16 %v330
    %v763 = vunpack.c.l.bf16 %v331
    %v764 = vunpack.c.l.bf16 %v332
    %v765 = vunpack.c.l.bf16 %v333
    %v766 = vunpack.c.l.bf16 %v334
    %v767 = vunpack.c.l.bf16 %v335
    %v768 = vunpack.c.l.bf16 %v336
    %v769 = vunpack.c.l.bf16 %v337
    %v770 = vunpack.c.l.bf16 %v338
    %v771 = vunpack.c.l.bf16 %v339
    %v772 = vunpack.c.l.bf16 %v340
    %v773 = vunpack.c.l.bf16 %v341
    %v774 = vunpack.c.l.bf16 %v342
    %v775 = vunpack.c.l.bf16 %v343
    %v776 = vunpack.c.l.bf16 %v344
    %v777 = vunpack.c.l.bf16 %v345
    %v778 = vunpack.c.l.bf16 %v346
    %v779 = vunpack.c.l.bf16 %v347
    %v780 = vunpack.c.l.bf16 %v348
    %v781 = vunpack.c.l.bf16 %v349
    %v782 = vunpack.c.l.bf16 %v350
    %v783 = vunpack.c.l.bf16 %v351
    %v784 = vunpack.c.l.bf16 %v352
    %v785 = vunpack.c.l.bf16 %v353
    %v786 = vunpack.c.l.bf16 %v354
    %v787 = vunpack.c.l.bf16 %v355
    %v788 = vunpack.c.l.bf16 %v356
    %v789 = vunpack.c.l.bf16 %v357
    %v790 = vunpack.c.l.bf16 %v358
    %v791 = vunpack.c.l.bf16 %v359
    %v792 = vunpack.c.l.bf16 %v360
    %v793 = vunpack.c.l.bf16 %v361
    %v794 = vunpack.c.l.bf16 %v362
    %v795 = vunpack.c.l.bf16 %v363
    %v796 = vunpack.c.l.bf16 %v364
    %v797 = vunpack.c.l.bf16 %v365
    %v798 = vunpack.c.l.bf16 %v366
    %v799 = vunpack.c.l.bf16 %v367
    %v800 = vunpack.c.l.bf16 %v368
    %v801 = vunpack.c.l.bf16 %v369
    %v802 = vunpack.c.l.bf16 %v370
    %v803 = vunpack.c.l.bf16 %v371
    %v804 = vunpack.c.l.bf16 %v372
    %v805 = vunpack.c.l.bf16 %v373
    %v806 = vunpack.c.l.bf16 %v374
    %v807 = vunpack.c.l.bf16 %v375
    %v808 = vunpack.c.l.bf16 %v376
    %v809 = vunpack.c.l.bf16 %v377
    %v810 = vunpack.c.l.bf16 %v378
    %v811 = vunpack.c.l.bf16 %v379
    %v812 = vunpack.c.l.bf16 %v380
    %v813 = vunpack.c.l.bf16 %v381
    %v814 = vunpack.c.l.bf16 %v382
    %v815 = vunpack.c.l.bf16 %v383
    %v816 = vunpack.c.l.bf16 %v384
    %v817 = vunpack.c.l.bf16 %v385
    %v818 = vunpack.c.l.bf16 %v386
    %v819 = vunpack.c.l.bf16 %v387
    %v820 = vunpack.c.l.bf16 %v388
    %v821 = vunpack.c.l.bf16 %v389
    %v822 = vunpack.c.l.bf16 %v390
    %v823 = vunpack.c.l.bf16 %v391
    %v824 = vunpack.c.l.bf16 %v392
    %v825 = vunpack.c.l.bf16 %v393
    %v826 = vunpack.c.l.bf16 %v394
    %v827 = vunpack.c.l.bf16 %v395
    %v828 = vunpack.c.l.bf16 %v396
    %v829 = vunpack.c.l.bf16 %v397
    %v830 = vunpack.c.l.bf16 %v398
    %v831 = vunpack.c.l.bf16 %v399
    %v832 = vunpack.c.l.bf16 %v400
    %v833 = vunpack.c.l.bf16 %v401
    %v834 = vunpack.c.l.bf16 %v402
    %v835 = vunpack.c.l.bf16 %v403
    %v836 = vunpack.c.l.bf16 %v404
    %v837 = vunpack.c.l.bf16 %v405
    %v838 = vunpack.c.l.bf16 %v406
    %v839 = vunpack.c.l.bf16 %v407
    %v840 = vunpack.c.l.bf16 %v408
    %v841 = vunpack.c.l.bf16 %v409
    %v842 = vunpack.c.l.bf16 %v410
    %v843 = vunpack.c.l.bf16 %v411
    %v844 = vunpack.c.l.bf16 %v412
    %v845 = vunpack.c.l.bf16 %v413
    %v846 = vunpack.c.l.bf16 %v414
    %v847 = vunpack.c.l.bf16 %v415
    %v848 = vunpack.c.l.bf16 %v416
    %v849 = vunpack.c.l.bf16 %v417
    %v850 = vunpack.c.l.bf16 %v418
    %v851 = vunpack.c.l.bf16 %v419
    %v852 = vunpack.c.l.bf16 %v420
    %v853 = vunpack.c.l.bf16 %v421
    %v854 = vunpack.c.l.bf16 %v422
    %v855 = vunpack.c.l.bf16 %v423
    %v856 = vunpack.c.l.bf16 %v424
    %v857 = vunpack.c.l.bf16 %v425
    %v858 = vunpack.c.l.bf16 %v426
    %v859 = vunpack.c.l.bf16 %v427
    %v860 = vunpack.c.l.bf16 %v428
    %v861 = vunpack.c.l.bf16 %v429
    %v862 = vunpack.c.l.bf16 %v430
    %v863 = vunpack.c.l.bf16 %v431
    %v864 = vunpack.c.l.bf16 %v432
    %v865 = vunpack.c.l.bf16 %v433
    %v866 = vunpack.c.l.bf16 %v434
    %v867 = vunpack.c.l.bf16 %v435
    %v868 = vunpack.c.l.bf16 %v436
    %v869 = vunpack.c.l.bf16 %v437
    %v870 = vunpack.c.l.bf16 %v438
    %v871 = vunpack.c.l.bf16 %v439
    %v872 = vunpack.c.l.bf16 %v440
    %v873 = vunpack.c.l.bf16 %v441
    %v874 = vunpack.c.l.bf16 %v442
    %v875 = vunpack.c.l.bf16 %v443
    %v876 = vunpack.c.l.bf16 %v444
    %v877 = vunpack.c.l.bf16 %v445
    %v878 = vunpack.c.l.bf16 %v446
    %v879 = vunpack.c.l.bf16 %v447
    %v880 = vunpack.c.l.bf16 %v448
    %v881 = vunpack.c.l.bf16 %v449
    %vm1266 = vcmask 1046528
    %v1267 = vrot.slane %v450, 1
    %v1268 = vrot.slane %v451, 1
    %v1269 = vsel %vm1266, %v1267, %v1268
    %v1270 = vrot.slane %v452, 1
    %v1271 = vsel %vm1266, %v1268, %v1270
    %v1272 = vrot.slane %v453, 1
    %v1273 = vrot.slane %v454, 1
    %v1274 = vsel %vm1266, %v1272, %v1273
    %v1275 = vrot.slane %v455, 1
    %v1276 = vsel %vm1266, %v1273, %v1275
    %v1277 = vrot.slane %v456, 1
    %v1278 = vrot.slane %v457, 1
    %v1279 = vsel %vm1266, %v1277, %v1278
    %v1280 = vrot.slane %v458, 1
    %v1281 = vsel %vm1266, %v1278, %v1280
    %v1282 = vrot.slane %v459, 1
    %v1283 = vrot.slane %v460, 1
    %v1284 = vsel %vm1266, %v1282, %v1283
    %v1285 = vrot.slane %v461, 1
    %v1286 = vsel %vm1266, %v1283, %v1285
    %v1287 = vrot.slane %v462, 1
    %v1288 = vrot.slane %v463, 1
    %v1289 = vsel %vm1266, %v1287, %v1288
    %v1290 = vrot.slane %v464, 1
    %v1291 = vsel %vm1266, %v1288, %v1290
    %v1292 = vrot.slane %v465, 1
    %v1293 = vrot.slane %v466, 1
    %v1294 = vsel %vm1266, %v1292, %v1293
    %v1295 = vrot.slane %v467, 1
    %v1296 = vsel %vm1266, %v1293, %v1295
    %v1297 = vrot.slane %v468, 1
    %v1298 = vrot.slane %v469, 1
    %v1299 = vsel %vm1266, %v1297, %v1298
    %v1300 = vrot.slane %v470, 1
    %v1301 = vsel %vm1266, %v1298, %v1300
    %v1302 = vrot.slane %v471, 1
    %v1303 = vrot.slane %v472, 1
    %v1304 = vsel %vm1266, %v1302, %v1303
    %v1305 = vrot.slane %v473, 1
    %v1306 = vsel %vm1266, %v1303, %v1305
    %v1307 = vrot.slane %v474, 1
    %v1308 = vrot.slane %v475, 1
    %v1309 = vsel %vm1266, %v1307, %v1308
    %v1310 = vrot.slane %v476, 1
    %v1311 = vsel %vm1266, %v1308, %v1310
    %v1312 = vrot.slane %v477, 1
    %v1313 = vrot.slane %v478, 1
    %v1314 = vsel %vm1266, %v1312, %v1313
    %v1315 = vrot.slane %v479, 1
    %v1316 = vsel %vm1266, %v1313, %v1315
    %v1317 = vrot.slane %v480, 1
    %v1318 = vrot.slane %v481, 1
    %v1319 = vsel %vm1266, %v1317, %v1318
    %v1320 = vrot.slane %v482, 1
    %v1321 = vsel %vm1266, %v1318, %v1320
    %v1322 = vrot.slane %v483, 1
    %v1323 = vrot.slane %v484, 1
    %v1324 = vsel %vm1266, %v1322, %v1323
    %v1325 = vrot.slane %v485, 1
    %v1326 = vsel %vm1266, %v1323, %v1325
    %v1327 = vrot.slane %v486, 1
    %v1328 = vrot.slane %v487, 1
    %v1329 = vsel %vm1266, %v1327, %v1328
    %v1330 = vrot.slane %v488, 1
    %v1331 = vsel %vm1266, %v1328, %v1330
    %v1332 = vrot.slane %v489, 1
    %v1333 = vrot.slane %v490, 1
    %v1334 = vsel %vm1266, %v1332, %v1333
    %v1335 = vrot.slane %v491, 1
    %v1336 = vsel %vm1266, %v1333, %v1335
    %v1337 = vrot.slane %v492, 1
    %v1338 = vrot.slane %v493, 1
    %v1339 = vsel %vm1266, %v1337, %v1338
    %v1340 = vrot.slane %v494, 1
    %v1341 = vsel %vm1266, %v1338, %v1340
    %v1342 = vrot.slane %v495, 1
    %v1343 = vrot.slane %v496, 1
    %v1344 = vsel %vm1266, %v1342, %v1343
    %v1345 = vrot.slane %v497, 1
    %v1346 = vsel %vm1266, %v1343, %v1345
    %v1347 = vrot.slane %v504, 1
    %v1348 = vrot.slane %v505, 1
    %v1349 = vsel %vm1266, %v1347, %v1348
    %v1350 = vrot.slane %v506, 1
    %v1351 = vsel %vm1266, %v1348, %v1350
    %v1352 = vrot.slane %v507, 1
    %v1353 = vrot.slane %v508, 1
    %v1354 = vsel %vm1266, %v1352, %v1353
    %v1355 = vrot.slane %v509, 1
    %v1356 = vsel %vm1266, %v1353, %v1355
    %v1357 = vrot.slane %v510, 1
    %v1358 = vrot.slane %v511, 1
    %v1359 = vsel %vm1266, %v1357, %v1358
    %v1360 = vrot.slane %v512, 1
    %v1361 = vsel %vm1266, %v1358, %v1360
    %v1362 = vrot.slane %v513, 1
    %v1363 = vrot.slane %v514, 1
    %v1364 = vsel %vm1266, %v1362, %v1363
    %v1365 = vrot.slane %v515, 1
    %v1366 = vsel %vm1266, %v1363, %v1365
    %v1367 = vrot.slane %v516, 1
    %v1368 = vrot.slane %v517, 1
    %v1369 = vsel %vm1266, %v1367, %v1368
    %v1370 = vrot.slane %v518, 1
    %v1371 = vsel %vm1266, %v1368, %v1370
    %v1372 = vrot.slane %v519, 1
    %v1373 = vrot.slane %v520, 1
    %v1374 = vsel %vm1266, %v1372, %v1373
    %v1375 = vrot.slane %v521, 1
    %v1376 = vsel %vm1266, %v1373, %v1375
    %v1377 = vrot.slane %v522, 1
    %v1378 = vrot.slane %v523, 1
    %v1379 = vsel %vm1266, %v1377, %v1378
    %v1380 = vrot.slane %v524, 1
    %v1381 = vsel %vm1266, %v1378, %v1380
    %v1382 = vrot.slane %v525, 1
    %v1383 = vrot.slane %v526, 1
    %v1384 = vsel %vm1266, %v1382, %v1383
    %v1385 = vrot.slane %v527, 1
    %v1386 = vsel %vm1266, %v1383, %v1385
    %v1387 = vrot.slane %v528, 1
    %v1388 = vrot.slane %v529, 1
    %v1389 = vsel %vm1266, %v1387, %v1388
    %v1390 = vrot.slane %v530, 1
    %v1391 = vsel %vm1266, %v1388, %v1390
    %v1392 = vrot.slane %v531, 1
    %v1393 = vrot.slane %v532, 1
    %v1394 = vsel %vm1266, %v1392, %v1393
    %v1395 = vrot.slane %v533, 1
    %v1396 = vsel %vm1266, %v1393, %v1395
    %v1397 = vrot.slane %v534, 1
    %v1398 = vrot.slane %v535, 1
    %v1399 = vsel %vm1266, %v1397, %v1398
    %v1400 = vrot.slane %v536, 1
    %v1401 = vsel %vm1266, %v1398, %v1400
    %v1402 = vrot.slane %v537, 1
    %v1403 = vrot.slane %v538, 1
    %v1404 = vsel %vm1266, %v1402, %v1403
    %v1405 = vrot.slane %v539, 1
    %v1406 = vsel %vm1266, %v1403, %v1405
    %v1407 = vrot.slane %v540, 1
    %v1408 = vrot.slane %v541, 1
    %v1409 = vsel %vm1266, %v1407, %v1408
    %v1410 = vrot.slane %v542, 1
    %v1411 = vsel %vm1266, %v1408, %v1410
    %v1412 = vrot.slane %v543, 1
    %v1413 = vrot.slane %v544, 1
    %v1414 = vsel %vm1266, %v1412, %v1413
    %v1415 = vrot.slane %v545, 1
    %v1416 = vsel %vm1266, %v1413, %v1415
    %v1417 = vrot.slane %v546, 1
    %v1418 = vrot.slane %v547, 1
    %v1419 = vsel %vm1266, %v1417, %v1418
    %v1420 = vrot.slane %v548, 1
    %v1421 = vsel %vm1266, %v1418, %v1420
    %v1422 = vrot.slane %v549, 1
    %v1423 = vrot.slane %v550, 1
    %v1424 = vsel %vm1266, %v1422, %v1423
    %v1425 = vrot.slane %v551, 1
    %v1426 = vsel %vm1266, %v1423, %v1425
    %v1427 = vrot.slane %v558, 1
    %v1428 = vrot.slane %v559, 1
    %v1429 = vsel %vm1266, %v1427, %v1428
    %v1430 = vrot.slane %v560, 1
    %v1431 = vsel %vm1266, %v1428, %v1430
    %v1432 = vrot.slane %v561, 1
    %v1433 = vrot.slane %v562, 1
    %v1434 = vsel %vm1266, %v1432, %v1433
    %v1435 = vrot.slane %v563, 1
    %v1436 = vsel %vm1266, %v1433, %v1435
    %v1437 = vrot.slane %v564, 1
    %v1438 = vrot.slane %v565, 1
    %v1439 = vsel %vm1266, %v1437, %v1438
    %v1440 = vrot.slane %v566, 1
    %v1441 = vsel %vm1266, %v1438, %v1440
    %v1442 = vrot.slane %v567, 1
    %v1443 = vrot.slane %v568, 1
    %v1444 = vsel %vm1266, %v1442, %v1443
    %v1445 = vrot.slane %v569, 1
    %v1446 = vsel %vm1266, %v1443, %v1445
    %v1447 = vrot.slane %v570, 1
    %v1448 = vrot.slane %v571, 1
    %v1449 = vsel %vm1266, %v1447, %v1448
    %v1450 = vrot.slane %v572, 1
    %v1451 = vsel %vm1266, %v1448, %v1450
    %v1452 = vrot.slane %v573, 1
    %v1453 = vrot.slane %v574, 1
    %v1454 = vsel %vm1266, %v1452, %v1453
    %v1455 = vrot.slane %v575, 1
    %v1456 = vsel %vm1266, %v1453, %v1455
    %v1457 = vrot.slane %v576, 1
    %v1458 = vrot.slane %v577, 1
    %v1459 = vsel %vm1266, %v1457, %v1458
    %v1460 = vrot.slane %v578, 1
    %v1461 = vsel %vm1266, %v1458, %v1460
    %v1462 = vrot.slane %v579, 1
    %v1463 = vrot.slane %v580, 1
    %v1464 = vsel %vm1266, %v1462, %v1463
    %v1465 = vrot.slane %v581, 1
    %v1466 = vsel %vm1266, %v1463, %v1465
    %v1467 = vrot.slane %v582, 1
    %v1468 = vrot.slane %v583, 1
    %v1469 = vsel %vm1266, %v1467, %v1468
    %v1470 = vrot.slane %v584, 1
    %v1471 = vsel %vm1266, %v1468, %v1470
    %v1472 = vrot.slane %v585, 1
    %v1473 = vrot.slane %v586, 1
    %v1474 = vsel %vm1266, %v1472, %v1473
    %v1475 = vrot.slane %v587, 1
    %v1476 = vsel %vm1266, %v1473, %v1475
    %v1477 = vrot.slane %v588, 1
    %v1478 = vrot.slane %v589, 1
    %v1479 = vsel %vm1266, %v1477, %v1478
    %v1480 = vrot.slane %v590, 1
    %v1481 = vsel %vm1266, %v1478, %v1480
    %v1482 = vrot.slane %v591, 1
    %v1483 = vrot.slane %v592, 1
    %v1484 = vsel %vm1266, %v1482, %v1483
    %v1485 = vrot.slane %v593, 1
    %v1486 = vsel %vm1266, %v1483, %v1485
    %v1487 = vrot.slane %v594, 1
    %v1488 = vrot.slane %v595, 1
    %v1489 = vsel %vm1266, %v1487, %v1488
    %v1490 = vrot.slane %v596, 1
    %v1491 = vsel %vm1266, %v1488, %v1490
    %v1492 = vrot.slane %v597, 1
    %v1493 = vrot.slane %v598, 1
    %v1494 = vsel %vm1266, %v1492, %v1493
    %v1495 = vrot.slane %v599, 1
    %v1496 = vsel %vm1266, %v1493, %v1495
    %v1497 = vrot.slane %v600, 1
    %v1498 = vrot.slane %v601, 1
    %v1499 = vsel %vm1266, %v1497, %v1498
    %v1500 = vrot.slane %v602, 1
    %v1501 = vsel %vm1266, %v1498, %v1500
    %v1502 = vrot.slane %v603, 1
    %v1503 = vrot.slane %v604, 1
    %v1504 = vsel %vm1266, %v1502, %v1503
    %v1505 = vrot.slane %v605, 1
    %v1506 = vsel %vm1266, %v1503, %v1505
    %v1507 = vrot.slane %v612, 1
    %v1508 = vrot.slane %v613, 1
    %v1509 = vsel %vm1266, %v1507, %v1508
    %v1510 = vrot.slane %v614, 1
    %v1511 = vsel %vm1266, %v1508, %v1510
    %v1512 = vrot.slane %v615, 1
    %v1513 = vrot.slane %v616, 1
    %v1514 = vsel %vm1266, %v1512, %v1513
    %v1515 = vrot.slane %v617, 1
    %v1516 = vsel %vm1266, %v1513, %v1515
    %v1517 = vrot.slane %v618, 1
    %v1518 = vrot.slane %v619, 1
    %v1519 = vsel %vm1266, %v1517, %v1518
    %v1520 = vrot.slane %v620, 1
    %v1521 = vsel %vm1266, %v1518, %v1520
    %v1522 = vrot.slane %v621, 1
    %v1523 = vrot.slane %v622, 1
    %v1524 = vsel %vm1266, %v1522, %v1523
    %v1525 = vrot.slane %v623, 1
    %v1526 = vsel %vm1266, %v1523, %v1525
    %v1527 = vrot.slane %v624, 1
    %v1528 = vrot.slane %v625, 1
    %v1529 = vsel %vm1266, %v1527, %v1528
    %v1530 = vrot.slane %v626, 1
    %v1531 = vsel %vm1266, %v1528, %v1530
    %v1532 = vrot.slane %v627, 1
    %v1533 = vrot.slane %v628, 1
    %v1534 = vsel %vm1266, %v1532, %v1533
    %v1535 = vrot.slane %v629, 1
    %v1536 = vsel %vm1266, %v1533, %v1535
    %v1537 = vrot.slane %v630, 1
    %v1538 = vrot.slane %v631, 1
    %v1539 = vsel %vm1266, %v1537, %v1538
    %v1540 = vrot.slane %v632, 1
    %v1541 = vsel %vm1266, %v1538, %v1540
    %v1542 = vrot.slane %v633, 1
    %v1543 = vrot.slane %v634, 1
    %v1544 = vsel %vm1266, %v1542, %v1543
    %v1545 = vrot.slane %v635, 1
    %v1546 = vsel %vm1266, %v1543, %v1545
    %v1547 = vrot.slane %v636, 1
    %v1548 = vrot.slane %v637, 1
    %v1549 = vsel %vm1266, %v1547, %v1548
    %v1550 = vrot.slane %v638, 1
    %v1551 = vsel %vm1266, %v1548, %v1550
    %v1552 = vrot.slane %v639, 1
    %v1553 = vrot.slane %v640, 1
    %v1554 = vsel %vm1266, %v1552, %v1553
    %v1555 = vrot.slane %v641, 1
    %v1556 = vsel %vm1266, %v1553, %v1555
    %v1557 = vrot.slane %v642, 1
    %v1558 = vrot.slane %v643, 1
    %v1559 = vsel %vm1266, %v1557, %v1558
    %v1560 = vrot.slane %v644, 1
    %v1561 = vsel %vm1266, %v1558, %v1560
    %v1562 = vrot.slane %v645, 1
    %v1563 = vrot.slane %v646, 1
    %v1564 = vsel %vm1266, %v1562, %v1563
    %v1565 = vrot.slane %v647, 1
    %v1566 = vsel %vm1266, %v1563, %v1565
    %v1567 = vrot.slane %v648, 1
    %v1568 = vrot.slane %v649, 1
    %v1569 = vsel %vm1266, %v1567, %v1568
    %v1570 = vrot.slane %v650, 1
    %v1571 = vsel %vm1266, %v1568, %v1570
    %v1572 = vrot.slane %v651, 1
    %v1573 = vrot.slane %v652, 1
    %v1574 = vsel %vm1266, %v1572, %v1573
    %v1575 = vrot.slane %v653, 1
    %v1576 = vsel %vm1266, %v1573, %v1575
    %v1577 = vrot.slane %v654, 1
    %v1578 = vrot.slane %v655, 1
    %v1579 = vsel %vm1266, %v1577, %v1578
    %v1580 = vrot.slane %v656, 1
    %v1581 = vsel %vm1266, %v1578, %v1580
    %v1582 = vrot.slane %v657, 1
    %v1583 = vrot.slane %v658, 1
    %v1584 = vsel %vm1266, %v1582, %v1583
    %v1585 = vrot.slane %v659, 1
    %v1586 = vsel %vm1266, %v1583, %v1585
    %v1587 = vrot.slane %v666, 1
    %v1588 = vrot.slane %v667, 1
    %v1589 = vsel %vm1266, %v1587, %v1588
    %v1590 = vrot.slane %v668, 1
    %v1591 = vsel %vm1266, %v1588, %v1590
    %v1592 = vrot.slane %v669, 1
    %v1593 = vrot.slane %v670, 1
    %v1594 = vsel %vm1266, %v1592, %v1593
    %v1595 = vrot.slane %v671, 1
    %v1596 = vsel %vm1266, %v1593, %v1595
    %v1597 = vrot.slane %v672, 1
    %v1598 = vrot.slane %v673, 1
    %v1599 = vsel %vm1266, %v1597, %v1598
    %v1600 = vrot.slane %v674, 1
    %v1601 = vsel %vm1266, %v1598, %v1600
    %v1602 = vrot.slane %v675, 1
    %v1603 = vrot.slane %v676, 1
    %v1604 = vsel %vm1266, %v1602, %v1603
    %v1605 = vrot.slane %v677, 1
    %v1606 = vsel %vm1266, %v1603, %v1605
    %v1607 = vrot.slane %v678, 1
    %v1608 = vrot.slane %v679, 1
    %v1609 = vsel %vm1266, %v1607, %v1608
    %v1610 = vrot.slane %v680, 1
    %v1611 = vsel %vm1266, %v1608, %v1610
    %v1612 = vrot.slane %v681, 1
    %v1613 = vrot.slane %v682, 1
    %v1614 = vsel %vm1266, %v1612, %v1613
    %v1615 = vrot.slane %v683, 1
    %v1616 = vsel %vm1266, %v1613, %v1615
    %v1617 = vrot.slane %v684, 1
    %v1618 = vrot.slane %v685, 1
    %v1619 = vsel %vm1266, %v1617, %v1618
    %v1620 = vrot.slane %v686, 1
    %v1621 = vsel %vm1266, %v1618, %v1620
    %v1622 = vrot.slane %v687, 1
    %v1623 = vrot.slane %v688, 1
    %v1624 = vsel %vm1266, %v1622, %v1623
    %v1625 = vrot.slane %v689, 1
    %v1626 = vsel %vm1266, %v1623, %v1625
    %v1627 = vrot.slane %v690, 1
    %v1628 = vrot.slane %v691, 1
    %v1629 = vsel %vm1266, %v1627, %v1628
    %v1630 = vrot.slane %v692, 1
    %v1631 = vsel %vm1266, %v1628, %v1630
    %v1632 = vrot.slane %v693, 1
    %v1633 = vrot.slane %v694, 1
    %v1634 = vsel %vm1266, %v1632, %v1633
    %v1635 = vrot.slane %v695, 1
    %v1636 = vsel %vm1266, %v1633, %v1635
    %v1637 = vrot.slane %v696, 1
    %v1638 = vrot.slane %v697, 1
    %v1639 = vsel %vm1266, %v1637, %v1638
    %v1640 = vrot.slane %v698, 1
    %v1641 = vsel %vm1266, %v1638, %v1640
    %v1642 = vrot.slane %v699, 1
    %v1643 = vrot.slane %v700, 1
    %v1644 = vsel %vm1266, %v1642, %v1643
    %v1645 = vrot.slane %v701, 1
    %v1646 = vsel %vm1266, %v1643, %v1645
    %v1647 = vrot.slane %v702, 1
    %v1648 = vrot.slane %v703, 1
    %v1649 = vsel %vm1266, %v1647, %v1648
    %v1650 = vrot.slane %v704, 1
    %v1651 = vsel %vm1266, %v1648, %v1650
    %v1652 = vrot.slane %v705, 1
    %v1653 = vrot.slane %v706, 1
    %v1654 = vsel %vm1266, %v1652, %v1653
    %v1655 = vrot.slane %v707, 1
    %v1656 = vsel %vm1266, %v1653, %v1655
    %v1657 = vrot.slane %v708, 1
    %v1658 = vrot.slane %v709, 1
    %v1659 = vsel %vm1266, %v1657, %v1658
    %v1660 = vrot.slane %v710, 1
    %v1661 = vsel %vm1266, %v1658, %v1660
    %v1662 = vrot.slane %v711, 1
    %v1663 = vrot.slane %v712, 1
    %v1664 = vsel %vm1266, %v1662, %v1663
    %v1665 = vrot.slane %v713, 1
    %v1666 = vsel %vm1266, %v1663, %v1665
    %v1667 = vrot.slane %v720, 1
    %v1668 = vrot.slane %v721, 1
    %v1669 = vsel %vm1266, %v1667, %v1668
    %v1670 = vrot.slane %v722, 1
    %v1671 = vsel %vm1266, %v1668, %v1670
    %v1672 = vrot.slane %v723, 1
    %v1673 = vrot.slane %v724, 1
    %v1674 = vsel %vm1266, %v1672, %v1673
    %v1675 = vrot.slane %v725, 1
    %v1676 = vsel %vm1266, %v1673, %v1675
    %v1677 = vrot.slane %v726, 1
    %v1678 = vrot.slane %v727, 1
    %v1679 = vsel %vm1266, %v1677, %v1678
    %v1680 = vrot.slane %v728, 1
    %v1681 = vsel %vm1266, %v1678, %v1680
    %v1682 = vrot.slane %v729, 1
    %v1683 = vrot.slane %v730, 1
    %v1684 = vsel %vm1266, %v1682, %v1683
    %v1685 = vrot.slane %v731, 1
    %v1686 = vsel %vm1266, %v1683, %v1685
    %v1687 = vrot.slane %v732, 1
    %v1688 = vrot.slane %v733, 1
    %v1689 = vsel %vm1266, %v1687, %v1688
    %v1690 = vrot.slane %v734, 1
    %v1691 = vsel %vm1266, %v1688, %v1690
    %v1692 = vrot.slane %v735, 1
    %v1693 = vrot.slane %v736, 1
    %v1694 = vsel %vm1266, %v1692, %v1693
    %v1695 = vrot.slane %v737, 1
    %v1696 = vsel %vm1266, %v1693, %v1695
    %v1697 = vrot.slane %v738, 1
    %v1698 = vrot.slane %v739, 1
    %v1699 = vsel %vm1266, %v1697, %v1698
    %v1700 = vrot.slane %v740, 1
    %v1701 = vsel %vm1266, %v1698, %v1700
    %v1702 = vrot.slane %v741, 1
    %v1703 = vrot.slane %v742, 1
    %v1704 = vsel %vm1266, %v1702, %v1703
    %v1705 = vrot.slane %v743, 1
    %v1706 = vsel %vm1266, %v1703, %v1705
    %v1707 = vrot.slane %v744, 1
    %v1708 = vrot.slane %v745, 1
    %v1709 = vsel %vm1266, %v1707, %v1708
    %v1710 = vrot.slane %v746, 1
    %v1711 = vsel %vm1266, %v1708, %v1710
    %v1712 = vrot.slane %v747, 1
    %v1713 = vrot.slane %v748, 1
    %v1714 = vsel %vm1266, %v1712, %v1713
    %v1715 = vrot.slane %v749, 1
    %v1716 = vsel %vm1266, %v1713, %v1715
    %v1717 = vrot.slane %v750, 1
    %v1718 = vrot.slane %v751, 1
    %v1719 = vsel %vm1266, %v1717, %v1718
    %v1720 = vrot.slane %v752, 1
    %v1721 = vsel %vm1266, %v1718, %v1720
    %v1722 = vrot.slane %v753, 1
    %v1723 = vrot.slane %v754, 1
    %v1724 = vsel %vm1266, %v1722, %v1723
    %v1725 = vrot.slane %v755, 1
    %v1726 = vsel %vm1266, %v1723, %v1725
    %v1727 = vrot.slane %v756, 1
    %v1728 = vrot.slane %v757, 1
    %v1729 = vsel %vm1266, %v1727, %v1728
    %v1730 = vrot.slane %v758, 1
    %v1731 = vsel %vm1266, %v1728, %v1730
    %v1732 = vrot.slane %v759, 1
    %v1733 = vrot.slane %v760, 1
    %v1734 = vsel %vm1266, %v1732, %v1733
    %v1735 = vrot.slane %v761, 1
    %v1736 = vsel %vm1266, %v1733, %v1735
    %v1737 = vrot.slane %v762, 1
    %v1738 = vrot.slane %v763, 1
    %v1739 = vsel %vm1266, %v1737, %v1738
    %v1740 = vrot.slane %v764, 1
    %v1741 = vsel %vm1266, %v1738, %v1740
    %v1742 = vrot.slane %v765, 1
    %v1743 = vrot.slane %v766, 1
    %v1744 = vsel %vm1266, %v1742, %v1743
    %v1745 = vrot.slane %v767, 1
    %v1746 = vsel %vm1266, %v1743, %v1745
    %v1747 = vrot.slane %v774, 1
    %v1748 = vrot.slane %v775, 1
    %v1749 = vsel %vm1266, %v1747, %v1748
    %v1750 = vrot.slane %v776, 1
    %v1751 = vsel %vm1266, %v1748, %v1750
    %v1752 = vrot.slane %v777, 1
    %v1753 = vrot.slane %v778, 1
    %v1754 = vsel %vm1266, %v1752, %v1753
    %v1755 = vrot.slane %v779, 1
    %v1756 = vsel %vm1266, %v1753, %v1755
    %v1757 = vrot.slane %v780, 1
    %v1758 = vrot.slane %v781, 1
    %v1759 = vsel %vm1266, %v1757, %v1758
    %v1760 = vrot.slane %v782, 1
    %v1761 = vsel %vm1266, %v1758, %v1760
    %v1762 = vrot.slane %v783, 1
    %v1763 = vrot.slane %v784, 1
    %v1764 = vsel %vm1266, %v1762, %v1763
    %v1765 = vrot.slane %v785, 1
    %v1766 = vsel %vm1266, %v1763, %v1765
    %v1767 = vrot.slane %v786, 1
    %v1768 = vrot.slane %v787, 1
    %v1769 = vsel %vm1266, %v1767, %v1768
    %v1770 = vrot.slane %v788, 1
    %v1771 = vsel %vm1266, %v1768, %v1770
    %v1772 = vrot.slane %v789, 1
    %v1773 = vrot.slane %v790, 1
    %v1774 = vsel %vm1266, %v1772, %v1773
    %v1775 = vrot.slane %v791, 1
    %v1776 = vsel %vm1266, %v1773, %v1775
    %v1777 = vrot.slane %v792, 1
    %v1778 = vrot.slane %v793, 1
    %v1779 = vsel %vm1266, %v1777, %v1778
    %v1780 = vrot.slane %v794, 1
    %v1781 = vsel %vm1266, %v1778, %v1780
    %v1782 = vrot.slane %v795, 1
    %v1783 = vrot.slane %v796, 1
    %v1784 = vsel %vm1266, %v1782, %v1783
    %v1785 = vrot.slane %v797, 1
    %v1786 = vsel %vm1266, %v1783, %v1785
    %v1787 = vrot.slane %v798, 1
    %v1788 = vrot.slane %v799, 1
    %v1789 = vsel %vm1266, %v1787, %v1788
    %v1790 = vrot.slane %v800, 1
    %v1791 = vsel %vm1266, %v1788, %v1790
    %v1792 = vrot.slane %v801, 1
    %v1793 = vrot.slane %v802, 1
    %v1794 = vsel %vm1266, %v1792, %v1793
    %v1795 = vrot.slane %v803, 1
    %v1796 = vsel %vm1266, %v1793, %v1795
    %v1797 = vrot.slane %v804, 1
    %v1798 = vrot.slane %v805, 1
    %v1799 = vsel %vm1266, %v1797, %v1798
    %v1800 = vrot.slane %v806, 1
    %v1801 = vsel %vm1266, %v1798, %v1800
    %v1802 = vrot.slane %v807, 1
    %v1803 = vrot.slane %v808, 1
    %v1804 = vsel %vm1266, %v1802, %v1803
    %v1805 = vrot.slane %v809, 1
    %v1806 = vsel %vm1266, %v1803, %v1805
    %v1807 = vrot.slane %v810, 1
    %v1808 = vrot.slane %v811, 1
    %v1809 = vsel %vm1266, %v1807, %v1808
    %v1810 = vrot.slane %v812, 1
    %v1811 = vsel %vm1266, %v1808, %v1810
    %v1812 = vrot.slane %v813, 1
    %v1813 = vrot.slane %v814, 1
    %v1814 = vsel %vm1266, %v1812, %v1813
    %v1815 = vrot.slane %v815, 1
    %v1816 = vsel %vm1266, %v1813, %v1815
    %v1817 = vrot.slane %v816, 1
    %v1818 = vrot.slane %v817, 1
    %v1819 = vsel %vm1266, %v1817, %v1818
    %v1820 = vrot.slane %v818, 1
    %v1821 = vsel %vm1266, %v1818, %v1820
    %v1822 = vrot.slane %v819, 1
    %v1823 = vrot.slane %v820, 1
    %v1824 = vsel %vm1266, %v1822, %v1823
    %v1825 = vrot.slane %v821, 1
    %v1826 = vsel %vm1266, %v1823, %v1825
    %v1827 = vrot.slane %v828, 1
    %v1828 = vrot.slane %v829, 1
    %v1829 = vsel %vm1266, %v1827, %v1828
    %v1830 = vrot.slane %v830, 1
    %v1831 = vsel %vm1266, %v1828, %v1830
    %v1832 = vrot.slane %v831, 1
    %v1833 = vrot.slane %v832, 1
    %v1834 = vsel %vm1266, %v1832, %v1833
    %v1835 = vrot.slane %v833, 1
    %v1836 = vsel %vm1266, %v1833, %v1835
    %v1837 = vrot.slane %v834, 1
    %v1838 = vrot.slane %v835, 1
    %v1839 = vsel %vm1266, %v1837, %v1838
    %v1840 = vrot.slane %v836, 1
    %v1841 = vsel %vm1266, %v1838, %v1840
    %v1842 = vrot.slane %v837, 1
    %v1843 = vrot.slane %v838, 1
    %v1844 = vsel %vm1266, %v1842, %v1843
    %v1845 = vrot.slane %v839, 1
    %v1846 = vsel %vm1266, %v1843, %v1845
    %v1847 = vrot.slane %v840, 1
    %v1848 = vrot.slane %v841, 1
    %v1849 = vsel %vm1266, %v1847, %v1848
    %v1850 = vrot.slane %v842, 1
    %v1851 = vsel %vm1266, %v1848, %v1850
    %v1852 = vrot.slane %v843, 1
    %v1853 = vrot.slane %v844, 1
    %v1854 = vsel %vm1266, %v1852, %v1853
    %v1855 = vrot.slane %v845, 1
    %v1856 = vsel %vm1266, %v1853, %v1855
    %v1857 = vrot.slane %v846, 1
    %v1858 = vrot.slane %v847, 1
    %v1859 = vsel %vm1266, %v1857, %v1858
    %v1860 = vrot.slane %v848, 1
    %v1861 = vsel %vm1266, %v1858, %v1860
    %v1862 = vrot.slane %v849, 1
    %v1863 = vrot.slane %v850, 1
    %v1864 = vsel %vm1266, %v1862, %v1863
    %v1865 = vrot.slane %v851, 1
    %v1866 = vsel %vm1266, %v1863, %v1865
    %v1867 = vrot.slane %v852, 1
    %v1868 = vrot.slane %v853, 1
    %v1869 = vsel %vm1266, %v1867, %v1868
    %v1870 = vrot.slane %v854, 1
    %v1871 = vsel %vm1266, %v1868, %v1870
    %v1872 = vrot.slane %v855, 1
    %v1873 = vrot.slane %v856, 1
    %v1874 = vsel %vm1266, %v1872, %v1873
    %v1875 = vrot.slane %v857, 1
    %v1876 = vsel %vm1266, %v1873, %v1875
    %v1877 = vrot.slane %v858, 1
    %v1878 = vrot.slane %v859, 1
    %v1879 = vsel %vm1266, %v1877, %v1878
    %v1880 = vrot.slane %v860, 1
    %v1881 = vsel %vm1266, %v1878, %v1880
    %v1882 = vrot.slane %v861, 1
    %v1883 = vrot.slane %v862, 1
    %v1884 = vsel %vm1266, %v1882, %v1883
    %v1885 = vrot.slane %v863, 1
    %v1886 = vsel %vm1266, %v1883, %v1885
    %v1887 = vrot.slane %v864, 1
    %v1888 = vrot.slane %v865, 1
    %v1889 = vsel %vm1266, %v1887, %v1888
    %v1890 = vrot.slane %v866, 1
    %v1891 = vsel %vm1266, %v1888, %v1890
    %v1892 = vrot.slane %v867, 1
    %v1893 = vrot.slane %v868, 1
    %v1894 = vsel %vm1266, %v1892, %v1893
    %v1895 = vrot.slane %v869, 1
    %v1896 = vsel %vm1266, %v1893, %v1895
    %v1897 = vrot.slane %v870, 1
    %v1898 = vrot.slane %v871, 1
    %v1899 = vsel %vm1266, %v1897, %v1898
    %v1900 = vrot.slane %v872, 1
    %v1901 = vsel %vm1266, %v1898, %v1900
    %v1902 = vrot.slane %v873, 1
    %v1903 = vrot.slane %v874, 1
    %v1904 = vsel %vm1266, %v1902, %v1903
    %v1905 = vrot.slane %v875, 1
    %v1906 = vsel %vm1266, %v1903, %v1905
    %1907 = vrot.lane.b32.xlu0 %v1269, 4
    %v1908 = vpop.permute.xlu0 %1907
    %1909 = vrot.lane.b32.xlu0 %v1271, 4
    %v1910 = vpop.permute.xlu0 %1909
    %1911 = vrot.lane.b32.xlu0 %v1274, 4
    %v1912 = vpop.permute.xlu0 %1911
    %1913 = vrot.lane.b32.xlu0 %v1276, 4
    %v1914 = vpop.permute.xlu0 %1913
    %1915 = vrot.lane.b32.xlu0 %v1279, 4
    %v1916 = vpop.permute.xlu0 %1915
    %1917 = vrot.lane.b32.xlu0 %v1281, 4
    %v1918 = vpop.permute.xlu0 %1917
    %1919 = vrot.lane.b32.xlu0 %v1284, 4
    %v1920 = vpop.permute.xlu0 %1919
    %1921 = vrot.lane.b32.xlu0 %v1286, 4
    %v1922 = vpop.permute.xlu0 %1921
    %1923 = vrot.lane.b32.xlu0 %v1289, 4
    %v1924 = vpop.permute.xlu0 %1923
    %1925 = vrot.lane.b32.xlu0 %v1291, 4
    %v1926 = vpop.permute.xlu0 %1925
    %1927 = vrot.lane.b32.xlu0 %v1294, 4
    %v1928 = vpop.permute.xlu0 %1927
    %1929 = vrot.lane.b32.xlu0 %v1296, 4
    %v1930 = vpop.permute.xlu0 %1929
    %1931 = vrot.lane.b32.xlu0 %v1299, 4
    %v1932 = vpop.permute.xlu0 %1931
    %1933 = vrot.lane.b32.xlu0 %v1301, 4
    %v1934 = vpop.permute.xlu0 %1933
    %1935 = vrot.lane.b32.xlu0 %v1304, 4
    %v1936 = vpop.permute.xlu0 %1935
    %1937 = vrot.lane.b32.xlu0 %v1306, 4
    %v1938 = vpop.permute.xlu0 %1937
    %1939 = vrot.lane.b32.xlu0 %v1309, 4
    %v1940 = vpop.permute.xlu0 %1939
    %1941 = vrot.lane.b32.xlu0 %v1311, 4
    %v1942 = vpop.permute.xlu0 %1941
    %1943 = vrot.lane.b32.xlu0 %v1314, 4
    %v1944 = vpop.permute.xlu0 %1943
    %1945 = vrot.lane.b32.xlu0 %v1316, 4
    %v1946 = vpop.permute.xlu0 %1945
    %1947 = vrot.lane.b32.xlu0 %v1319, 4
    %v1948 = vpop.permute.xlu0 %1947
    %1949 = vrot.lane.b32.xlu0 %v1321, 4
    %v1950 = vpop.permute.xlu0 %1949
    %1951 = vrot.lane.b32.xlu0 %v1324, 4
    %v1952 = vpop.permute.xlu0 %1951
    %1953 = vrot.lane.b32.xlu0 %v1326, 4
    %v1954 = vpop.permute.xlu0 %1953
    %1955 = vrot.lane.b32.xlu0 %v1329, 4
    %v1956 = vpop.permute.xlu0 %1955
    %1957 = vrot.lane.b32.xlu0 %v1331, 4
    %v1958 = vpop.permute.xlu0 %1957
    %1959 = vrot.lane.b32.xlu0 %v1334, 4
    %v1960 = vpop.permute.xlu0 %1959
    %1961 = vrot.lane.b32.xlu0 %v1336, 4
    %v1962 = vpop.permute.xlu0 %1961
    %1963 = vrot.lane.b32.xlu0 %v1339, 4
    %v1964 = vpop.permute.xlu0 %1963
    %1965 = vrot.lane.b32.xlu0 %v1341, 4
    %v1966 = vpop.permute.xlu0 %1965
    %1967 = vrot.lane.b32.xlu0 %v1344, 4
    %v1968 = vpop.permute.xlu0 %1967
    %1969 = vrot.lane.b32.xlu0 %v1346, 4
    %v1970 = vpop.permute.xlu0 %1969
    %1971 = vrot.lane.b32.xlu0 %v1349, 4
    %v1972 = vpop.permute.xlu0 %1971
    %1973 = vrot.lane.b32.xlu0 %v1351, 4
    %v1974 = vpop.permute.xlu0 %1973
    %1975 = vrot.lane.b32.xlu0 %v1354, 4
    %v1976 = vpop.permute.xlu0 %1975
    %1977 = vrot.lane.b32.xlu0 %v1356, 4
    %v1978 = vpop.permute.xlu0 %1977
    %1979 = vrot.lane.b32.xlu0 %v1359, 4
    %v1980 = vpop.permute.xlu0 %1979
    %1981 = vrot.lane.b32.xlu0 %v1361, 4
    %v1982 = vpop.permute.xlu0 %1981
    %1983 = vrot.lane.b32.xlu0 %v1364, 4
    %v1984 = vpop.permute.xlu0 %1983
    %1985 = vrot.lane.b32.xlu0 %v1366, 4
    %v1986 = vpop.permute.xlu0 %1985
    %1987 = vrot.lane.b32.xlu0 %v1369, 4
    %v1988 = vpop.permute.xlu0 %1987
    %1989 = vrot.lane.b32.xlu0 %v1371, 4
    %v1990 = vpop.permute.xlu0 %1989
    %1991 = vrot.lane.b32.xlu0 %v1374, 4
    %v1992 = vpop.permute.xlu0 %1991
    %1993 = vrot.lane.b32.xlu0 %v1376, 4
    %v1994 = vpop.permute.xlu0 %1993
    %1995 = vrot.lane.b32.xlu0 %v1379, 4
    %v1996 = vpop.permute.xlu0 %1995
    %1997 = vrot.lane.b32.xlu0 %v1381, 4
    %v1998 = vpop.permute.xlu0 %1997
    %1999 = vrot.lane.b32.xlu0 %v1384, 4
    %v2000 = vpop.permute.xlu0 %1999
    %2001 = vrot.lane.b32.xlu0 %v1386, 4
    %v2002 = vpop.permute.xlu0 %2001
    %2003 = vrot.lane.b32.xlu0 %v1389, 4
    %v2004 = vpop.permute.xlu0 %2003
    %2005 = vrot.lane.b32.xlu0 %v1391, 4
    %v2006 = vpop.permute.xlu0 %2005
    %2007 = vrot.lane.b32.xlu0 %v1394, 4
    %v2008 = vpop.permute.xlu0 %2007
    %2009 = vrot.lane.b32.xlu0 %v1396, 4
    %v2010 = vpop.permute.xlu0 %2009
    %2011 = vrot.lane.b32.xlu0 %v1399, 4
    %v2012 = vpop.permute.xlu0 %2011
    %2013 = vrot.lane.b32.xlu0 %v1401, 4
    %v2014 = vpop.permute.xlu0 %2013
    %2015 = vrot.lane.b32.xlu0 %v1404, 4
    %v2016 = vpop.permute.xlu0 %2015
    %2017 = vrot.lane.b32.xlu0 %v1406, 4
    %v2018 = vpop.permute.xlu0 %2017
    %2019 = vrot.lane.b32.xlu0 %v1409, 4
    %v2020 = vpop.permute.xlu0 %2019
    %2021 = vrot.lane.b32.xlu0 %v1411, 4
    %v2022 = vpop.permute.xlu0 %2021
    %2023 = vrot.lane.b32.xlu0 %v1414, 4
    %v2024 = vpop.permute.xlu0 %2023
    %2025 = vrot.lane.b32.xlu0 %v1416, 4
    %v2026 = vpop.permute.xlu0 %2025
    %2027 = vrot.lane.b32.xlu0 %v1419, 4
    %v2028 = vpop.permute.xlu0 %2027
    %2029 = vrot.lane.b32.xlu0 %v1421, 4
    %v2030 = vpop.permute.xlu0 %2029
    %2031 = vrot.lane.b32.xlu0 %v1424, 4
    %v2032 = vpop.permute.xlu0 %2031
    %2033 = vrot.lane.b32.xlu0 %v1426, 4
    %v2034 = vpop.permute.xlu0 %2033
    %2035 = vrot.lane.b32.xlu0 %v1429, 4
    %v2036 = vpop.permute.xlu0 %2035
    %2037 = vrot.lane.b32.xlu0 %v1431, 4
    %v2038 = vpop.permute.xlu0 %2037
    %2039 = vrot.lane.b32.xlu0 %v1434, 4
    %v2040 = vpop.permute.xlu0 %2039
    %2041 = vrot.lane.b32.xlu0 %v1436, 4
    %v2042 = vpop.permute.xlu0 %2041
    %2043 = vrot.lane.b32.xlu0 %v1439, 4
    %v2044 = vpop.permute.xlu0 %2043
    %2045 = vrot.lane.b32.xlu0 %v1441, 4
    %v2046 = vpop.permute.xlu0 %2045
    %2047 = vrot.lane.b32.xlu0 %v1444, 4
    %v2048 = vpop.permute.xlu0 %2047
    %2049 = vrot.lane.b32.xlu0 %v1446, 4
    %v2050 = vpop.permute.xlu0 %2049
    %2051 = vrot.lane.b32.xlu0 %v1449, 4
    %v2052 = vpop.permute.xlu0 %2051
    %2053 = vrot.lane.b32.xlu0 %v1451, 4
    %v2054 = vpop.permute.xlu0 %2053
    %2055 = vrot.lane.b32.xlu0 %v1454, 4
    %v2056 = vpop.permute.xlu0 %2055
    %2057 = vrot.lane.b32.xlu0 %v1456, 4
    %v2058 = vpop.permute.xlu0 %2057
    %2059 = vrot.lane.b32.xlu0 %v1459, 4
    %v2060 = vpop.permute.xlu0 %2059
    %2061 = vrot.lane.b32.xlu0 %v1461, 4
    %v2062 = vpop.permute.xlu0 %2061
    %2063 = vrot.lane.b32.xlu0 %v1464, 4
    %v2064 = vpop.permute.xlu0 %2063
    %2065 = vrot.lane.b32.xlu0 %v1466, 4
    %v2066 = vpop.permute.xlu0 %2065
    %2067 = vrot.lane.b32.xlu0 %v1469, 4
    %v2068 = vpop.permute.xlu0 %2067
    %2069 = vrot.lane.b32.xlu0 %v1471, 4
    %v2070 = vpop.permute.xlu0 %2069
    %2071 = vrot.lane.b32.xlu0 %v1474, 4
    %v2072 = vpop.permute.xlu0 %2071
    %2073 = vrot.lane.b32.xlu0 %v1476, 4
    %v2074 = vpop.permute.xlu0 %2073
    %2075 = vrot.lane.b32.xlu0 %v1479, 4
    %v2076 = vpop.permute.xlu0 %2075
    %2077 = vrot.lane.b32.xlu0 %v1481, 4
    %v2078 = vpop.permute.xlu0 %2077
    %2079 = vrot.lane.b32.xlu0 %v1484, 4
    %v2080 = vpop.permute.xlu0 %2079
    %2081 = vrot.lane.b32.xlu0 %v1486, 4
    %v2082 = vpop.permute.xlu0 %2081
    %2083 = vrot.lane.b32.xlu0 %v1489, 4
    %v2084 = vpop.permute.xlu0 %2083
    %2085 = vrot.lane.b32.xlu0 %v1491, 4
    %v2086 = vpop.permute.xlu0 %2085
    %2087 = vrot.lane.b32.xlu0 %v1494, 4
    %v2088 = vpop.permute.xlu0 %2087
    %2089 = vrot.lane.b32.xlu0 %v1496, 4
    %v2090 = vpop.permute.xlu0 %2089
    %2091 = vrot.lane.b32.xlu0 %v1499, 4
    %v2092 = vpop.permute.xlu0 %2091
    %2093 = vrot.lane.b32.xlu0 %v1501, 4
    %v2094 = vpop.permute.xlu0 %2093
    %2095 = vrot.lane.b32.xlu0 %v1504, 4
    %v2096 = vpop.permute.xlu0 %2095
    %2097 = vrot.lane.b32.xlu0 %v1506, 4
    %v2098 = vpop.permute.xlu0 %2097
    %2099 = vrot.lane.b32.xlu0 %v1509, 4
    %v2100 = vpop.permute.xlu0 %2099
    %2101 = vrot.lane.b32.xlu0 %v1511, 4
    %v2102 = vpop.permute.xlu0 %2101
    %2103 = vrot.lane.b32.xlu0 %v1514, 4
    %v2104 = vpop.permute.xlu0 %2103
    %2105 = vrot.lane.b32.xlu0 %v1516, 4
    %v2106 = vpop.permute.xlu0 %2105
    %2107 = vrot.lane.b32.xlu0 %v1519, 4
    %v2108 = vpop.permute.xlu0 %2107
    %2109 = vrot.lane.b32.xlu0 %v1521, 4
    %v2110 = vpop.permute.xlu0 %2109
    %2111 = vrot.lane.b32.xlu0 %v1524, 4
    %v2112 = vpop.permute.xlu0 %2111
    %2113 = vrot.lane.b32.xlu0 %v1526, 4
    %v2114 = vpop.permute.xlu0 %2113
    %2115 = vrot.lane.b32.xlu0 %v1529, 4
    %v2116 = vpop.permute.xlu0 %2115
    %2117 = vrot.lane.b32.xlu0 %v1531, 4
    %v2118 = vpop.permute.xlu0 %2117
    %2119 = vrot.lane.b32.xlu0 %v1534, 4
    %v2120 = vpop.permute.xlu0 %2119
    %2121 = vrot.lane.b32.xlu0 %v1536, 4
    %v2122 = vpop.permute.xlu0 %2121
    %2123 = vrot.lane.b32.xlu0 %v1539, 4
    %v2124 = vpop.permute.xlu0 %2123
    %2125 = vrot.lane.b32.xlu0 %v1541, 4
    %v2126 = vpop.permute.xlu0 %2125
    %2127 = vrot.lane.b32.xlu0 %v1544, 4
    %v2128 = vpop.permute.xlu0 %2127
    %2129 = vrot.lane.b32.xlu0 %v1546, 4
    %v2130 = vpop.permute.xlu0 %2129
    %2131 = vrot.lane.b32.xlu0 %v1549, 4
    %v2132 = vpop.permute.xlu0 %2131
    %2133 = vrot.lane.b32.xlu0 %v1551, 4
    %v2134 = vpop.permute.xlu0 %2133
    %2135 = vrot.lane.b32.xlu0 %v1554, 4
    %v2136 = vpop.permute.xlu0 %2135
    %2137 = vrot.lane.b32.xlu0 %v1556, 4
    %v2138 = vpop.permute.xlu0 %2137
    %2139 = vrot.lane.b32.xlu0 %v1559, 4
    %v2140 = vpop.permute.xlu0 %2139
    %2141 = vrot.lane.b32.xlu0 %v1561, 4
    %v2142 = vpop.permute.xlu0 %2141
    %2143 = vrot.lane.b32.xlu0 %v1564, 4
    %v2144 = vpop.permute.xlu0 %2143
    %2145 = vrot.lane.b32.xlu0 %v1566, 4
    %v2146 = vpop.permute.xlu0 %2145
    %2147 = vrot.lane.b32.xlu0 %v1569, 4
    %v2148 = vpop.permute.xlu0 %2147
    %2149 = vrot.lane.b32.xlu0 %v1571, 4
    %v2150 = vpop.permute.xlu0 %2149
    %2151 = vrot.lane.b32.xlu0 %v1574, 4
    %v2152 = vpop.permute.xlu0 %2151
    %2153 = vrot.lane.b32.xlu0 %v1576, 4
    %v2154 = vpop.permute.xlu0 %2153
    %2155 = vrot.lane.b32.xlu0 %v1579, 4
    %v2156 = vpop.permute.xlu0 %2155
    %2157 = vrot.lane.b32.xlu0 %v1581, 4
    %v2158 = vpop.permute.xlu0 %2157
    %2159 = vrot.lane.b32.xlu0 %v1584, 4
    %v2160 = vpop.permute.xlu0 %2159
    %2161 = vrot.lane.b32.xlu0 %v1586, 4
    %v2162 = vpop.permute.xlu0 %2161
    %2163 = vrot.lane.b32.xlu0 %v1589, 4
    %v2164 = vpop.permute.xlu0 %2163
    %2165 = vrot.lane.b32.xlu0 %v1591, 4
    %v2166 = vpop.permute.xlu0 %2165
    %2167 = vrot.lane.b32.xlu0 %v1594, 4
    %v2168 = vpop.permute.xlu0 %2167
    %2169 = vrot.lane.b32.xlu0 %v1596, 4
    %v2170 = vpop.permute.xlu0 %2169
    %2171 = vrot.lane.b32.xlu0 %v1599, 4
    %v2172 = vpop.permute.xlu0 %2171
    %2173 = vrot.lane.b32.xlu0 %v1601, 4
    %v2174 = vpop.permute.xlu0 %2173
    %2175 = vrot.lane.b32.xlu0 %v1604, 4
    %v2176 = vpop.permute.xlu0 %2175
    %2177 = vrot.lane.b32.xlu0 %v1606, 4
    %v2178 = vpop.permute.xlu0 %2177
    %2179 = vrot.lane.b32.xlu0 %v1609, 4
    %v2180 = vpop.permute.xlu0 %2179
    %2181 = vrot.lane.b32.xlu0 %v1611, 4
    %v2182 = vpop.permute.xlu0 %2181
    %2183 = vrot.lane.b32.xlu0 %v1614, 4
    %v2184 = vpop.permute.xlu0 %2183
    %2185 = vrot.lane.b32.xlu0 %v1616, 4
    %v2186 = vpop.permute.xlu0 %2185
    %2187 = vrot.lane.b32.xlu0 %v1619, 4
    %v2188 = vpop.permute.xlu0 %2187
    %2189 = vrot.lane.b32.xlu0 %v1621, 4
    %v2190 = vpop.permute.xlu0 %2189
    %2191 = vrot.lane.b32.xlu0 %v1624, 4
    %v2192 = vpop.permute.xlu0 %2191
    %2193 = vrot.lane.b32.xlu0 %v1626, 4
    %v2194 = vpop.permute.xlu0 %2193
    %2195 = vrot.lane.b32.xlu0 %v1629, 4
    %v2196 = vpop.permute.xlu0 %2195
    %2197 = vrot.lane.b32.xlu0 %v1631, 4
    %v2198 = vpop.permute.xlu0 %2197
    %2199 = vrot.lane.b32.xlu0 %v1634, 4
    %v2200 = vpop.permute.xlu0 %2199
    %2201 = vrot.lane.b32.xlu0 %v1636, 4
    %v2202 = vpop.permute.xlu0 %2201
    %2203 = vrot.lane.b32.xlu0 %v1639, 4
    %v2204 = vpop.permute.xlu0 %2203
    %2205 = vrot.lane.b32.xlu0 %v1641, 4
    %v2206 = vpop.permute.xlu0 %2205
    %2207 = vrot.lane.b32.xlu0 %v1644, 4
    %v2208 = vpop.permute.xlu0 %2207
    %2209 = vrot.lane.b32.xlu0 %v1646, 4
    %v2210 = vpop.permute.xlu0 %2209
    %2211 = vrot.lane.b32.xlu0 %v1649, 4
    %v2212 = vpop.permute.xlu0 %2211
    %2213 = vrot.lane.b32.xlu0 %v1651, 4
    %v2214 = vpop.permute.xlu0 %2213
    %2215 = vrot.lane.b32.xlu0 %v1654, 4
    %v2216 = vpop.permute.xlu0 %2215
    %2217 = vrot.lane.b32.xlu0 %v1656, 4
    %v2218 = vpop.permute.xlu0 %2217
    %2219 = vrot.lane.b32.xlu0 %v1659, 4
    %v2220 = vpop.permute.xlu0 %2219
    %2221 = vrot.lane.b32.xlu0 %v1661, 4
    %v2222 = vpop.permute.xlu0 %2221
    %2223 = vrot.lane.b32.xlu0 %v1664, 4
    %v2224 = vpop.permute.xlu0 %2223
    %2225 = vrot.lane.b32.xlu0 %v1666, 4
    %v2226 = vpop.permute.xlu0 %2225
    %2227 = vrot.lane.b32.xlu0 %v1669, 4
    %v2228 = vpop.permute.xlu0 %2227
    %2229 = vrot.lane.b32.xlu0 %v1671, 4
    %v2230 = vpop.permute.xlu0 %2229
    %2231 = vrot.lane.b32.xlu0 %v1674, 4
    %v2232 = vpop.permute.xlu0 %2231
    %2233 = vrot.lane.b32.xlu0 %v1676, 4
    %v2234 = vpop.permute.xlu0 %2233
    %2235 = vrot.lane.b32.xlu0 %v1679, 4
    %v2236 = vpop.permute.xlu0 %2235
    %2237 = vrot.lane.b32.xlu0 %v1681, 4
    %v2238 = vpop.permute.xlu0 %2237
    %2239 = vrot.lane.b32.xlu0 %v1684, 4
    %v2240 = vpop.permute.xlu0 %2239
    %2241 = vrot.lane.b32.xlu0 %v1686, 4
    %v2242 = vpop.permute.xlu0 %2241
    %2243 = vrot.lane.b32.xlu0 %v1689, 4
    %v2244 = vpop.permute.xlu0 %2243
    %2245 = vrot.lane.b32.xlu0 %v1691, 4
    %v2246 = vpop.permute.xlu0 %2245
    %2247 = vrot.lane.b32.xlu0 %v1694, 4
    %v2248 = vpop.permute.xlu0 %2247
    %2249 = vrot.lane.b32.xlu0 %v1696, 4
    %v2250 = vpop.permute.xlu0 %2249
    %2251 = vrot.lane.b32.xlu0 %v1699, 4
    %v2252 = vpop.permute.xlu0 %2251
    %2253 = vrot.lane.b32.xlu0 %v1701, 4
    %v2254 = vpop.permute.xlu0 %2253
    %2255 = vrot.lane.b32.xlu0 %v1704, 4
    %v2256 = vpop.permute.xlu0 %2255
    %2257 = vrot.lane.b32.xlu0 %v1706, 4
    %v2258 = vpop.permute.xlu0 %2257
    %2259 = vrot.lane.b32.xlu0 %v1709, 4
    %v2260 = vpop.permute.xlu0 %2259
    %2261 = vrot.lane.b32.xlu0 %v1711, 4
    %v2262 = vpop.permute.xlu0 %2261
    %2263 = vrot.lane.b32.xlu0 %v1714, 4
    %v2264 = vpop.permute.xlu0 %2263
    %2265 = vrot.lane.b32.xlu0 %v1716, 4
    %v2266 = vpop.permute.xlu0 %2265
    %2267 = vrot.lane.b32.xlu0 %v1719, 4
    %v2268 = vpop.permute.xlu0 %2267
    %2269 = vrot.lane.b32.xlu0 %v1721, 4
    %v2270 = vpop.permute.xlu0 %2269
    %2271 = vrot.lane.b32.xlu0 %v1724, 4
    %v2272 = vpop.permute.xlu0 %2271
    %2273 = vrot.lane.b32.xlu0 %v1726, 4
    %v2274 = vpop.permute.xlu0 %2273
    %2275 = vrot.lane.b32.xlu0 %v1729, 4
    %v2276 = vpop.permute.xlu0 %2275
    %2277 = vrot.lane.b32.xlu0 %v1731, 4
    %v2278 = vpop.permute.xlu0 %2277
    %2279 = vrot.lane.b32.xlu0 %v1734, 4
    %v2280 = vpop.permute.xlu0 %2279
    %2281 = vrot.lane.b32.xlu0 %v1736, 4
    %v2282 = vpop.permute.xlu0 %2281
    %2283 = vrot.lane.b32.xlu0 %v1739, 4
    %v2284 = vpop.permute.xlu0 %2283
    %2285 = vrot.lane.b32.xlu0 %v1741, 4
    %v2286 = vpop.permute.xlu0 %2285
    %2287 = vrot.lane.b32.xlu0 %v1744, 4
    %v2288 = vpop.permute.xlu0 %2287
    %2289 = vrot.lane.b32.xlu0 %v1746, 4
    %v2290 = vpop.permute.xlu0 %2289
    %2291 = vrot.lane.b32.xlu0 %v1749, 4
    %v2292 = vpop.permute.xlu0 %2291
    %2293 = vrot.lane.b32.xlu0 %v1751, 4
    %v2294 = vpop.permute.xlu0 %2293
    %2295 = vrot.lane.b32.xlu0 %v1754, 4
    %v2296 = vpop.permute.xlu0 %2295
    %2297 = vrot.lane.b32.xlu0 %v1756, 4
    %v2298 = vpop.permute.xlu0 %2297
    %2299 = vrot.lane.b32.xlu0 %v1759, 4
    %v2300 = vpop.permute.xlu0 %2299
    %2301 = vrot.lane.b32.xlu0 %v1761, 4
    %v2302 = vpop.permute.xlu0 %2301
    %2303 = vrot.lane.b32.xlu0 %v1764, 4
    %v2304 = vpop.permute.xlu0 %2303
    %2305 = vrot.lane.b32.xlu0 %v1766, 4
    %v2306 = vpop.permute.xlu0 %2305
    %2307 = vrot.lane.b32.xlu0 %v1769, 4
    %v2308 = vpop.permute.xlu0 %2307
    %2309 = vrot.lane.b32.xlu0 %v1771, 4
    %v2310 = vpop.permute.xlu0 %2309
    %2311 = vrot.lane.b32.xlu0 %v1774, 4
    %v2312 = vpop.permute.xlu0 %2311
    %2313 = vrot.lane.b32.xlu0 %v1776, 4
    %v2314 = vpop.permute.xlu0 %2313
    %2315 = vrot.lane.b32.xlu0 %v1779, 4
    %v2316 = vpop.permute.xlu0 %2315
    %2317 = vrot.lane.b32.xlu0 %v1781, 4
    %v2318 = vpop.permute.xlu0 %2317
    %2319 = vrot.lane.b32.xlu0 %v1784, 4
    %v2320 = vpop.permute.xlu0 %2319
    %2321 = vrot.lane.b32.xlu0 %v1786, 4
    %v2322 = vpop.permute.xlu0 %2321
    %2323 = vrot.lane.b32.xlu0 %v1789, 4
    %v2324 = vpop.permute.xlu0 %2323
    %2325 = vrot.lane.b32.xlu0 %v1791, 4
    %v2326 = vpop.permute.xlu0 %2325
    %2327 = vrot.lane.b32.xlu0 %v1794, 4
    %v2328 = vpop.permute.xlu0 %2327
    %2329 = vrot.lane.b32.xlu0 %v1796, 4
    %v2330 = vpop.permute.xlu0 %2329
    %2331 = vrot.lane.b32.xlu0 %v1799, 4
    %v2332 = vpop.permute.xlu0 %2331
    %2333 = vrot.lane.b32.xlu0 %v1801, 4
    %v2334 = vpop.permute.xlu0 %2333
    %2335 = vrot.lane.b32.xlu0 %v1804, 4
    %v2336 = vpop.permute.xlu0 %2335
    %2337 = vrot.lane.b32.xlu0 %v1806, 4
    %v2338 = vpop.permute.xlu0 %2337
    %2339 = vrot.lane.b32.xlu0 %v1809, 4
    %v2340 = vpop.permute.xlu0 %2339
    %2341 = vrot.lane.b32.xlu0 %v1811, 4
    %v2342 = vpop.permute.xlu0 %2341
    %2343 = vrot.lane.b32.xlu0 %v1814, 4
    %v2344 = vpop.permute.xlu0 %2343
    %2345 = vrot.lane.b32.xlu0 %v1816, 4
    %v2346 = vpop.permute.xlu0 %2345
    %2347 = vrot.lane.b32.xlu0 %v1819, 4
    %v2348 = vpop.permute.xlu0 %2347
    %2349 = vrot.lane.b32.xlu0 %v1821, 4
    %v2350 = vpop.permute.xlu0 %2349
    %2351 = vrot.lane.b32.xlu0 %v1824, 4
    %v2352 = vpop.permute.xlu0 %2351
    %2353 = vrot.lane.b32.xlu0 %v1826, 4
    %v2354 = vpop.permute.xlu0 %2353
    %2355 = vrot.lane.b32.xlu0 %v1829, 4
    %v2356 = vpop.permute.xlu0 %2355
    %2357 = vrot.lane.b32.xlu0 %v1831, 4
    %v2358 = vpop.permute.xlu0 %2357
    %2359 = vrot.lane.b32.xlu0 %v1834, 4
    %v2360 = vpop.permute.xlu0 %2359
    %2361 = vrot.lane.b32.xlu0 %v1836, 4
    %v2362 = vpop.permute.xlu0 %2361
    %2363 = vrot.lane.b32.xlu0 %v1839, 4
    %v2364 = vpop.permute.xlu0 %2363
    %2365 = vrot.lane.b32.xlu0 %v1841, 4
    %v2366 = vpop.permute.xlu0 %2365
    %2367 = vrot.lane.b32.xlu0 %v1844, 4
    %v2368 = vpop.permute.xlu0 %2367
    %2369 = vrot.lane.b32.xlu0 %v1846, 4
    %v2370 = vpop.permute.xlu0 %2369
    %2371 = vrot.lane.b32.xlu0 %v1849, 4
    %v2372 = vpop.permute.xlu0 %2371
    %2373 = vrot.lane.b32.xlu0 %v1851, 4
    %v2374 = vpop.permute.xlu0 %2373
    %2375 = vrot.lane.b32.xlu0 %v1854, 4
    %v2376 = vpop.permute.xlu0 %2375
    %2377 = vrot.lane.b32.xlu0 %v1856, 4
    %v2378 = vpop.permute.xlu0 %2377
    %2379 = vrot.lane.b32.xlu0 %v1859, 4
    %v2380 = vpop.permute.xlu0 %2379
    %2381 = vrot.lane.b32.xlu0 %v1861, 4
    %v2382 = vpop.permute.xlu0 %2381
    %2383 = vrot.lane.b32.xlu0 %v1864, 4
    %v2384 = vpop.permute.xlu0 %2383
    %2385 = vrot.lane.b32.xlu0 %v1866, 4
    %v2386 = vpop.permute.xlu0 %2385
    %2387 = vrot.lane.b32.xlu0 %v1869, 4
    %v2388 = vpop.permute.xlu0 %2387
    %2389 = vrot.lane.b32.xlu0 %v1871, 4
    %v2390 = vpop.permute.xlu0 %2389
    %2391 = vrot.lane.b32.xlu0 %v1874, 4
    %v2392 = vpop.permute.xlu0 %2391
    %2393 = vrot.lane.b32.xlu0 %v1876, 4
    %v2394 = vpop.permute.xlu0 %2393
    %2395 = vrot.lane.b32.xlu0 %v1879, 4
    %v2396 = vpop.permute.xlu0 %2395
    %2397 = vrot.lane.b32.xlu0 %v1881, 4
    %v2398 = vpop.permute.xlu0 %2397
    %2399 = vrot.lane.b32.xlu0 %v1884, 4
    %v2400 = vpop.permute.xlu0 %2399
    %2401 = vrot.lane.b32.xlu0 %v1886, 4
    %v2402 = vpop.permute.xlu0 %2401
    %2403 = vrot.lane.b32.xlu0 %v1889, 4
    %v2404 = vpop.permute.xlu0 %2403
    %2405 = vrot.lane.b32.xlu0 %v1891, 4
    %v2406 = vpop.permute.xlu0 %2405
    %2407 = vrot.lane.b32.xlu0 %v1894, 4
    %v2408 = vpop.permute.xlu0 %2407
    %2409 = vrot.lane.b32.xlu0 %v1896, 4
    %v2410 = vpop.permute.xlu0 %2409
    %2411 = vrot.lane.b32.xlu0 %v1899, 4
    %v2412 = vpop.permute.xlu0 %2411
    %2413 = vrot.lane.b32.xlu0 %v1901, 4
    %v2414 = vpop.permute.xlu0 %2413
    %2415 = vrot.lane.b32.xlu0 %v1904, 4
    %v2416 = vpop.permute.xlu0 %2415
    %2417 = vrot.lane.b32.xlu0 %v1906, 4
    %v2418 = vpop.permute.xlu0 %2417
    %vm2675 = vcmask 1045504
    %v2676 = vrot.slane %v450, 2
    %v2677 = vrot.slane %v451, 2
    %v2678 = vsel %vm2675, %v2676, %v2677
    %v2679 = vrot.slane %v452, 2
    %v2680 = vsel %vm2675, %v2677, %v2679
    %v2681 = vrot.slane %v453, 2
    %v2682 = vrot.slane %v454, 2
    %v2683 = vsel %vm2675, %v2681, %v2682
    %v2684 = vrot.slane %v455, 2
    %v2685 = vsel %vm2675, %v2682, %v2684
    %v2686 = vrot.slane %v456, 2
    %v2687 = vrot.slane %v457, 2
    %v2688 = vsel %vm2675, %v2686, %v2687
    %v2689 = vrot.slane %v458, 2
    %v2690 = vsel %vm2675, %v2687, %v2689
    %v2691 = vrot.slane %v459, 2
    %v2692 = vrot.slane %v460, 2
    %v2693 = vsel %vm2675, %v2691, %v2692
    %v2694 = vrot.slane %v461, 2
    %v2695 = vsel %vm2675, %v2692, %v2694
    %v2696 = vrot.slane %v462, 2
    %v2697 = vrot.slane %v463, 2
    %v2698 = vsel %vm2675, %v2696, %v2697
    %v2699 = vrot.slane %v464, 2
    %v2700 = vsel %vm2675, %v2697, %v2699
    %v2701 = vrot.slane %v465, 2
    %v2702 = vrot.slane %v466, 2
    %v2703 = vsel %vm2675, %v2701, %v2702
    %v2704 = vrot.slane %v467, 2
    %v2705 = vsel %vm2675, %v2702, %v2704
    %v2706 = vrot.slane %v468, 2
    %v2707 = vrot.slane %v469, 2
    %v2708 = vsel %vm2675, %v2706, %v2707
    %v2709 = vrot.slane %v470, 2
    %v2710 = vsel %vm2675, %v2707, %v2709
    %v2711 = vrot.slane %v471, 2
    %v2712 = vrot.slane %v472, 2
    %v2713 = vsel %vm2675, %v2711, %v2712
    %v2714 = vrot.slane %v473, 2
    %v2715 = vsel %vm2675, %v2712, %v2714
    %v2716 = vrot.slane %v474, 2
    %v2717 = vrot.slane %v475, 2
    %v2718 = vsel %vm2675, %v2716, %v2717
    %v2719 = vrot.slane %v476, 2
    %v2720 = vsel %vm2675, %v2717, %v2719
    %v2721 = vrot.slane %v477, 2
    %v2722 = vrot.slane %v478, 2
    %v2723 = vsel %vm2675, %v2721, %v2722
    %v2724 = vrot.slane %v479, 2
    %v2725 = vsel %vm2675, %v2722, %v2724
    %v2726 = vrot.slane %v480, 2
    %v2727 = vrot.slane %v481, 2
    %v2728 = vsel %vm2675, %v2726, %v2727
    %v2729 = vrot.slane %v482, 2
    %v2730 = vsel %vm2675, %v2727, %v2729
    %v2731 = vrot.slane %v483, 2
    %v2732 = vrot.slane %v484, 2
    %v2733 = vsel %vm2675, %v2731, %v2732
    %v2734 = vrot.slane %v485, 2
    %v2735 = vsel %vm2675, %v2732, %v2734
    %v2736 = vrot.slane %v486, 2
    %v2737 = vrot.slane %v487, 2
    %v2738 = vsel %vm2675, %v2736, %v2737
    %v2739 = vrot.slane %v488, 2
    %v2740 = vsel %vm2675, %v2737, %v2739
    %v2741 = vrot.slane %v489, 2
    %v2742 = vrot.slane %v490, 2
    %v2743 = vsel %vm2675, %v2741, %v2742
    %v2744 = vrot.slane %v491, 2
    %v2745 = vsel %vm2675, %v2742, %v2744
    %v2746 = vrot.slane %v492, 2
    %v2747 = vrot.slane %v493, 2
    %v2748 = vsel %vm2675, %v2746, %v2747
    %v2749 = vrot.slane %v494, 2
    %v2750 = vsel %vm2675, %v2747, %v2749
    %v2751 = vrot.slane %v495, 2
    %v2752 = vrot.slane %v496, 2
    %v2753 = vsel %vm2675, %v2751, %v2752
    %v2754 = vrot.slane %v497, 2
    %v2755 = vsel %vm2675, %v2752, %v2754
    %v2756 = vrot.slane %v504, 2
    %v2757 = vrot.slane %v505, 2
    %v2758 = vsel %vm2675, %v2756, %v2757
    %v2759 = vrot.slane %v506, 2
    %v2760 = vsel %vm2675, %v2757, %v2759
    %v2761 = vrot.slane %v507, 2
    %v2762 = vrot.slane %v508, 2
    %v2763 = vsel %vm2675, %v2761, %v2762
    %v2764 = vrot.slane %v509, 2
    %v2765 = vsel %vm2675, %v2762, %v2764
    %v2766 = vrot.slane %v510, 2
    %v2767 = vrot.slane %v511, 2
    %v2768 = vsel %vm2675, %v2766, %v2767
    %v2769 = vrot.slane %v512, 2
    %v2770 = vsel %vm2675, %v2767, %v2769
    %v2771 = vrot.slane %v513, 2
    %v2772 = vrot.slane %v514, 2
    %v2773 = vsel %vm2675, %v2771, %v2772
    %v2774 = vrot.slane %v515, 2
    %v2775 = vsel %vm2675, %v2772, %v2774
    %v2776 = vrot.slane %v516, 2
    %v2777 = vrot.slane %v517, 2
    %v2778 = vsel %vm2675, %v2776, %v2777
    %v2779 = vrot.slane %v518, 2
    %v2780 = vsel %vm2675, %v2777, %v2779
    %v2781 = vrot.slane %v519, 2
    %v2782 = vrot.slane %v520, 2
    %v2783 = vsel %vm2675, %v2781, %v2782
    %v2784 = vrot.slane %v521, 2
    %v2785 = vsel %vm2675, %v2782, %v2784
    %v2786 = vrot.slane %v522, 2
    %v2787 = vrot.slane %v523, 2
    %v2788 = vsel %vm2675, %v2786, %v2787
    %v2789 = vrot.slane %v524, 2
    %v2790 = vsel %vm2675, %v2787, %v2789
    %v2791 = vrot.slane %v525, 2
    %v2792 = vrot.slane %v526, 2
    %v2793 = vsel %vm2675, %v2791, %v2792
    %v2794 = vrot.slane %v527, 2
    %v2795 = vsel %vm2675, %v2792, %v2794
    %v2796 = vrot.slane %v528, 2
    %v2797 = vrot.slane %v529, 2
    %v2798 = vsel %vm2675, %v2796, %v2797
    %v2799 = vrot.slane %v530, 2
    %v2800 = vsel %vm2675, %v2797, %v2799
    %v2801 = vrot.slane %v531, 2
    %v2802 = vrot.slane %v532, 2
    %v2803 = vsel %vm2675, %v2801, %v2802
    %v2804 = vrot.slane %v533, 2
    %v2805 = vsel %vm2675, %v2802, %v2804
    %v2806 = vrot.slane %v534, 2
    %v2807 = vrot.slane %v535, 2
    %v2808 = vsel %vm2675, %v2806, %v2807
    %v2809 = vrot.slane %v536, 2
    %v2810 = vsel %vm2675, %v2807, %v2809
    %v2811 = vrot.slane %v537, 2
    %v2812 = vrot.slane %v538, 2
    %v2813 = vsel %vm2675, %v2811, %v2812
    %v2814 = vrot.slane %v539, 2
    %v2815 = vsel %vm2675, %v2812, %v2814
    %v2816 = vrot.slane %v540, 2
    %v2817 = vrot.slane %v541, 2
    %v2818 = vsel %vm2675, %v2816, %v2817
    %v2819 = vrot.slane %v542, 2
    %v2820 = vsel %vm2675, %v2817, %v2819
    %v2821 = vrot.slane %v543, 2
    %v2822 = vrot.slane %v544, 2
    %v2823 = vsel %vm2675, %v2821, %v2822
    %v2824 = vrot.slane %v545, 2
    %v2825 = vsel %vm2675, %v2822, %v2824
    %v2826 = vrot.slane %v546, 2
    %v2827 = vrot.slane %v547, 2
    %v2828 = vsel %vm2675, %v2826, %v2827
    %v2829 = vrot.slane %v548, 2
    %v2830 = vsel %vm2675, %v2827, %v2829
    %v2831 = vrot.slane %v549, 2
    %v2832 = vrot.slane %v550, 2
    %v2833 = vsel %vm2675, %v2831, %v2832
    %v2834 = vrot.slane %v551, 2
    %v2835 = vsel %vm2675, %v2832, %v2834
    %v2836 = vrot.slane %v558, 2
    %v2837 = vrot.slane %v559, 2
    %v2838 = vsel %vm2675, %v2836, %v2837
    %v2839 = vrot.slane %v560, 2
    %v2840 = vsel %vm2675, %v2837, %v2839
    %v2841 = vrot.slane %v561, 2
    %v2842 = vrot.slane %v562, 2
    %v2843 = vsel %vm2675, %v2841, %v2842
    %v2844 = vrot.slane %v563, 2
    %v2845 = vsel %vm2675, %v2842, %v2844
    %v2846 = vrot.slane %v564, 2
    %v2847 = vrot.slane %v565, 2
    %v2848 = vsel %vm2675, %v2846, %v2847
    %v2849 = vrot.slane %v566, 2
    %v2850 = vsel %vm2675, %v2847, %v2849
    %v2851 = vrot.slane %v567, 2
    %v2852 = vrot.slane %v568, 2
    %v2853 = vsel %vm2675, %v2851, %v2852
    %v2854 = vrot.slane %v569, 2
    %v2855 = vsel %vm2675, %v2852, %v2854
    %v2856 = vrot.slane %v570, 2
    %v2857 = vrot.slane %v571, 2
    %v2858 = vsel %vm2675, %v2856, %v2857
    %v2859 = vrot.slane %v572, 2
    %v2860 = vsel %vm2675, %v2857, %v2859
    %v2861 = vrot.slane %v573, 2
    %v2862 = vrot.slane %v574, 2
    %v2863 = vsel %vm2675, %v2861, %v2862
    %v2864 = vrot.slane %v575, 2
    %v2865 = vsel %vm2675, %v2862, %v2864
    %v2866 = vrot.slane %v576, 2
    %v2867 = vrot.slane %v577, 2
    %v2868 = vsel %vm2675, %v2866, %v2867
    %v2869 = vrot.slane %v578, 2
    %v2870 = vsel %vm2675, %v2867, %v2869
    %v2871 = vrot.slane %v579, 2
    %v2872 = vrot.slane %v580, 2
    %v2873 = vsel %vm2675, %v2871, %v2872
    %v2874 = vrot.slane %v581, 2
    %v2875 = vsel %vm2675, %v2872, %v2874
    %v2876 = vrot.slane %v582, 2
    %v2877 = vrot.slane %v583, 2
    %v2878 = vsel %vm2675, %v2876, %v2877
    %v2879 = vrot.slane %v584, 2
    %v2880 = vsel %vm2675, %v2877, %v2879
    %v2881 = vrot.slane %v585, 2
    %v2882 = vrot.slane %v586, 2
    %v2883 = vsel %vm2675, %v2881, %v2882
    %v2884 = vrot.slane %v587, 2
    %v2885 = vsel %vm2675, %v2882, %v2884
    %v2886 = vrot.slane %v588, 2
    %v2887 = vrot.slane %v589, 2
    %v2888 = vsel %vm2675, %v2886, %v2887
    %v2889 = vrot.slane %v590, 2
    %v2890 = vsel %vm2675, %v2887, %v2889
    %v2891 = vrot.slane %v591, 2
    %v2892 = vrot.slane %v592, 2
    %v2893 = vsel %vm2675, %v2891, %v2892
    %v2894 = vrot.slane %v593, 2
    %v2895 = vsel %vm2675, %v2892, %v2894
    %v2896 = vrot.slane %v594, 2
    %v2897 = vrot.slane %v595, 2
    %v2898 = vsel %vm2675, %v2896, %v2897
    %v2899 = vrot.slane %v596, 2
    %v2900 = vsel %vm2675, %v2897, %v2899
    %v2901 = vrot.slane %v597, 2
    %v2902 = vrot.slane %v598, 2
    %v2903 = vsel %vm2675, %v2901, %v2902
    %v2904 = vrot.slane %v599, 2
    %v2905 = vsel %vm2675, %v2902, %v2904
    %v2906 = vrot.slane %v600, 2
    %v2907 = vrot.slane %v601, 2
    %v2908 = vsel %vm2675, %v2906, %v2907
    %v2909 = vrot.slane %v602, 2
    %v2910 = vsel %vm2675, %v2907, %v2909
    %v2911 = vrot.slane %v603, 2
    %v2912 = vrot.slane %v604, 2
    %v2913 = vsel %vm2675, %v2911, %v2912
    %v2914 = vrot.slane %v605, 2
    %v2915 = vsel %vm2675, %v2912, %v2914
    %v2916 = vrot.slane %v612, 2
    %v2917 = vrot.slane %v613, 2
    %v2918 = vsel %vm2675, %v2916, %v2917
    %v2919 = vrot.slane %v614, 2
    %v2920 = vsel %vm2675, %v2917, %v2919
    %v2921 = vrot.slane %v615, 2
    %v2922 = vrot.slane %v616, 2
    %v2923 = vsel %vm2675, %v2921, %v2922
    %v2924 = vrot.slane %v617, 2
    %v2925 = vsel %vm2675, %v2922, %v2924
    %v2926 = vrot.slane %v618, 2
    %v2927 = vrot.slane %v619, 2
    %v2928 = vsel %vm2675, %v2926, %v2927
    %v2929 = vrot.slane %v620, 2
    %v2930 = vsel %vm2675, %v2927, %v2929
    %v2931 = vrot.slane %v621, 2
    %v2932 = vrot.slane %v622, 2
    %v2933 = vsel %vm2675, %v2931, %v2932
    %v2934 = vrot.slane %v623, 2
    %v2935 = vsel %vm2675, %v2932, %v2934
    %v2936 = vrot.slane %v624, 2
    %v2937 = vrot.slane %v625, 2
    %v2938 = vsel %vm2675, %v2936, %v2937
    %v2939 = vrot.slane %v626, 2
    %v2940 = vsel %vm2675, %v2937, %v2939
    %v2941 = vrot.slane %v627, 2
    %v2942 = vrot.slane %v628, 2
    %v2943 = vsel %vm2675, %v2941, %v2942
    %v2944 = vrot.slane %v629, 2
    %v2945 = vsel %vm2675, %v2942, %v2944
    %v2946 = vrot.slane %v630, 2
    %v2947 = vrot.slane %v631, 2
    %v2948 = vsel %vm2675, %v2946, %v2947
    %v2949 = vrot.slane %v632, 2
    %v2950 = vsel %vm2675, %v2947, %v2949
    %v2951 = vrot.slane %v633, 2
    %v2952 = vrot.slane %v634, 2
    %v2953 = vsel %vm2675, %v2951, %v2952
    %v2954 = vrot.slane %v635, 2
    %v2955 = vsel %vm2675, %v2952, %v2954
    %v2956 = vrot.slane %v636, 2
    %v2957 = vrot.slane %v637, 2
    %v2958 = vsel %vm2675, %v2956, %v2957
    %v2959 = vrot.slane %v638, 2
    %v2960 = vsel %vm2675, %v2957, %v2959
    %v2961 = vrot.slane %v639, 2
    %v2962 = vrot.slane %v640, 2
    %v2963 = vsel %vm2675, %v2961, %v2962
    %v2964 = vrot.slane %v641, 2
    %v2965 = vsel %vm2675, %v2962, %v2964
    %v2966 = vrot.slane %v642, 2
    %v2967 = vrot.slane %v643, 2
    %v2968 = vsel %vm2675, %v2966, %v2967
    %v2969 = vrot.slane %v644, 2
    %v2970 = vsel %vm2675, %v2967, %v2969
    %v2971 = vrot.slane %v645, 2
    %v2972 = vrot.slane %v646, 2
    %v2973 = vsel %vm2675, %v2971, %v2972
    %v2974 = vrot.slane %v647, 2
    %v2975 = vsel %vm2675, %v2972, %v2974
    %v2976 = vrot.slane %v648, 2
    %v2977 = vrot.slane %v649, 2
    %v2978 = vsel %vm2675, %v2976, %v2977
    %v2979 = vrot.slane %v650, 2
    %v2980 = vsel %vm2675, %v2977, %v2979
    %v2981 = vrot.slane %v651, 2
    %v2982 = vrot.slane %v652, 2
    %v2983 = vsel %vm2675, %v2981, %v2982
    %v2984 = vrot.slane %v653, 2
    %v2985 = vsel %vm2675, %v2982, %v2984
    %v2986 = vrot.slane %v654, 2
    %v2987 = vrot.slane %v655, 2
    %v2988 = vsel %vm2675, %v2986, %v2987
    %v2989 = vrot.slane %v656, 2
    %v2990 = vsel %vm2675, %v2987, %v2989
    %v2991 = vrot.slane %v657, 2
    %v2992 = vrot.slane %v658, 2
    %v2993 = vsel %vm2675, %v2991, %v2992
    %v2994 = vrot.slane %v659, 2
    %v2995 = vsel %vm2675, %v2992, %v2994
    %v2996 = vrot.slane %v666, 2
    %v2997 = vrot.slane %v667, 2
    %v2998 = vsel %vm2675, %v2996, %v2997
    %v2999 = vrot.slane %v668, 2
    %v3000 = vsel %vm2675, %v2997, %v2999
    %v3001 = vrot.slane %v669, 2
    %v3002 = vrot.slane %v670, 2
    %v3003 = vsel %vm2675, %v3001, %v3002
    %v3004 = vrot.slane %v671, 2
    %v3005 = vsel %vm2675, %v3002, %v3004
    %v3006 = vrot.slane %v672, 2
    %v3007 = vrot.slane %v673, 2
    %v3008 = vsel %vm2675, %v3006, %v3007
    %v3009 = vrot.slane %v674, 2
    %v3010 = vsel %vm2675, %v3007, %v3009
    %v3011 = vrot.slane %v675, 2
    %v3012 = vrot.slane %v676, 2
    %v3013 = vsel %vm2675, %v3011, %v3012
    %v3014 = vrot.slane %v677, 2
    %v3015 = vsel %vm2675, %v3012, %v3014
    %v3016 = vrot.slane %v678, 2
    %v3017 = vrot.slane %v679, 2
    %v3018 = vsel %vm2675, %v3016, %v3017
    %v3019 = vrot.slane %v680, 2
    %v3020 = vsel %vm2675, %v3017, %v3019
    %v3021 = vrot.slane %v681, 2
    %v3022 = vrot.slane %v682, 2
    %v3023 = vsel %vm2675, %v3021, %v3022
    %v3024 = vrot.slane %v683, 2
    %v3025 = vsel %vm2675, %v3022, %v3024
    %v3026 = vrot.slane %v684, 2
    %v3027 = vrot.slane %v685, 2
    %v3028 = vsel %vm2675, %v3026, %v3027
    %v3029 = vrot.slane %v686, 2
    %v3030 = vsel %vm2675, %v3027, %v3029
    %v3031 = vrot.slane %v687, 2
    %v3032 = vrot.slane %v688, 2
    %v3033 = vsel %vm2675, %v3031, %v3032
    %v3034 = vrot.slane %v689, 2
    %v3035 = vsel %vm2675, %v3032, %v3034
    %v3036 = vrot.slane %v690, 2
    %v3037 = vrot.slane %v691, 2
    %v3038 = vsel %vm2675, %v3036, %v3037
    %v3039 = vrot.slane %v692, 2
    %v3040 = vsel %vm2675, %v3037, %v3039
    %v3041 = vrot.slane %v693, 2
    %v3042 = vrot.slane %v694, 2
    %v3043 = vsel %vm2675, %v3041, %v3042
    %v3044 = vrot.slane %v695, 2
    %v3045 = vsel %vm2675, %v3042, %v3044
    %v3046 = vrot.slane %v696, 2
    %v3047 = vrot.slane %v697, 2
    %v3048 = vsel %vm2675, %v3046, %v3047
    %v3049 = vrot.slane %v698, 2
    %v3050 = vsel %vm2675, %v3047, %v3049
    %v3051 = vrot.slane %v699, 2
    %v3052 = vrot.slane %v700, 2
    %v3053 = vsel %vm2675, %v3051, %v3052
    %v3054 = vrot.slane %v701, 2
    %v3055 = vsel %vm2675, %v3052, %v3054
    %v3056 = vrot.slane %v702, 2
    %v3057 = vrot.slane %v703, 2
    %v3058 = vsel %vm2675, %v3056, %v3057
    %v3059 = vrot.slane %v704, 2
    %v3060 = vsel %vm2675, %v3057, %v3059
    %v3061 = vrot.slane %v705, 2
    %v3062 = vrot.slane %v706, 2
    %v3063 = vsel %vm2675, %v3061, %v3062
    %v3064 = vrot.slane %v707, 2
    %v3065 = vsel %vm2675, %v3062, %v3064
    %v3066 = vrot.slane %v708, 2
    %v3067 = vrot.slane %v709, 2
    %v3068 = vsel %vm2675, %v3066, %v3067
    %v3069 = vrot.slane %v710, 2
    %v3070 = vsel %vm2675, %v3067, %v3069
    %v3071 = vrot.slane %v711, 2
    %v3072 = vrot.slane %v712, 2
    %v3073 = vsel %vm2675, %v3071, %v3072
    %v3074 = vrot.slane %v713, 2
    %v3075 = vsel %vm2675, %v3072, %v3074
    %v3076 = vrot.slane %v720, 2
    %v3077 = vrot.slane %v721, 2
    %v3078 = vsel %vm2675, %v3076, %v3077
    %v3079 = vrot.slane %v722, 2
    %v3080 = vsel %vm2675, %v3077, %v3079
    %v3081 = vrot.slane %v723, 2
    %v3082 = vrot.slane %v724, 2
    %v3083 = vsel %vm2675, %v3081, %v3082
    %v3084 = vrot.slane %v725, 2
    %v3085 = vsel %vm2675, %v3082, %v3084
    %v3086 = vrot.slane %v726, 2
    %v3087 = vrot.slane %v727, 2
    %v3088 = vsel %vm2675, %v3086, %v3087
    %v3089 = vrot.slane %v728, 2
    %v3090 = vsel %vm2675, %v3087, %v3089
    %v3091 = vrot.slane %v729, 2
    %v3092 = vrot.slane %v730, 2
    %v3093 = vsel %vm2675, %v3091, %v3092
    %v3094 = vrot.slane %v731, 2
    %v3095 = vsel %vm2675, %v3092, %v3094
    %v3096 = vrot.slane %v732, 2
    %v3097 = vrot.slane %v733, 2
    %v3098 = vsel %vm2675, %v3096, %v3097
    %v3099 = vrot.slane %v734, 2
    %v3100 = vsel %vm2675, %v3097, %v3099
    %v3101 = vrot.slane %v735, 2
    %v3102 = vrot.slane %v736, 2
    %v3103 = vsel %vm2675, %v3101, %v3102
    %v3104 = vrot.slane %v737, 2
    %v3105 = vsel %vm2675, %v3102, %v3104
    %v3106 = vrot.slane %v738, 2
    %v3107 = vrot.slane %v739, 2
    %v3108 = vsel %vm2675, %v3106, %v3107
    %v3109 = vrot.slane %v740, 2
    %v3110 = vsel %vm2675, %v3107, %v3109
    %v3111 = vrot.slane %v741, 2
    %v3112 = vrot.slane %v742, 2
    %v3113 = vsel %vm2675, %v3111, %v3112
    %v3114 = vrot.slane %v743, 2
    %v3115 = vsel %vm2675, %v3112, %v3114
    %v3116 = vrot.slane %v744, 2
    %v3117 = vrot.slane %v745, 2
    %v3118 = vsel %vm2675, %v3116, %v3117
    %v3119 = vrot.slane %v746, 2
    %v3120 = vsel %vm2675, %v3117, %v3119
    %v3121 = vrot.slane %v747, 2
    %v3122 = vrot.slane %v748, 2
    %v3123 = vsel %vm2675, %v3121, %v3122
    %v3124 = vrot.slane %v749, 2
    %v3125 = vsel %vm2675, %v3122, %v3124
    %v3126 = vrot.slane %v750, 2
    %v3127 = vrot.slane %v751, 2
    %v3128 = vsel %vm2675, %v3126, %v3127
    %v3129 = vrot.slane %v752, 2
    %v3130 = vsel %vm2675, %v3127, %v3129
    %v3131 = vrot.slane %v753, 2
    %v3132 = vrot.slane %v754, 2
    %v3133 = vsel %vm2675, %v3131, %v3132
    %v3134 = vrot.slane %v755, 2
    %v3135 = vsel %vm2675, %v3132, %v3134
    %v3136 = vrot.slane %v756, 2
    %v3137 = vrot.slane %v757, 2
    %v3138 = vsel %vm2675, %v3136, %v3137
    %v3139 = vrot.slane %v758, 2
    %v3140 = vsel %vm2675, %v3137, %v3139
    %v3141 = vrot.slane %v759, 2
    %v3142 = vrot.slane %v760, 2
    %v3143 = vsel %vm2675, %v3141, %v3142
    %v3144 = vrot.slane %v761, 2
    %v3145 = vsel %vm2675, %v3142, %v3144
    %v3146 = vrot.slane %v762, 2
    %v3147 = vrot.slane %v763, 2
    %v3148 = vsel %vm2675, %v3146, %v3147
    %v3149 = vrot.slane %v764, 2
    %v3150 = vsel %vm2675, %v3147, %v3149
    %v3151 = vrot.slane %v765, 2
    %v3152 = vrot.slane %v766, 2
    %v3153 = vsel %vm2675, %v3151, %v3152
    %v3154 = vrot.slane %v767, 2
    %v3155 = vsel %vm2675, %v3152, %v3154
    %v3156 = vrot.slane %v774, 2
    %v3157 = vrot.slane %v775, 2
    %v3158 = vsel %vm2675, %v3156, %v3157
    %v3159 = vrot.slane %v776, 2
    %v3160 = vsel %vm2675, %v3157, %v3159
    %v3161 = vrot.slane %v777, 2
    %v3162 = vrot.slane %v778, 2
    %v3163 = vsel %vm2675, %v3161, %v3162
    %v3164 = vrot.slane %v779, 2
    %v3165 = vsel %vm2675, %v3162, %v3164
    %v3166 = vrot.slane %v780, 2
    %v3167 = vrot.slane %v781, 2
    %v3168 = vsel %vm2675, %v3166, %v3167
    %v3169 = vrot.slane %v782, 2
    %v3170 = vsel %vm2675, %v3167, %v3169
    %v3171 = vrot.slane %v783, 2
    %v3172 = vrot.slane %v784, 2
    %v3173 = vsel %vm2675, %v3171, %v3172
    %v3174 = vrot.slane %v785, 2
    %v3175 = vsel %vm2675, %v3172, %v3174
    %v3176 = vrot.slane %v786, 2
    %v3177 = vrot.slane %v787, 2
    %v3178 = vsel %vm2675, %v3176, %v3177
    %v3179 = vrot.slane %v788, 2
    %v3180 = vsel %vm2675, %v3177, %v3179
    %v3181 = vrot.slane %v789, 2
    %v3182 = vrot.slane %v790, 2
    %v3183 = vsel %vm2675, %v3181, %v3182
    %v3184 = vrot.slane %v791, 2
    %v3185 = vsel %vm2675, %v3182, %v3184
    %v3186 = vrot.slane %v792, 2
    %v3187 = vrot.slane %v793, 2
    %v3188 = vsel %vm2675, %v3186, %v3187
    %v3189 = vrot.slane %v794, 2
    %v3190 = vsel %vm2675, %v3187, %v3189
    %v3191 = vrot.slane %v795, 2
    %v3192 = vrot.slane %v796, 2
    %v3193 = vsel %vm2675, %v3191, %v3192
    %v3194 = vrot.slane %v797, 2
    %v3195 = vsel %vm2675, %v3192, %v3194
    %v3196 = vrot.slane %v798, 2
    %v3197 = vrot.slane %v799, 2
    %v3198 = vsel %vm2675, %v3196, %v3197
    %v3199 = vrot.slane %v800, 2
    %v3200 = vsel %vm2675, %v3197, %v3199
    %v3201 = vrot.slane %v801, 2
    %v3202 = vrot.slane %v802, 2
    %v3203 = vsel %vm2675, %v3201, %v3202
    %v3204 = vrot.slane %v803, 2
    %v3205 = vsel %vm2675, %v3202, %v3204
    %v3206 = vrot.slane %v804, 2
    %v3207 = vrot.slane %v805, 2
    %v3208 = vsel %vm2675, %v3206, %v3207
    %v3209 = vrot.slane %v806, 2
    %v3210 = vsel %vm2675, %v3207, %v3209
    %v3211 = vrot.slane %v807, 2
    %v3212 = vrot.slane %v808, 2
    %v3213 = vsel %vm2675, %v3211, %v3212
    %v3214 = vrot.slane %v809, 2
    %v3215 = vsel %vm2675, %v3212, %v3214
    %v3216 = vrot.slane %v810, 2
    %v3217 = vrot.slane %v811, 2
    %v3218 = vsel %vm2675, %v3216, %v3217
    %v3219 = vrot.slane %v812, 2
    %v3220 = vsel %vm2675, %v3217, %v3219
    %v3221 = vrot.slane %v813, 2
    %v3222 = vrot.slane %v814, 2
    %v3223 = vsel %vm2675, %v3221, %v3222
    %v3224 = vrot.slane %v815, 2
    %v3225 = vsel %vm2675, %v3222, %v3224
    %v3226 = vrot.slane %v816, 2
    %v3227 = vrot.slane %v817, 2
    %v3228 = vsel %vm2675, %v3226, %v3227
    %v3229 = vrot.slane %v818, 2
    %v3230 = vsel %vm2675, %v3227, %v3229
    %v3231 = vrot.slane %v819, 2
    %v3232 = vrot.slane %v820, 2
    %v3233 = vsel %vm2675, %v3231, %v3232
    %v3234 = vrot.slane %v821, 2
    %v3235 = vsel %vm2675, %v3232, %v3234
    %v3236 = vrot.slane %v828, 2
    %v3237 = vrot.slane %v829, 2
    %v3238 = vsel %vm2675, %v3236, %v3237
    %v3239 = vrot.slane %v830, 2
    %v3240 = vsel %vm2675, %v3237, %v3239
    %v3241 = vrot.slane %v831, 2
    %v3242 = vrot.slane %v832, 2
    %v3243 = vsel %vm2675, %v3241, %v3242
    %v3244 = vrot.slane %v833, 2
    %v3245 = vsel %vm2675, %v3242, %v3244
    %v3246 = vrot.slane %v834, 2
    %v3247 = vrot.slane %v835, 2
    %v3248 = vsel %vm2675, %v3246, %v3247
    %v3249 = vrot.slane %v836, 2
    %v3250 = vsel %vm2675, %v3247, %v3249
    %v3251 = vrot.slane %v837, 2
    %v3252 = vrot.slane %v838, 2
    %v3253 = vsel %vm2675, %v3251, %v3252
    %v3254 = vrot.slane %v839, 2
    %v3255 = vsel %vm2675, %v3252, %v3254
    %v3256 = vrot.slane %v840, 2
    %v3257 = vrot.slane %v841, 2
    %v3258 = vsel %vm2675, %v3256, %v3257
    %v3259 = vrot.slane %v842, 2
    %v3260 = vsel %vm2675, %v3257, %v3259
    %v3261 = vrot.slane %v843, 2
    %v3262 = vrot.slane %v844, 2
    %v3263 = vsel %vm2675, %v3261, %v3262
    %v3264 = vrot.slane %v845, 2
    %v3265 = vsel %vm2675, %v3262, %v3264
    %v3266 = vrot.slane %v846, 2
    %v3267 = vrot.slane %v847, 2
    %v3268 = vsel %vm2675, %v3266, %v3267
    %v3269 = vrot.slane %v848, 2
    %v3270 = vsel %vm2675, %v3267, %v3269
    %v3271 = vrot.slane %v849, 2
    %v3272 = vrot.slane %v850, 2
    %v3273 = vsel %vm2675, %v3271, %v3272
    %v3274 = vrot.slane %v851, 2
    %v3275 = vsel %vm2675, %v3272, %v3274
    %v3276 = vrot.slane %v852, 2
    %v3277 = vrot.slane %v853, 2
    %v3278 = vsel %vm2675, %v3276, %v3277
    %v3279 = vrot.slane %v854, 2
    %v3280 = vsel %vm2675, %v3277, %v3279
    %v3281 = vrot.slane %v855, 2
    %v3282 = vrot.slane %v856, 2
    %v3283 = vsel %vm2675, %v3281, %v3282
    %v3284 = vrot.slane %v857, 2
    %v3285 = vsel %vm2675, %v3282, %v3284
    %v3286 = vrot.slane %v858, 2
    %v3287 = vrot.slane %v859, 2
    %v3288 = vsel %vm2675, %v3286, %v3287
    %v3289 = vrot.slane %v860, 2
    %v3290 = vsel %vm2675, %v3287, %v3289
    %v3291 = vrot.slane %v861, 2
    %v3292 = vrot.slane %v862, 2
    %v3293 = vsel %vm2675, %v3291, %v3292
    %v3294 = vrot.slane %v863, 2
    %v3295 = vsel %vm2675, %v3292, %v3294
    %v3296 = vrot.slane %v864, 2
    %v3297 = vrot.slane %v865, 2
    %v3298 = vsel %vm2675, %v3296, %v3297
    %v3299 = vrot.slane %v866, 2
    %v3300 = vsel %vm2675, %v3297, %v3299
    %v3301 = vrot.slane %v867, 2
    %v3302 = vrot.slane %v868, 2
    %v3303 = vsel %vm2675, %v3301, %v3302
    %v3304 = vrot.slane %v869, 2
    %v3305 = vsel %vm2675, %v3302, %v3304
    %v3306 = vrot.slane %v870, 2
    %v3307 = vrot.slane %v871, 2
    %v3308 = vsel %vm2675, %v3306, %v3307
    %v3309 = vrot.slane %v872, 2
    %v3310 = vsel %vm2675, %v3307, %v3309
    %v3311 = vrot.slane %v873, 2
    %v3312 = vrot.slane %v874, 2
    %v3313 = vsel %vm2675, %v3311, %v3312
    %v3314 = vrot.slane %v875, 2
    %v3315 = vsel %vm2675, %v3312, %v3314
    %3316 = vrot.lane.b32.xlu0 %v2678, 8
    %v3317 = vpop.permute.xlu0 %3316
    %3318 = vrot.lane.b32.xlu0 %v2680, 8
    %v3319 = vpop.permute.xlu0 %3318
    %3320 = vrot.lane.b32.xlu0 %v2683, 8
    %v3321 = vpop.permute.xlu0 %3320
    %3322 = vrot.lane.b32.xlu0 %v2685, 8
    %v3323 = vpop.permute.xlu0 %3322
    %3324 = vrot.lane.b32.xlu0 %v2688, 8
    %v3325 = vpop.permute.xlu0 %3324
    %3326 = vrot.lane.b32.xlu0 %v2690, 8
    %v3327 = vpop.permute.xlu0 %3326
    %3328 = vrot.lane.b32.xlu0 %v2693, 8
    %v3329 = vpop.permute.xlu0 %3328
    %3330 = vrot.lane.b32.xlu0 %v2695, 8
    %v3331 = vpop.permute.xlu0 %3330
    %3332 = vrot.lane.b32.xlu0 %v2698, 8
    %v3333 = vpop.permute.xlu0 %3332
    %3334 = vrot.lane.b32.xlu0 %v2700, 8
    %v3335 = vpop.permute.xlu0 %3334
    %3336 = vrot.lane.b32.xlu0 %v2703, 8
    %v3337 = vpop.permute.xlu0 %3336
    %3338 = vrot.lane.b32.xlu0 %v2705, 8
    %v3339 = vpop.permute.xlu0 %3338
    %3340 = vrot.lane.b32.xlu0 %v2708, 8
    %v3341 = vpop.permute.xlu0 %3340
    %3342 = vrot.lane.b32.xlu0 %v2710, 8
    %v3343 = vpop.permute.xlu0 %3342
    %3344 = vrot.lane.b32.xlu0 %v2713, 8
    %v3345 = vpop.permute.xlu0 %3344
    %3346 = vrot.lane.b32.xlu0 %v2715, 8
    %v3347 = vpop.permute.xlu0 %3346
    %3348 = vrot.lane.b32.xlu0 %v2718, 8
    %v3349 = vpop.permute.xlu0 %3348
    %3350 = vrot.lane.b32.xlu0 %v2720, 8
    %v3351 = vpop.permute.xlu0 %3350
    %3352 = vrot.lane.b32.xlu0 %v2723, 8
    %v3353 = vpop.permute.xlu0 %3352
    %3354 = vrot.lane.b32.xlu0 %v2725, 8
    %v3355 = vpop.permute.xlu0 %3354
    %3356 = vrot.lane.b32.xlu0 %v2728, 8
    %v3357 = vpop.permute.xlu0 %3356
    %3358 = vrot.lane.b32.xlu0 %v2730, 8
    %v3359 = vpop.permute.xlu0 %3358
    %3360 = vrot.lane.b32.xlu0 %v2733, 8
    %v3361 = vpop.permute.xlu0 %3360
    %3362 = vrot.lane.b32.xlu0 %v2735, 8
    %v3363 = vpop.permute.xlu0 %3362
    %3364 = vrot.lane.b32.xlu0 %v2738, 8
    %v3365 = vpop.permute.xlu0 %3364
    %3366 = vrot.lane.b32.xlu0 %v2740, 8
    %v3367 = vpop.permute.xlu0 %3366
    %3368 = vrot.lane.b32.xlu0 %v2743, 8
    %v3369 = vpop.permute.xlu0 %3368
    %3370 = vrot.lane.b32.xlu0 %v2745, 8
    %v3371 = vpop.permute.xlu0 %3370
    %3372 = vrot.lane.b32.xlu0 %v2748, 8
    %v3373 = vpop.permute.xlu0 %3372
    %3374 = vrot.lane.b32.xlu0 %v2750, 8
    %v3375 = vpop.permute.xlu0 %3374
    %3376 = vrot.lane.b32.xlu0 %v2753, 8
    %v3377 = vpop.permute.xlu0 %3376
    %3378 = vrot.lane.b32.xlu0 %v2755, 8
    %v3379 = vpop.permute.xlu0 %3378
    %3380 = vrot.lane.b32.xlu0 %v2758, 8
    %v3381 = vpop.permute.xlu0 %3380
    %3382 = vrot.lane.b32.xlu0 %v2760, 8
    %v3383 = vpop.permute.xlu0 %3382
    %3384 = vrot.lane.b32.xlu0 %v2763, 8
    %v3385 = vpop.permute.xlu0 %3384
    %3386 = vrot.lane.b32.xlu0 %v2765, 8
    %v3387 = vpop.permute.xlu0 %3386
    %3388 = vrot.lane.b32.xlu0 %v2768, 8
    %v3389 = vpop.permute.xlu0 %3388
    %3390 = vrot.lane.b32.xlu0 %v2770, 8
    %v3391 = vpop.permute.xlu0 %3390
    %3392 = vrot.lane.b32.xlu0 %v2773, 8
    %v3393 = vpop.permute.xlu0 %3392
    %3394 = vrot.lane.b32.xlu0 %v2775, 8
    %v3395 = vpop.permute.xlu0 %3394
    %3396 = vrot.lane.b32.xlu0 %v2778, 8
    %v3397 = vpop.permute.xlu0 %3396
    %3398 = vrot.lane.b32.xlu0 %v2780, 8
    %v3399 = vpop.permute.xlu0 %3398
    %3400 = vrot.lane.b32.xlu0 %v2783, 8
    %v3401 = vpop.permute.xlu0 %3400
    %3402 = vrot.lane.b32.xlu0 %v2785, 8
    %v3403 = vpop.permute.xlu0 %3402
    %3404 = vrot.lane.b32.xlu0 %v2788, 8
    %v3405 = vpop.permute.xlu0 %3404
    %3406 = vrot.lane.b32.xlu0 %v2790, 8
    %v3407 = vpop.permute.xlu0 %3406
    %3408 = vrot.lane.b32.xlu0 %v2793, 8
    %v3409 = vpop.permute.xlu0 %3408
    %3410 = vrot.lane.b32.xlu0 %v2795, 8
    %v3411 = vpop.permute.xlu0 %3410
    %3412 = vrot.lane.b32.xlu0 %v2798, 8
    %v3413 = vpop.permute.xlu0 %3412
    %3414 = vrot.lane.b32.xlu0 %v2800, 8
    %v3415 = vpop.permute.xlu0 %3414
    %3416 = vrot.lane.b32.xlu0 %v2803, 8
    %v3417 = vpop.permute.xlu0 %3416
    %3418 = vrot.lane.b32.xlu0 %v2805, 8
    %v3419 = vpop.permute.xlu0 %3418
    %3420 = vrot.lane.b32.xlu0 %v2808, 8
    %v3421 = vpop.permute.xlu0 %3420
    %3422 = vrot.lane.b32.xlu0 %v2810, 8
    %v3423 = vpop.permute.xlu0 %3422
    %3424 = vrot.lane.b32.xlu0 %v2813, 8
    %v3425 = vpop.permute.xlu0 %3424
    %3426 = vrot.lane.b32.xlu0 %v2815, 8
    %v3427 = vpop.permute.xlu0 %3426
    %3428 = vrot.lane.b32.xlu0 %v2818, 8
    %v3429 = vpop.permute.xlu0 %3428
    %3430 = vrot.lane.b32.xlu0 %v2820, 8
    %v3431 = vpop.permute.xlu0 %3430
    %3432 = vrot.lane.b32.xlu0 %v2823, 8
    %v3433 = vpop.permute.xlu0 %3432
    %3434 = vrot.lane.b32.xlu0 %v2825, 8
    %v3435 = vpop.permute.xlu0 %3434
    %3436 = vrot.lane.b32.xlu0 %v2828, 8
    %v3437 = vpop.permute.xlu0 %3436
    %3438 = vrot.lane.b32.xlu0 %v2830, 8
    %v3439 = vpop.permute.xlu0 %3438
    %3440 = vrot.lane.b32.xlu0 %v2833, 8
    %v3441 = vpop.permute.xlu0 %3440
    %3442 = vrot.lane.b32.xlu0 %v2835, 8
    %v3443 = vpop.permute.xlu0 %3442
    %3444 = vrot.lane.b32.xlu0 %v2838, 8
    %v3445 = vpop.permute.xlu0 %3444
    %3446 = vrot.lane.b32.xlu0 %v2840, 8
    %v3447 = vpop.permute.xlu0 %3446
    %3448 = vrot.lane.b32.xlu0 %v2843, 8
    %v3449 = vpop.permute.xlu0 %3448
    %3450 = vrot.lane.b32.xlu0 %v2845, 8
    %v3451 = vpop.permute.xlu0 %3450
    %3452 = vrot.lane.b32.xlu0 %v2848, 8
    %v3453 = vpop.permute.xlu0 %3452
    %3454 = vrot.lane.b32.xlu0 %v2850, 8
    %v3455 = vpop.permute.xlu0 %3454
    %3456 = vrot.lane.b32.xlu0 %v2853, 8
    %v3457 = vpop.permute.xlu0 %3456
    %3458 = vrot.lane.b32.xlu0 %v2855, 8
    %v3459 = vpop.permute.xlu0 %3458
    %3460 = vrot.lane.b32.xlu0 %v2858, 8
    %v3461 = vpop.permute.xlu0 %3460
    %3462 = vrot.lane.b32.xlu0 %v2860, 8
    %v3463 = vpop.permute.xlu0 %3462
    %3464 = vrot.lane.b32.xlu0 %v2863, 8
    %v3465 = vpop.permute.xlu0 %3464
    %3466 = vrot.lane.b32.xlu0 %v2865, 8
    %v3467 = vpop.permute.xlu0 %3466
    %3468 = vrot.lane.b32.xlu0 %v2868, 8
    %v3469 = vpop.permute.xlu0 %3468
    %3470 = vrot.lane.b32.xlu0 %v2870, 8
    %v3471 = vpop.permute.xlu0 %3470
    %3472 = vrot.lane.b32.xlu0 %v2873, 8
    %v3473 = vpop.permute.xlu0 %3472
    %3474 = vrot.lane.b32.xlu0 %v2875, 8
    %v3475 = vpop.permute.xlu0 %3474
    %3476 = vrot.lane.b32.xlu0 %v2878, 8
    %v3477 = vpop.permute.xlu0 %3476
    %3478 = vrot.lane.b32.xlu0 %v2880, 8
    %v3479 = vpop.permute.xlu0 %3478
    %3480 = vrot.lane.b32.xlu0 %v2883, 8
    %v3481 = vpop.permute.xlu0 %3480
    %3482 = vrot.lane.b32.xlu0 %v2885, 8
    %v3483 = vpop.permute.xlu0 %3482
    %3484 = vrot.lane.b32.xlu0 %v2888, 8
    %v3485 = vpop.permute.xlu0 %3484
    %3486 = vrot.lane.b32.xlu0 %v2890, 8
    %v3487 = vpop.permute.xlu0 %3486
    %3488 = vrot.lane.b32.xlu0 %v2893, 8
    %v3489 = vpop.permute.xlu0 %3488
    %3490 = vrot.lane.b32.xlu0 %v2895, 8
    %v3491 = vpop.permute.xlu0 %3490
    %3492 = vrot.lane.b32.xlu0 %v2898, 8
    %v3493 = vpop.permute.xlu0 %3492
    %3494 = vrot.lane.b32.xlu0 %v2900, 8
    %v3495 = vpop.permute.xlu0 %3494
    %3496 = vrot.lane.b32.xlu0 %v2903, 8
    %v3497 = vpop.permute.xlu0 %3496
    %3498 = vrot.lane.b32.xlu0 %v2905, 8
    %v3499 = vpop.permute.xlu0 %3498
    %3500 = vrot.lane.b32.xlu0 %v2908, 8
    %v3501 = vpop.permute.xlu0 %3500
    %3502 = vrot.lane.b32.xlu0 %v2910, 8
    %v3503 = vpop.permute.xlu0 %3502
    %3504 = vrot.lane.b32.xlu0 %v2913, 8
    %v3505 = vpop.permute.xlu0 %3504
    %3506 = vrot.lane.b32.xlu0 %v2915, 8
    %v3507 = vpop.permute.xlu0 %3506
    %3508 = vrot.lane.b32.xlu0 %v2918, 8
    %v3509 = vpop.permute.xlu0 %3508
    %3510 = vrot.lane.b32.xlu0 %v2920, 8
    %v3511 = vpop.permute.xlu0 %3510
    %3512 = vrot.lane.b32.xlu0 %v2923, 8
    %v3513 = vpop.permute.xlu0 %3512
    %3514 = vrot.lane.b32.xlu0 %v2925, 8
    %v3515 = vpop.permute.xlu0 %3514
    %3516 = vrot.lane.b32.xlu0 %v2928, 8
    %v3517 = vpop.permute.xlu0 %3516
    %3518 = vrot.lane.b32.xlu0 %v2930, 8
    %v3519 = vpop.permute.xlu0 %3518
    %3520 = vrot.lane.b32.xlu0 %v2933, 8
    %v3521 = vpop.permute.xlu0 %3520
    %3522 = vrot.lane.b32.xlu0 %v2935, 8
    %v3523 = vpop.permute.xlu0 %3522
    %3524 = vrot.lane.b32.xlu0 %v2938, 8
    %v3525 = vpop.permute.xlu0 %3524
    %3526 = vrot.lane.b32.xlu0 %v2940, 8
    %v3527 = vpop.permute.xlu0 %3526
    %3528 = vrot.lane.b32.xlu0 %v2943, 8
    %v3529 = vpop.permute.xlu0 %3528
    %3530 = vrot.lane.b32.xlu0 %v2945, 8
    %v3531 = vpop.permute.xlu0 %3530
    %3532 = vrot.lane.b32.xlu0 %v2948, 8
    %v3533 = vpop.permute.xlu0 %3532
    %3534 = vrot.lane.b32.xlu0 %v2950, 8
    %v3535 = vpop.permute.xlu0 %3534
    %3536 = vrot.lane.b32.xlu0 %v2953, 8
    %v3537 = vpop.permute.xlu0 %3536
    %3538 = vrot.lane.b32.xlu0 %v2955, 8
    %v3539 = vpop.permute.xlu0 %3538
    %3540 = vrot.lane.b32.xlu0 %v2958, 8
    %v3541 = vpop.permute.xlu0 %3540
    %3542 = vrot.lane.b32.xlu0 %v2960, 8
    %v3543 = vpop.permute.xlu0 %3542
    %3544 = vrot.lane.b32.xlu0 %v2963, 8
    %v3545 = vpop.permute.xlu0 %3544
    %3546 = vrot.lane.b32.xlu0 %v2965, 8
    %v3547 = vpop.permute.xlu0 %3546
    %3548 = vrot.lane.b32.xlu0 %v2968, 8
    %v3549 = vpop.permute.xlu0 %3548
    %3550 = vrot.lane.b32.xlu0 %v2970, 8
    %v3551 = vpop.permute.xlu0 %3550
    %3552 = vrot.lane.b32.xlu0 %v2973, 8
    %v3553 = vpop.permute.xlu0 %3552
    %3554 = vrot.lane.b32.xlu0 %v2975, 8
    %v3555 = vpop.permute.xlu0 %3554
    %3556 = vrot.lane.b32.xlu0 %v2978, 8
    %v3557 = vpop.permute.xlu0 %3556
    %3558 = vrot.lane.b32.xlu0 %v2980, 8
    %v3559 = vpop.permute.xlu0 %3558
    %3560 = vrot.lane.b32.xlu0 %v2983, 8
    %v3561 = vpop.permute.xlu0 %3560
    %3562 = vrot.lane.b32.xlu0 %v2985, 8
    %v3563 = vpop.permute.xlu0 %3562
    %3564 = vrot.lane.b32.xlu0 %v2988, 8
    %v3565 = vpop.permute.xlu0 %3564
    %3566 = vrot.lane.b32.xlu0 %v2990, 8
    %v3567 = vpop.permute.xlu0 %3566
    %3568 = vrot.lane.b32.xlu0 %v2993, 8
    %v3569 = vpop.permute.xlu0 %3568
    %3570 = vrot.lane.b32.xlu0 %v2995, 8
    %v3571 = vpop.permute.xlu0 %3570
    %3572 = vrot.lane.b32.xlu0 %v2998, 8
    %v3573 = vpop.permute.xlu0 %3572
    %3574 = vrot.lane.b32.xlu0 %v3000, 8
    %v3575 = vpop.permute.xlu0 %3574
    %3576 = vrot.lane.b32.xlu0 %v3003, 8
    %v3577 = vpop.permute.xlu0 %3576
    %3578 = vrot.lane.b32.xlu0 %v3005, 8
    %v3579 = vpop.permute.xlu0 %3578
    %3580 = vrot.lane.b32.xlu0 %v3008, 8
    %v3581 = vpop.permute.xlu0 %3580
    %3582 = vrot.lane.b32.xlu0 %v3010, 8
    %v3583 = vpop.permute.xlu0 %3582
    %3584 = vrot.lane.b32.xlu0 %v3013, 8
    %v3585 = vpop.permute.xlu0 %3584
    %3586 = vrot.lane.b32.xlu0 %v3015, 8
    %v3587 = vpop.permute.xlu0 %3586
    %3588 = vrot.lane.b32.xlu0 %v3018, 8
    %v3589 = vpop.permute.xlu0 %3588
    %3590 = vrot.lane.b32.xlu0 %v3020, 8
    %v3591 = vpop.permute.xlu0 %3590
    %3592 = vrot.lane.b32.xlu0 %v3023, 8
    %v3593 = vpop.permute.xlu0 %3592
    %3594 = vrot.lane.b32.xlu0 %v3025, 8
    %v3595 = vpop.permute.xlu0 %3594
    %3596 = vrot.lane.b32.xlu0 %v3028, 8
    %v3597 = vpop.permute.xlu0 %3596
    %3598 = vrot.lane.b32.xlu0 %v3030, 8
    %v3599 = vpop.permute.xlu0 %3598
    %3600 = vrot.lane.b32.xlu0 %v3033, 8
    %v3601 = vpop.permute.xlu0 %3600
    %3602 = vrot.lane.b32.xlu0 %v3035, 8
    %v3603 = vpop.permute.xlu0 %3602
    %3604 = vrot.lane.b32.xlu0 %v3038, 8
    %v3605 = vpop.permute.xlu0 %3604
    %3606 = vrot.lane.b32.xlu0 %v3040, 8
    %v3607 = vpop.permute.xlu0 %3606
    %3608 = vrot.lane.b32.xlu0 %v3043, 8
    %v3609 = vpop.permute.xlu0 %3608
    %3610 = vrot.lane.b32.xlu0 %v3045, 8
    %v3611 = vpop.permute.xlu0 %3610
    %3612 = vrot.lane.b32.xlu0 %v3048, 8
    %v3613 = vpop.permute.xlu0 %3612
    %3614 = vrot.lane.b32.xlu0 %v3050, 8
    %v3615 = vpop.permute.xlu0 %3614
    %3616 = vrot.lane.b32.xlu0 %v3053, 8
    %v3617 = vpop.permute.xlu0 %3616
    %3618 = vrot.lane.b32.xlu0 %v3055, 8
    %v3619 = vpop.permute.xlu0 %3618
    %3620 = vrot.lane.b32.xlu0 %v3058, 8
    %v3621 = vpop.permute.xlu0 %3620
    %3622 = vrot.lane.b32.xlu0 %v3060, 8
    %v3623 = vpop.permute.xlu0 %3622
    %3624 = vrot.lane.b32.xlu0 %v3063, 8
    %v3625 = vpop.permute.xlu0 %3624
    %3626 = vrot.lane.b32.xlu0 %v3065, 8
    %v3627 = vpop.permute.xlu0 %3626
    %3628 = vrot.lane.b32.xlu0 %v3068, 8
    %v3629 = vpop.permute.xlu0 %3628
    %3630 = vrot.lane.b32.xlu0 %v3070, 8
    %v3631 = vpop.permute.xlu0 %3630
    %3632 = vrot.lane.b32.xlu0 %v3073, 8
    %v3633 = vpop.permute.xlu0 %3632
    %3634 = vrot.lane.b32.xlu0 %v3075, 8
    %v3635 = vpop.permute.xlu0 %3634
    %3636 = vrot.lane.b32.xlu0 %v3078, 8
    %v3637 = vpop.permute.xlu0 %3636
    %3638 = vrot.lane.b32.xlu0 %v3080, 8
    %v3639 = vpop.permute.xlu0 %3638
    %3640 = vrot.lane.b32.xlu0 %v3083, 8
    %v3641 = vpop.permute.xlu0 %3640
    %3642 = vrot.lane.b32.xlu0 %v3085, 8
    %v3643 = vpop.permute.xlu0 %3642
    %3644 = vrot.lane.b32.xlu0 %v3088, 8
    %v3645 = vpop.permute.xlu0 %3644
    %3646 = vrot.lane.b32.xlu0 %v3090, 8
    %v3647 = vpop.permute.xlu0 %3646
    %3648 = vrot.lane.b32.xlu0 %v3093, 8
    %v3649 = vpop.permute.xlu0 %3648
    %3650 = vrot.lane.b32.xlu0 %v3095, 8
    %v3651 = vpop.permute.xlu0 %3650
    %3652 = vrot.lane.b32.xlu0 %v3098, 8
    %v3653 = vpop.permute.xlu0 %3652
    %3654 = vrot.lane.b32.xlu0 %v3100, 8
    %v3655 = vpop.permute.xlu0 %3654
    %3656 = vrot.lane.b32.xlu0 %v3103, 8
    %v3657 = vpop.permute.xlu0 %3656
    %3658 = vrot.lane.b32.xlu0 %v3105, 8
    %v3659 = vpop.permute.xlu0 %3658
    %3660 = vrot.lane.b32.xlu0 %v3108, 8
    %v3661 = vpop.permute.xlu0 %3660
    %3662 = vrot.lane.b32.xlu0 %v3110, 8
    %v3663 = vpop.permute.xlu0 %3662
    %3664 = vrot.lane.b32.xlu0 %v3113, 8
    %v3665 = vpop.permute.xlu0 %3664
    %3666 = vrot.lane.b32.xlu0 %v3115, 8
    %v3667 = vpop.permute.xlu0 %3666
    %3668 = vrot.lane.b32.xlu0 %v3118, 8
    %v3669 = vpop.permute.xlu0 %3668
    %3670 = vrot.lane.b32.xlu0 %v3120, 8
    %v3671 = vpop.permute.xlu0 %3670
    %3672 = vrot.lane.b32.xlu0 %v3123, 8
    %v3673 = vpop.permute.xlu0 %3672
    %3674 = vrot.lane.b32.xlu0 %v3125, 8
    %v3675 = vpop.permute.xlu0 %3674
    %3676 = vrot.lane.b32.xlu0 %v3128, 8
    %v3677 = vpop.permute.xlu0 %3676
    %3678 = vrot.lane.b32.xlu0 %v3130, 8
    %v3679 = vpop.permute.xlu0 %3678
    %3680 = vrot.lane.b32.xlu0 %v3133, 8
    %v3681 = vpop.permute.xlu0 %3680
    %3682 = vrot.lane.b32.xlu0 %v3135, 8
    %v3683 = vpop.permute.xlu0 %3682
    %3684 = vrot.lane.b32.xlu0 %v3138, 8
    %v3685 = vpop.permute.xlu0 %3684
    %3686 = vrot.lane.b32.xlu0 %v3140, 8
    %v3687 = vpop.permute.xlu0 %3686
    %3688 = vrot.lane.b32.xlu0 %v3143, 8
    %v3689 = vpop.permute.xlu0 %3688
    %3690 = vrot.lane.b32.xlu0 %v3145, 8
    %v3691 = vpop.permute.xlu0 %3690
    %3692 = vrot.lane.b32.xlu0 %v3148, 8
    %v3693 = vpop.permute.xlu0 %3692
    %3694 = vrot.lane.b32.xlu0 %v3150, 8
    %v3695 = vpop.permute.xlu0 %3694
    %3696 = vrot.lane.b32.xlu0 %v3153, 8
    %v3697 = vpop.permute.xlu0 %3696
    %3698 = vrot.lane.b32.xlu0 %v3155, 8
    %v3699 = vpop.permute.xlu0 %3698
    %3700 = vrot.lane.b32.xlu0 %v3158, 8
    %v3701 = vpop.permute.xlu0 %3700
    %3702 = vrot.lane.b32.xlu0 %v3160, 8
    %v3703 = vpop.permute.xlu0 %3702
    %3704 = vrot.lane.b32.xlu0 %v3163, 8
    %v3705 = vpop.permute.xlu0 %3704
    %3706 = vrot.lane.b32.xlu0 %v3165, 8
    %v3707 = vpop.permute.xlu0 %3706
    %3708 = vrot.lane.b32.xlu0 %v3168, 8
    %v3709 = vpop.permute.xlu0 %3708
    %3710 = vrot.lane.b32.xlu0 %v3170, 8
    %v3711 = vpop.permute.xlu0 %3710
    %3712 = vrot.lane.b32.xlu0 %v3173, 8
    %v3713 = vpop.permute.xlu0 %3712
    %3714 = vrot.lane.b32.xlu0 %v3175, 8
    %v3715 = vpop.permute.xlu0 %3714
    %3716 = vrot.lane.b32.xlu0 %v3178, 8
    %v3717 = vpop.permute.xlu0 %3716
    %3718 = vrot.lane.b32.xlu0 %v3180, 8
    %v3719 = vpop.permute.xlu0 %3718
    %3720 = vrot.lane.b32.xlu0 %v3183, 8
    %v3721 = vpop.permute.xlu0 %3720
    %3722 = vrot.lane.b32.xlu0 %v3185, 8
    %v3723 = vpop.permute.xlu0 %3722
    %3724 = vrot.lane.b32.xlu0 %v3188, 8
    %v3725 = vpop.permute.xlu0 %3724
    %3726 = vrot.lane.b32.xlu0 %v3190, 8
    %v3727 = vpop.permute.xlu0 %3726
    %3728 = vrot.lane.b32.xlu0 %v3193, 8
    %v3729 = vpop.permute.xlu0 %3728
    %3730 = vrot.lane.b32.xlu0 %v3195, 8
    %v3731 = vpop.permute.xlu0 %3730
    %3732 = vrot.lane.b32.xlu0 %v3198, 8
    %v3733 = vpop.permute.xlu0 %3732
    %3734 = vrot.lane.b32.xlu0 %v3200, 8
    %v3735 = vpop.permute.xlu0 %3734
    %3736 = vrot.lane.b32.xlu0 %v3203, 8
    %v3737 = vpop.permute.xlu0 %3736
    %3738 = vrot.lane.b32.xlu0 %v3205, 8
    %v3739 = vpop.permute.xlu0 %3738
    %3740 = vrot.lane.b32.xlu0 %v3208, 8
    %v3741 = vpop.permute.xlu0 %3740
    %3742 = vrot.lane.b32.xlu0 %v3210, 8
    %v3743 = vpop.permute.xlu0 %3742
    %3744 = vrot.lane.b32.xlu0 %v3213, 8
    %v3745 = vpop.permute.xlu0 %3744
    %3746 = vrot.lane.b32.xlu0 %v3215, 8
    %v3747 = vpop.permute.xlu0 %3746
    %3748 = vrot.lane.b32.xlu0 %v3218, 8
    %v3749 = vpop.permute.xlu0 %3748
    %3750 = vrot.lane.b32.xlu0 %v3220, 8
    %v3751 = vpop.permute.xlu0 %3750
    %3752 = vrot.lane.b32.xlu0 %v3223, 8
    %v3753 = vpop.permute.xlu0 %3752
    %3754 = vrot.lane.b32.xlu0 %v3225, 8
    %v3755 = vpop.permute.xlu0 %3754
    %3756 = vrot.lane.b32.xlu0 %v3228, 8
    %v3757 = vpop.permute.xlu0 %3756
    %3758 = vrot.lane.b32.xlu0 %v3230, 8
    %v3759 = vpop.permute.xlu0 %3758
    %3760 = vrot.lane.b32.xlu0 %v3233, 8
    %v3761 = vpop.permute.xlu0 %3760
    %3762 = vrot.lane.b32.xlu0 %v3235, 8
    %v3763 = vpop.permute.xlu0 %3762
    %3764 = vrot.lane.b32.xlu0 %v3238, 8
    %v3765 = vpop.permute.xlu0 %3764
    %3766 = vrot.lane.b32.xlu0 %v3240, 8
    %v3767 = vpop.permute.xlu0 %3766
    %3768 = vrot.lane.b32.xlu0 %v3243, 8
    %v3769 = vpop.permute.xlu0 %3768
    %3770 = vrot.lane.b32.xlu0 %v3245, 8
    %v3771 = vpop.permute.xlu0 %3770
    %3772 = vrot.lane.b32.xlu0 %v3248, 8
    %v3773 = vpop.permute.xlu0 %3772
    %3774 = vrot.lane.b32.xlu0 %v3250, 8
    %v3775 = vpop.permute.xlu0 %3774
    %3776 = vrot.lane.b32.xlu0 %v3253, 8
    %v3777 = vpop.permute.xlu0 %3776
    %3778 = vrot.lane.b32.xlu0 %v3255, 8
    %v3779 = vpop.permute.xlu0 %3778
    %3780 = vrot.lane.b32.xlu0 %v3258, 8
    %v3781 = vpop.permute.xlu0 %3780
    %3782 = vrot.lane.b32.xlu0 %v3260, 8
    %v3783 = vpop.permute.xlu0 %3782
    %3784 = vrot.lane.b32.xlu0 %v3263, 8
    %v3785 = vpop.permute.xlu0 %3784
    %3786 = vrot.lane.b32.xlu0 %v3265, 8
    %v3787 = vpop.permute.xlu0 %3786
    %3788 = vrot.lane.b32.xlu0 %v3268, 8
    %v3789 = vpop.permute.xlu0 %3788
    %3790 = vrot.lane.b32.xlu0 %v3270, 8
    %v3791 = vpop.permute.xlu0 %3790
    %3792 = vrot.lane.b32.xlu0 %v3273, 8
    %v3793 = vpop.permute.xlu0 %3792
    %3794 = vrot.lane.b32.xlu0 %v3275, 8
    %v3795 = vpop.permute.xlu0 %3794
    %3796 = vrot.lane.b32.xlu0 %v3278, 8
    %v3797 = vpop.permute.xlu0 %3796
    %3798 = vrot.lane.b32.xlu0 %v3280, 8
    %v3799 = vpop.permute.xlu0 %3798
    %3800 = vrot.lane.b32.xlu0 %v3283, 8
    %v3801 = vpop.permute.xlu0 %3800
    %3802 = vrot.lane.b32.xlu0 %v3285, 8
    %v3803 = vpop.permute.xlu0 %3802
    %3804 = vrot.lane.b32.xlu0 %v3288, 8
    %v3805 = vpop.permute.xlu0 %3804
    %3806 = vrot.lane.b32.xlu0 %v3290, 8
    %v3807 = vpop.permute.xlu0 %3806
    %3808 = vrot.lane.b32.xlu0 %v3293, 8
    %v3809 = vpop.permute.xlu0 %3808
    %3810 = vrot.lane.b32.xlu0 %v3295, 8
    %v3811 = vpop.permute.xlu0 %3810
    %3812 = vrot.lane.b32.xlu0 %v3298, 8
    %v3813 = vpop.permute.xlu0 %3812
    %3814 = vrot.lane.b32.xlu0 %v3300, 8
    %v3815 = vpop.permute.xlu0 %3814
    %3816 = vrot.lane.b32.xlu0 %v3303, 8
    %v3817 = vpop.permute.xlu0 %3816
    %3818 = vrot.lane.b32.xlu0 %v3305, 8
    %v3819 = vpop.permute.xlu0 %3818
    %3820 = vrot.lane.b32.xlu0 %v3308, 8
    %v3821 = vpop.permute.xlu0 %3820
    %3822 = vrot.lane.b32.xlu0 %v3310, 8
    %v3823 = vpop.permute.xlu0 %3822
    %3824 = vrot.lane.b32.xlu0 %v3313, 8
    %v3825 = vpop.permute.xlu0 %3824
    %3826 = vrot.lane.b32.xlu0 %v3315, 8
    %v3827 = vpop.permute.xlu0 %3826
    %4100 = vrot.lane.b32.xlu0 %v453, 12
    %v4101 = vpop.permute.xlu0 %4100
    %4102 = vrot.lane.b32.xlu0 %v454, 12
    %v4103 = vpop.permute.xlu0 %4102
    %4104 = vrot.lane.b32.xlu0 %v456, 12
    %v4105 = vpop.permute.xlu0 %4104
    %4106 = vrot.lane.b32.xlu0 %v457, 12
    %v4107 = vpop.permute.xlu0 %4106
    %4108 = vrot.lane.b32.xlu0 %v459, 12
    %v4109 = vpop.permute.xlu0 %4108
    %4110 = vrot.lane.b32.xlu0 %v460, 12
    %v4111 = vpop.permute.xlu0 %4110
    %4112 = vrot.lane.b32.xlu0 %v462, 12
    %v4113 = vpop.permute.xlu0 %4112
    %4114 = vrot.lane.b32.xlu0 %v463, 12
    %v4115 = vpop.permute.xlu0 %4114
    %4116 = vrot.lane.b32.xlu0 %v465, 12
    %v4117 = vpop.permute.xlu0 %4116
    %4118 = vrot.lane.b32.xlu0 %v466, 12
    %v4119 = vpop.permute.xlu0 %4118
    %4120 = vrot.lane.b32.xlu0 %v468, 12
    %v4121 = vpop.permute.xlu0 %4120
    %4122 = vrot.lane.b32.xlu0 %v469, 12
    %v4123 = vpop.permute.xlu0 %4122
    %4124 = vrot.lane.b32.xlu0 %v471, 12
    %v4125 = vpop.permute.xlu0 %4124
    %4126 = vrot.lane.b32.xlu0 %v472, 12
    %v4127 = vpop.permute.xlu0 %4126
    %4128 = vrot.lane.b32.xlu0 %v474, 12
    %v4129 = vpop.permute.xlu0 %4128
    %4130 = vrot.lane.b32.xlu0 %v475, 12
    %v4131 = vpop.permute.xlu0 %4130
    %4132 = vrot.lane.b32.xlu0 %v477, 12
    %v4133 = vpop.permute.xlu0 %4132
    %4134 = vrot.lane.b32.xlu0 %v478, 12
    %v4135 = vpop.permute.xlu0 %4134
    %4136 = vrot.lane.b32.xlu0 %v480, 12
    %v4137 = vpop.permute.xlu0 %4136
    %4138 = vrot.lane.b32.xlu0 %v481, 12
    %v4139 = vpop.permute.xlu0 %4138
    %4140 = vrot.lane.b32.xlu0 %v483, 12
    %v4141 = vpop.permute.xlu0 %4140
    %4142 = vrot.lane.b32.xlu0 %v484, 12
    %v4143 = vpop.permute.xlu0 %4142
    %4144 = vrot.lane.b32.xlu0 %v486, 12
    %v4145 = vpop.permute.xlu0 %4144
    %4146 = vrot.lane.b32.xlu0 %v487, 12
    %v4147 = vpop.permute.xlu0 %4146
    %4148 = vrot.lane.b32.xlu0 %v489, 12
    %v4149 = vpop.permute.xlu0 %4148
    %4150 = vrot.lane.b32.xlu0 %v490, 12
    %v4151 = vpop.permute.xlu0 %4150
    %4152 = vrot.lane.b32.xlu0 %v492, 12
    %v4153 = vpop.permute.xlu0 %4152
    %4154 = vrot.lane.b32.xlu0 %v493, 12
    %v4155 = vpop.permute.xlu0 %4154
    %4156 = vrot.lane.b32.xlu0 %v495, 12
    %v4157 = vpop.permute.xlu0 %4156
    %4158 = vrot.lane.b32.xlu0 %v496, 12
    %v4159 = vpop.permute.xlu0 %4158
    %4160 = vrot.lane.b32.xlu0 %v498, 12
    %v4161 = vpop.permute.xlu0 %4160
    %4162 = vrot.lane.b32.xlu0 %v499, 12
    %v4163 = vpop.permute.xlu0 %4162
    %4164 = vrot.lane.b32.xlu0 %v507, 12
    %v4165 = vpop.permute.xlu0 %4164
    %4166 = vrot.lane.b32.xlu0 %v508, 12
    %v4167 = vpop.permute.xlu0 %4166
    %4168 = vrot.lane.b32.xlu0 %v510, 12
    %v4169 = vpop.permute.xlu0 %4168
    %4170 = vrot.lane.b32.xlu0 %v511, 12
    %v4171 = vpop.permute.xlu0 %4170
    %4172 = vrot.lane.b32.xlu0 %v513, 12
    %v4173 = vpop.permute.xlu0 %4172
    %4174 = vrot.lane.b32.xlu0 %v514, 12
    %v4175 = vpop.permute.xlu0 %4174
    %4176 = vrot.lane.b32.xlu0 %v516, 12
    %v4177 = vpop.permute.xlu0 %4176
    %4178 = vrot.lane.b32.xlu0 %v517, 12
    %v4179 = vpop.permute.xlu0 %4178
    %4180 = vrot.lane.b32.xlu0 %v519, 12
    %v4181 = vpop.permute.xlu0 %4180
    %4182 = vrot.lane.b32.xlu0 %v520, 12
    %v4183 = vpop.permute.xlu0 %4182
    %4184 = vrot.lane.b32.xlu0 %v522, 12
    %v4185 = vpop.permute.xlu0 %4184
    %4186 = vrot.lane.b32.xlu0 %v523, 12
    %v4187 = vpop.permute.xlu0 %4186
    %4188 = vrot.lane.b32.xlu0 %v525, 12
    %v4189 = vpop.permute.xlu0 %4188
    %4190 = vrot.lane.b32.xlu0 %v526, 12
    %v4191 = vpop.permute.xlu0 %4190
    %4192 = vrot.lane.b32.xlu0 %v528, 12
    %v4193 = vpop.permute.xlu0 %4192
    %4194 = vrot.lane.b32.xlu0 %v529, 12
    %v4195 = vpop.permute.xlu0 %4194
    %4196 = vrot.lane.b32.xlu0 %v531, 12
    %v4197 = vpop.permute.xlu0 %4196
    %4198 = vrot.lane.b32.xlu0 %v532, 12
    %v4199 = vpop.permute.xlu0 %4198
    %4200 = vrot.lane.b32.xlu0 %v534, 12
    %v4201 = vpop.permute.xlu0 %4200
    %4202 = vrot.lane.b32.xlu0 %v535, 12
    %v4203 = vpop.permute.xlu0 %4202
    %4204 = vrot.lane.b32.xlu0 %v537, 12
    %v4205 = vpop.permute.xlu0 %4204
    %4206 = vrot.lane.b32.xlu0 %v538, 12
    %v4207 = vpop.permute.xlu0 %4206
    %4208 = vrot.lane.b32.xlu0 %v540, 12
    %v4209 = vpop.permute.xlu0 %4208
    %4210 = vrot.lane.b32.xlu0 %v541, 12
    %v4211 = vpop.permute.xlu0 %4210
    %4212 = vrot.lane.b32.xlu0 %v543, 12
    %v4213 = vpop.permute.xlu0 %4212
    %4214 = vrot.lane.b32.xlu0 %v544, 12
    %v4215 = vpop.permute.xlu0 %4214
    %4216 = vrot.lane.b32.xlu0 %v546, 12
    %v4217 = vpop.permute.xlu0 %4216
    %4218 = vrot.lane.b32.xlu0 %v547, 12
    %v4219 = vpop.permute.xlu0 %4218
    %4220 = vrot.lane.b32.xlu0 %v549, 12
    %v4221 = vpop.permute.xlu0 %4220
    %4222 = vrot.lane.b32.xlu0 %v550, 12
    %v4223 = vpop.permute.xlu0 %4222
    %4224 = vrot.lane.b32.xlu0 %v552, 12
    %v4225 = vpop.permute.xlu0 %4224
    %4226 = vrot.lane.b32.xlu0 %v553, 12
    %v4227 = vpop.permute.xlu0 %4226
    %4228 = vrot.lane.b32.xlu0 %v561, 12
    %v4229 = vpop.permute.xlu0 %4228
    %4230 = vrot.lane.b32.xlu0 %v562, 12
    %v4231 = vpop.permute.xlu0 %4230
    %4232 = vrot.lane.b32.xlu0 %v564, 12
    %v4233 = vpop.permute.xlu0 %4232
    %4234 = vrot.lane.b32.xlu0 %v565, 12
    %v4235 = vpop.permute.xlu0 %4234
    %4236 = vrot.lane.b32.xlu0 %v567, 12
    %v4237 = vpop.permute.xlu0 %4236
    %4238 = vrot.lane.b32.xlu0 %v568, 12
    %v4239 = vpop.permute.xlu0 %4238
    %4240 = vrot.lane.b32.xlu0 %v570, 12
    %v4241 = vpop.permute.xlu0 %4240
    %4242 = vrot.lane.b32.xlu0 %v571, 12
    %v4243 = vpop.permute.xlu0 %4242
    %4244 = vrot.lane.b32.xlu0 %v573, 12
    %v4245 = vpop.permute.xlu0 %4244
    %4246 = vrot.lane.b32.xlu0 %v574, 12
    %v4247 = vpop.permute.xlu0 %4246
    %4248 = vrot.lane.b32.xlu0 %v576, 12
    %v4249 = vpop.permute.xlu0 %4248
    %4250 = vrot.lane.b32.xlu0 %v577, 12
    %v4251 = vpop.permute.xlu0 %4250
    %4252 = vrot.lane.b32.xlu0 %v579, 12
    %v4253 = vpop.permute.xlu0 %4252
    %4254 = vrot.lane.b32.xlu0 %v580, 12
    %v4255 = vpop.permute.xlu0 %4254
    %4256 = vrot.lane.b32.xlu0 %v582, 12
    %v4257 = vpop.permute.xlu0 %4256
    %4258 = vrot.lane.b32.xlu0 %v583, 12
    %v4259 = vpop.permute.xlu0 %4258
    %4260 = vrot.lane.b32.xlu0 %v585, 12
    %v4261 = vpop.permute.xlu0 %4260
    %4262 = vrot.lane.b32.xlu0 %v586, 12
    %v4263 = vpop.permute.xlu0 %4262
    %4264 = vrot.lane.b32.xlu0 %v588, 12
    %v4265 = vpop.permute.xlu0 %4264
    %4266 = vrot.lane.b32.xlu0 %v589, 12
    %v4267 = vpop.permute.xlu0 %4266
    %4268 = vrot.lane.b32.xlu0 %v591, 12
    %v4269 = vpop.permute.xlu0 %4268
    %4270 = vrot.lane.b32.xlu0 %v592, 12
    %v4271 = vpop.permute.xlu0 %4270
    %4272 = vrot.lane.b32.xlu0 %v594, 12
    %v4273 = vpop.permute.xlu0 %4272
    %4274 = vrot.lane.b32.xlu0 %v595, 12
    %v4275 = vpop.permute.xlu0 %4274
    %4276 = vrot.lane.b32.xlu0 %v597, 12
    %v4277 = vpop.permute.xlu0 %4276
    %4278 = vrot.lane.b32.xlu0 %v598, 12
    %v4279 = vpop.permute.xlu0 %4278
    %4280 = vrot.lane.b32.xlu0 %v600, 12
    %v4281 = vpop.permute.xlu0 %4280
    %4282 = vrot.lane.b32.xlu0 %v601, 12
    %v4283 = vpop.permute.xlu0 %4282
    %4284 = vrot.lane.b32.xlu0 %v603, 12
    %v4285 = vpop.permute.xlu0 %4284
    %4286 = vrot.lane.b32.xlu0 %v604, 12
    %v4287 = vpop.permute.xlu0 %4286
    %4288 = vrot.lane.b32.xlu0 %v606, 12
    %v4289 = vpop.permute.xlu0 %4288
    %4290 = vrot.lane.b32.xlu0 %v607, 12
    %v4291 = vpop.permute.xlu0 %4290
    %4292 = vrot.lane.b32.xlu0 %v615, 12
    %v4293 = vpop.permute.xlu0 %4292
    %4294 = vrot.lane.b32.xlu0 %v616, 12
    %v4295 = vpop.permute.xlu0 %4294
    %4296 = vrot.lane.b32.xlu0 %v618, 12
    %v4297 = vpop.permute.xlu0 %4296
    %4298 = vrot.lane.b32.xlu0 %v619, 12
    %v4299 = vpop.permute.xlu0 %4298
    %4300 = vrot.lane.b32.xlu0 %v621, 12
    %v4301 = vpop.permute.xlu0 %4300
    %4302 = vrot.lane.b32.xlu0 %v622, 12
    %v4303 = vpop.permute.xlu0 %4302
    %4304 = vrot.lane.b32.xlu0 %v624, 12
    %v4305 = vpop.permute.xlu0 %4304
    %4306 = vrot.lane.b32.xlu0 %v625, 12
    %v4307 = vpop.permute.xlu0 %4306
    %4308 = vrot.lane.b32.xlu0 %v627, 12
    %v4309 = vpop.permute.xlu0 %4308
    %4310 = vrot.lane.b32.xlu0 %v628, 12
    %v4311 = vpop.permute.xlu0 %4310
    %4312 = vrot.lane.b32.xlu0 %v630, 12
    %v4313 = vpop.permute.xlu0 %4312
    %4314 = vrot.lane.b32.xlu0 %v631, 12
    %v4315 = vpop.permute.xlu0 %4314
    %4316 = vrot.lane.b32.xlu0 %v633, 12
    %v4317 = vpop.permute.xlu0 %4316
    %4318 = vrot.lane.b32.xlu0 %v634, 12
    %v4319 = vpop.permute.xlu0 %4318
    %4320 = vrot.lane.b32.xlu0 %v636, 12
    %v4321 = vpop.permute.xlu0 %4320
    %4322 = vrot.lane.b32.xlu0 %v637, 12
    %v4323 = vpop.permute.xlu0 %4322
    %4324 = vrot.lane.b32.xlu0 %v639, 12
    %v4325 = vpop.permute.xlu0 %4324
    %4326 = vrot.lane.b32.xlu0 %v640, 12
    %v4327 = vpop.permute.xlu0 %4326
    %4328 = vrot.lane.b32.xlu0 %v642, 12
    %v4329 = vpop.permute.xlu0 %4328
    %4330 = vrot.lane.b32.xlu0 %v643, 12
    %v4331 = vpop.permute.xlu0 %4330
    %4332 = vrot.lane.b32.xlu0 %v645, 12
    %v4333 = vpop.permute.xlu0 %4332
    %4334 = vrot.lane.b32.xlu0 %v646, 12
    %v4335 = vpop.permute.xlu0 %4334
    %4336 = vrot.lane.b32.xlu0 %v648, 12
    %v4337 = vpop.permute.xlu0 %4336
    %4338 = vrot.lane.b32.xlu0 %v649, 12
    %v4339 = vpop.permute.xlu0 %4338
    %4340 = vrot.lane.b32.xlu0 %v651, 12
    %v4341 = vpop.permute.xlu0 %4340
    %4342 = vrot.lane.b32.xlu0 %v652, 12
    %v4343 = vpop.permute.xlu0 %4342
    %4344 = vrot.lane.b32.xlu0 %v654, 12
    %v4345 = vpop.permute.xlu0 %4344
    %4346 = vrot.lane.b32.xlu0 %v655, 12
    %v4347 = vpop.permute.xlu0 %4346
    %4348 = vrot.lane.b32.xlu0 %v657, 12
    %v4349 = vpop.permute.xlu0 %4348
    %4350 = vrot.lane.b32.xlu0 %v658, 12
    %v4351 = vpop.permute.xlu0 %4350
    %4352 = vrot.lane.b32.xlu0 %v660, 12
    %v4353 = vpop.permute.xlu0 %4352
    %4354 = vrot.lane.b32.xlu0 %v661, 12
    %v4355 = vpop.permute.xlu0 %4354
    %4356 = vrot.lane.b32.xlu0 %v669, 12
    %v4357 = vpop.permute.xlu0 %4356
    %4358 = vrot.lane.b32.xlu0 %v670, 12
    %v4359 = vpop.permute.xlu0 %4358
    %4360 = vrot.lane.b32.xlu0 %v672, 12
    %v4361 = vpop.permute.xlu0 %4360
    %4362 = vrot.lane.b32.xlu0 %v673, 12
    %v4363 = vpop.permute.xlu0 %4362
    %4364 = vrot.lane.b32.xlu0 %v675, 12
    %v4365 = vpop.permute.xlu0 %4364
    %4366 = vrot.lane.b32.xlu0 %v676, 12
    %v4367 = vpop.permute.xlu0 %4366
    %4368 = vrot.lane.b32.xlu0 %v678, 12
    %v4369 = vpop.permute.xlu0 %4368
    %4370 = vrot.lane.b32.xlu0 %v679, 12
    %v4371 = vpop.permute.xlu0 %4370
    %4372 = vrot.lane.b32.xlu0 %v681, 12
    %v4373 = vpop.permute.xlu0 %4372
    %4374 = vrot.lane.b32.xlu0 %v682, 12
    %v4375 = vpop.permute.xlu0 %4374
    %4376 = vrot.lane.b32.xlu0 %v684, 12
    %v4377 = vpop.permute.xlu0 %4376
    %4378 = vrot.lane.b32.xlu0 %v685, 12
    %v4379 = vpop.permute.xlu0 %4378
    %4380 = vrot.lane.b32.xlu0 %v687, 12
    %v4381 = vpop.permute.xlu0 %4380
    %4382 = vrot.lane.b32.xlu0 %v688, 12
    %v4383 = vpop.permute.xlu0 %4382
    %4384 = vrot.lane.b32.xlu0 %v690, 12
    %v4385 = vpop.permute.xlu0 %4384
    %4386 = vrot.lane.b32.xlu0 %v691, 12
    %v4387 = vpop.permute.xlu0 %4386
    %4388 = vrot.lane.b32.xlu0 %v693, 12
    %v4389 = vpop.permute.xlu0 %4388
    %4390 = vrot.lane.b32.xlu0 %v694, 12
    %v4391 = vpop.permute.xlu0 %4390
    %4392 = vrot.lane.b32.xlu0 %v696, 12
    %v4393 = vpop.permute.xlu0 %4392
    %4394 = vrot.lane.b32.xlu0 %v697, 12
    %v4395 = vpop.permute.xlu0 %4394
    %4396 = vrot.lane.b32.xlu0 %v699, 12
    %v4397 = vpop.permute.xlu0 %4396
    %4398 = vrot.lane.b32.xlu0 %v700, 12
    %v4399 = vpop.permute.xlu0 %4398
    %4400 = vrot.lane.b32.xlu0 %v702, 12
    %v4401 = vpop.permute.xlu0 %4400
    %4402 = vrot.lane.b32.xlu0 %v703, 12
    %v4403 = vpop.permute.xlu0 %4402
    %4404 = vrot.lane.b32.xlu0 %v705, 12
    %v4405 = vpop.permute.xlu0 %4404
    %4406 = vrot.lane.b32.xlu0 %v706, 12
    %v4407 = vpop.permute.xlu0 %4406
    %4408 = vrot.lane.b32.xlu0 %v708, 12
    %v4409 = vpop.permute.xlu0 %4408
    %4410 = vrot.lane.b32.xlu0 %v709, 12
    %v4411 = vpop.permute.xlu0 %4410
    %4412 = vrot.lane.b32.xlu0 %v711, 12
    %v4413 = vpop.permute.xlu0 %4412
    %4414 = vrot.lane.b32.xlu0 %v712, 12
    %v4415 = vpop.permute.xlu0 %4414
    %4416 = vrot.lane.b32.xlu0 %v714, 12
    %v4417 = vpop.permute.xlu0 %4416
    %4418 = vrot.lane.b32.xlu0 %v715, 12
    %v4419 = vpop.permute.xlu0 %4418
    %4420 = vrot.lane.b32.xlu0 %v723, 12
    %v4421 = vpop.permute.xlu0 %4420
    %4422 = vrot.lane.b32.xlu0 %v724, 12
    %v4423 = vpop.permute.xlu0 %4422
    %4424 = vrot.lane.b32.xlu0 %v726, 12
    %v4425 = vpop.permute.xlu0 %4424
    %4426 = vrot.lane.b32.xlu0 %v727, 12
    %v4427 = vpop.permute.xlu0 %4426
    %4428 = vrot.lane.b32.xlu0 %v729, 12
    %v4429 = vpop.permute.xlu0 %4428
    %4430 = vrot.lane.b32.xlu0 %v730, 12
    %v4431 = vpop.permute.xlu0 %4430
    %4432 = vrot.lane.b32.xlu0 %v732, 12
    %v4433 = vpop.permute.xlu0 %4432
    %4434 = vrot.lane.b32.xlu0 %v733, 12
    %v4435 = vpop.permute.xlu0 %4434
    %4436 = vrot.lane.b32.xlu0 %v735, 12
    %v4437 = vpop.permute.xlu0 %4436
    %4438 = vrot.lane.b32.xlu0 %v736, 12
    %v4439 = vpop.permute.xlu0 %4438
    %4440 = vrot.lane.b32.xlu0 %v738, 12
    %v4441 = vpop.permute.xlu0 %4440
    %4442 = vrot.lane.b32.xlu0 %v739, 12
    %v4443 = vpop.permute.xlu0 %4442
    %4444 = vrot.lane.b32.xlu0 %v741, 12
    %v4445 = vpop.permute.xlu0 %4444
    %4446 = vrot.lane.b32.xlu0 %v742, 12
    %v4447 = vpop.permute.xlu0 %4446
    %4448 = vrot.lane.b32.xlu0 %v744, 12
    %v4449 = vpop.permute.xlu0 %4448
    %4450 = vrot.lane.b32.xlu0 %v745, 12
    %v4451 = vpop.permute.xlu0 %4450
    %4452 = vrot.lane.b32.xlu0 %v747, 12
    %v4453 = vpop.permute.xlu0 %4452
    %4454 = vrot.lane.b32.xlu0 %v748, 12
    %v4455 = vpop.permute.xlu0 %4454
    %4456 = vrot.lane.b32.xlu0 %v750, 12
    %v4457 = vpop.permute.xlu0 %4456
    %4458 = vrot.lane.b32.xlu0 %v751, 12
    %v4459 = vpop.permute.xlu0 %4458
    %4460 = vrot.lane.b32.xlu0 %v753, 12
    %v4461 = vpop.permute.xlu0 %4460
    %4462 = vrot.lane.b32.xlu0 %v754, 12
    %v4463 = vpop.permute.xlu0 %4462
    %4464 = vrot.lane.b32.xlu0 %v756, 12
    %v4465 = vpop.permute.xlu0 %4464
    %4466 = vrot.lane.b32.xlu0 %v757, 12
    %v4467 = vpop.permute.xlu0 %4466
    %4468 = vrot.lane.b32.xlu0 %v759, 12
    %v4469 = vpop.permute.xlu0 %4468
    %4470 = vrot.lane.b32.xlu0 %v760, 12
    %v4471 = vpop.permute.xlu0 %4470
    %4472 = vrot.lane.b32.xlu0 %v762, 12
    %v4473 = vpop.permute.xlu0 %4472
    %4474 = vrot.lane.b32.xlu0 %v763, 12
    %v4475 = vpop.permute.xlu0 %4474
    %4476 = vrot.lane.b32.xlu0 %v765, 12
    %v4477 = vpop.permute.xlu0 %4476
    %4478 = vrot.lane.b32.xlu0 %v766, 12
    %v4479 = vpop.permute.xlu0 %4478
    %4480 = vrot.lane.b32.xlu0 %v768, 12
    %v4481 = vpop.permute.xlu0 %4480
    %4482 = vrot.lane.b32.xlu0 %v769, 12
    %v4483 = vpop.permute.xlu0 %4482
    %4484 = vrot.lane.b32.xlu0 %v777, 12
    %v4485 = vpop.permute.xlu0 %4484
    %4486 = vrot.lane.b32.xlu0 %v778, 12
    %v4487 = vpop.permute.xlu0 %4486
    %4488 = vrot.lane.b32.xlu0 %v780, 12
    %v4489 = vpop.permute.xlu0 %4488
    %4490 = vrot.lane.b32.xlu0 %v781, 12
    %v4491 = vpop.permute.xlu0 %4490
    %4492 = vrot.lane.b32.xlu0 %v783, 12
    %v4493 = vpop.permute.xlu0 %4492
    %4494 = vrot.lane.b32.xlu0 %v784, 12
    %v4495 = vpop.permute.xlu0 %4494
    %4496 = vrot.lane.b32.xlu0 %v786, 12
    %v4497 = vpop.permute.xlu0 %4496
    %4498 = vrot.lane.b32.xlu0 %v787, 12
    %v4499 = vpop.permute.xlu0 %4498
    %4500 = vrot.lane.b32.xlu0 %v789, 12
    %v4501 = vpop.permute.xlu0 %4500
    %4502 = vrot.lane.b32.xlu0 %v790, 12
    %v4503 = vpop.permute.xlu0 %4502
    %4504 = vrot.lane.b32.xlu0 %v792, 12
    %v4505 = vpop.permute.xlu0 %4504
    %4506 = vrot.lane.b32.xlu0 %v793, 12
    %v4507 = vpop.permute.xlu0 %4506
    %4508 = vrot.lane.b32.xlu0 %v795, 12
    %v4509 = vpop.permute.xlu0 %4508
    %4510 = vrot.lane.b32.xlu0 %v796, 12
    %v4511 = vpop.permute.xlu0 %4510
    %4512 = vrot.lane.b32.xlu0 %v798, 12
    %v4513 = vpop.permute.xlu0 %4512
    %4514 = vrot.lane.b32.xlu0 %v799, 12
    %v4515 = vpop.permute.xlu0 %4514
    %4516 = vrot.lane.b32.xlu0 %v801, 12
    %v4517 = vpop.permute.xlu0 %4516
    %4518 = vrot.lane.b32.xlu0 %v802, 12
    %v4519 = vpop.permute.xlu0 %4518
    %4520 = vrot.lane.b32.xlu0 %v804, 12
    %v4521 = vpop.permute.xlu0 %4520
    %4522 = vrot.lane.b32.xlu0 %v805, 12
    %v4523 = vpop.permute.xlu0 %4522
    %4524 = vrot.lane.b32.xlu0 %v807, 12
    %v4525 = vpop.permute.xlu0 %4524
    %4526 = vrot.lane.b32.xlu0 %v808, 12
    %v4527 = vpop.permute.xlu0 %4526
    %4528 = vrot.lane.b32.xlu0 %v810, 12
    %v4529 = vpop.permute.xlu0 %4528
    %4530 = vrot.lane.b32.xlu0 %v811, 12
    %v4531 = vpop.permute.xlu0 %4530
    %4532 = vrot.lane.b32.xlu0 %v813, 12
    %v4533 = vpop.permute.xlu0 %4532
    %4534 = vrot.lane.b32.xlu0 %v814, 12
    %v4535 = vpop.permute.xlu0 %4534
    %4536 = vrot.lane.b32.xlu0 %v816, 12
    %v4537 = vpop.permute.xlu0 %4536
    %4538 = vrot.lane.b32.xlu0 %v817, 12
    %v4539 = vpop.permute.xlu0 %4538
    %4540 = vrot.lane.b32.xlu0 %v819, 12
    %v4541 = vpop.permute.xlu0 %4540
    %4542 = vrot.lane.b32.xlu0 %v820, 12
    %v4543 = vpop.permute.xlu0 %4542
    %4544 = vrot.lane.b32.xlu0 %v822, 12
    %v4545 = vpop.permute.xlu0 %4544
    %4546 = vrot.lane.b32.xlu0 %v823, 12
    %v4547 = vpop.permute.xlu0 %4546
    %4548 = vrot.lane.b32.xlu0 %v831, 12
    %v4549 = vpop.permute.xlu0 %4548
    %4550 = vrot.lane.b32.xlu0 %v832, 12
    %v4551 = vpop.permute.xlu0 %4550
    %4552 = vrot.lane.b32.xlu0 %v834, 12
    %v4553 = vpop.permute.xlu0 %4552
    %4554 = vrot.lane.b32.xlu0 %v835, 12
    %v4555 = vpop.permute.xlu0 %4554
    %4556 = vrot.lane.b32.xlu0 %v837, 12
    %v4557 = vpop.permute.xlu0 %4556
    %4558 = vrot.lane.b32.xlu0 %v838, 12
    %v4559 = vpop.permute.xlu0 %4558
    %4560 = vrot.lane.b32.xlu0 %v840, 12
    %v4561 = vpop.permute.xlu0 %4560
    %4562 = vrot.lane.b32.xlu0 %v841, 12
    %v4563 = vpop.permute.xlu0 %4562
    %4564 = vrot.lane.b32.xlu0 %v843, 12
    %v4565 = vpop.permute.xlu0 %4564
    %4566 = vrot.lane.b32.xlu0 %v844, 12
    %v4567 = vpop.permute.xlu0 %4566
    %4568 = vrot.lane.b32.xlu0 %v846, 12
    %v4569 = vpop.permute.xlu0 %4568
    %4570 = vrot.lane.b32.xlu0 %v847, 12
    %v4571 = vpop.permute.xlu0 %4570
    %4572 = vrot.lane.b32.xlu0 %v849, 12
    %v4573 = vpop.permute.xlu0 %4572
    %4574 = vrot.lane.b32.xlu0 %v850, 12
    %v4575 = vpop.permute.xlu0 %4574
    %4576 = vrot.lane.b32.xlu0 %v852, 12
    %v4577 = vpop.permute.xlu0 %4576
    %4578 = vrot.lane.b32.xlu0 %v853, 12
    %v4579 = vpop.permute.xlu0 %4578
    %4580 = vrot.lane.b32.xlu0 %v855, 12
    %v4581 = vpop.permute.xlu0 %4580
    %4582 = vrot.lane.b32.xlu0 %v856, 12
    %v4583 = vpop.permute.xlu0 %4582
    %4584 = vrot.lane.b32.xlu0 %v858, 12
    %v4585 = vpop.permute.xlu0 %4584
    %4586 = vrot.lane.b32.xlu0 %v859, 12
    %v4587 = vpop.permute.xlu0 %4586
    %4588 = vrot.lane.b32.xlu0 %v861, 12
    %v4589 = vpop.permute.xlu0 %4588
    %4590 = vrot.lane.b32.xlu0 %v862, 12
    %v4591 = vpop.permute.xlu0 %4590
    %4592 = vrot.lane.b32.xlu0 %v864, 12
    %v4593 = vpop.permute.xlu0 %4592
    %4594 = vrot.lane.b32.xlu0 %v865, 12
    %v4595 = vpop.permute.xlu0 %4594
    %4596 = vrot.lane.b32.xlu0 %v867, 12
    %v4597 = vpop.permute.xlu0 %4596
    %4598 = vrot.lane.b32.xlu0 %v868, 12
    %v4599 = vpop.permute.xlu0 %4598
    %4600 = vrot.lane.b32.xlu0 %v870, 12
    %v4601 = vpop.permute.xlu0 %4600
    %4602 = vrot.lane.b32.xlu0 %v871, 12
    %v4603 = vpop.permute.xlu0 %4602
    %4604 = vrot.lane.b32.xlu0 %v873, 12
    %v4605 = vpop.permute.xlu0 %4604
    %4606 = vrot.lane.b32.xlu0 %v874, 12
    %v4607 = vpop.permute.xlu0 %4606
    %4608 = vrot.lane.b32.xlu0 %v876, 12
    %v4609 = vpop.permute.xlu0 %4608
    %4610 = vrot.lane.b32.xlu0 %v877, 12
    %v4611 = vpop.permute.xlu0 %4610
    %v4876 = vrot.slane %v498, 1
    %v4877 = vrot.slane %v499, 1
    %v4878 = vsel %vm1266, %v4876, %v4877
    %v4879 = vrot.slane %v500, 1
    %v4880 = vsel %vm1266, %v4877, %v4879
    %v4881 = vrot.slane %v552, 1
    %v4882 = vrot.slane %v553, 1
    %v4883 = vsel %vm1266, %v4881, %v4882
    %v4884 = vrot.slane %v554, 1
    %v4885 = vsel %vm1266, %v4882, %v4884
    %v4886 = vrot.slane %v606, 1
    %v4887 = vrot.slane %v607, 1
    %v4888 = vsel %vm1266, %v4886, %v4887
    %v4889 = vrot.slane %v608, 1
    %v4890 = vsel %vm1266, %v4887, %v4889
    %v4891 = vrot.slane %v660, 1
    %v4892 = vrot.slane %v661, 1
    %v4893 = vsel %vm1266, %v4891, %v4892
    %v4894 = vrot.slane %v662, 1
    %v4895 = vsel %vm1266, %v4892, %v4894
    %v4896 = vrot.slane %v714, 1
    %v4897 = vrot.slane %v715, 1
    %v4898 = vsel %vm1266, %v4896, %v4897
    %v4899 = vrot.slane %v716, 1
    %v4900 = vsel %vm1266, %v4897, %v4899
    %v4901 = vrot.slane %v768, 1
    %v4902 = vrot.slane %v769, 1
    %v4903 = vsel %vm1266, %v4901, %v4902
    %v4904 = vrot.slane %v770, 1
    %v4905 = vsel %vm1266, %v4902, %v4904
    %v4906 = vrot.slane %v822, 1
    %v4907 = vrot.slane %v823, 1
    %v4908 = vsel %vm1266, %v4906, %v4907
    %v4909 = vrot.slane %v824, 1
    %v4910 = vsel %vm1266, %v4907, %v4909
    %v4911 = vrot.slane %v876, 1
    %v4912 = vrot.slane %v877, 1
    %v4913 = vsel %vm1266, %v4911, %v4912
    %v4914 = vrot.slane %v878, 1
    %v4915 = vsel %vm1266, %v4912, %v4914
    %4916 = vrot.lane.b32.xlu0 %v1274, 16
    %v4917 = vpop.permute.xlu0 %4916
    %4918 = vrot.lane.b32.xlu0 %v1276, 16
    %v4919 = vpop.permute.xlu0 %4918
    %4920 = vrot.lane.b32.xlu0 %v1279, 16
    %v4921 = vpop.permute.xlu0 %4920
    %4922 = vrot.lane.b32.xlu0 %v1281, 16
    %v4923 = vpop.permute.xlu0 %4922
    %4924 = vrot.lane.b32.xlu0 %v1284, 16
    %v4925 = vpop.permute.xlu0 %4924
    %4926 = vrot.lane.b32.xlu0 %v1286, 16
    %v4927 = vpop.permute.xlu0 %4926
    %4928 = vrot.lane.b32.xlu0 %v1289, 16
    %v4929 = vpop.permute.xlu0 %4928
    %4930 = vrot.lane.b32.xlu0 %v1291, 16
    %v4931 = vpop.permute.xlu0 %4930
    %4932 = vrot.lane.b32.xlu0 %v1294, 16
    %v4933 = vpop.permute.xlu0 %4932
    %4934 = vrot.lane.b32.xlu0 %v1296, 16
    %v4935 = vpop.permute.xlu0 %4934
    %4936 = vrot.lane.b32.xlu0 %v1299, 16
    %v4937 = vpop.permute.xlu0 %4936
    %4938 = vrot.lane.b32.xlu0 %v1301, 16
    %v4939 = vpop.permute.xlu0 %4938
    %4940 = vrot.lane.b32.xlu0 %v1304, 16
    %v4941 = vpop.permute.xlu0 %4940
    %4942 = vrot.lane.b32.xlu0 %v1306, 16
    %v4943 = vpop.permute.xlu0 %4942
    %4944 = vrot.lane.b32.xlu0 %v1309, 16
    %v4945 = vpop.permute.xlu0 %4944
    %4946 = vrot.lane.b32.xlu0 %v1311, 16
    %v4947 = vpop.permute.xlu0 %4946
    %4948 = vrot.lane.b32.xlu0 %v1314, 16
    %v4949 = vpop.permute.xlu0 %4948
    %4950 = vrot.lane.b32.xlu0 %v1316, 16
    %v4951 = vpop.permute.xlu0 %4950
    %4952 = vrot.lane.b32.xlu0 %v1319, 16
    %v4953 = vpop.permute.xlu0 %4952
    %4954 = vrot.lane.b32.xlu0 %v1321, 16
    %v4955 = vpop.permute.xlu0 %4954
    %4956 = vrot.lane.b32.xlu0 %v1324, 16
    %v4957 = vpop.permute.xlu0 %4956
    %4958 = vrot.lane.b32.xlu0 %v1326, 16
    %v4959 = vpop.permute.xlu0 %4958
    %4960 = vrot.lane.b32.xlu0 %v1329, 16
    %v4961 = vpop.permute.xlu0 %4960
    %4962 = vrot.lane.b32.xlu0 %v1331, 16
    %v4963 = vpop.permute.xlu0 %4962
    %4964 = vrot.lane.b32.xlu0 %v1334, 16
    %v4965 = vpop.permute.xlu0 %4964
    %4966 = vrot.lane.b32.xlu0 %v1336, 16
    %v4967 = vpop.permute.xlu0 %4966
    %4968 = vrot.lane.b32.xlu0 %v1339, 16
    %v4969 = vpop.permute.xlu0 %4968
    %4970 = vrot.lane.b32.xlu0 %v1341, 16
    %v4971 = vpop.permute.xlu0 %4970
    %4972 = vrot.lane.b32.xlu0 %v1344, 16
    %v4973 = vpop.permute.xlu0 %4972
    %4974 = vrot.lane.b32.xlu0 %v1346, 16
    %v4975 = vpop.permute.xlu0 %4974
    %4976 = vrot.lane.b32.xlu0 %v4878, 16
    %v4977 = vpop.permute.xlu0 %4976
    %4978 = vrot.lane.b32.xlu0 %v4880, 16
    %v4979 = vpop.permute.xlu0 %4978
    %4980 = vrot.lane.b32.xlu0 %v1354, 16
    %v4981 = vpop.permute.xlu0 %4980
    %4982 = vrot.lane.b32.xlu0 %v1356, 16
    %v4983 = vpop.permute.xlu0 %4982
    %4984 = vrot.lane.b32.xlu0 %v1359, 16
    %v4985 = vpop.permute.xlu0 %4984
    %4986 = vrot.lane.b32.xlu0 %v1361, 16
    %v4987 = vpop.permute.xlu0 %4986
    %4988 = vrot.lane.b32.xlu0 %v1364, 16
    %v4989 = vpop.permute.xlu0 %4988
    %4990 = vrot.lane.b32.xlu0 %v1366, 16
    %v4991 = vpop.permute.xlu0 %4990
    %4992 = vrot.lane.b32.xlu0 %v1369, 16
    %v4993 = vpop.permute.xlu0 %4992
    %4994 = vrot.lane.b32.xlu0 %v1371, 16
    %v4995 = vpop.permute.xlu0 %4994
    %4996 = vrot.lane.b32.xlu0 %v1374, 16
    %v4997 = vpop.permute.xlu0 %4996
    %4998 = vrot.lane.b32.xlu0 %v1376, 16
    %v4999 = vpop.permute.xlu0 %4998
    %5000 = vrot.lane.b32.xlu0 %v1379, 16
    %v5001 = vpop.permute.xlu0 %5000
    %5002 = vrot.lane.b32.xlu0 %v1381, 16
    %v5003 = vpop.permute.xlu0 %5002
    %5004 = vrot.lane.b32.xlu0 %v1384, 16
    %v5005 = vpop.permute.xlu0 %5004
    %5006 = vrot.lane.b32.xlu0 %v1386, 16
    %v5007 = vpop.permute.xlu0 %5006
    %5008 = vrot.lane.b32.xlu0 %v1389, 16
    %v5009 = vpop.permute.xlu0 %5008
    %5010 = vrot.lane.b32.xlu0 %v1391, 16
    %v5011 = vpop.permute.xlu0 %5010
    %5012 = vrot.lane.b32.xlu0 %v1394, 16
    %v5013 = vpop.permute.xlu0 %5012
    %5014 = vrot.lane.b32.xlu0 %v1396, 16
    %v5015 = vpop.permute.xlu0 %5014
    %5016 = vrot.lane.b32.xlu0 %v1399, 16
    %v5017 = vpop.permute.xlu0 %5016
    %5018 = vrot.lane.b32.xlu0 %v1401, 16
    %v5019 = vpop.permute.xlu0 %5018
    %5020 = vrot.lane.b32.xlu0 %v1404, 16
    %v5021 = vpop.permute.xlu0 %5020
    %5022 = vrot.lane.b32.xlu0 %v1406, 16
    %v5023 = vpop.permute.xlu0 %5022
    %5024 = vrot.lane.b32.xlu0 %v1409, 16
    %v5025 = vpop.permute.xlu0 %5024
    %5026 = vrot.lane.b32.xlu0 %v1411, 16
    %v5027 = vpop.permute.xlu0 %5026
    %5028 = vrot.lane.b32.xlu0 %v1414, 16
    %v5029 = vpop.permute.xlu0 %5028
    %5030 = vrot.lane.b32.xlu0 %v1416, 16
    %v5031 = vpop.permute.xlu0 %5030
    %5032 = vrot.lane.b32.xlu0 %v1419, 16
    %v5033 = vpop.permute.xlu0 %5032
    %5034 = vrot.lane.b32.xlu0 %v1421, 16
    %v5035 = vpop.permute.xlu0 %5034
    %5036 = vrot.lane.b32.xlu0 %v1424, 16
    %v5037 = vpop.permute.xlu0 %5036
    %5038 = vrot.lane.b32.xlu0 %v1426, 16
    %v5039 = vpop.permute.xlu0 %5038
    %5040 = vrot.lane.b32.xlu0 %v4883, 16
    %v5041 = vpop.permute.xlu0 %5040
    %5042 = vrot.lane.b32.xlu0 %v4885, 16
    %v5043 = vpop.permute.xlu0 %5042
    %5044 = vrot.lane.b32.xlu0 %v1434, 16
    %v5045 = vpop.permute.xlu0 %5044
    %5046 = vrot.lane.b32.xlu0 %v1436, 16
    %v5047 = vpop.permute.xlu0 %5046
    %5048 = vrot.lane.b32.xlu0 %v1439, 16
    %v5049 = vpop.permute.xlu0 %5048
    %5050 = vrot.lane.b32.xlu0 %v1441, 16
    %v5051 = vpop.permute.xlu0 %5050
    %5052 = vrot.lane.b32.xlu0 %v1444, 16
    %v5053 = vpop.permute.xlu0 %5052
    %5054 = vrot.lane.b32.xlu0 %v1446, 16
    %v5055 = vpop.permute.xlu0 %5054
    %5056 = vrot.lane.b32.xlu0 %v1449, 16
    %v5057 = vpop.permute.xlu0 %5056
    %5058 = vrot.lane.b32.xlu0 %v1451, 16
    %v5059 = vpop.permute.xlu0 %5058
    %5060 = vrot.lane.b32.xlu0 %v1454, 16
    %v5061 = vpop.permute.xlu0 %5060
    %5062 = vrot.lane.b32.xlu0 %v1456, 16
    %v5063 = vpop.permute.xlu0 %5062
    %5064 = vrot.lane.b32.xlu0 %v1459, 16
    %v5065 = vpop.permute.xlu0 %5064
    %5066 = vrot.lane.b32.xlu0 %v1461, 16
    %v5067 = vpop.permute.xlu0 %5066
    %5068 = vrot.lane.b32.xlu0 %v1464, 16
    %v5069 = vpop.permute.xlu0 %5068
    %5070 = vrot.lane.b32.xlu0 %v1466, 16
    %v5071 = vpop.permute.xlu0 %5070
    %5072 = vrot.lane.b32.xlu0 %v1469, 16
    %v5073 = vpop.permute.xlu0 %5072
    %5074 = vrot.lane.b32.xlu0 %v1471, 16
    %v5075 = vpop.permute.xlu0 %5074
    %5076 = vrot.lane.b32.xlu0 %v1474, 16
    %v5077 = vpop.permute.xlu0 %5076
    %5078 = vrot.lane.b32.xlu0 %v1476, 16
    %v5079 = vpop.permute.xlu0 %5078
    %5080 = vrot.lane.b32.xlu0 %v1479, 16
    %v5081 = vpop.permute.xlu0 %5080
    %5082 = vrot.lane.b32.xlu0 %v1481, 16
    %v5083 = vpop.permute.xlu0 %5082
    %5084 = vrot.lane.b32.xlu0 %v1484, 16
    %v5085 = vpop.permute.xlu0 %5084
    %5086 = vrot.lane.b32.xlu0 %v1486, 16
    %v5087 = vpop.permute.xlu0 %5086
    %5088 = vrot.lane.b32.xlu0 %v1489, 16
    %v5089 = vpop.permute.xlu0 %5088
    %5090 = vrot.lane.b32.xlu0 %v1491, 16
    %v5091 = vpop.permute.xlu0 %5090
    %5092 = vrot.lane.b32.xlu0 %v1494, 16
    %v5093 = vpop.permute.xlu0 %5092
    %5094 = vrot.lane.b32.xlu0 %v1496, 16
    %v5095 = vpop.permute.xlu0 %5094
    %5096 = vrot.lane.b32.xlu0 %v1499, 16
    %v5097 = vpop.permute.xlu0 %5096
    %5098 = vrot.lane.b32.xlu0 %v1501, 16
    %v5099 = vpop.permute.xlu0 %5098
    %5100 = vrot.lane.b32.xlu0 %v1504, 16
    %v5101 = vpop.permute.xlu0 %5100
    %5102 = vrot.lane.b32.xlu0 %v1506, 16
    %v5103 = vpop.permute.xlu0 %5102
    %5104 = vrot.lane.b32.xlu0 %v4888, 16
    %v5105 = vpop.permute.xlu0 %5104
    %5106 = vrot.lane.b32.xlu0 %v4890, 16
    %v5107 = vpop.permute.xlu0 %5106
    %5108 = vrot.lane.b32.xlu0 %v1514, 16
    %v5109 = vpop.permute.xlu0 %5108
    %5110 = vrot.lane.b32.xlu0 %v1516, 16
    %v5111 = vpop.permute.xlu0 %5110
    %5112 = vrot.lane.b32.xlu0 %v1519, 16
    %v5113 = vpop.permute.xlu0 %5112
    %5114 = vrot.lane.b32.xlu0 %v1521, 16
    %v5115 = vpop.permute.xlu0 %5114
    %5116 = vrot.lane.b32.xlu0 %v1524, 16
    %v5117 = vpop.permute.xlu0 %5116
    %5118 = vrot.lane.b32.xlu0 %v1526, 16
    %v5119 = vpop.permute.xlu0 %5118
    %5120 = vrot.lane.b32.xlu0 %v1529, 16
    %v5121 = vpop.permute.xlu0 %5120
    %5122 = vrot.lane.b32.xlu0 %v1531, 16
    %v5123 = vpop.permute.xlu0 %5122
    %5124 = vrot.lane.b32.xlu0 %v1534, 16
    %v5125 = vpop.permute.xlu0 %5124
    %5126 = vrot.lane.b32.xlu0 %v1536, 16
    %v5127 = vpop.permute.xlu0 %5126
    %5128 = vrot.lane.b32.xlu0 %v1539, 16
    %v5129 = vpop.permute.xlu0 %5128
    %5130 = vrot.lane.b32.xlu0 %v1541, 16
    %v5131 = vpop.permute.xlu0 %5130
    %5132 = vrot.lane.b32.xlu0 %v1544, 16
    %v5133 = vpop.permute.xlu0 %5132
    %5134 = vrot.lane.b32.xlu0 %v1546, 16
    %v5135 = vpop.permute.xlu0 %5134
    %5136 = vrot.lane.b32.xlu0 %v1549, 16
    %v5137 = vpop.permute.xlu0 %5136
    %5138 = vrot.lane.b32.xlu0 %v1551, 16
    %v5139 = vpop.permute.xlu0 %5138
    %5140 = vrot.lane.b32.xlu0 %v1554, 16
    %v5141 = vpop.permute.xlu0 %5140
    %5142 = vrot.lane.b32.xlu0 %v1556, 16
    %v5143 = vpop.permute.xlu0 %5142
    %5144 = vrot.lane.b32.xlu0 %v1559, 16
    %v5145 = vpop.permute.xlu0 %5144
    %5146 = vrot.lane.b32.xlu0 %v1561, 16
    %v5147 = vpop.permute.xlu0 %5146
    %5148 = vrot.lane.b32.xlu0 %v1564, 16
    %v5149 = vpop.permute.xlu0 %5148
    %5150 = vrot.lane.b32.xlu0 %v1566, 16
    %v5151 = vpop.permute.xlu0 %5150
    %5152 = vrot.lane.b32.xlu0 %v1569, 16
    %v5153 = vpop.permute.xlu0 %5152
    %5154 = vrot.lane.b32.xlu0 %v1571, 16
    %v5155 = vpop.permute.xlu0 %5154
    %5156 = vrot.lane.b32.xlu0 %v1574, 16
    %v5157 = vpop.permute.xlu0 %5156
    %5158 = vrot.lane.b32.xlu0 %v1576, 16
    %v5159 = vpop.permute.xlu0 %5158
    %5160 = vrot.lane.b32.xlu0 %v1579, 16
    %v5161 = vpop.permute.xlu0 %5160
    %5162 = vrot.lane.b32.xlu0 %v1581, 16
    %v5163 = vpop.permute.xlu0 %5162
    %5164 = vrot.lane.b32.xlu0 %v1584, 16
    %v5165 = vpop.permute.xlu0 %5164
    %5166 = vrot.lane.b32.xlu0 %v1586, 16
    %v5167 = vpop.permute.xlu0 %5166
    %5168 = vrot.lane.b32.xlu0 %v4893, 16
    %v5169 = vpop.permute.xlu0 %5168
    %5170 = vrot.lane.b32.xlu0 %v4895, 16
    %v5171 = vpop.permute.xlu0 %5170
    %5172 = vrot.lane.b32.xlu0 %v1594, 16
    %v5173 = vpop.permute.xlu0 %5172
    %5174 = vrot.lane.b32.xlu0 %v1596, 16
    %v5175 = vpop.permute.xlu0 %5174
    %5176 = vrot.lane.b32.xlu0 %v1599, 16
    %v5177 = vpop.permute.xlu0 %5176
    %5178 = vrot.lane.b32.xlu0 %v1601, 16
    %v5179 = vpop.permute.xlu0 %5178
    %5180 = vrot.lane.b32.xlu0 %v1604, 16
    %v5181 = vpop.permute.xlu0 %5180
    %5182 = vrot.lane.b32.xlu0 %v1606, 16
    %v5183 = vpop.permute.xlu0 %5182
    %5184 = vrot.lane.b32.xlu0 %v1609, 16
    %v5185 = vpop.permute.xlu0 %5184
    %5186 = vrot.lane.b32.xlu0 %v1611, 16
    %v5187 = vpop.permute.xlu0 %5186
    %5188 = vrot.lane.b32.xlu0 %v1614, 16
    %v5189 = vpop.permute.xlu0 %5188
    %5190 = vrot.lane.b32.xlu0 %v1616, 16
    %v5191 = vpop.permute.xlu0 %5190
    %5192 = vrot.lane.b32.xlu0 %v1619, 16
    %v5193 = vpop.permute.xlu0 %5192
    %5194 = vrot.lane.b32.xlu0 %v1621, 16
    %v5195 = vpop.permute.xlu0 %5194
    %5196 = vrot.lane.b32.xlu0 %v1624, 16
    %v5197 = vpop.permute.xlu0 %5196
    %5198 = vrot.lane.b32.xlu0 %v1626, 16
    %v5199 = vpop.permute.xlu0 %5198
    %5200 = vrot.lane.b32.xlu0 %v1629, 16
    %v5201 = vpop.permute.xlu0 %5200
    %5202 = vrot.lane.b32.xlu0 %v1631, 16
    %v5203 = vpop.permute.xlu0 %5202
    %5204 = vrot.lane.b32.xlu0 %v1634, 16
    %v5205 = vpop.permute.xlu0 %5204
    %5206 = vrot.lane.b32.xlu0 %v1636, 16
    %v5207 = vpop.permute.xlu0 %5206
    %5208 = vrot.lane.b32.xlu0 %v1639, 16
    %v5209 = vpop.permute.xlu0 %5208
    %5210 = vrot.lane.b32.xlu0 %v1641, 16
    %v5211 = vpop.permute.xlu0 %5210
    %5212 = vrot.lane.b32.xlu0 %v1644, 16
    %v5213 = vpop.permute.xlu0 %5212
    %5214 = vrot.lane.b32.xlu0 %v1646, 16
    %v5215 = vpop.permute.xlu0 %5214
    %5216 = vrot.lane.b32.xlu0 %v1649, 16
    %v5217 = vpop.permute.xlu0 %5216
    %5218 = vrot.lane.b32.xlu0 %v1651, 16
    %v5219 = vpop.permute.xlu0 %5218
    %5220 = vrot.lane.b32.xlu0 %v1654, 16
    %v5221 = vpop.permute.xlu0 %5220
    %5222 = vrot.lane.b32.xlu0 %v1656, 16
    %v5223 = vpop.permute.xlu0 %5222
    %5224 = vrot.lane.b32.xlu0 %v1659, 16
    %v5225 = vpop.permute.xlu0 %5224
    %5226 = vrot.lane.b32.xlu0 %v1661, 16
    %v5227 = vpop.permute.xlu0 %5226
    %5228 = vrot.lane.b32.xlu0 %v1664, 16
    %v5229 = vpop.permute.xlu0 %5228
    %5230 = vrot.lane.b32.xlu0 %v1666, 16
    %v5231 = vpop.permute.xlu0 %5230
    %5232 = vrot.lane.b32.xlu0 %v4898, 16
    %v5233 = vpop.permute.xlu0 %5232
    %5234 = vrot.lane.b32.xlu0 %v4900, 16
    %v5235 = vpop.permute.xlu0 %5234
    %5236 = vrot.lane.b32.xlu0 %v1674, 16
    %v5237 = vpop.permute.xlu0 %5236
    %5238 = vrot.lane.b32.xlu0 %v1676, 16
    %v5239 = vpop.permute.xlu0 %5238
    %5240 = vrot.lane.b32.xlu0 %v1679, 16
    %v5241 = vpop.permute.xlu0 %5240
    %5242 = vrot.lane.b32.xlu0 %v1681, 16
    %v5243 = vpop.permute.xlu0 %5242
    %5244 = vrot.lane.b32.xlu0 %v1684, 16
    %v5245 = vpop.permute.xlu0 %5244
    %5246 = vrot.lane.b32.xlu0 %v1686, 16
    %v5247 = vpop.permute.xlu0 %5246
    %5248 = vrot.lane.b32.xlu0 %v1689, 16
    %v5249 = vpop.permute.xlu0 %5248
    %5250 = vrot.lane.b32.xlu0 %v1691, 16
    %v5251 = vpop.permute.xlu0 %5250
    %5252 = vrot.lane.b32.xlu0 %v1694, 16
    %v5253 = vpop.permute.xlu0 %5252
    %5254 = vrot.lane.b32.xlu0 %v1696, 16
    %v5255 = vpop.permute.xlu0 %5254
    %5256 = vrot.lane.b32.xlu0 %v1699, 16
    %v5257 = vpop.permute.xlu0 %5256
    %5258 = vrot.lane.b32.xlu0 %v1701, 16
    %v5259 = vpop.permute.xlu0 %5258
    %5260 = vrot.lane.b32.xlu0 %v1704, 16
    %v5261 = vpop.permute.xlu0 %5260
    %5262 = vrot.lane.b32.xlu0 %v1706, 16
    %v5263 = vpop.permute.xlu0 %5262
    %5264 = vrot.lane.b32.xlu0 %v1709, 16
    %v5265 = vpop.permute.xlu0 %5264
    %5266 = vrot.lane.b32.xlu0 %v1711, 16
    %v5267 = vpop.permute.xlu0 %5266
    %5268 = vrot.lane.b32.xlu0 %v1714, 16
    %v5269 = vpop.permute.xlu0 %5268
    %5270 = vrot.lane.b32.xlu0 %v1716, 16
    %v5271 = vpop.permute.xlu0 %5270
    %5272 = vrot.lane.b32.xlu0 %v1719, 16
    %v5273 = vpop.permute.xlu0 %5272
    %5274 = vrot.lane.b32.xlu0 %v1721, 16
    %v5275 = vpop.permute.xlu0 %5274
    %5276 = vrot.lane.b32.xlu0 %v1724, 16
    %v5277 = vpop.permute.xlu0 %5276
    %5278 = vrot.lane.b32.xlu0 %v1726, 16
    %v5279 = vpop.permute.xlu0 %5278
    %5280 = vrot.lane.b32.xlu0 %v1729, 16
    %v5281 = vpop.permute.xlu0 %5280
    %5282 = vrot.lane.b32.xlu0 %v1731, 16
    %v5283 = vpop.permute.xlu0 %5282
    %5284 = vrot.lane.b32.xlu0 %v1734, 16
    %v5285 = vpop.permute.xlu0 %5284
    %5286 = vrot.lane.b32.xlu0 %v1736, 16
    %v5287 = vpop.permute.xlu0 %5286
    %5288 = vrot.lane.b32.xlu0 %v1739, 16
    %v5289 = vpop.permute.xlu0 %5288
    %5290 = vrot.lane.b32.xlu0 %v1741, 16
    %v5291 = vpop.permute.xlu0 %5290
    %5292 = vrot.lane.b32.xlu0 %v1744, 16
    %v5293 = vpop.permute.xlu0 %5292
    %5294 = vrot.lane.b32.xlu0 %v1746, 16
    %v5295 = vpop.permute.xlu0 %5294
    %5296 = vrot.lane.b32.xlu0 %v4903, 16
    %v5297 = vpop.permute.xlu0 %5296
    %5298 = vrot.lane.b32.xlu0 %v4905, 16
    %v5299 = vpop.permute.xlu0 %5298
    %5300 = vrot.lane.b32.xlu0 %v1754, 16
    %v5301 = vpop.permute.xlu0 %5300
    %5302 = vrot.lane.b32.xlu0 %v1756, 16
    %v5303 = vpop.permute.xlu0 %5302
    %5304 = vrot.lane.b32.xlu0 %v1759, 16
    %v5305 = vpop.permute.xlu0 %5304
    %5306 = vrot.lane.b32.xlu0 %v1761, 16
    %v5307 = vpop.permute.xlu0 %5306
    %5308 = vrot.lane.b32.xlu0 %v1764, 16
    %v5309 = vpop.permute.xlu0 %5308
    %5310 = vrot.lane.b32.xlu0 %v1766, 16
    %v5311 = vpop.permute.xlu0 %5310
    %5312 = vrot.lane.b32.xlu0 %v1769, 16
    %v5313 = vpop.permute.xlu0 %5312
    %5314 = vrot.lane.b32.xlu0 %v1771, 16
    %v5315 = vpop.permute.xlu0 %5314
    %5316 = vrot.lane.b32.xlu0 %v1774, 16
    %v5317 = vpop.permute.xlu0 %5316
    %5318 = vrot.lane.b32.xlu0 %v1776, 16
    %v5319 = vpop.permute.xlu0 %5318
    %5320 = vrot.lane.b32.xlu0 %v1779, 16
    %v5321 = vpop.permute.xlu0 %5320
    %5322 = vrot.lane.b32.xlu0 %v1781, 16
    %v5323 = vpop.permute.xlu0 %5322
    %5324 = vrot.lane.b32.xlu0 %v1784, 16
    %v5325 = vpop.permute.xlu0 %5324
    %5326 = vrot.lane.b32.xlu0 %v1786, 16
    %v5327 = vpop.permute.xlu0 %5326
    %5328 = vrot.lane.b32.xlu0 %v1789, 16
    %v5329 = vpop.permute.xlu0 %5328
    %5330 = vrot.lane.b32.xlu0 %v1791, 16
    %v5331 = vpop.permute.xlu0 %5330
    %5332 = vrot.lane.b32.xlu0 %v1794, 16
    %v5333 = vpop.permute.xlu0 %5332
    %5334 = vrot.lane.b32.xlu0 %v1796, 16
    %v5335 = vpop.permute.xlu0 %5334
    %5336 = vrot.lane.b32.xlu0 %v1799, 16
    %v5337 = vpop.permute.xlu0 %5336
    %5338 = vrot.lane.b32.xlu0 %v1801, 16
    %v5339 = vpop.permute.xlu0 %5338
    %5340 = vrot.lane.b32.xlu0 %v1804, 16
    %v5341 = vpop.permute.xlu0 %5340
    %5342 = vrot.lane.b32.xlu0 %v1806, 16
    %v5343 = vpop.permute.xlu0 %5342
    %5344 = vrot.lane.b32.xlu0 %v1809, 16
    %v5345 = vpop.permute.xlu0 %5344
    %5346 = vrot.lane.b32.xlu0 %v1811, 16
    %v5347 = vpop.permute.xlu0 %5346
    %5348 = vrot.lane.b32.xlu0 %v1814, 16
    %v5349 = vpop.permute.xlu0 %5348
    %5350 = vrot.lane.b32.xlu0 %v1816, 16
    %v5351 = vpop.permute.xlu0 %5350
    %5352 = vrot.lane.b32.xlu0 %v1819, 16
    %v5353 = vpop.permute.xlu0 %5352
    %5354 = vrot.lane.b32.xlu0 %v1821, 16
    %v5355 = vpop.permute.xlu0 %5354
    %5356 = vrot.lane.b32.xlu0 %v1824, 16
    %v5357 = vpop.permute.xlu0 %5356
    %5358 = vrot.lane.b32.xlu0 %v1826, 16
    %v5359 = vpop.permute.xlu0 %5358
    %5360 = vrot.lane.b32.xlu0 %v4908, 16
    %v5361 = vpop.permute.xlu0 %5360
    %5362 = vrot.lane.b32.xlu0 %v4910, 16
    %v5363 = vpop.permute.xlu0 %5362
    %5364 = vrot.lane.b32.xlu0 %v1834, 16
    %v5365 = vpop.permute.xlu0 %5364
    %5366 = vrot.lane.b32.xlu0 %v1836, 16
    %v5367 = vpop.permute.xlu0 %5366
    %5368 = vrot.lane.b32.xlu0 %v1839, 16
    %v5369 = vpop.permute.xlu0 %5368
    %5370 = vrot.lane.b32.xlu0 %v1841, 16
    %v5371 = vpop.permute.xlu0 %5370
    %5372 = vrot.lane.b32.xlu0 %v1844, 16
    %v5373 = vpop.permute.xlu0 %5372
    %5374 = vrot.lane.b32.xlu0 %v1846, 16
    %v5375 = vpop.permute.xlu0 %5374
    %5376 = vrot.lane.b32.xlu0 %v1849, 16
    %v5377 = vpop.permute.xlu0 %5376
    %5378 = vrot.lane.b32.xlu0 %v1851, 16
    %v5379 = vpop.permute.xlu0 %5378
    %5380 = vrot.lane.b32.xlu0 %v1854, 16
    %v5381 = vpop.permute.xlu0 %5380
    %5382 = vrot.lane.b32.xlu0 %v1856, 16
    %v5383 = vpop.permute.xlu0 %5382
    %5384 = vrot.lane.b32.xlu0 %v1859, 16
    %v5385 = vpop.permute.xlu0 %5384
    %5386 = vrot.lane.b32.xlu0 %v1861, 16
    %v5387 = vpop.permute.xlu0 %5386
    %5388 = vrot.lane.b32.xlu0 %v1864, 16
    %v5389 = vpop.permute.xlu0 %5388
    %5390 = vrot.lane.b32.xlu0 %v1866, 16
    %v5391 = vpop.permute.xlu0 %5390
    %5392 = vrot.lane.b32.xlu0 %v1869, 16
    %v5393 = vpop.permute.xlu0 %5392
    %5394 = vrot.lane.b32.xlu0 %v1871, 16
    %v5395 = vpop.permute.xlu0 %5394
    %5396 = vrot.lane.b32.xlu0 %v1874, 16
    %v5397 = vpop.permute.xlu0 %5396
    %5398 = vrot.lane.b32.xlu0 %v1876, 16
    %v5399 = vpop.permute.xlu0 %5398
    %5400 = vrot.lane.b32.xlu0 %v1879, 16
    %v5401 = vpop.permute.xlu0 %5400
    %5402 = vrot.lane.b32.xlu0 %v1881, 16
    %v5403 = vpop.permute.xlu0 %5402
    %5404 = vrot.lane.b32.xlu0 %v1884, 16
    %v5405 = vpop.permute.xlu0 %5404
    %5406 = vrot.lane.b32.xlu0 %v1886, 16
    %v5407 = vpop.permute.xlu0 %5406
    %5408 = vrot.lane.b32.xlu0 %v1889, 16
    %v5409 = vpop.permute.xlu0 %5408
    %5410 = vrot.lane.b32.xlu0 %v1891, 16
    %v5411 = vpop.permute.xlu0 %5410
    %5412 = vrot.lane.b32.xlu0 %v1894, 16
    %v5413 = vpop.permute.xlu0 %5412
    %5414 = vrot.lane.b32.xlu0 %v1896, 16
    %v5415 = vpop.permute.xlu0 %5414
    %5416 = vrot.lane.b32.xlu0 %v1899, 16
    %v5417 = vpop.permute.xlu0 %5416
    %5418 = vrot.lane.b32.xlu0 %v1901, 16
    %v5419 = vpop.permute.xlu0 %5418
    %5420 = vrot.lane.b32.xlu0 %v1904, 16
    %v5421 = vpop.permute.xlu0 %5420
    %5422 = vrot.lane.b32.xlu0 %v1906, 16
    %v5423 = vpop.permute.xlu0 %5422
    %5424 = vrot.lane.b32.xlu0 %v4913, 16
    %v5425 = vpop.permute.xlu0 %5424
    %5426 = vrot.lane.b32.xlu0 %v4915, 16
    %v5427 = vpop.permute.xlu0 %5426
    %v5684 = vrot.slane %v498, 2
    %v5685 = vrot.slane %v499, 2
    %v5686 = vsel %vm2675, %v5684, %v5685
    %v5687 = vrot.slane %v500, 2
    %v5688 = vsel %vm2675, %v5685, %v5687
    %v5689 = vrot.slane %v552, 2
    %v5690 = vrot.slane %v553, 2
    %v5691 = vsel %vm2675, %v5689, %v5690
    %v5692 = vrot.slane %v554, 2
    %v5693 = vsel %vm2675, %v5690, %v5692
    %v5694 = vrot.slane %v606, 2
    %v5695 = vrot.slane %v607, 2
    %v5696 = vsel %vm2675, %v5694, %v5695
    %v5697 = vrot.slane %v608, 2
    %v5698 = vsel %vm2675, %v5695, %v5697
    %v5699 = vrot.slane %v660, 2
    %v5700 = vrot.slane %v661, 2
    %v5701 = vsel %vm2675, %v5699, %v5700
    %v5702 = vrot.slane %v662, 2
    %v5703 = vsel %vm2675, %v5700, %v5702
    %v5704 = vrot.slane %v714, 2
    %v5705 = vrot.slane %v715, 2
    %v5706 = vsel %vm2675, %v5704, %v5705
    %v5707 = vrot.slane %v716, 2
    %v5708 = vsel %vm2675, %v5705, %v5707
    %v5709 = vrot.slane %v768, 2
    %v5710 = vrot.slane %v769, 2
    %v5711 = vsel %vm2675, %v5709, %v5710
    %v5712 = vrot.slane %v770, 2
    %v5713 = vsel %vm2675, %v5710, %v5712
    %v5714 = vrot.slane %v822, 2
    %v5715 = vrot.slane %v823, 2
    %v5716 = vsel %vm2675, %v5714, %v5715
    %v5717 = vrot.slane %v824, 2
    %v5718 = vsel %vm2675, %v5715, %v5717
    %v5719 = vrot.slane %v876, 2
    %v5720 = vrot.slane %v877, 2
    %v5721 = vsel %vm2675, %v5719, %v5720
    %v5722 = vrot.slane %v878, 2
    %v5723 = vsel %vm2675, %v5720, %v5722
    %5724 = vrot.lane.b32.xlu0 %v2683, 20
    %v5725 = vpop.permute.xlu0 %5724
    %5726 = vrot.lane.b32.xlu0 %v2685, 20
    %v5727 = vpop.permute.xlu0 %5726
    %5728 = vrot.lane.b32.xlu0 %v2688, 20
    %v5729 = vpop.permute.xlu0 %5728
    %5730 = vrot.lane.b32.xlu0 %v2690, 20
    %v5731 = vpop.permute.xlu0 %5730
    %5732 = vrot.lane.b32.xlu0 %v2693, 20
    %v5733 = vpop.permute.xlu0 %5732
    %5734 = vrot.lane.b32.xlu0 %v2695, 20
    %v5735 = vpop.permute.xlu0 %5734
    %5736 = vrot.lane.b32.xlu0 %v2698, 20
    %v5737 = vpop.permute.xlu0 %5736
    %5738 = vrot.lane.b32.xlu0 %v2700, 20
    %v5739 = vpop.permute.xlu0 %5738
    %5740 = vrot.lane.b32.xlu0 %v2703, 20
    %v5741 = vpop.permute.xlu0 %5740
    %5742 = vrot.lane.b32.xlu0 %v2705, 20
    %v5743 = vpop.permute.xlu0 %5742
    %5744 = vrot.lane.b32.xlu0 %v2708, 20
    %v5745 = vpop.permute.xlu0 %5744
    %5746 = vrot.lane.b32.xlu0 %v2710, 20
    %v5747 = vpop.permute.xlu0 %5746
    %5748 = vrot.lane.b32.xlu0 %v2713, 20
    %v5749 = vpop.permute.xlu0 %5748
    %5750 = vrot.lane.b32.xlu0 %v2715, 20
    %v5751 = vpop.permute.xlu0 %5750
    %5752 = vrot.lane.b32.xlu0 %v2718, 20
    %v5753 = vpop.permute.xlu0 %5752
    %5754 = vrot.lane.b32.xlu0 %v2720, 20
    %v5755 = vpop.permute.xlu0 %5754
    %5756 = vrot.lane.b32.xlu0 %v2723, 20
    %v5757 = vpop.permute.xlu0 %5756
    %5758 = vrot.lane.b32.xlu0 %v2725, 20
    %v5759 = vpop.permute.xlu0 %5758
    %5760 = vrot.lane.b32.xlu0 %v2728, 20
    %v5761 = vpop.permute.xlu0 %5760
    %5762 = vrot.lane.b32.xlu0 %v2730, 20
    %v5763 = vpop.permute.xlu0 %5762
    %5764 = vrot.lane.b32.xlu0 %v2733, 20
    %v5765 = vpop.permute.xlu0 %5764
    %5766 = vrot.lane.b32.xlu0 %v2735, 20
    %v5767 = vpop.permute.xlu0 %5766
    %5768 = vrot.lane.b32.xlu0 %v2738, 20
    %v5769 = vpop.permute.xlu0 %5768
    %5770 = vrot.lane.b32.xlu0 %v2740, 20
    %v5771 = vpop.permute.xlu0 %5770
    %5772 = vrot.lane.b32.xlu0 %v2743, 20
    %v5773 = vpop.permute.xlu0 %5772
    %5774 = vrot.lane.b32.xlu0 %v2745, 20
    %v5775 = vpop.permute.xlu0 %5774
    %5776 = vrot.lane.b32.xlu0 %v2748, 20
    %v5777 = vpop.permute.xlu0 %5776
    %5778 = vrot.lane.b32.xlu0 %v2750, 20
    %v5779 = vpop.permute.xlu0 %5778
    %5780 = vrot.lane.b32.xlu0 %v2753, 20
    %v5781 = vpop.permute.xlu0 %5780
    %5782 = vrot.lane.b32.xlu0 %v2755, 20
    %v5783 = vpop.permute.xlu0 %5782
    %5784 = vrot.lane.b32.xlu0 %v5686, 20
    %v5785 = vpop.permute.xlu0 %5784
    %5786 = vrot.lane.b32.xlu0 %v5688, 20
    %v5787 = vpop.permute.xlu0 %5786
    %5788 = vrot.lane.b32.xlu0 %v2763, 20
    %v5789 = vpop.permute.xlu0 %5788
    %5790 = vrot.lane.b32.xlu0 %v2765, 20
    %v5791 = vpop.permute.xlu0 %5790
    %5792 = vrot.lane.b32.xlu0 %v2768, 20
    %v5793 = vpop.permute.xlu0 %5792
    %5794 = vrot.lane.b32.xlu0 %v2770, 20
    %v5795 = vpop.permute.xlu0 %5794
    %5796 = vrot.lane.b32.xlu0 %v2773, 20
    %v5797 = vpop.permute.xlu0 %5796
    %5798 = vrot.lane.b32.xlu0 %v2775, 20
    %v5799 = vpop.permute.xlu0 %5798
    %5800 = vrot.lane.b32.xlu0 %v2778, 20
    %v5801 = vpop.permute.xlu0 %5800
    %5802 = vrot.lane.b32.xlu0 %v2780, 20
    %v5803 = vpop.permute.xlu0 %5802
    %5804 = vrot.lane.b32.xlu0 %v2783, 20
    %v5805 = vpop.permute.xlu0 %5804
    %5806 = vrot.lane.b32.xlu0 %v2785, 20
    %v5807 = vpop.permute.xlu0 %5806
    %5808 = vrot.lane.b32.xlu0 %v2788, 20
    %v5809 = vpop.permute.xlu0 %5808
    %5810 = vrot.lane.b32.xlu0 %v2790, 20
    %v5811 = vpop.permute.xlu0 %5810
    %5812 = vrot.lane.b32.xlu0 %v2793, 20
    %v5813 = vpop.permute.xlu0 %5812
    %5814 = vrot.lane.b32.xlu0 %v2795, 20
    %v5815 = vpop.permute.xlu0 %5814
    %5816 = vrot.lane.b32.xlu0 %v2798, 20
    %v5817 = vpop.permute.xlu0 %5816
    %5818 = vrot.lane.b32.xlu0 %v2800, 20
    %v5819 = vpop.permute.xlu0 %5818
    %5820 = vrot.lane.b32.xlu0 %v2803, 20
    %v5821 = vpop.permute.xlu0 %5820
    %5822 = vrot.lane.b32.xlu0 %v2805, 20
    %v5823 = vpop.permute.xlu0 %5822
    %5824 = vrot.lane.b32.xlu0 %v2808, 20
    %v5825 = vpop.permute.xlu0 %5824
    %5826 = vrot.lane.b32.xlu0 %v2810, 20
    %v5827 = vpop.permute.xlu0 %5826
    %5828 = vrot.lane.b32.xlu0 %v2813, 20
    %v5829 = vpop.permute.xlu0 %5828
    %5830 = vrot.lane.b32.xlu0 %v2815, 20
    %v5831 = vpop.permute.xlu0 %5830
    %5832 = vrot.lane.b32.xlu0 %v2818, 20
    %v5833 = vpop.permute.xlu0 %5832
    %5834 = vrot.lane.b32.xlu0 %v2820, 20
    %v5835 = vpop.permute.xlu0 %5834
    %5836 = vrot.lane.b32.xlu0 %v2823, 20
    %v5837 = vpop.permute.xlu0 %5836
    %5838 = vrot.lane.b32.xlu0 %v2825, 20
    %v5839 = vpop.permute.xlu0 %5838
    %5840 = vrot.lane.b32.xlu0 %v2828, 20
    %v5841 = vpop.permute.xlu0 %5840
    %5842 = vrot.lane.b32.xlu0 %v2830, 20
    %v5843 = vpop.permute.xlu0 %5842
    %5844 = vrot.lane.b32.xlu0 %v2833, 20
    %v5845 = vpop.permute.xlu0 %5844
    %5846 = vrot.lane.b32.xlu0 %v2835, 20
    %v5847 = vpop.permute.xlu0 %5846
    %5848 = vrot.lane.b32.xlu0 %v5691, 20
    %v5849 = vpop.permute.xlu0 %5848
    %5850 = vrot.lane.b32.xlu0 %v5693, 20
    %v5851 = vpop.permute.xlu0 %5850
    %5852 = vrot.lane.b32.xlu0 %v2843, 20
    %v5853 = vpop.permute.xlu0 %5852
    %5854 = vrot.lane.b32.xlu0 %v2845, 20
    %v5855 = vpop.permute.xlu0 %5854
    %5856 = vrot.lane.b32.xlu0 %v2848, 20
    %v5857 = vpop.permute.xlu0 %5856
    %5858 = vrot.lane.b32.xlu0 %v2850, 20
    %v5859 = vpop.permute.xlu0 %5858
    %5860 = vrot.lane.b32.xlu0 %v2853, 20
    %v5861 = vpop.permute.xlu0 %5860
    %5862 = vrot.lane.b32.xlu0 %v2855, 20
    %v5863 = vpop.permute.xlu0 %5862
    %5864 = vrot.lane.b32.xlu0 %v2858, 20
    %v5865 = vpop.permute.xlu0 %5864
    %5866 = vrot.lane.b32.xlu0 %v2860, 20
    %v5867 = vpop.permute.xlu0 %5866
    %5868 = vrot.lane.b32.xlu0 %v2863, 20
    %v5869 = vpop.permute.xlu0 %5868
    %5870 = vrot.lane.b32.xlu0 %v2865, 20
    %v5871 = vpop.permute.xlu0 %5870
    %5872 = vrot.lane.b32.xlu0 %v2868, 20
    %v5873 = vpop.permute.xlu0 %5872
    %5874 = vrot.lane.b32.xlu0 %v2870, 20
    %v5875 = vpop.permute.xlu0 %5874
    %5876 = vrot.lane.b32.xlu0 %v2873, 20
    %v5877 = vpop.permute.xlu0 %5876
    %5878 = vrot.lane.b32.xlu0 %v2875, 20
    %v5879 = vpop.permute.xlu0 %5878
    %5880 = vrot.lane.b32.xlu0 %v2878, 20
    %v5881 = vpop.permute.xlu0 %5880
    %5882 = vrot.lane.b32.xlu0 %v2880, 20
    %v5883 = vpop.permute.xlu0 %5882
    %5884 = vrot.lane.b32.xlu0 %v2883, 20
    %v5885 = vpop.permute.xlu0 %5884
    %5886 = vrot.lane.b32.xlu0 %v2885, 20
    %v5887 = vpop.permute.xlu0 %5886
    %5888 = vrot.lane.b32.xlu0 %v2888, 20
    %v5889 = vpop.permute.xlu0 %5888
    %5890 = vrot.lane.b32.xlu0 %v2890, 20
    %v5891 = vpop.permute.xlu0 %5890
    %5892 = vrot.lane.b32.xlu0 %v2893, 20
    %v5893 = vpop.permute.xlu0 %5892
    %5894 = vrot.lane.b32.xlu0 %v2895, 20
    %v5895 = vpop.permute.xlu0 %5894
    %5896 = vrot.lane.b32.xlu0 %v2898, 20
    %v5897 = vpop.permute.xlu0 %5896
    %5898 = vrot.lane.b32.xlu0 %v2900, 20
    %v5899 = vpop.permute.xlu0 %5898
    %5900 = vrot.lane.b32.xlu0 %v2903, 20
    %v5901 = vpop.permute.xlu0 %5900
    %5902 = vrot.lane.b32.xlu0 %v2905, 20
    %v5903 = vpop.permute.xlu0 %5902
    %5904 = vrot.lane.b32.xlu0 %v2908, 20
    %v5905 = vpop.permute.xlu0 %5904
    %5906 = vrot.lane.b32.xlu0 %v2910, 20
    %v5907 = vpop.permute.xlu0 %5906
    %5908 = vrot.lane.b32.xlu0 %v2913, 20
    %v5909 = vpop.permute.xlu0 %5908
    %5910 = vrot.lane.b32.xlu0 %v2915, 20
    %v5911 = vpop.permute.xlu0 %5910
    %5912 = vrot.lane.b32.xlu0 %v5696, 20
    %v5913 = vpop.permute.xlu0 %5912
    %5914 = vrot.lane.b32.xlu0 %v5698, 20
    %v5915 = vpop.permute.xlu0 %5914
    %5916 = vrot.lane.b32.xlu0 %v2923, 20
    %v5917 = vpop.permute.xlu0 %5916
    %5918 = vrot.lane.b32.xlu0 %v2925, 20
    %v5919 = vpop.permute.xlu0 %5918
    %5920 = vrot.lane.b32.xlu0 %v2928, 20
    %v5921 = vpop.permute.xlu0 %5920
    %5922 = vrot.lane.b32.xlu0 %v2930, 20
    %v5923 = vpop.permute.xlu0 %5922
    %5924 = vrot.lane.b32.xlu0 %v2933, 20
    %v5925 = vpop.permute.xlu0 %5924
    %5926 = vrot.lane.b32.xlu0 %v2935, 20
    %v5927 = vpop.permute.xlu0 %5926
    %5928 = vrot.lane.b32.xlu0 %v2938, 20
    %v5929 = vpop.permute.xlu0 %5928
    %5930 = vrot.lane.b32.xlu0 %v2940, 20
    %v5931 = vpop.permute.xlu0 %5930
    %5932 = vrot.lane.b32.xlu0 %v2943, 20
    %v5933 = vpop.permute.xlu0 %5932
    %5934 = vrot.lane.b32.xlu0 %v2945, 20
    %v5935 = vpop.permute.xlu0 %5934
    %5936 = vrot.lane.b32.xlu0 %v2948, 20
    %v5937 = vpop.permute.xlu0 %5936
    %5938 = vrot.lane.b32.xlu0 %v2950, 20
    %v5939 = vpop.permute.xlu0 %5938
    %5940 = vrot.lane.b32.xlu0 %v2953, 20
    %v5941 = vpop.permute.xlu0 %5940
    %5942 = vrot.lane.b32.xlu0 %v2955, 20
    %v5943 = vpop.permute.xlu0 %5942
    %5944 = vrot.lane.b32.xlu0 %v2958, 20
    %v5945 = vpop.permute.xlu0 %5944
    %5946 = vrot.lane.b32.xlu0 %v2960, 20
    %v5947 = vpop.permute.xlu0 %5946
    %5948 = vrot.lane.b32.xlu0 %v2963, 20
    %v5949 = vpop.permute.xlu0 %5948
    %5950 = vrot.lane.b32.xlu0 %v2965, 20
    %v5951 = vpop.permute.xlu0 %5950
    %5952 = vrot.lane.b32.xlu0 %v2968, 20
    %v5953 = vpop.permute.xlu0 %5952
    %5954 = vrot.lane.b32.xlu0 %v2970, 20
    %v5955 = vpop.permute.xlu0 %5954
    %5956 = vrot.lane.b32.xlu0 %v2973, 20
    %v5957 = vpop.permute.xlu0 %5956
    %5958 = vrot.lane.b32.xlu0 %v2975, 20
    %v5959 = vpop.permute.xlu0 %5958
    %5960 = vrot.lane.b32.xlu0 %v2978, 20
    %v5961 = vpop.permute.xlu0 %5960
    %5962 = vrot.lane.b32.xlu0 %v2980, 20
    %v5963 = vpop.permute.xlu0 %5962
    %5964 = vrot.lane.b32.xlu0 %v2983, 20
    %v5965 = vpop.permute.xlu0 %5964
    %5966 = vrot.lane.b32.xlu0 %v2985, 20
    %v5967 = vpop.permute.xlu0 %5966
    %5968 = vrot.lane.b32.xlu0 %v2988, 20
    %v5969 = vpop.permute.xlu0 %5968
    %5970 = vrot.lane.b32.xlu0 %v2990, 20
    %v5971 = vpop.permute.xlu0 %5970
    %5972 = vrot.lane.b32.xlu0 %v2993, 20
    %v5973 = vpop.permute.xlu0 %5972
    %5974 = vrot.lane.b32.xlu0 %v2995, 20
    %v5975 = vpop.permute.xlu0 %5974
    %5976 = vrot.lane.b32.xlu0 %v5701, 20
    %v5977 = vpop.permute.xlu0 %5976
    %5978 = vrot.lane.b32.xlu0 %v5703, 20
    %v5979 = vpop.permute.xlu0 %5978
    %5980 = vrot.lane.b32.xlu0 %v3003, 20
    %v5981 = vpop.permute.xlu0 %5980
    %5982 = vrot.lane.b32.xlu0 %v3005, 20
    %v5983 = vpop.permute.xlu0 %5982
    %5984 = vrot.lane.b32.xlu0 %v3008, 20
    %v5985 = vpop.permute.xlu0 %5984
    %5986 = vrot.lane.b32.xlu0 %v3010, 20
    %v5987 = vpop.permute.xlu0 %5986
    %5988 = vrot.lane.b32.xlu0 %v3013, 20
    %v5989 = vpop.permute.xlu0 %5988
    %5990 = vrot.lane.b32.xlu0 %v3015, 20
    %v5991 = vpop.permute.xlu0 %5990
    %5992 = vrot.lane.b32.xlu0 %v3018, 20
    %v5993 = vpop.permute.xlu0 %5992
    %5994 = vrot.lane.b32.xlu0 %v3020, 20
    %v5995 = vpop.permute.xlu0 %5994
    %5996 = vrot.lane.b32.xlu0 %v3023, 20
    %v5997 = vpop.permute.xlu0 %5996
    %5998 = vrot.lane.b32.xlu0 %v3025, 20
    %v5999 = vpop.permute.xlu0 %5998
    %6000 = vrot.lane.b32.xlu0 %v3028, 20
    %v6001 = vpop.permute.xlu0 %6000
    %6002 = vrot.lane.b32.xlu0 %v3030, 20
    %v6003 = vpop.permute.xlu0 %6002
    %6004 = vrot.lane.b32.xlu0 %v3033, 20
    %v6005 = vpop.permute.xlu0 %6004
    %6006 = vrot.lane.b32.xlu0 %v3035, 20
    %v6007 = vpop.permute.xlu0 %6006
    %6008 = vrot.lane.b32.xlu0 %v3038, 20
    %v6009 = vpop.permute.xlu0 %6008
    %6010 = vrot.lane.b32.xlu0 %v3040, 20
    %v6011 = vpop.permute.xlu0 %6010
    %6012 = vrot.lane.b32.xlu0 %v3043, 20
    %v6013 = vpop.permute.xlu0 %6012
    %6014 = vrot.lane.b32.xlu0 %v3045, 20
    %v6015 = vpop.permute.xlu0 %6014
    %6016 = vrot.lane.b32.xlu0 %v3048, 20
    %v6017 = vpop.permute.xlu0 %6016
    %6018 = vrot.lane.b32.xlu0 %v3050, 20
    %v6019 = vpop.permute.xlu0 %6018
    %6020 = vrot.lane.b32.xlu0 %v3053, 20
    %v6021 = vpop.permute.xlu0 %6020
    %6022 = vrot.lane.b32.xlu0 %v3055, 20
    %v6023 = vpop.permute.xlu0 %6022
    %6024 = vrot.lane.b32.xlu0 %v3058, 20
    %v6025 = vpop.permute.xlu0 %6024
    %6026 = vrot.lane.b32.xlu0 %v3060, 20
    %v6027 = vpop.permute.xlu0 %6026
    %6028 = vrot.lane.b32.xlu0 %v3063, 20
    %v6029 = vpop.permute.xlu0 %6028
    %6030 = vrot.lane.b32.xlu0 %v3065, 20
    %v6031 = vpop.permute.xlu0 %6030
    %6032 = vrot.lane.b32.xlu0 %v3068, 20
    %v6033 = vpop.permute.xlu0 %6032
    %6034 = vrot.lane.b32.xlu0 %v3070, 20
    %v6035 = vpop.permute.xlu0 %6034
    %6036 = vrot.lane.b32.xlu0 %v3073, 20
    %v6037 = vpop.permute.xlu0 %6036
    %6038 = vrot.lane.b32.xlu0 %v3075, 20
    %v6039 = vpop.permute.xlu0 %6038
    %6040 = vrot.lane.b32.xlu0 %v5706, 20
    %v6041 = vpop.permute.xlu0 %6040
    %6042 = vrot.lane.b32.xlu0 %v5708, 20
    %v6043 = vpop.permute.xlu0 %6042
    %6044 = vrot.lane.b32.xlu0 %v3083, 20
    %v6045 = vpop.permute.xlu0 %6044
    %6046 = vrot.lane.b32.xlu0 %v3085, 20
    %v6047 = vpop.permute.xlu0 %6046
    %6048 = vrot.lane.b32.xlu0 %v3088, 20
    %v6049 = vpop.permute.xlu0 %6048
    %6050 = vrot.lane.b32.xlu0 %v3090, 20
    %v6051 = vpop.permute.xlu0 %6050
    %6052 = vrot.lane.b32.xlu0 %v3093, 20
    %v6053 = vpop.permute.xlu0 %6052
    %6054 = vrot.lane.b32.xlu0 %v3095, 20
    %v6055 = vpop.permute.xlu0 %6054
    %6056 = vrot.lane.b32.xlu0 %v3098, 20
    %v6057 = vpop.permute.xlu0 %6056
    %6058 = vrot.lane.b32.xlu0 %v3100, 20
    %v6059 = vpop.permute.xlu0 %6058
    %6060 = vrot.lane.b32.xlu0 %v3103, 20
    %v6061 = vpop.permute.xlu0 %6060
    %6062 = vrot.lane.b32.xlu0 %v3105, 20
    %v6063 = vpop.permute.xlu0 %6062
    %6064 = vrot.lane.b32.xlu0 %v3108, 20
    %v6065 = vpop.permute.xlu0 %6064
    %6066 = vrot.lane.b32.xlu0 %v3110, 20
    %v6067 = vpop.permute.xlu0 %6066
    %6068 = vrot.lane.b32.xlu0 %v3113, 20
    %v6069 = vpop.permute.xlu0 %6068
    %6070 = vrot.lane.b32.xlu0 %v3115, 20
    %v6071 = vpop.permute.xlu0 %6070
    %6072 = vrot.lane.b32.xlu0 %v3118, 20
    %v6073 = vpop.permute.xlu0 %6072
    %6074 = vrot.lane.b32.xlu0 %v3120, 20
    %v6075 = vpop.permute.xlu0 %6074
    %6076 = vrot.lane.b32.xlu0 %v3123, 20
    %v6077 = vpop.permute.xlu0 %6076
    %6078 = vrot.lane.b32.xlu0 %v3125, 20
    %v6079 = vpop.permute.xlu0 %6078
    %6080 = vrot.lane.b32.xlu0 %v3128, 20
    %v6081 = vpop.permute.xlu0 %6080
    %6082 = vrot.lane.b32.xlu0 %v3130, 20
    %v6083 = vpop.permute.xlu0 %6082
    %6084 = vrot.lane.b32.xlu0 %v3133, 20
    %v6085 = vpop.permute.xlu0 %6084
    %6086 = vrot.lane.b32.xlu0 %v3135, 20
    %v6087 = vpop.permute.xlu0 %6086
    %6088 = vrot.lane.b32.xlu0 %v3138, 20
    %v6089 = vpop.permute.xlu0 %6088
    %6090 = vrot.lane.b32.xlu0 %v3140, 20
    %v6091 = vpop.permute.xlu0 %6090
    %6092 = vrot.lane.b32.xlu0 %v3143, 20
    %v6093 = vpop.permute.xlu0 %6092
    %6094 = vrot.lane.b32.xlu0 %v3145, 20
    %v6095 = vpop.permute.xlu0 %6094
    %6096 = vrot.lane.b32.xlu0 %v3148, 20
    %v6097 = vpop.permute.xlu0 %6096
    %6098 = vrot.lane.b32.xlu0 %v3150, 20
    %v6099 = vpop.permute.xlu0 %6098
    %6100 = vrot.lane.b32.xlu0 %v3153, 20
    %v6101 = vpop.permute.xlu0 %6100
    %6102 = vrot.lane.b32.xlu0 %v3155, 20
    %v6103 = vpop.permute.xlu0 %6102
    %6104 = vrot.lane.b32.xlu0 %v5711, 20
    %v6105 = vpop.permute.xlu0 %6104
    %6106 = vrot.lane.b32.xlu0 %v5713, 20
    %v6107 = vpop.permute.xlu0 %6106
    %6108 = vrot.lane.b32.xlu0 %v3163, 20
    %v6109 = vpop.permute.xlu0 %6108
    %6110 = vrot.lane.b32.xlu0 %v3165, 20
    %v6111 = vpop.permute.xlu0 %6110
    %6112 = vrot.lane.b32.xlu0 %v3168, 20
    %v6113 = vpop.permute.xlu0 %6112
    %6114 = vrot.lane.b32.xlu0 %v3170, 20
    %v6115 = vpop.permute.xlu0 %6114
    %6116 = vrot.lane.b32.xlu0 %v3173, 20
    %v6117 = vpop.permute.xlu0 %6116
    %6118 = vrot.lane.b32.xlu0 %v3175, 20
    %v6119 = vpop.permute.xlu0 %6118
    %6120 = vrot.lane.b32.xlu0 %v3178, 20
    %v6121 = vpop.permute.xlu0 %6120
    %6122 = vrot.lane.b32.xlu0 %v3180, 20
    %v6123 = vpop.permute.xlu0 %6122
    %6124 = vrot.lane.b32.xlu0 %v3183, 20
    %v6125 = vpop.permute.xlu0 %6124
    %6126 = vrot.lane.b32.xlu0 %v3185, 20
    %v6127 = vpop.permute.xlu0 %6126
    %6128 = vrot.lane.b32.xlu0 %v3188, 20
    %v6129 = vpop.permute.xlu0 %6128
    %6130 = vrot.lane.b32.xlu0 %v3190, 20
    %v6131 = vpop.permute.xlu0 %6130
    %6132 = vrot.lane.b32.xlu0 %v3193, 20
    %v6133 = vpop.permute.xlu0 %6132
    %6134 = vrot.lane.b32.xlu0 %v3195, 20
    %v6135 = vpop.permute.xlu0 %6134
    %6136 = vrot.lane.b32.xlu0 %v3198, 20
    %v6137 = vpop.permute.xlu0 %6136
    %6138 = vrot.lane.b32.xlu0 %v3200, 20
    %v6139 = vpop.permute.xlu0 %6138
    %6140 = vrot.lane.b32.xlu0 %v3203, 20
    %v6141 = vpop.permute.xlu0 %6140
    %6142 = vrot.lane.b32.xlu0 %v3205, 20
    %v6143 = vpop.permute.xlu0 %6142
    %6144 = vrot.lane.b32.xlu0 %v3208, 20
    %v6145 = vpop.permute.xlu0 %6144
    %6146 = vrot.lane.b32.xlu0 %v3210, 20
    %v6147 = vpop.permute.xlu0 %6146
    %6148 = vrot.lane.b32.xlu0 %v3213, 20
    %v6149 = vpop.permute.xlu0 %6148
    %6150 = vrot.lane.b32.xlu0 %v3215, 20
    %v6151 = vpop.permute.xlu0 %6150
    %6152 = vrot.lane.b32.xlu0 %v3218, 20
    %v6153 = vpop.permute.xlu0 %6152
    %6154 = vrot.lane.b32.xlu0 %v3220, 20
    %v6155 = vpop.permute.xlu0 %6154
    %6156 = vrot.lane.b32.xlu0 %v3223, 20
    %v6157 = vpop.permute.xlu0 %6156
    %6158 = vrot.lane.b32.xlu0 %v3225, 20
    %v6159 = vpop.permute.xlu0 %6158
    %6160 = vrot.lane.b32.xlu0 %v3228, 20
    %v6161 = vpop.permute.xlu0 %6160
    %6162 = vrot.lane.b32.xlu0 %v3230, 20
    %v6163 = vpop.permute.xlu0 %6162
    %6164 = vrot.lane.b32.xlu0 %v3233, 20
    %v6165 = vpop.permute.xlu0 %6164
    %6166 = vrot.lane.b32.xlu0 %v3235, 20
    %v6167 = vpop.permute.xlu0 %6166
    %6168 = vrot.lane.b32.xlu0 %v5716, 20
    %v6169 = vpop.permute.xlu0 %6168
    %6170 = vrot.lane.b32.xlu0 %v5718, 20
    %v6171 = vpop.permute.xlu0 %6170
    %6172 = vrot.lane.b32.xlu0 %v3243, 20
    %v6173 = vpop.permute.xlu0 %6172
    %6174 = vrot.lane.b32.xlu0 %v3245, 20
    %v6175 = vpop.permute.xlu0 %6174
    %6176 = vrot.lane.b32.xlu0 %v3248, 20
    %v6177 = vpop.permute.xlu0 %6176
    %6178 = vrot.lane.b32.xlu0 %v3250, 20
    %v6179 = vpop.permute.xlu0 %6178
    %6180 = vrot.lane.b32.xlu0 %v3253, 20
    %v6181 = vpop.permute.xlu0 %6180
    %6182 = vrot.lane.b32.xlu0 %v3255, 20
    %v6183 = vpop.permute.xlu0 %6182
    %6184 = vrot.lane.b32.xlu0 %v3258, 20
    %v6185 = vpop.permute.xlu0 %6184
    %6186 = vrot.lane.b32.xlu0 %v3260, 20
    %v6187 = vpop.permute.xlu0 %6186
    %6188 = vrot.lane.b32.xlu0 %v3263, 20
    %v6189 = vpop.permute.xlu0 %6188
    %6190 = vrot.lane.b32.xlu0 %v3265, 20
    %v6191 = vpop.permute.xlu0 %6190
    %6192 = vrot.lane.b32.xlu0 %v3268, 20
    %v6193 = vpop.permute.xlu0 %6192
    %6194 = vrot.lane.b32.xlu0 %v3270, 20
    %v6195 = vpop.permute.xlu0 %6194
    %6196 = vrot.lane.b32.xlu0 %v3273, 20
    %v6197 = vpop.permute.xlu0 %6196
    %6198 = vrot.lane.b32.xlu0 %v3275, 20
    %v6199 = vpop.permute.xlu0 %6198
    %6200 = vrot.lane.b32.xlu0 %v3278, 20
    %v6201 = vpop.permute.xlu0 %6200
    %6202 = vrot.lane.b32.xlu0 %v3280, 20
    %v6203 = vpop.permute.xlu0 %6202
    %6204 = vrot.lane.b32.xlu0 %v3283, 20
    %v6205 = vpop.permute.xlu0 %6204
    %6206 = vrot.lane.b32.xlu0 %v3285, 20
    %v6207 = vpop.permute.xlu0 %6206
    %6208 = vrot.lane.b32.xlu0 %v3288, 20
    %v6209 = vpop.permute.xlu0 %6208
    %6210 = vrot.lane.b32.xlu0 %v3290, 20
    %v6211 = vpop.permute.xlu0 %6210
    %6212 = vrot.lane.b32.xlu0 %v3293, 20
    %v6213 = vpop.permute.xlu0 %6212
    %6214 = vrot.lane.b32.xlu0 %v3295, 20
    %v6215 = vpop.permute.xlu0 %6214
    %6216 = vrot.lane.b32.xlu0 %v3298, 20
    %v6217 = vpop.permute.xlu0 %6216
    %6218 = vrot.lane.b32.xlu0 %v3300, 20
    %v6219 = vpop.permute.xlu0 %6218
    %6220 = vrot.lane.b32.xlu0 %v3303, 20
    %v6221 = vpop.permute.xlu0 %6220
    %6222 = vrot.lane.b32.xlu0 %v3305, 20
    %v6223 = vpop.permute.xlu0 %6222
    %6224 = vrot.lane.b32.xlu0 %v3308, 20
    %v6225 = vpop.permute.xlu0 %6224
    %6226 = vrot.lane.b32.xlu0 %v3310, 20
    %v6227 = vpop.permute.xlu0 %6226
    %6228 = vrot.lane.b32.xlu0 %v3313, 20
    %v6229 = vpop.permute.xlu0 %6228
    %6230 = vrot.lane.b32.xlu0 %v3315, 20
    %v6231 = vpop.permute.xlu0 %6230
    %6232 = vrot.lane.b32.xlu0 %v5721, 20
    %v6233 = vpop.permute.xlu0 %6232
    %6234 = vrot.lane.b32.xlu0 %v5723, 20
    %v6235 = vpop.permute.xlu0 %6234
    %6508 = vrot.lane.b32.xlu0 %v456, 24
    %v6509 = vpop.permute.xlu0 %6508
    %6510 = vrot.lane.b32.xlu0 %v457, 24
    %v6511 = vpop.permute.xlu0 %6510
    %6512 = vrot.lane.b32.xlu0 %v459, 24
    %v6513 = vpop.permute.xlu0 %6512
    %6514 = vrot.lane.b32.xlu0 %v460, 24
    %v6515 = vpop.permute.xlu0 %6514
    %6516 = vrot.lane.b32.xlu0 %v462, 24
    %v6517 = vpop.permute.xlu0 %6516
    %6518 = vrot.lane.b32.xlu0 %v463, 24
    %v6519 = vpop.permute.xlu0 %6518
    %6520 = vrot.lane.b32.xlu0 %v465, 24
    %v6521 = vpop.permute.xlu0 %6520
    %6522 = vrot.lane.b32.xlu0 %v466, 24
    %v6523 = vpop.permute.xlu0 %6522
    %6524 = vrot.lane.b32.xlu0 %v468, 24
    %v6525 = vpop.permute.xlu0 %6524
    %6526 = vrot.lane.b32.xlu0 %v469, 24
    %v6527 = vpop.permute.xlu0 %6526
    %6528 = vrot.lane.b32.xlu0 %v471, 24
    %v6529 = vpop.permute.xlu0 %6528
    %6530 = vrot.lane.b32.xlu0 %v472, 24
    %v6531 = vpop.permute.xlu0 %6530
    %6532 = vrot.lane.b32.xlu0 %v474, 24
    %v6533 = vpop.permute.xlu0 %6532
    %6534 = vrot.lane.b32.xlu0 %v475, 24
    %v6535 = vpop.permute.xlu0 %6534
    %6536 = vrot.lane.b32.xlu0 %v477, 24
    %v6537 = vpop.permute.xlu0 %6536
    %6538 = vrot.lane.b32.xlu0 %v478, 24
    %v6539 = vpop.permute.xlu0 %6538
    %6540 = vrot.lane.b32.xlu0 %v480, 24
    %v6541 = vpop.permute.xlu0 %6540
    %6542 = vrot.lane.b32.xlu0 %v481, 24
    %v6543 = vpop.permute.xlu0 %6542
    %6544 = vrot.lane.b32.xlu0 %v483, 24
    %v6545 = vpop.permute.xlu0 %6544
    %6546 = vrot.lane.b32.xlu0 %v484, 24
    %v6547 = vpop.permute.xlu0 %6546
    %6548 = vrot.lane.b32.xlu0 %v486, 24
    %v6549 = vpop.permute.xlu0 %6548
    %6550 = vrot.lane.b32.xlu0 %v487, 24
    %v6551 = vpop.permute.xlu0 %6550
    %6552 = vrot.lane.b32.xlu0 %v489, 24
    %v6553 = vpop.permute.xlu0 %6552
    %6554 = vrot.lane.b32.xlu0 %v490, 24
    %v6555 = vpop.permute.xlu0 %6554
    %6556 = vrot.lane.b32.xlu0 %v492, 24
    %v6557 = vpop.permute.xlu0 %6556
    %6558 = vrot.lane.b32.xlu0 %v493, 24
    %v6559 = vpop.permute.xlu0 %6558
    %6560 = vrot.lane.b32.xlu0 %v495, 24
    %v6561 = vpop.permute.xlu0 %6560
    %6562 = vrot.lane.b32.xlu0 %v496, 24
    %v6563 = vpop.permute.xlu0 %6562
    %6564 = vrot.lane.b32.xlu0 %v498, 24
    %v6565 = vpop.permute.xlu0 %6564
    %6566 = vrot.lane.b32.xlu0 %v499, 24
    %v6567 = vpop.permute.xlu0 %6566
    %6568 = vrot.lane.b32.xlu0 %v501, 24
    %v6569 = vpop.permute.xlu0 %6568
    %6570 = vrot.lane.b32.xlu0 %v502, 24
    %v6571 = vpop.permute.xlu0 %6570
    %6572 = vrot.lane.b32.xlu0 %v510, 24
    %v6573 = vpop.permute.xlu0 %6572
    %6574 = vrot.lane.b32.xlu0 %v511, 24
    %v6575 = vpop.permute.xlu0 %6574
    %6576 = vrot.lane.b32.xlu0 %v513, 24
    %v6577 = vpop.permute.xlu0 %6576
    %6578 = vrot.lane.b32.xlu0 %v514, 24
    %v6579 = vpop.permute.xlu0 %6578
    %6580 = vrot.lane.b32.xlu0 %v516, 24
    %v6581 = vpop.permute.xlu0 %6580
    %6582 = vrot.lane.b32.xlu0 %v517, 24
    %v6583 = vpop.permute.xlu0 %6582
    %6584 = vrot.lane.b32.xlu0 %v519, 24
    %v6585 = vpop.permute.xlu0 %6584
    %6586 = vrot.lane.b32.xlu0 %v520, 24
    %v6587 = vpop.permute.xlu0 %6586
    %6588 = vrot.lane.b32.xlu0 %v522, 24
    %v6589 = vpop.permute.xlu0 %6588
    %6590 = vrot.lane.b32.xlu0 %v523, 24
    %v6591 = vpop.permute.xlu0 %6590
    %6592 = vrot.lane.b32.xlu0 %v525, 24
    %v6593 = vpop.permute.xlu0 %6592
    %6594 = vrot.lane.b32.xlu0 %v526, 24
    %v6595 = vpop.permute.xlu0 %6594
    %6596 = vrot.lane.b32.xlu0 %v528, 24
    %v6597 = vpop.permute.xlu0 %6596
    %6598 = vrot.lane.b32.xlu0 %v529, 24
    %v6599 = vpop.permute.xlu0 %6598
    %6600 = vrot.lane.b32.xlu0 %v531, 24
    %v6601 = vpop.permute.xlu0 %6600
    %6602 = vrot.lane.b32.xlu0 %v532, 24
    %v6603 = vpop.permute.xlu0 %6602
    %6604 = vrot.lane.b32.xlu0 %v534, 24
    %v6605 = vpop.permute.xlu0 %6604
    %6606 = vrot.lane.b32.xlu0 %v535, 24
    %v6607 = vpop.permute.xlu0 %6606
    %6608 = vrot.lane.b32.xlu0 %v537, 24
    %v6609 = vpop.permute.xlu0 %6608
    %6610 = vrot.lane.b32.xlu0 %v538, 24
    %v6611 = vpop.permute.xlu0 %6610
    %6612 = vrot.lane.b32.xlu0 %v540, 24
    %v6613 = vpop.permute.xlu0 %6612
    %6614 = vrot.lane.b32.xlu0 %v541, 24
    %v6615 = vpop.permute.xlu0 %6614
    %6616 = vrot.lane.b32.xlu0 %v543, 24
    %v6617 = vpop.permute.xlu0 %6616
    %6618 = vrot.lane.b32.xlu0 %v544, 24
    %v6619 = vpop.permute.xlu0 %6618
    %6620 = vrot.lane.b32.xlu0 %v546, 24
    %v6621 = vpop.permute.xlu0 %6620
    %6622 = vrot.lane.b32.xlu0 %v547, 24
    %v6623 = vpop.permute.xlu0 %6622
    %6624 = vrot.lane.b32.xlu0 %v549, 24
    %v6625 = vpop.permute.xlu0 %6624
    %6626 = vrot.lane.b32.xlu0 %v550, 24
    %v6627 = vpop.permute.xlu0 %6626
    %6628 = vrot.lane.b32.xlu0 %v552, 24
    %v6629 = vpop.permute.xlu0 %6628
    %6630 = vrot.lane.b32.xlu0 %v553, 24
    %v6631 = vpop.permute.xlu0 %6630
    %6632 = vrot.lane.b32.xlu0 %v555, 24
    %v6633 = vpop.permute.xlu0 %6632
    %6634 = vrot.lane.b32.xlu0 %v556, 24
    %v6635 = vpop.permute.xlu0 %6634
    %6636 = vrot.lane.b32.xlu0 %v564, 24
    %v6637 = vpop.permute.xlu0 %6636
    %6638 = vrot.lane.b32.xlu0 %v565, 24
    %v6639 = vpop.permute.xlu0 %6638
    %6640 = vrot.lane.b32.xlu0 %v567, 24
    %v6641 = vpop.permute.xlu0 %6640
    %6642 = vrot.lane.b32.xlu0 %v568, 24
    %v6643 = vpop.permute.xlu0 %6642
    %6644 = vrot.lane.b32.xlu0 %v570, 24
    %v6645 = vpop.permute.xlu0 %6644
    %6646 = vrot.lane.b32.xlu0 %v571, 24
    %v6647 = vpop.permute.xlu0 %6646
    %6648 = vrot.lane.b32.xlu0 %v573, 24
    %v6649 = vpop.permute.xlu0 %6648
    %6650 = vrot.lane.b32.xlu0 %v574, 24
    %v6651 = vpop.permute.xlu0 %6650
    %6652 = vrot.lane.b32.xlu0 %v576, 24
    %v6653 = vpop.permute.xlu0 %6652
    %6654 = vrot.lane.b32.xlu0 %v577, 24
    %v6655 = vpop.permute.xlu0 %6654
    %6656 = vrot.lane.b32.xlu0 %v579, 24
    %v6657 = vpop.permute.xlu0 %6656
    %6658 = vrot.lane.b32.xlu0 %v580, 24
    %v6659 = vpop.permute.xlu0 %6658
    %6660 = vrot.lane.b32.xlu0 %v582, 24
    %v6661 = vpop.permute.xlu0 %6660
    %6662 = vrot.lane.b32.xlu0 %v583, 24
    %v6663 = vpop.permute.xlu0 %6662
    %6664 = vrot.lane.b32.xlu0 %v585, 24
    %v6665 = vpop.permute.xlu0 %6664
    %6666 = vrot.lane.b32.xlu0 %v586, 24
    %v6667 = vpop.permute.xlu0 %6666
    %6668 = vrot.lane.b32.xlu0 %v588, 24
    %v6669 = vpop.permute.xlu0 %6668
    %6670 = vrot.lane.b32.xlu0 %v589, 24
    %v6671 = vpop.permute.xlu0 %6670
    %6672 = vrot.lane.b32.xlu0 %v591, 24
    %v6673 = vpop.permute.xlu0 %6672
    %6674 = vrot.lane.b32.xlu0 %v592, 24
    %v6675 = vpop.permute.xlu0 %6674
    %6676 = vrot.lane.b32.xlu0 %v594, 24
    %v6677 = vpop.permute.xlu0 %6676
    %6678 = vrot.lane.b32.xlu0 %v595, 24
    %v6679 = vpop.permute.xlu0 %6678
    %6680 = vrot.lane.b32.xlu0 %v597, 24
    %v6681 = vpop.permute.xlu0 %6680
    %6682 = vrot.lane.b32.xlu0 %v598, 24
    %v6683 = vpop.permute.xlu0 %6682
    %6684 = vrot.lane.b32.xlu0 %v600, 24
    %v6685 = vpop.permute.xlu0 %6684
    %6686 = vrot.lane.b32.xlu0 %v601, 24
    %v6687 = vpop.permute.xlu0 %6686
    %6688 = vrot.lane.b32.xlu0 %v603, 24
    %v6689 = vpop.permute.xlu0 %6688
    %6690 = vrot.lane.b32.xlu0 %v604, 24
    %v6691 = vpop.permute.xlu0 %6690
    %6692 = vrot.lane.b32.xlu0 %v606, 24
    %v6693 = vpop.permute.xlu0 %6692
    %6694 = vrot.lane.b32.xlu0 %v607, 24
    %v6695 = vpop.permute.xlu0 %6694
    %6696 = vrot.lane.b32.xlu0 %v609, 24
    %v6697 = vpop.permute.xlu0 %6696
    %6698 = vrot.lane.b32.xlu0 %v610, 24
    %v6699 = vpop.permute.xlu0 %6698
    %6700 = vrot.lane.b32.xlu0 %v618, 24
    %v6701 = vpop.permute.xlu0 %6700
    %6702 = vrot.lane.b32.xlu0 %v619, 24
    %v6703 = vpop.permute.xlu0 %6702
    %6704 = vrot.lane.b32.xlu0 %v621, 24
    %v6705 = vpop.permute.xlu0 %6704
    %6706 = vrot.lane.b32.xlu0 %v622, 24
    %v6707 = vpop.permute.xlu0 %6706
    %6708 = vrot.lane.b32.xlu0 %v624, 24
    %v6709 = vpop.permute.xlu0 %6708
    %6710 = vrot.lane.b32.xlu0 %v625, 24
    %v6711 = vpop.permute.xlu0 %6710
    %6712 = vrot.lane.b32.xlu0 %v627, 24
    %v6713 = vpop.permute.xlu0 %6712
    %6714 = vrot.lane.b32.xlu0 %v628, 24
    %v6715 = vpop.permute.xlu0 %6714
    %6716 = vrot.lane.b32.xlu0 %v630, 24
    %v6717 = vpop.permute.xlu0 %6716
    %6718 = vrot.lane.b32.xlu0 %v631, 24
    %v6719 = vpop.permute.xlu0 %6718
    %6720 = vrot.lane.b32.xlu0 %v633, 24
    %v6721 = vpop.permute.xlu0 %6720
    %6722 = vrot.lane.b32.xlu0 %v634, 24
    %v6723 = vpop.permute.xlu0 %6722
    %6724 = vrot.lane.b32.xlu0 %v636, 24
    %v6725 = vpop.permute.xlu0 %6724
    %6726 = vrot.lane.b32.xlu0 %v637, 24
    %v6727 = vpop.permute.xlu0 %6726
    %6728 = vrot.lane.b32.xlu0 %v639, 24
    %v6729 = vpop.permute.xlu0 %6728
    %6730 = vrot.lane.b32.xlu0 %v640, 24
    %v6731 = vpop.permute.xlu0 %6730
    %6732 = vrot.lane.b32.xlu0 %v642, 24
    %v6733 = vpop.permute.xlu0 %6732
    %6734 = vrot.lane.b32.xlu0 %v643, 24
    %v6735 = vpop.permute.xlu0 %6734
    %6736 = vrot.lane.b32.xlu0 %v645, 24
    %v6737 = vpop.permute.xlu0 %6736
    %6738 = vrot.lane.b32.xlu0 %v646, 24
    %v6739 = vpop.permute.xlu0 %6738
    %6740 = vrot.lane.b32.xlu0 %v648, 24
    %v6741 = vpop.permute.xlu0 %6740
    %6742 = vrot.lane.b32.xlu0 %v649, 24
    %v6743 = vpop.permute.xlu0 %6742
    %6744 = vrot.lane.b32.xlu0 %v651, 24
    %v6745 = vpop.permute.xlu0 %6744
    %6746 = vrot.lane.b32.xlu0 %v652, 24
    %v6747 = vpop.permute.xlu0 %6746
    %6748 = vrot.lane.b32.xlu0 %v654, 24
    %v6749 = vpop.permute.xlu0 %6748
    %6750 = vrot.lane.b32.xlu0 %v655, 24
    %v6751 = vpop.permute.xlu0 %6750
    %6752 = vrot.lane.b32.xlu0 %v657, 24
    %v6753 = vpop.permute.xlu0 %6752
    %6754 = vrot.lane.b32.xlu0 %v658, 24
    %v6755 = vpop.permute.xlu0 %6754
    %6756 = vrot.lane.b32.xlu0 %v660, 24
    %v6757 = vpop.permute.xlu0 %6756
    %6758 = vrot.lane.b32.xlu0 %v661, 24
    %v6759 = vpop.permute.xlu0 %6758
    %6760 = vrot.lane.b32.xlu0 %v663, 24
    %v6761 = vpop.permute.xlu0 %6760
    %6762 = vrot.lane.b32.xlu0 %v664, 24
    %v6763 = vpop.permute.xlu0 %6762
    %6764 = vrot.lane.b32.xlu0 %v672, 24
    %v6765 = vpop.permute.xlu0 %6764
    %6766 = vrot.lane.b32.xlu0 %v673, 24
    %v6767 = vpop.permute.xlu0 %6766
    %6768 = vrot.lane.b32.xlu0 %v675, 24
    %v6769 = vpop.permute.xlu0 %6768
    %6770 = vrot.lane.b32.xlu0 %v676, 24
    %v6771 = vpop.permute.xlu0 %6770
    %6772 = vrot.lane.b32.xlu0 %v678, 24
    %v6773 = vpop.permute.xlu0 %6772
    %6774 = vrot.lane.b32.xlu0 %v679, 24
    %v6775 = vpop.permute.xlu0 %6774
    %6776 = vrot.lane.b32.xlu0 %v681, 24
    %v6777 = vpop.permute.xlu0 %6776
    %6778 = vrot.lane.b32.xlu0 %v682, 24
    %v6779 = vpop.permute.xlu0 %6778
    %6780 = vrot.lane.b32.xlu0 %v684, 24
    %v6781 = vpop.permute.xlu0 %6780
    %6782 = vrot.lane.b32.xlu0 %v685, 24
    %v6783 = vpop.permute.xlu0 %6782
    %6784 = vrot.lane.b32.xlu0 %v687, 24
    %v6785 = vpop.permute.xlu0 %6784
    %6786 = vrot.lane.b32.xlu0 %v688, 24
    %v6787 = vpop.permute.xlu0 %6786
    %6788 = vrot.lane.b32.xlu0 %v690, 24
    %v6789 = vpop.permute.xlu0 %6788
    %6790 = vrot.lane.b32.xlu0 %v691, 24
    %v6791 = vpop.permute.xlu0 %6790
    %6792 = vrot.lane.b32.xlu0 %v693, 24
    %v6793 = vpop.permute.xlu0 %6792
    %6794 = vrot.lane.b32.xlu0 %v694, 24
    %v6795 = vpop.permute.xlu0 %6794
    %6796 = vrot.lane.b32.xlu0 %v696, 24
    %v6797 = vpop.permute.xlu0 %6796
    %6798 = vrot.lane.b32.xlu0 %v697, 24
    %v6799 = vpop.permute.xlu0 %6798
    %6800 = vrot.lane.b32.xlu0 %v699, 24
    %v6801 = vpop.permute.xlu0 %6800
    %6802 = vrot.lane.b32.xlu0 %v700, 24
    %v6803 = vpop.permute.xlu0 %6802
    %6804 = vrot.lane.b32.xlu0 %v702, 24
    %v6805 = vpop.permute.xlu0 %6804
    %6806 = vrot.lane.b32.xlu0 %v703, 24
    %v6807 = vpop.permute.xlu0 %6806
    %6808 = vrot.lane.b32.xlu0 %v705, 24
    %v6809 = vpop.permute.xlu0 %6808
    %6810 = vrot.lane.b32.xlu0 %v706, 24
    %v6811 = vpop.permute.xlu0 %6810
    %6812 = vrot.lane.b32.xlu0 %v708, 24
    %v6813 = vpop.permute.xlu0 %6812
    %6814 = vrot.lane.b32.xlu0 %v709, 24
    %v6815 = vpop.permute.xlu0 %6814
    %6816 = vrot.lane.b32.xlu0 %v711, 24
    %v6817 = vpop.permute.xlu0 %6816
    %6818 = vrot.lane.b32.xlu0 %v712, 24
    %v6819 = vpop.permute.xlu0 %6818
    %6820 = vrot.lane.b32.xlu0 %v714, 24
    %v6821 = vpop.permute.xlu0 %6820
    %6822 = vrot.lane.b32.xlu0 %v715, 24
    %v6823 = vpop.permute.xlu0 %6822
    %6824 = vrot.lane.b32.xlu0 %v717, 24
    %v6825 = vpop.permute.xlu0 %6824
    %6826 = vrot.lane.b32.xlu0 %v718, 24
    %v6827 = vpop.permute.xlu0 %6826
    %6828 = vrot.lane.b32.xlu0 %v726, 24
    %v6829 = vpop.permute.xlu0 %6828
    %6830 = vrot.lane.b32.xlu0 %v727, 24
    %v6831 = vpop.permute.xlu0 %6830
    %6832 = vrot.lane.b32.xlu0 %v729, 24
    %v6833 = vpop.permute.xlu0 %6832
    %6834 = vrot.lane.b32.xlu0 %v730, 24
    %v6835 = vpop.permute.xlu0 %6834
    %6836 = vrot.lane.b32.xlu0 %v732, 24
    %v6837 = vpop.permute.xlu0 %6836
    %6838 = vrot.lane.b32.xlu0 %v733, 24
    %v6839 = vpop.permute.xlu0 %6838
    %6840 = vrot.lane.b32.xlu0 %v735, 24
    %v6841 = vpop.permute.xlu0 %6840
    %6842 = vrot.lane.b32.xlu0 %v736, 24
    %v6843 = vpop.permute.xlu0 %6842
    %6844 = vrot.lane.b32.xlu0 %v738, 24
    %v6845 = vpop.permute.xlu0 %6844
    %6846 = vrot.lane.b32.xlu0 %v739, 24
    %v6847 = vpop.permute.xlu0 %6846
    %6848 = vrot.lane.b32.xlu0 %v741, 24
    %v6849 = vpop.permute.xlu0 %6848
    %6850 = vrot.lane.b32.xlu0 %v742, 24
    %v6851 = vpop.permute.xlu0 %6850
    %6852 = vrot.lane.b32.xlu0 %v744, 24
    %v6853 = vpop.permute.xlu0 %6852
    %6854 = vrot.lane.b32.xlu0 %v745, 24
    %v6855 = vpop.permute.xlu0 %6854
    %6856 = vrot.lane.b32.xlu0 %v747, 24
    %v6857 = vpop.permute.xlu0 %6856
    %6858 = vrot.lane.b32.xlu0 %v748, 24
    %v6859 = vpop.permute.xlu0 %6858
    %6860 = vrot.lane.b32.xlu0 %v750, 24
    %v6861 = vpop.permute.xlu0 %6860
    %6862 = vrot.lane.b32.xlu0 %v751, 24
    %v6863 = vpop.permute.xlu0 %6862
    %6864 = vrot.lane.b32.xlu0 %v753, 24
    %v6865 = vpop.permute.xlu0 %6864
    %6866 = vrot.lane.b32.xlu0 %v754, 24
    %v6867 = vpop.permute.xlu0 %6866
    %6868 = vrot.lane.b32.xlu0 %v756, 24
    %v6869 = vpop.permute.xlu0 %6868
    %6870 = vrot.lane.b32.xlu0 %v757, 24
    %v6871 = vpop.permute.xlu0 %6870
    %6872 = vrot.lane.b32.xlu0 %v759, 24
    %v6873 = vpop.permute.xlu0 %6872
    %6874 = vrot.lane.b32.xlu0 %v760, 24
    %v6875 = vpop.permute.xlu0 %6874
    %6876 = vrot.lane.b32.xlu0 %v762, 24
    %v6877 = vpop.permute.xlu0 %6876
    %6878 = vrot.lane.b32.xlu0 %v763, 24
    %v6879 = vpop.permute.xlu0 %6878
    %6880 = vrot.lane.b32.xlu0 %v765, 24
    %v6881 = vpop.permute.xlu0 %6880
    %6882 = vrot.lane.b32.xlu0 %v766, 24
    %v6883 = vpop.permute.xlu0 %6882
    %6884 = vrot.lane.b32.xlu0 %v768, 24
    %v6885 = vpop.permute.xlu0 %6884
    %6886 = vrot.lane.b32.xlu0 %v769, 24
    %v6887 = vpop.permute.xlu0 %6886
    %6888 = vrot.lane.b32.xlu0 %v771, 24
    %v6889 = vpop.permute.xlu0 %6888
    %6890 = vrot.lane.b32.xlu0 %v772, 24
    %v6891 = vpop.permute.xlu0 %6890
    %6892 = vrot.lane.b32.xlu0 %v780, 24
    %v6893 = vpop.permute.xlu0 %6892
    %6894 = vrot.lane.b32.xlu0 %v781, 24
    %v6895 = vpop.permute.xlu0 %6894
    %6896 = vrot.lane.b32.xlu0 %v783, 24
    %v6897 = vpop.permute.xlu0 %6896
    %6898 = vrot.lane.b32.xlu0 %v784, 24
    %v6899 = vpop.permute.xlu0 %6898
    %6900 = vrot.lane.b32.xlu0 %v786, 24
    %v6901 = vpop.permute.xlu0 %6900
    %6902 = vrot.lane.b32.xlu0 %v787, 24
    %v6903 = vpop.permute.xlu0 %6902
    %6904 = vrot.lane.b32.xlu0 %v789, 24
    %v6905 = vpop.permute.xlu0 %6904
    %6906 = vrot.lane.b32.xlu0 %v790, 24
    %v6907 = vpop.permute.xlu0 %6906
    %6908 = vrot.lane.b32.xlu0 %v792, 24
    %v6909 = vpop.permute.xlu0 %6908
    %6910 = vrot.lane.b32.xlu0 %v793, 24
    %v6911 = vpop.permute.xlu0 %6910
    %6912 = vrot.lane.b32.xlu0 %v795, 24
    %v6913 = vpop.permute.xlu0 %6912
    %6914 = vrot.lane.b32.xlu0 %v796, 24
    %v6915 = vpop.permute.xlu0 %6914
    %6916 = vrot.lane.b32.xlu0 %v798, 24
    %v6917 = vpop.permute.xlu0 %6916
    %6918 = vrot.lane.b32.xlu0 %v799, 24
    %v6919 = vpop.permute.xlu0 %6918
    %6920 = vrot.lane.b32.xlu0 %v801, 24
    %v6921 = vpop.permute.xlu0 %6920
    %6922 = vrot.lane.b32.xlu0 %v802, 24
    %v6923 = vpop.permute.xlu0 %6922
    %6924 = vrot.lane.b32.xlu0 %v804, 24
    %v6925 = vpop.permute.xlu0 %6924
    %6926 = vrot.lane.b32.xlu0 %v805, 24
    %v6927 = vpop.permute.xlu0 %6926
    %6928 = vrot.lane.b32.xlu0 %v807, 24
    %v6929 = vpop.permute.xlu0 %6928
    %6930 = vrot.lane.b32.xlu0 %v808, 24
    %v6931 = vpop.permute.xlu0 %6930
    %6932 = vrot.lane.b32.xlu0 %v810, 24
    %v6933 = vpop.permute.xlu0 %6932
    %6934 = vrot.lane.b32.xlu0 %v811, 24
    %v6935 = vpop.permute.xlu0 %6934
    %6936 = vrot.lane.b32.xlu0 %v813, 24
    %v6937 = vpop.permute.xlu0 %6936
    %6938 = vrot.lane.b32.xlu0 %v814, 24
    %v6939 = vpop.permute.xlu0 %6938
    %6940 = vrot.lane.b32.xlu0 %v816, 24
    %v6941 = vpop.permute.xlu0 %6940
    %6942 = vrot.lane.b32.xlu0 %v817, 24
    %v6943 = vpop.permute.xlu0 %6942
    %6944 = vrot.lane.b32.xlu0 %v819, 24
    %v6945 = vpop.permute.xlu0 %6944
    %6946 = vrot.lane.b32.xlu0 %v820, 24
    %v6947 = vpop.permute.xlu0 %6946
    %6948 = vrot.lane.b32.xlu0 %v822, 24
    %v6949 = vpop.permute.xlu0 %6948
    %6950 = vrot.lane.b32.xlu0 %v823, 24
    %v6951 = vpop.permute.xlu0 %6950
    %6952 = vrot.lane.b32.xlu0 %v825, 24
    %v6953 = vpop.permute.xlu0 %6952
    %6954 = vrot.lane.b32.xlu0 %v826, 24
    %v6955 = vpop.permute.xlu0 %6954
    %6956 = vrot.lane.b32.xlu0 %v834, 24
    %v6957 = vpop.permute.xlu0 %6956
    %6958 = vrot.lane.b32.xlu0 %v835, 24
    %v6959 = vpop.permute.xlu0 %6958
    %6960 = vrot.lane.b32.xlu0 %v837, 24
    %v6961 = vpop.permute.xlu0 %6960
    %6962 = vrot.lane.b32.xlu0 %v838, 24
    %v6963 = vpop.permute.xlu0 %6962
    %6964 = vrot.lane.b32.xlu0 %v840, 24
    %v6965 = vpop.permute.xlu0 %6964
    %6966 = vrot.lane.b32.xlu0 %v841, 24
    %v6967 = vpop.permute.xlu0 %6966
    %6968 = vrot.lane.b32.xlu0 %v843, 24
    %v6969 = vpop.permute.xlu0 %6968
    %6970 = vrot.lane.b32.xlu0 %v844, 24
    %v6971 = vpop.permute.xlu0 %6970
    %6972 = vrot.lane.b32.xlu0 %v846, 24
    %v6973 = vpop.permute.xlu0 %6972
    %6974 = vrot.lane.b32.xlu0 %v847, 24
    %v6975 = vpop.permute.xlu0 %6974
    %6976 = vrot.lane.b32.xlu0 %v849, 24
    %v6977 = vpop.permute.xlu0 %6976
    %6978 = vrot.lane.b32.xlu0 %v850, 24
    %v6979 = vpop.permute.xlu0 %6978
    %6980 = vrot.lane.b32.xlu0 %v852, 24
    %v6981 = vpop.permute.xlu0 %6980
    %6982 = vrot.lane.b32.xlu0 %v853, 24
    %v6983 = vpop.permute.xlu0 %6982
    %6984 = vrot.lane.b32.xlu0 %v855, 24
    %v6985 = vpop.permute.xlu0 %6984
    %6986 = vrot.lane.b32.xlu0 %v856, 24
    %v6987 = vpop.permute.xlu0 %6986
    %6988 = vrot.lane.b32.xlu0 %v858, 24
    %v6989 = vpop.permute.xlu0 %6988
    %6990 = vrot.lane.b32.xlu0 %v859, 24
    %v6991 = vpop.permute.xlu0 %6990
    %6992 = vrot.lane.b32.xlu0 %v861, 24
    %v6993 = vpop.permute.xlu0 %6992
    %6994 = vrot.lane.b32.xlu0 %v862, 24
    %v6995 = vpop.permute.xlu0 %6994
    %6996 = vrot.lane.b32.xlu0 %v864, 24
    %v6997 = vpop.permute.xlu0 %6996
    %6998 = vrot.lane.b32.xlu0 %v865, 24
    %v6999 = vpop.permute.xlu0 %6998
    %7000 = vrot.lane.b32.xlu0 %v867, 24
    %v7001 = vpop.permute.xlu0 %7000
    %7002 = vrot.lane.b32.xlu0 %v868, 24
    %v7003 = vpop.permute.xlu0 %7002
    %7004 = vrot.lane.b32.xlu0 %v870, 24
    %v7005 = vpop.permute.xlu0 %7004
    %7006 = vrot.lane.b32.xlu0 %v871, 24
    %v7007 = vpop.permute.xlu0 %7006
    %7008 = vrot.lane.b32.xlu0 %v873, 24
    %v7009 = vpop.permute.xlu0 %7008
    %7010 = vrot.lane.b32.xlu0 %v874, 24
    %v7011 = vpop.permute.xlu0 %7010
    %7012 = vrot.lane.b32.xlu0 %v876, 24
    %v7013 = vpop.permute.xlu0 %7012
    %7014 = vrot.lane.b32.xlu0 %v877, 24
    %v7015 = vpop.permute.xlu0 %7014
    %7016 = vrot.lane.b32.xlu0 %v879, 24
    %v7017 = vpop.permute.xlu0 %7016
    %7018 = vrot.lane.b32.xlu0 %v880, 24
    %v7019 = vpop.permute.xlu0 %7018
    %v7284 = vrot.slane %v501, 1
    %v7285 = vrot.slane %v502, 1
    %v7286 = vsel %vm1266, %v7284, %v7285
    %v7287 = vrot.slane %v503, 1
    %v7288 = vsel %vm1266, %v7285, %v7287
    %v7289 = vrot.slane %v555, 1
    %v7290 = vrot.slane %v556, 1
    %v7291 = vsel %vm1266, %v7289, %v7290
    %v7292 = vrot.slane %v557, 1
    %v7293 = vsel %vm1266, %v7290, %v7292
    %v7294 = vrot.slane %v609, 1
    %v7295 = vrot.slane %v610, 1
    %v7296 = vsel %vm1266, %v7294, %v7295
    %v7297 = vrot.slane %v611, 1
    %v7298 = vsel %vm1266, %v7295, %v7297
    %v7299 = vrot.slane %v663, 1
    %v7300 = vrot.slane %v664, 1
    %v7301 = vsel %vm1266, %v7299, %v7300
    %v7302 = vrot.slane %v665, 1
    %v7303 = vsel %vm1266, %v7300, %v7302
    %v7304 = vrot.slane %v717, 1
    %v7305 = vrot.slane %v718, 1
    %v7306 = vsel %vm1266, %v7304, %v7305
    %v7307 = vrot.slane %v719, 1
    %v7308 = vsel %vm1266, %v7305, %v7307
    %v7309 = vrot.slane %v771, 1
    %v7310 = vrot.slane %v772, 1
    %v7311 = vsel %vm1266, %v7309, %v7310
    %v7312 = vrot.slane %v773, 1
    %v7313 = vsel %vm1266, %v7310, %v7312
    %v7314 = vrot.slane %v825, 1
    %v7315 = vrot.slane %v826, 1
    %v7316 = vsel %vm1266, %v7314, %v7315
    %v7317 = vrot.slane %v827, 1
    %v7318 = vsel %vm1266, %v7315, %v7317
    %v7319 = vrot.slane %v879, 1
    %v7320 = vrot.slane %v880, 1
    %v7321 = vsel %vm1266, %v7319, %v7320
    %v7322 = vrot.slane %v881, 1
    %v7323 = vsel %vm1266, %v7320, %v7322
    %7324 = vrot.lane.b32.xlu0 %v1279, 28
    %v7325 = vpop.permute.xlu0 %7324
    %7326 = vrot.lane.b32.xlu0 %v1281, 28
    %v7327 = vpop.permute.xlu0 %7326
    %7328 = vrot.lane.b32.xlu0 %v1284, 28
    %v7329 = vpop.permute.xlu0 %7328
    %7330 = vrot.lane.b32.xlu0 %v1286, 28
    %v7331 = vpop.permute.xlu0 %7330
    %7332 = vrot.lane.b32.xlu0 %v1289, 28
    %v7333 = vpop.permute.xlu0 %7332
    %7334 = vrot.lane.b32.xlu0 %v1291, 28
    %v7335 = vpop.permute.xlu0 %7334
    %7336 = vrot.lane.b32.xlu0 %v1294, 28
    %v7337 = vpop.permute.xlu0 %7336
    %7338 = vrot.lane.b32.xlu0 %v1296, 28
    %v7339 = vpop.permute.xlu0 %7338
    %7340 = vrot.lane.b32.xlu0 %v1299, 28
    %v7341 = vpop.permute.xlu0 %7340
    %7342 = vrot.lane.b32.xlu0 %v1301, 28
    %v7343 = vpop.permute.xlu0 %7342
    %7344 = vrot.lane.b32.xlu0 %v1304, 28
    %v7345 = vpop.permute.xlu0 %7344
    %7346 = vrot.lane.b32.xlu0 %v1306, 28
    %v7347 = vpop.permute.xlu0 %7346
    %7348 = vrot.lane.b32.xlu0 %v1309, 28
    %v7349 = vpop.permute.xlu0 %7348
    %7350 = vrot.lane.b32.xlu0 %v1311, 28
    %v7351 = vpop.permute.xlu0 %7350
    %7352 = vrot.lane.b32.xlu0 %v1314, 28
    %v7353 = vpop.permute.xlu0 %7352
    %7354 = vrot.lane.b32.xlu0 %v1316, 28
    %v7355 = vpop.permute.xlu0 %7354
    %7356 = vrot.lane.b32.xlu0 %v1319, 28
    %v7357 = vpop.permute.xlu0 %7356
    %7358 = vrot.lane.b32.xlu0 %v1321, 28
    %v7359 = vpop.permute.xlu0 %7358
    %7360 = vrot.lane.b32.xlu0 %v1324, 28
    %v7361 = vpop.permute.xlu0 %7360
    %7362 = vrot.lane.b32.xlu0 %v1326, 28
    %v7363 = vpop.permute.xlu0 %7362
    %7364 = vrot.lane.b32.xlu0 %v1329, 28
    %v7365 = vpop.permute.xlu0 %7364
    %7366 = vrot.lane.b32.xlu0 %v1331, 28
    %v7367 = vpop.permute.xlu0 %7366
    %7368 = vrot.lane.b32.xlu0 %v1334, 28
    %v7369 = vpop.permute.xlu0 %7368
    %7370 = vrot.lane.b32.xlu0 %v1336, 28
    %v7371 = vpop.permute.xlu0 %7370
    %7372 = vrot.lane.b32.xlu0 %v1339, 28
    %v7373 = vpop.permute.xlu0 %7372
    %7374 = vrot.lane.b32.xlu0 %v1341, 28
    %v7375 = vpop.permute.xlu0 %7374
    %7376 = vrot.lane.b32.xlu0 %v1344, 28
    %v7377 = vpop.permute.xlu0 %7376
    %7378 = vrot.lane.b32.xlu0 %v1346, 28
    %v7379 = vpop.permute.xlu0 %7378
    %7380 = vrot.lane.b32.xlu0 %v4878, 28
    %v7381 = vpop.permute.xlu0 %7380
    %7382 = vrot.lane.b32.xlu0 %v4880, 28
    %v7383 = vpop.permute.xlu0 %7382
    %7384 = vrot.lane.b32.xlu0 %v7286, 28
    %v7385 = vpop.permute.xlu0 %7384
    %7386 = vrot.lane.b32.xlu0 %v7288, 28
    %v7387 = vpop.permute.xlu0 %7386
    %7388 = vrot.lane.b32.xlu0 %v1359, 28
    %v7389 = vpop.permute.xlu0 %7388
    %7390 = vrot.lane.b32.xlu0 %v1361, 28
    %v7391 = vpop.permute.xlu0 %7390
    %7392 = vrot.lane.b32.xlu0 %v1364, 28
    %v7393 = vpop.permute.xlu0 %7392
    %7394 = vrot.lane.b32.xlu0 %v1366, 28
    %v7395 = vpop.permute.xlu0 %7394
    %7396 = vrot.lane.b32.xlu0 %v1369, 28
    %v7397 = vpop.permute.xlu0 %7396
    %7398 = vrot.lane.b32.xlu0 %v1371, 28
    %v7399 = vpop.permute.xlu0 %7398
    %7400 = vrot.lane.b32.xlu0 %v1374, 28
    %v7401 = vpop.permute.xlu0 %7400
    %7402 = vrot.lane.b32.xlu0 %v1376, 28
    %v7403 = vpop.permute.xlu0 %7402
    %7404 = vrot.lane.b32.xlu0 %v1379, 28
    %v7405 = vpop.permute.xlu0 %7404
    %7406 = vrot.lane.b32.xlu0 %v1381, 28
    %v7407 = vpop.permute.xlu0 %7406
    %7408 = vrot.lane.b32.xlu0 %v1384, 28
    %v7409 = vpop.permute.xlu0 %7408
    %7410 = vrot.lane.b32.xlu0 %v1386, 28
    %v7411 = vpop.permute.xlu0 %7410
    %7412 = vrot.lane.b32.xlu0 %v1389, 28
    %v7413 = vpop.permute.xlu0 %7412
    %7414 = vrot.lane.b32.xlu0 %v1391, 28
    %v7415 = vpop.permute.xlu0 %7414
    %7416 = vrot.lane.b32.xlu0 %v1394, 28
    %v7417 = vpop.permute.xlu0 %7416
    %7418 = vrot.lane.b32.xlu0 %v1396, 28
    %v7419 = vpop.permute.xlu0 %7418
    %7420 = vrot.lane.b32.xlu0 %v1399, 28
    %v7421 = vpop.permute.xlu0 %7420
    %7422 = vrot.lane.b32.xlu0 %v1401, 28
    %v7423 = vpop.permute.xlu0 %7422
    %7424 = vrot.lane.b32.xlu0 %v1404, 28
    %v7425 = vpop.permute.xlu0 %7424
    %7426 = vrot.lane.b32.xlu0 %v1406, 28
    %v7427 = vpop.permute.xlu0 %7426
    %7428 = vrot.lane.b32.xlu0 %v1409, 28
    %v7429 = vpop.permute.xlu0 %7428
    %7430 = vrot.lane.b32.xlu0 %v1411, 28
    %v7431 = vpop.permute.xlu0 %7430
    %7432 = vrot.lane.b32.xlu0 %v1414, 28
    %v7433 = vpop.permute.xlu0 %7432
    %7434 = vrot.lane.b32.xlu0 %v1416, 28
    %v7435 = vpop.permute.xlu0 %7434
    %7436 = vrot.lane.b32.xlu0 %v1419, 28
    %v7437 = vpop.permute.xlu0 %7436
    %7438 = vrot.lane.b32.xlu0 %v1421, 28
    %v7439 = vpop.permute.xlu0 %7438
    %7440 = vrot.lane.b32.xlu0 %v1424, 28
    %v7441 = vpop.permute.xlu0 %7440
    %7442 = vrot.lane.b32.xlu0 %v1426, 28
    %v7443 = vpop.permute.xlu0 %7442
    %7444 = vrot.lane.b32.xlu0 %v4883, 28
    %v7445 = vpop.permute.xlu0 %7444
    %7446 = vrot.lane.b32.xlu0 %v4885, 28
    %v7447 = vpop.permute.xlu0 %7446
    %7448 = vrot.lane.b32.xlu0 %v7291, 28
    %v7449 = vpop.permute.xlu0 %7448
    %7450 = vrot.lane.b32.xlu0 %v7293, 28
    %v7451 = vpop.permute.xlu0 %7450
    %7452 = vrot.lane.b32.xlu0 %v1439, 28
    %v7453 = vpop.permute.xlu0 %7452
    %7454 = vrot.lane.b32.xlu0 %v1441, 28
    %v7455 = vpop.permute.xlu0 %7454
    %7456 = vrot.lane.b32.xlu0 %v1444, 28
    %v7457 = vpop.permute.xlu0 %7456
    %7458 = vrot.lane.b32.xlu0 %v1446, 28
    %v7459 = vpop.permute.xlu0 %7458
    %7460 = vrot.lane.b32.xlu0 %v1449, 28
    %v7461 = vpop.permute.xlu0 %7460
    %7462 = vrot.lane.b32.xlu0 %v1451, 28
    %v7463 = vpop.permute.xlu0 %7462
    %7464 = vrot.lane.b32.xlu0 %v1454, 28
    %v7465 = vpop.permute.xlu0 %7464
    %7466 = vrot.lane.b32.xlu0 %v1456, 28
    %v7467 = vpop.permute.xlu0 %7466
    %7468 = vrot.lane.b32.xlu0 %v1459, 28
    %v7469 = vpop.permute.xlu0 %7468
    %7470 = vrot.lane.b32.xlu0 %v1461, 28
    %v7471 = vpop.permute.xlu0 %7470
    %7472 = vrot.lane.b32.xlu0 %v1464, 28
    %v7473 = vpop.permute.xlu0 %7472
    %7474 = vrot.lane.b32.xlu0 %v1466, 28
    %v7475 = vpop.permute.xlu0 %7474
    %7476 = vrot.lane.b32.xlu0 %v1469, 28
    %v7477 = vpop.permute.xlu0 %7476
    %7478 = vrot.lane.b32.xlu0 %v1471, 28
    %v7479 = vpop.permute.xlu0 %7478
    %7480 = vrot.lane.b32.xlu0 %v1474, 28
    %v7481 = vpop.permute.xlu0 %7480
    %7482 = vrot.lane.b32.xlu0 %v1476, 28
    %v7483 = vpop.permute.xlu0 %7482
    %7484 = vrot.lane.b32.xlu0 %v1479, 28
    %v7485 = vpop.permute.xlu0 %7484
    %7486 = vrot.lane.b32.xlu0 %v1481, 28
    %v7487 = vpop.permute.xlu0 %7486
    %7488 = vrot.lane.b32.xlu0 %v1484, 28
    %v7489 = vpop.permute.xlu0 %7488
    %7490 = vrot.lane.b32.xlu0 %v1486, 28
    %v7491 = vpop.permute.xlu0 %7490
    %7492 = vrot.lane.b32.xlu0 %v1489, 28
    %v7493 = vpop.permute.xlu0 %7492
    %7494 = vrot.lane.b32.xlu0 %v1491, 28
    %v7495 = vpop.permute.xlu0 %7494
    %7496 = vrot.lane.b32.xlu0 %v1494, 28
    %v7497 = vpop.permute.xlu0 %7496
    %7498 = vrot.lane.b32.xlu0 %v1496, 28
    %v7499 = vpop.permute.xlu0 %7498
    %7500 = vrot.lane.b32.xlu0 %v1499, 28
    %v7501 = vpop.permute.xlu0 %7500
    %7502 = vrot.lane.b32.xlu0 %v1501, 28
    %v7503 = vpop.permute.xlu0 %7502
    %7504 = vrot.lane.b32.xlu0 %v1504, 28
    %v7505 = vpop.permute.xlu0 %7504
    %7506 = vrot.lane.b32.xlu0 %v1506, 28
    %v7507 = vpop.permute.xlu0 %7506
    %7508 = vrot.lane.b32.xlu0 %v4888, 28
    %v7509 = vpop.permute.xlu0 %7508
    %7510 = vrot.lane.b32.xlu0 %v4890, 28
    %v7511 = vpop.permute.xlu0 %7510
    %7512 = vrot.lane.b32.xlu0 %v7296, 28
    %v7513 = vpop.permute.xlu0 %7512
    %7514 = vrot.lane.b32.xlu0 %v7298, 28
    %v7515 = vpop.permute.xlu0 %7514
    %7516 = vrot.lane.b32.xlu0 %v1519, 28
    %v7517 = vpop.permute.xlu0 %7516
    %7518 = vrot.lane.b32.xlu0 %v1521, 28
    %v7519 = vpop.permute.xlu0 %7518
    %7520 = vrot.lane.b32.xlu0 %v1524, 28
    %v7521 = vpop.permute.xlu0 %7520
    %7522 = vrot.lane.b32.xlu0 %v1526, 28
    %v7523 = vpop.permute.xlu0 %7522
    %7524 = vrot.lane.b32.xlu0 %v1529, 28
    %v7525 = vpop.permute.xlu0 %7524
    %7526 = vrot.lane.b32.xlu0 %v1531, 28
    %v7527 = vpop.permute.xlu0 %7526
    %7528 = vrot.lane.b32.xlu0 %v1534, 28
    %v7529 = vpop.permute.xlu0 %7528
    %7530 = vrot.lane.b32.xlu0 %v1536, 28
    %v7531 = vpop.permute.xlu0 %7530
    %7532 = vrot.lane.b32.xlu0 %v1539, 28
    %v7533 = vpop.permute.xlu0 %7532
    %7534 = vrot.lane.b32.xlu0 %v1541, 28
    %v7535 = vpop.permute.xlu0 %7534
    %7536 = vrot.lane.b32.xlu0 %v1544, 28
    %v7537 = vpop.permute.xlu0 %7536
    %7538 = vrot.lane.b32.xlu0 %v1546, 28
    %v7539 = vpop.permute.xlu0 %7538
    %7540 = vrot.lane.b32.xlu0 %v1549, 28
    %v7541 = vpop.permute.xlu0 %7540
    %7542 = vrot.lane.b32.xlu0 %v1551, 28
    %v7543 = vpop.permute.xlu0 %7542
    %7544 = vrot.lane.b32.xlu0 %v1554, 28
    %v7545 = vpop.permute.xlu0 %7544
    %7546 = vrot.lane.b32.xlu0 %v1556, 28
    %v7547 = vpop.permute.xlu0 %7546
    %7548 = vrot.lane.b32.xlu0 %v1559, 28
    %v7549 = vpop.permute.xlu0 %7548
    %7550 = vrot.lane.b32.xlu0 %v1561, 28
    %v7551 = vpop.permute.xlu0 %7550
    %7552 = vrot.lane.b32.xlu0 %v1564, 28
    %v7553 = vpop.permute.xlu0 %7552
    %7554 = vrot.lane.b32.xlu0 %v1566, 28
    %v7555 = vpop.permute.xlu0 %7554
    %7556 = vrot.lane.b32.xlu0 %v1569, 28
    %v7557 = vpop.permute.xlu0 %7556
    %7558 = vrot.lane.b32.xlu0 %v1571, 28
    %v7559 = vpop.permute.xlu0 %7558
    %7560 = vrot.lane.b32.xlu0 %v1574, 28
    %v7561 = vpop.permute.xlu0 %7560
    %7562 = vrot.lane.b32.xlu0 %v1576, 28
    %v7563 = vpop.permute.xlu0 %7562
    %7564 = vrot.lane.b32.xlu0 %v1579, 28
    %v7565 = vpop.permute.xlu0 %7564
    %7566 = vrot.lane.b32.xlu0 %v1581, 28
    %v7567 = vpop.permute.xlu0 %7566
    %7568 = vrot.lane.b32.xlu0 %v1584, 28
    %v7569 = vpop.permute.xlu0 %7568
    %7570 = vrot.lane.b32.xlu0 %v1586, 28
    %v7571 = vpop.permute.xlu0 %7570
    %7572 = vrot.lane.b32.xlu0 %v4893, 28
    %v7573 = vpop.permute.xlu0 %7572
    %7574 = vrot.lane.b32.xlu0 %v4895, 28
    %v7575 = vpop.permute.xlu0 %7574
    %7576 = vrot.lane.b32.xlu0 %v7301, 28
    %v7577 = vpop.permute.xlu0 %7576
    %7578 = vrot.lane.b32.xlu0 %v7303, 28
    %v7579 = vpop.permute.xlu0 %7578
    %7580 = vrot.lane.b32.xlu0 %v1599, 28
    %v7581 = vpop.permute.xlu0 %7580
    %7582 = vrot.lane.b32.xlu0 %v1601, 28
    %v7583 = vpop.permute.xlu0 %7582
    %7584 = vrot.lane.b32.xlu0 %v1604, 28
    %v7585 = vpop.permute.xlu0 %7584
    %7586 = vrot.lane.b32.xlu0 %v1606, 28
    %v7587 = vpop.permute.xlu0 %7586
    %7588 = vrot.lane.b32.xlu0 %v1609, 28
    %v7589 = vpop.permute.xlu0 %7588
    %7590 = vrot.lane.b32.xlu0 %v1611, 28
    %v7591 = vpop.permute.xlu0 %7590
    %7592 = vrot.lane.b32.xlu0 %v1614, 28
    %v7593 = vpop.permute.xlu0 %7592
    %7594 = vrot.lane.b32.xlu0 %v1616, 28
    %v7595 = vpop.permute.xlu0 %7594
    %7596 = vrot.lane.b32.xlu0 %v1619, 28
    %v7597 = vpop.permute.xlu0 %7596
    %7598 = vrot.lane.b32.xlu0 %v1621, 28
    %v7599 = vpop.permute.xlu0 %7598
    %7600 = vrot.lane.b32.xlu0 %v1624, 28
    %v7601 = vpop.permute.xlu0 %7600
    %7602 = vrot.lane.b32.xlu0 %v1626, 28
    %v7603 = vpop.permute.xlu0 %7602
    %7604 = vrot.lane.b32.xlu0 %v1629, 28
    %v7605 = vpop.permute.xlu0 %7604
    %7606 = vrot.lane.b32.xlu0 %v1631, 28
    %v7607 = vpop.permute.xlu0 %7606
    %7608 = vrot.lane.b32.xlu0 %v1634, 28
    %v7609 = vpop.permute.xlu0 %7608
    %7610 = vrot.lane.b32.xlu0 %v1636, 28
    %v7611 = vpop.permute.xlu0 %7610
    %7612 = vrot.lane.b32.xlu0 %v1639, 28
    %v7613 = vpop.permute.xlu0 %7612
    %7614 = vrot.lane.b32.xlu0 %v1641, 28
    %v7615 = vpop.permute.xlu0 %7614
    %7616 = vrot.lane.b32.xlu0 %v1644, 28
    %v7617 = vpop.permute.xlu0 %7616
    %7618 = vrot.lane.b32.xlu0 %v1646, 28
    %v7619 = vpop.permute.xlu0 %7618
    %7620 = vrot.lane.b32.xlu0 %v1649, 28
    %v7621 = vpop.permute.xlu0 %7620
    %7622 = vrot.lane.b32.xlu0 %v1651, 28
    %v7623 = vpop.permute.xlu0 %7622
    %7624 = vrot.lane.b32.xlu0 %v1654, 28
    %v7625 = vpop.permute.xlu0 %7624
    %7626 = vrot.lane.b32.xlu0 %v1656, 28
    %v7627 = vpop.permute.xlu0 %7626
    %7628 = vrot.lane.b32.xlu0 %v1659, 28
    %v7629 = vpop.permute.xlu0 %7628
    %7630 = vrot.lane.b32.xlu0 %v1661, 28
    %v7631 = vpop.permute.xlu0 %7630
    %7632 = vrot.lane.b32.xlu0 %v1664, 28
    %v7633 = vpop.permute.xlu0 %7632
    %7634 = vrot.lane.b32.xlu0 %v1666, 28
    %v7635 = vpop.permute.xlu0 %7634
    %7636 = vrot.lane.b32.xlu0 %v4898, 28
    %v7637 = vpop.permute.xlu0 %7636
    %7638 = vrot.lane.b32.xlu0 %v4900, 28
    %v7639 = vpop.permute.xlu0 %7638
    %7640 = vrot.lane.b32.xlu0 %v7306, 28
    %v7641 = vpop.permute.xlu0 %7640
    %7642 = vrot.lane.b32.xlu0 %v7308, 28
    %v7643 = vpop.permute.xlu0 %7642
    %7644 = vrot.lane.b32.xlu0 %v1679, 28
    %v7645 = vpop.permute.xlu0 %7644
    %7646 = vrot.lane.b32.xlu0 %v1681, 28
    %v7647 = vpop.permute.xlu0 %7646
    %7648 = vrot.lane.b32.xlu0 %v1684, 28
    %v7649 = vpop.permute.xlu0 %7648
    %7650 = vrot.lane.b32.xlu0 %v1686, 28
    %v7651 = vpop.permute.xlu0 %7650
    %7652 = vrot.lane.b32.xlu0 %v1689, 28
    %v7653 = vpop.permute.xlu0 %7652
    %7654 = vrot.lane.b32.xlu0 %v1691, 28
    %v7655 = vpop.permute.xlu0 %7654
    %7656 = vrot.lane.b32.xlu0 %v1694, 28
    %v7657 = vpop.permute.xlu0 %7656
    %7658 = vrot.lane.b32.xlu0 %v1696, 28
    %v7659 = vpop.permute.xlu0 %7658
    %7660 = vrot.lane.b32.xlu0 %v1699, 28
    %v7661 = vpop.permute.xlu0 %7660
    %7662 = vrot.lane.b32.xlu0 %v1701, 28
    %v7663 = vpop.permute.xlu0 %7662
    %7664 = vrot.lane.b32.xlu0 %v1704, 28
    %v7665 = vpop.permute.xlu0 %7664
    %7666 = vrot.lane.b32.xlu0 %v1706, 28
    %v7667 = vpop.permute.xlu0 %7666
    %7668 = vrot.lane.b32.xlu0 %v1709, 28
    %v7669 = vpop.permute.xlu0 %7668
    %7670 = vrot.lane.b32.xlu0 %v1711, 28
    %v7671 = vpop.permute.xlu0 %7670
    %7672 = vrot.lane.b32.xlu0 %v1714, 28
    %v7673 = vpop.permute.xlu0 %7672
    %7674 = vrot.lane.b32.xlu0 %v1716, 28
    %v7675 = vpop.permute.xlu0 %7674
    %7676 = vrot.lane.b32.xlu0 %v1719, 28
    %v7677 = vpop.permute.xlu0 %7676
    %7678 = vrot.lane.b32.xlu0 %v1721, 28
    %v7679 = vpop.permute.xlu0 %7678
    %7680 = vrot.lane.b32.xlu0 %v1724, 28
    %v7681 = vpop.permute.xlu0 %7680
    %7682 = vrot.lane.b32.xlu0 %v1726, 28
    %v7683 = vpop.permute.xlu0 %7682
    %7684 = vrot.lane.b32.xlu0 %v1729, 28
    %v7685 = vpop.permute.xlu0 %7684
    %7686 = vrot.lane.b32.xlu0 %v1731, 28
    %v7687 = vpop.permute.xlu0 %7686
    %7688 = vrot.lane.b32.xlu0 %v1734, 28
    %v7689 = vpop.permute.xlu0 %7688
    %7690 = vrot.lane.b32.xlu0 %v1736, 28
    %v7691 = vpop.permute.xlu0 %7690
    %7692 = vrot.lane.b32.xlu0 %v1739, 28
    %v7693 = vpop.permute.xlu0 %7692
    %7694 = vrot.lane.b32.xlu0 %v1741, 28
    %v7695 = vpop.permute.xlu0 %7694
    %7696 = vrot.lane.b32.xlu0 %v1744, 28
    %v7697 = vpop.permute.xlu0 %7696
    %7698 = vrot.lane.b32.xlu0 %v1746, 28
    %v7699 = vpop.permute.xlu0 %7698
    %7700 = vrot.lane.b32.xlu0 %v4903, 28
    %v7701 = vpop.permute.xlu0 %7700
    %7702 = vrot.lane.b32.xlu0 %v4905, 28
    %v7703 = vpop.permute.xlu0 %7702
    %7704 = vrot.lane.b32.xlu0 %v7311, 28
    %v7705 = vpop.permute.xlu0 %7704
    %7706 = vrot.lane.b32.xlu0 %v7313, 28
    %v7707 = vpop.permute.xlu0 %7706
    %7708 = vrot.lane.b32.xlu0 %v1759, 28
    %v7709 = vpop.permute.xlu0 %7708
    %7710 = vrot.lane.b32.xlu0 %v1761, 28
    %v7711 = vpop.permute.xlu0 %7710
    %7712 = vrot.lane.b32.xlu0 %v1764, 28
    %v7713 = vpop.permute.xlu0 %7712
    %7714 = vrot.lane.b32.xlu0 %v1766, 28
    %v7715 = vpop.permute.xlu0 %7714
    %7716 = vrot.lane.b32.xlu0 %v1769, 28
    %v7717 = vpop.permute.xlu0 %7716
    %7718 = vrot.lane.b32.xlu0 %v1771, 28
    %v7719 = vpop.permute.xlu0 %7718
    %7720 = vrot.lane.b32.xlu0 %v1774, 28
    %v7721 = vpop.permute.xlu0 %7720
    %7722 = vrot.lane.b32.xlu0 %v1776, 28
    %v7723 = vpop.permute.xlu0 %7722
    %7724 = vrot.lane.b32.xlu0 %v1779, 28
    %v7725 = vpop.permute.xlu0 %7724
    %7726 = vrot.lane.b32.xlu0 %v1781, 28
    %v7727 = vpop.permute.xlu0 %7726
    %7728 = vrot.lane.b32.xlu0 %v1784, 28
    %v7729 = vpop.permute.xlu0 %7728
    %7730 = vrot.lane.b32.xlu0 %v1786, 28
    %v7731 = vpop.permute.xlu0 %7730
    %7732 = vrot.lane.b32.xlu0 %v1789, 28
    %v7733 = vpop.permute.xlu0 %7732
    %7734 = vrot.lane.b32.xlu0 %v1791, 28
    %v7735 = vpop.permute.xlu0 %7734
    %7736 = vrot.lane.b32.xlu0 %v1794, 28
    %v7737 = vpop.permute.xlu0 %7736
    %7738 = vrot.lane.b32.xlu0 %v1796, 28
    %v7739 = vpop.permute.xlu0 %7738
    %7740 = vrot.lane.b32.xlu0 %v1799, 28
    %v7741 = vpop.permute.xlu0 %7740
    %7742 = vrot.lane.b32.xlu0 %v1801, 28
    %v7743 = vpop.permute.xlu0 %7742
    %7744 = vrot.lane.b32.xlu0 %v1804, 28
    %v7745 = vpop.permute.xlu0 %7744
    %7746 = vrot.lane.b32.xlu0 %v1806, 28
    %v7747 = vpop.permute.xlu0 %7746
    %7748 = vrot.lane.b32.xlu0 %v1809, 28
    %v7749 = vpop.permute.xlu0 %7748
    %7750 = vrot.lane.b32.xlu0 %v1811, 28
    %v7751 = vpop.permute.xlu0 %7750
    %7752 = vrot.lane.b32.xlu0 %v1814, 28
    %v7753 = vpop.permute.xlu0 %7752
    %7754 = vrot.lane.b32.xlu0 %v1816, 28
    %v7755 = vpop.permute.xlu0 %7754
    %7756 = vrot.lane.b32.xlu0 %v1819, 28
    %v7757 = vpop.permute.xlu0 %7756
    %7758 = vrot.lane.b32.xlu0 %v1821, 28
    %v7759 = vpop.permute.xlu0 %7758
    %7760 = vrot.lane.b32.xlu0 %v1824, 28
    %v7761 = vpop.permute.xlu0 %7760
    %7762 = vrot.lane.b32.xlu0 %v1826, 28
    %v7763 = vpop.permute.xlu0 %7762
    %7764 = vrot.lane.b32.xlu0 %v4908, 28
    %v7765 = vpop.permute.xlu0 %7764
    %7766 = vrot.lane.b32.xlu0 %v4910, 28
    %v7767 = vpop.permute.xlu0 %7766
    %7768 = vrot.lane.b32.xlu0 %v7316, 28
    %v7769 = vpop.permute.xlu0 %7768
    %7770 = vrot.lane.b32.xlu0 %v7318, 28
    %v7771 = vpop.permute.xlu0 %7770
    %7772 = vrot.lane.b32.xlu0 %v1839, 28
    %v7773 = vpop.permute.xlu0 %7772
    %7774 = vrot.lane.b32.xlu0 %v1841, 28
    %v7775 = vpop.permute.xlu0 %7774
    %7776 = vrot.lane.b32.xlu0 %v1844, 28
    %v7777 = vpop.permute.xlu0 %7776
    %7778 = vrot.lane.b32.xlu0 %v1846, 28
    %v7779 = vpop.permute.xlu0 %7778
    %7780 = vrot.lane.b32.xlu0 %v1849, 28
    %v7781 = vpop.permute.xlu0 %7780
    %7782 = vrot.lane.b32.xlu0 %v1851, 28
    %v7783 = vpop.permute.xlu0 %7782
    %7784 = vrot.lane.b32.xlu0 %v1854, 28
    %v7785 = vpop.permute.xlu0 %7784
    %7786 = vrot.lane.b32.xlu0 %v1856, 28
    %v7787 = vpop.permute.xlu0 %7786
    %7788 = vrot.lane.b32.xlu0 %v1859, 28
    %v7789 = vpop.permute.xlu0 %7788
    %7790 = vrot.lane.b32.xlu0 %v1861, 28
    %v7791 = vpop.permute.xlu0 %7790
    %7792 = vrot.lane.b32.xlu0 %v1864, 28
    %v7793 = vpop.permute.xlu0 %7792
    %7794 = vrot.lane.b32.xlu0 %v1866, 28
    %v7795 = vpop.permute.xlu0 %7794
    %7796 = vrot.lane.b32.xlu0 %v1869, 28
    %v7797 = vpop.permute.xlu0 %7796
    %7798 = vrot.lane.b32.xlu0 %v1871, 28
    %v7799 = vpop.permute.xlu0 %7798
    %7800 = vrot.lane.b32.xlu0 %v1874, 28
    %v7801 = vpop.permute.xlu0 %7800
    %7802 = vrot.lane.b32.xlu0 %v1876, 28
    %v7803 = vpop.permute.xlu0 %7802
    %7804 = vrot.lane.b32.xlu0 %v1879, 28
    %v7805 = vpop.permute.xlu0 %7804
    %7806 = vrot.lane.b32.xlu0 %v1881, 28
    %v7807 = vpop.permute.xlu0 %7806
    %7808 = vrot.lane.b32.xlu0 %v1884, 28
    %v7809 = vpop.permute.xlu0 %7808
    %7810 = vrot.lane.b32.xlu0 %v1886, 28
    %v7811 = vpop.permute.xlu0 %7810
    %7812 = vrot.lane.b32.xlu0 %v1889, 28
    %v7813 = vpop.permute.xlu0 %7812
    %7814 = vrot.lane.b32.xlu0 %v1891, 28
    %v7815 = vpop.permute.xlu0 %7814
    %7816 = vrot.lane.b32.xlu0 %v1894, 28
    %v7817 = vpop.permute.xlu0 %7816
    %7818 = vrot.lane.b32.xlu0 %v1896, 28
    %v7819 = vpop.permute.xlu0 %7818
    %7820 = vrot.lane.b32.xlu0 %v1899, 28
    %v7821 = vpop.permute.xlu0 %7820
    %7822 = vrot.lane.b32.xlu0 %v1901, 28
    %v7823 = vpop.permute.xlu0 %7822
    %7824 = vrot.lane.b32.xlu0 %v1904, 28
    %v7825 = vpop.permute.xlu0 %7824
    %7826 = vrot.lane.b32.xlu0 %v1906, 28
    %v7827 = vpop.permute.xlu0 %7826
    %7828 = vrot.lane.b32.xlu0 %v4913, 28
    %v7829 = vpop.permute.xlu0 %7828
    %7830 = vrot.lane.b32.xlu0 %v4915, 28
    %v7831 = vpop.permute.xlu0 %7830
    %7832 = vrot.lane.b32.xlu0 %v7321, 28
    %v7833 = vpop.permute.xlu0 %7832
    %7834 = vrot.lane.b32.xlu0 %v7323, 28
    %v7835 = vpop.permute.xlu0 %7834
    %v8092 = vrot.slane %v501, 2
    %v8093 = vrot.slane %v502, 2
    %v8094 = vsel %vm2675, %v8092, %v8093
    %v8095 = vrot.slane %v503, 2
    %v8096 = vsel %vm2675, %v8093, %v8095
    %v8097 = vrot.slane %v555, 2
    %v8098 = vrot.slane %v556, 2
    %v8099 = vsel %vm2675, %v8097, %v8098
    %v8100 = vrot.slane %v557, 2
    %v8101 = vsel %vm2675, %v8098, %v8100
    %v8102 = vrot.slane %v609, 2
    %v8103 = vrot.slane %v610, 2
    %v8104 = vsel %vm2675, %v8102, %v8103
    %v8105 = vrot.slane %v611, 2
    %v8106 = vsel %vm2675, %v8103, %v8105
    %v8107 = vrot.slane %v663, 2
    %v8108 = vrot.slane %v664, 2
    %v8109 = vsel %vm2675, %v8107, %v8108
    %v8110 = vrot.slane %v665, 2
    %v8111 = vsel %vm2675, %v8108, %v8110
    %v8112 = vrot.slane %v717, 2
    %v8113 = vrot.slane %v718, 2
    %v8114 = vsel %vm2675, %v8112, %v8113
    %v8115 = vrot.slane %v719, 2
    %v8116 = vsel %vm2675, %v8113, %v8115
    %v8117 = vrot.slane %v771, 2
    %v8118 = vrot.slane %v772, 2
    %v8119 = vsel %vm2675, %v8117, %v8118
    %v8120 = vrot.slane %v773, 2
    %v8121 = vsel %vm2675, %v8118, %v8120
    %v8122 = vrot.slane %v825, 2
    %v8123 = vrot.slane %v826, 2
    %v8124 = vsel %vm2675, %v8122, %v8123
    %v8125 = vrot.slane %v827, 2
    %v8126 = vsel %vm2675, %v8123, %v8125
    %v8127 = vrot.slane %v879, 2
    %v8128 = vrot.slane %v880, 2
    %v8129 = vsel %vm2675, %v8127, %v8128
    %v8130 = vrot.slane %v881, 2
    %v8131 = vsel %vm2675, %v8128, %v8130
    %8132 = vrot.lane.b32.xlu0 %v2688, 32
    %v8133 = vpop.permute.xlu0 %8132
    %8134 = vrot.lane.b32.xlu0 %v2690, 32
    %v8135 = vpop.permute.xlu0 %8134
    %8136 = vrot.lane.b32.xlu0 %v2693, 32
    %v8137 = vpop.permute.xlu0 %8136
    %8138 = vrot.lane.b32.xlu0 %v2695, 32
    %v8139 = vpop.permute.xlu0 %8138
    %8140 = vrot.lane.b32.xlu0 %v2698, 32
    %v8141 = vpop.permute.xlu0 %8140
    %8142 = vrot.lane.b32.xlu0 %v2700, 32
    %v8143 = vpop.permute.xlu0 %8142
    %8144 = vrot.lane.b32.xlu0 %v2703, 32
    %v8145 = vpop.permute.xlu0 %8144
    %8146 = vrot.lane.b32.xlu0 %v2705, 32
    %v8147 = vpop.permute.xlu0 %8146
    %8148 = vrot.lane.b32.xlu0 %v2708, 32
    %v8149 = vpop.permute.xlu0 %8148
    %8150 = vrot.lane.b32.xlu0 %v2710, 32
    %v8151 = vpop.permute.xlu0 %8150
    %8152 = vrot.lane.b32.xlu0 %v2713, 32
    %v8153 = vpop.permute.xlu0 %8152
    %8154 = vrot.lane.b32.xlu0 %v2715, 32
    %v8155 = vpop.permute.xlu0 %8154
    %8156 = vrot.lane.b32.xlu0 %v2718, 32
    %v8157 = vpop.permute.xlu0 %8156
    %8158 = vrot.lane.b32.xlu0 %v2720, 32
    %v8159 = vpop.permute.xlu0 %8158
    %8160 = vrot.lane.b32.xlu0 %v2723, 32
    %v8161 = vpop.permute.xlu0 %8160
    %8162 = vrot.lane.b32.xlu0 %v2725, 32
    %v8163 = vpop.permute.xlu0 %8162
    %8164 = vrot.lane.b32.xlu0 %v2728, 32
    %v8165 = vpop.permute.xlu0 %8164
    %8166 = vrot.lane.b32.xlu0 %v2730, 32
    %v8167 = vpop.permute.xlu0 %8166
    %8168 = vrot.lane.b32.xlu0 %v2733, 32
    %v8169 = vpop.permute.xlu0 %8168
    %8170 = vrot.lane.b32.xlu0 %v2735, 32
    %v8171 = vpop.permute.xlu0 %8170
    %8172 = vrot.lane.b32.xlu0 %v2738, 32
    %v8173 = vpop.permute.xlu0 %8172
    %8174 = vrot.lane.b32.xlu0 %v2740, 32
    %v8175 = vpop.permute.xlu0 %8174
    %8176 = vrot.lane.b32.xlu0 %v2743, 32
    %v8177 = vpop.permute.xlu0 %8176
    %8178 = vrot.lane.b32.xlu0 %v2745, 32
    %v8179 = vpop.permute.xlu0 %8178
    %8180 = vrot.lane.b32.xlu0 %v2748, 32
    %v8181 = vpop.permute.xlu0 %8180
    %8182 = vrot.lane.b32.xlu0 %v2750, 32
    %v8183 = vpop.permute.xlu0 %8182
    %8184 = vrot.lane.b32.xlu0 %v2753, 32
    %v8185 = vpop.permute.xlu0 %8184
    %8186 = vrot.lane.b32.xlu0 %v2755, 32
    %v8187 = vpop.permute.xlu0 %8186
    %8188 = vrot.lane.b32.xlu0 %v5686, 32
    %v8189 = vpop.permute.xlu0 %8188
    %8190 = vrot.lane.b32.xlu0 %v5688, 32
    %v8191 = vpop.permute.xlu0 %8190
    %8192 = vrot.lane.b32.xlu0 %v8094, 32
    %v8193 = vpop.permute.xlu0 %8192
    %8194 = vrot.lane.b32.xlu0 %v8096, 32
    %v8195 = vpop.permute.xlu0 %8194
    %8196 = vrot.lane.b32.xlu0 %v2768, 32
    %v8197 = vpop.permute.xlu0 %8196
    %8198 = vrot.lane.b32.xlu0 %v2770, 32
    %v8199 = vpop.permute.xlu0 %8198
    %8200 = vrot.lane.b32.xlu0 %v2773, 32
    %v8201 = vpop.permute.xlu0 %8200
    %8202 = vrot.lane.b32.xlu0 %v2775, 32
    %v8203 = vpop.permute.xlu0 %8202
    %8204 = vrot.lane.b32.xlu0 %v2778, 32
    %v8205 = vpop.permute.xlu0 %8204
    %8206 = vrot.lane.b32.xlu0 %v2780, 32
    %v8207 = vpop.permute.xlu0 %8206
    %8208 = vrot.lane.b32.xlu0 %v2783, 32
    %v8209 = vpop.permute.xlu0 %8208
    %8210 = vrot.lane.b32.xlu0 %v2785, 32
    %v8211 = vpop.permute.xlu0 %8210
    %8212 = vrot.lane.b32.xlu0 %v2788, 32
    %v8213 = vpop.permute.xlu0 %8212
    %8214 = vrot.lane.b32.xlu0 %v2790, 32
    %v8215 = vpop.permute.xlu0 %8214
    %8216 = vrot.lane.b32.xlu0 %v2793, 32
    %v8217 = vpop.permute.xlu0 %8216
    %8218 = vrot.lane.b32.xlu0 %v2795, 32
    %v8219 = vpop.permute.xlu0 %8218
    %8220 = vrot.lane.b32.xlu0 %v2798, 32
    %v8221 = vpop.permute.xlu0 %8220
    %8222 = vrot.lane.b32.xlu0 %v2800, 32
    %v8223 = vpop.permute.xlu0 %8222
    %8224 = vrot.lane.b32.xlu0 %v2803, 32
    %v8225 = vpop.permute.xlu0 %8224
    %8226 = vrot.lane.b32.xlu0 %v2805, 32
    %v8227 = vpop.permute.xlu0 %8226
    %8228 = vrot.lane.b32.xlu0 %v2808, 32
    %v8229 = vpop.permute.xlu0 %8228
    %8230 = vrot.lane.b32.xlu0 %v2810, 32
    %v8231 = vpop.permute.xlu0 %8230
    %8232 = vrot.lane.b32.xlu0 %v2813, 32
    %v8233 = vpop.permute.xlu0 %8232
    %8234 = vrot.lane.b32.xlu0 %v2815, 32
    %v8235 = vpop.permute.xlu0 %8234
    %8236 = vrot.lane.b32.xlu0 %v2818, 32
    %v8237 = vpop.permute.xlu0 %8236
    %8238 = vrot.lane.b32.xlu0 %v2820, 32
    %v8239 = vpop.permute.xlu0 %8238
    %8240 = vrot.lane.b32.xlu0 %v2823, 32
    %v8241 = vpop.permute.xlu0 %8240
    %8242 = vrot.lane.b32.xlu0 %v2825, 32
    %v8243 = vpop.permute.xlu0 %8242
    %8244 = vrot.lane.b32.xlu0 %v2828, 32
    %v8245 = vpop.permute.xlu0 %8244
    %8246 = vrot.lane.b32.xlu0 %v2830, 32
    %v8247 = vpop.permute.xlu0 %8246
    %8248 = vrot.lane.b32.xlu0 %v2833, 32
    %v8249 = vpop.permute.xlu0 %8248
    %8250 = vrot.lane.b32.xlu0 %v2835, 32
    %v8251 = vpop.permute.xlu0 %8250
    %8252 = vrot.lane.b32.xlu0 %v5691, 32
    %v8253 = vpop.permute.xlu0 %8252
    %8254 = vrot.lane.b32.xlu0 %v5693, 32
    %v8255 = vpop.permute.xlu0 %8254
    %8256 = vrot.lane.b32.xlu0 %v8099, 32
    %v8257 = vpop.permute.xlu0 %8256
    %8258 = vrot.lane.b32.xlu0 %v8101, 32
    %v8259 = vpop.permute.xlu0 %8258
    %8260 = vrot.lane.b32.xlu0 %v2848, 32
    %v8261 = vpop.permute.xlu0 %8260
    %8262 = vrot.lane.b32.xlu0 %v2850, 32
    %v8263 = vpop.permute.xlu0 %8262
    %8264 = vrot.lane.b32.xlu0 %v2853, 32
    %v8265 = vpop.permute.xlu0 %8264
    %8266 = vrot.lane.b32.xlu0 %v2855, 32
    %v8267 = vpop.permute.xlu0 %8266
    %8268 = vrot.lane.b32.xlu0 %v2858, 32
    %v8269 = vpop.permute.xlu0 %8268
    %8270 = vrot.lane.b32.xlu0 %v2860, 32
    %v8271 = vpop.permute.xlu0 %8270
    %8272 = vrot.lane.b32.xlu0 %v2863, 32
    %v8273 = vpop.permute.xlu0 %8272
    %8274 = vrot.lane.b32.xlu0 %v2865, 32
    %v8275 = vpop.permute.xlu0 %8274
    %8276 = vrot.lane.b32.xlu0 %v2868, 32
    %v8277 = vpop.permute.xlu0 %8276
    %8278 = vrot.lane.b32.xlu0 %v2870, 32
    %v8279 = vpop.permute.xlu0 %8278
    %8280 = vrot.lane.b32.xlu0 %v2873, 32
    %v8281 = vpop.permute.xlu0 %8280
    %8282 = vrot.lane.b32.xlu0 %v2875, 32
    %v8283 = vpop.permute.xlu0 %8282
    %8284 = vrot.lane.b32.xlu0 %v2878, 32
    %v8285 = vpop.permute.xlu0 %8284
    %8286 = vrot.lane.b32.xlu0 %v2880, 32
    %v8287 = vpop.permute.xlu0 %8286
    %8288 = vrot.lane.b32.xlu0 %v2883, 32
    %v8289 = vpop.permute.xlu0 %8288
    %8290 = vrot.lane.b32.xlu0 %v2885, 32
    %v8291 = vpop.permute.xlu0 %8290
    %8292 = vrot.lane.b32.xlu0 %v2888, 32
    %v8293 = vpop.permute.xlu0 %8292
    %8294 = vrot.lane.b32.xlu0 %v2890, 32
    %v8295 = vpop.permute.xlu0 %8294
    %8296 = vrot.lane.b32.xlu0 %v2893, 32
    %v8297 = vpop.permute.xlu0 %8296
    %8298 = vrot.lane.b32.xlu0 %v2895, 32
    %v8299 = vpop.permute.xlu0 %8298
    %8300 = vrot.lane.b32.xlu0 %v2898, 32
    %v8301 = vpop.permute.xlu0 %8300
    %8302 = vrot.lane.b32.xlu0 %v2900, 32
    %v8303 = vpop.permute.xlu0 %8302
    %8304 = vrot.lane.b32.xlu0 %v2903, 32
    %v8305 = vpop.permute.xlu0 %8304
    %8306 = vrot.lane.b32.xlu0 %v2905, 32
    %v8307 = vpop.permute.xlu0 %8306
    %8308 = vrot.lane.b32.xlu0 %v2908, 32
    %v8309 = vpop.permute.xlu0 %8308
    %8310 = vrot.lane.b32.xlu0 %v2910, 32
    %v8311 = vpop.permute.xlu0 %8310
    %8312 = vrot.lane.b32.xlu0 %v2913, 32
    %v8313 = vpop.permute.xlu0 %8312
    %8314 = vrot.lane.b32.xlu0 %v2915, 32
    %v8315 = vpop.permute.xlu0 %8314
    %8316 = vrot.lane.b32.xlu0 %v5696, 32
    %v8317 = vpop.permute.xlu0 %8316
    %8318 = vrot.lane.b32.xlu0 %v5698, 32
    %v8319 = vpop.permute.xlu0 %8318
    %8320 = vrot.lane.b32.xlu0 %v8104, 32
    %v8321 = vpop.permute.xlu0 %8320
    %8322 = vrot.lane.b32.xlu0 %v8106, 32
    %v8323 = vpop.permute.xlu0 %8322
    %8324 = vrot.lane.b32.xlu0 %v2928, 32
    %v8325 = vpop.permute.xlu0 %8324
    %8326 = vrot.lane.b32.xlu0 %v2930, 32
    %v8327 = vpop.permute.xlu0 %8326
    %8328 = vrot.lane.b32.xlu0 %v2933, 32
    %v8329 = vpop.permute.xlu0 %8328
    %8330 = vrot.lane.b32.xlu0 %v2935, 32
    %v8331 = vpop.permute.xlu0 %8330
    %8332 = vrot.lane.b32.xlu0 %v2938, 32
    %v8333 = vpop.permute.xlu0 %8332
    %8334 = vrot.lane.b32.xlu0 %v2940, 32
    %v8335 = vpop.permute.xlu0 %8334
    %8336 = vrot.lane.b32.xlu0 %v2943, 32
    %v8337 = vpop.permute.xlu0 %8336
    %8338 = vrot.lane.b32.xlu0 %v2945, 32
    %v8339 = vpop.permute.xlu0 %8338
    %8340 = vrot.lane.b32.xlu0 %v2948, 32
    %v8341 = vpop.permute.xlu0 %8340
    %8342 = vrot.lane.b32.xlu0 %v2950, 32
    %v8343 = vpop.permute.xlu0 %8342
    %8344 = vrot.lane.b32.xlu0 %v2953, 32
    %v8345 = vpop.permute.xlu0 %8344
    %8346 = vrot.lane.b32.xlu0 %v2955, 32
    %v8347 = vpop.permute.xlu0 %8346
    %8348 = vrot.lane.b32.xlu0 %v2958, 32
    %v8349 = vpop.permute.xlu0 %8348
    %8350 = vrot.lane.b32.xlu0 %v2960, 32
    %v8351 = vpop.permute.xlu0 %8350
    %8352 = vrot.lane.b32.xlu0 %v2963, 32
    %v8353 = vpop.permute.xlu0 %8352
    %8354 = vrot.lane.b32.xlu0 %v2965, 32
    %v8355 = vpop.permute.xlu0 %8354
    %8356 = vrot.lane.b32.xlu0 %v2968, 32
    %v8357 = vpop.permute.xlu0 %8356
    %8358 = vrot.lane.b32.xlu0 %v2970, 32
    %v8359 = vpop.permute.xlu0 %8358
    %8360 = vrot.lane.b32.xlu0 %v2973, 32
    %v8361 = vpop.permute.xlu0 %8360
    %8362 = vrot.lane.b32.xlu0 %v2975, 32
    %v8363 = vpop.permute.xlu0 %8362
    %8364 = vrot.lane.b32.xlu0 %v2978, 32
    %v8365 = vpop.permute.xlu0 %8364
    %8366 = vrot.lane.b32.xlu0 %v2980, 32
    %v8367 = vpop.permute.xlu0 %8366
    %8368 = vrot.lane.b32.xlu0 %v2983, 32
    %v8369 = vpop.permute.xlu0 %8368
    %8370 = vrot.lane.b32.xlu0 %v2985, 32
    %v8371 = vpop.permute.xlu0 %8370
    %8372 = vrot.lane.b32.xlu0 %v2988, 32
    %v8373 = vpop.permute.xlu0 %8372
    %8374 = vrot.lane.b32.xlu0 %v2990, 32
    %v8375 = vpop.permute.xlu0 %8374
    %8376 = vrot.lane.b32.xlu0 %v2993, 32
    %v8377 = vpop.permute.xlu0 %8376
    %8378 = vrot.lane.b32.xlu0 %v2995, 32
    %v8379 = vpop.permute.xlu0 %8378
    %8380 = vrot.lane.b32.xlu0 %v5701, 32
    %v8381 = vpop.permute.xlu0 %8380
    %8382 = vrot.lane.b32.xlu0 %v5703, 32
    %v8383 = vpop.permute.xlu0 %8382
    %8384 = vrot.lane.b32.xlu0 %v8109, 32
    %v8385 = vpop.permute.xlu0 %8384
    %8386 = vrot.lane.b32.xlu0 %v8111, 32
    %v8387 = vpop.permute.xlu0 %8386
    %8388 = vrot.lane.b32.xlu0 %v3008, 32
    %v8389 = vpop.permute.xlu0 %8388
    %8390 = vrot.lane.b32.xlu0 %v3010, 32
    %v8391 = vpop.permute.xlu0 %8390
    %8392 = vrot.lane.b32.xlu0 %v3013, 32
    %v8393 = vpop.permute.xlu0 %8392
    %8394 = vrot.lane.b32.xlu0 %v3015, 32
    %v8395 = vpop.permute.xlu0 %8394
    %8396 = vrot.lane.b32.xlu0 %v3018, 32
    %v8397 = vpop.permute.xlu0 %8396
    %8398 = vrot.lane.b32.xlu0 %v3020, 32
    %v8399 = vpop.permute.xlu0 %8398
    %8400 = vrot.lane.b32.xlu0 %v3023, 32
    %v8401 = vpop.permute.xlu0 %8400
    %8402 = vrot.lane.b32.xlu0 %v3025, 32
    %v8403 = vpop.permute.xlu0 %8402
    %8404 = vrot.lane.b32.xlu0 %v3028, 32
    %v8405 = vpop.permute.xlu0 %8404
    %8406 = vrot.lane.b32.xlu0 %v3030, 32
    %v8407 = vpop.permute.xlu0 %8406
    %8408 = vrot.lane.b32.xlu0 %v3033, 32
    %v8409 = vpop.permute.xlu0 %8408
    %8410 = vrot.lane.b32.xlu0 %v3035, 32
    %v8411 = vpop.permute.xlu0 %8410
    %8412 = vrot.lane.b32.xlu0 %v3038, 32
    %v8413 = vpop.permute.xlu0 %8412
    %8414 = vrot.lane.b32.xlu0 %v3040, 32
    %v8415 = vpop.permute.xlu0 %8414
    %8416 = vrot.lane.b32.xlu0 %v3043, 32
    %v8417 = vpop.permute.xlu0 %8416
    %8418 = vrot.lane.b32.xlu0 %v3045, 32
    %v8419 = vpop.permute.xlu0 %8418
    %8420 = vrot.lane.b32.xlu0 %v3048, 32
    %v8421 = vpop.permute.xlu0 %8420
    %8422 = vrot.lane.b32.xlu0 %v3050, 32
    %v8423 = vpop.permute.xlu0 %8422
    %8424 = vrot.lane.b32.xlu0 %v3053, 32
    %v8425 = vpop.permute.xlu0 %8424
    %8426 = vrot.lane.b32.xlu0 %v3055, 32
    %v8427 = vpop.permute.xlu0 %8426
    %8428 = vrot.lane.b32.xlu0 %v3058, 32
    %v8429 = vpop.permute.xlu0 %8428
    %8430 = vrot.lane.b32.xlu0 %v3060, 32
    %v8431 = vpop.permute.xlu0 %8430
    %8432 = vrot.lane.b32.xlu0 %v3063, 32
    %v8433 = vpop.permute.xlu0 %8432
    %8434 = vrot.lane.b32.xlu0 %v3065, 32
    %v8435 = vpop.permute.xlu0 %8434
    %8436 = vrot.lane.b32.xlu0 %v3068, 32
    %v8437 = vpop.permute.xlu0 %8436
    %8438 = vrot.lane.b32.xlu0 %v3070, 32
    %v8439 = vpop.permute.xlu0 %8438
    %8440 = vrot.lane.b32.xlu0 %v3073, 32
    %v8441 = vpop.permute.xlu0 %8440
    %8442 = vrot.lane.b32.xlu0 %v3075, 32
    %v8443 = vpop.permute.xlu0 %8442
    %8444 = vrot.lane.b32.xlu0 %v5706, 32
    %v8445 = vpop.permute.xlu0 %8444
    %8446 = vrot.lane.b32.xlu0 %v5708, 32
    %v8447 = vpop.permute.xlu0 %8446
    %8448 = vrot.lane.b32.xlu0 %v8114, 32
    %v8449 = vpop.permute.xlu0 %8448
    %8450 = vrot.lane.b32.xlu0 %v8116, 32
    %v8451 = vpop.permute.xlu0 %8450
    %8452 = vrot.lane.b32.xlu0 %v3088, 32
    %v8453 = vpop.permute.xlu0 %8452
    %8454 = vrot.lane.b32.xlu0 %v3090, 32
    %v8455 = vpop.permute.xlu0 %8454
    %8456 = vrot.lane.b32.xlu0 %v3093, 32
    %v8457 = vpop.permute.xlu0 %8456
    %8458 = vrot.lane.b32.xlu0 %v3095, 32
    %v8459 = vpop.permute.xlu0 %8458
    %8460 = vrot.lane.b32.xlu0 %v3098, 32
    %v8461 = vpop.permute.xlu0 %8460
    %8462 = vrot.lane.b32.xlu0 %v3100, 32
    %v8463 = vpop.permute.xlu0 %8462
    %8464 = vrot.lane.b32.xlu0 %v3103, 32
    %v8465 = vpop.permute.xlu0 %8464
    %8466 = vrot.lane.b32.xlu0 %v3105, 32
    %v8467 = vpop.permute.xlu0 %8466
    %8468 = vrot.lane.b32.xlu0 %v3108, 32
    %v8469 = vpop.permute.xlu0 %8468
    %8470 = vrot.lane.b32.xlu0 %v3110, 32
    %v8471 = vpop.permute.xlu0 %8470
    %8472 = vrot.lane.b32.xlu0 %v3113, 32
    %v8473 = vpop.permute.xlu0 %8472
    %8474 = vrot.lane.b32.xlu0 %v3115, 32
    %v8475 = vpop.permute.xlu0 %8474
    %8476 = vrot.lane.b32.xlu0 %v3118, 32
    %v8477 = vpop.permute.xlu0 %8476
    %8478 = vrot.lane.b32.xlu0 %v3120, 32
    %v8479 = vpop.permute.xlu0 %8478
    %8480 = vrot.lane.b32.xlu0 %v3123, 32
    %v8481 = vpop.permute.xlu0 %8480
    %8482 = vrot.lane.b32.xlu0 %v3125, 32
    %v8483 = vpop.permute.xlu0 %8482
    %8484 = vrot.lane.b32.xlu0 %v3128, 32
    %v8485 = vpop.permute.xlu0 %8484
    %8486 = vrot.lane.b32.xlu0 %v3130, 32
    %v8487 = vpop.permute.xlu0 %8486
    %8488 = vrot.lane.b32.xlu0 %v3133, 32
    %v8489 = vpop.permute.xlu0 %8488
    %8490 = vrot.lane.b32.xlu0 %v3135, 32
    %v8491 = vpop.permute.xlu0 %8490
    %8492 = vrot.lane.b32.xlu0 %v3138, 32
    %v8493 = vpop.permute.xlu0 %8492
    %8494 = vrot.lane.b32.xlu0 %v3140, 32
    %v8495 = vpop.permute.xlu0 %8494
    %8496 = vrot.lane.b32.xlu0 %v3143, 32
    %v8497 = vpop.permute.xlu0 %8496
    %8498 = vrot.lane.b32.xlu0 %v3145, 32
    %v8499 = vpop.permute.xlu0 %8498
    %8500 = vrot.lane.b32.xlu0 %v3148, 32
    %v8501 = vpop.permute.xlu0 %8500
    %8502 = vrot.lane.b32.xlu0 %v3150, 32
    %v8503 = vpop.permute.xlu0 %8502
    %8504 = vrot.lane.b32.xlu0 %v3153, 32
    %v8505 = vpop.permute.xlu0 %8504
    %8506 = vrot.lane.b32.xlu0 %v3155, 32
    %v8507 = vpop.permute.xlu0 %8506
    %8508 = vrot.lane.b32.xlu0 %v5711, 32
    %v8509 = vpop.permute.xlu0 %8508
    %8510 = vrot.lane.b32.xlu0 %v5713, 32
    %v8511 = vpop.permute.xlu0 %8510
    %8512 = vrot.lane.b32.xlu0 %v8119, 32
    %v8513 = vpop.permute.xlu0 %8512
    %8514 = vrot.lane.b32.xlu0 %v8121, 32
    %v8515 = vpop.permute.xlu0 %8514
    %8516 = vrot.lane.b32.xlu0 %v3168, 32
    %v8517 = vpop.permute.xlu0 %8516
    %8518 = vrot.lane.b32.xlu0 %v3170, 32
    %v8519 = vpop.permute.xlu0 %8518
    %8520 = vrot.lane.b32.xlu0 %v3173, 32
    %v8521 = vpop.permute.xlu0 %8520
    %8522 = vrot.lane.b32.xlu0 %v3175, 32
    %v8523 = vpop.permute.xlu0 %8522
    %8524 = vrot.lane.b32.xlu0 %v3178, 32
    %v8525 = vpop.permute.xlu0 %8524
    %8526 = vrot.lane.b32.xlu0 %v3180, 32
    %v8527 = vpop.permute.xlu0 %8526
    %8528 = vrot.lane.b32.xlu0 %v3183, 32
    %v8529 = vpop.permute.xlu0 %8528
    %8530 = vrot.lane.b32.xlu0 %v3185, 32
    %v8531 = vpop.permute.xlu0 %8530
    %8532 = vrot.lane.b32.xlu0 %v3188, 32
    %v8533 = vpop.permute.xlu0 %8532
    %8534 = vrot.lane.b32.xlu0 %v3190, 32
    %v8535 = vpop.permute.xlu0 %8534
    %8536 = vrot.lane.b32.xlu0 %v3193, 32
    %v8537 = vpop.permute.xlu0 %8536
    %8538 = vrot.lane.b32.xlu0 %v3195, 32
    %v8539 = vpop.permute.xlu0 %8538
    %8540 = vrot.lane.b32.xlu0 %v3198, 32
    %v8541 = vpop.permute.xlu0 %8540
    %8542 = vrot.lane.b32.xlu0 %v3200, 32
    %v8543 = vpop.permute.xlu0 %8542
    %8544 = vrot.lane.b32.xlu0 %v3203, 32
    %v8545 = vpop.permute.xlu0 %8544
    %8546 = vrot.lane.b32.xlu0 %v3205, 32
    %v8547 = vpop.permute.xlu0 %8546
    %8548 = vrot.lane.b32.xlu0 %v3208, 32
    %v8549 = vpop.permute.xlu0 %8548
    %8550 = vrot.lane.b32.xlu0 %v3210, 32
    %v8551 = vpop.permute.xlu0 %8550
    %8552 = vrot.lane.b32.xlu0 %v3213, 32
    %v8553 = vpop.permute.xlu0 %8552
    %8554 = vrot.lane.b32.xlu0 %v3215, 32
    %v8555 = vpop.permute.xlu0 %8554
    %8556 = vrot.lane.b32.xlu0 %v3218, 32
    %v8557 = vpop.permute.xlu0 %8556
    %8558 = vrot.lane.b32.xlu0 %v3220, 32
    %v8559 = vpop.permute.xlu0 %8558
    %8560 = vrot.lane.b32.xlu0 %v3223, 32
    %v8561 = vpop.permute.xlu0 %8560
    %8562 = vrot.lane.b32.xlu0 %v3225, 32
    %v8563 = vpop.permute.xlu0 %8562
    %8564 = vrot.lane.b32.xlu0 %v3228, 32
    %v8565 = vpop.permute.xlu0 %8564
    %8566 = vrot.lane.b32.xlu0 %v3230, 32
    %v8567 = vpop.permute.xlu0 %8566
    %8568 = vrot.lane.b32.xlu0 %v3233, 32
    %v8569 = vpop.permute.xlu0 %8568
    %8570 = vrot.lane.b32.xlu0 %v3235, 32
    %v8571 = vpop.permute.xlu0 %8570
    %8572 = vrot.lane.b32.xlu0 %v5716, 32
    %v8573 = vpop.permute.xlu0 %8572
    %8574 = vrot.lane.b32.xlu0 %v5718, 32
    %v8575 = vpop.permute.xlu0 %8574
    %8576 = vrot.lane.b32.xlu0 %v8124, 32
    %v8577 = vpop.permute.xlu0 %8576
    %8578 = vrot.lane.b32.xlu0 %v8126, 32
    %v8579 = vpop.permute.xlu0 %8578
    %8580 = vrot.lane.b32.xlu0 %v3248, 32
    %v8581 = vpop.permute.xlu0 %8580
    %8582 = vrot.lane.b32.xlu0 %v3250, 32
    %v8583 = vpop.permute.xlu0 %8582
    %8584 = vrot.lane.b32.xlu0 %v3253, 32
    %v8585 = vpop.permute.xlu0 %8584
    %8586 = vrot.lane.b32.xlu0 %v3255, 32
    %v8587 = vpop.permute.xlu0 %8586
    %8588 = vrot.lane.b32.xlu0 %v3258, 32
    %v8589 = vpop.permute.xlu0 %8588
    %8590 = vrot.lane.b32.xlu0 %v3260, 32
    %v8591 = vpop.permute.xlu0 %8590
    %8592 = vrot.lane.b32.xlu0 %v3263, 32
    %v8593 = vpop.permute.xlu0 %8592
    %8594 = vrot.lane.b32.xlu0 %v3265, 32
    %v8595 = vpop.permute.xlu0 %8594
    %8596 = vrot.lane.b32.xlu0 %v3268, 32
    %v8597 = vpop.permute.xlu0 %8596
    %8598 = vrot.lane.b32.xlu0 %v3270, 32
    %v8599 = vpop.permute.xlu0 %8598
    %8600 = vrot.lane.b32.xlu0 %v3273, 32
    %v8601 = vpop.permute.xlu0 %8600
    %8602 = vrot.lane.b32.xlu0 %v3275, 32
    %v8603 = vpop.permute.xlu0 %8602
    %8604 = vrot.lane.b32.xlu0 %v3278, 32
    %v8605 = vpop.permute.xlu0 %8604
    %8606 = vrot.lane.b32.xlu0 %v3280, 32
    %v8607 = vpop.permute.xlu0 %8606
    %8608 = vrot.lane.b32.xlu0 %v3283, 32
    %v8609 = vpop.permute.xlu0 %8608
    %8610 = vrot.lane.b32.xlu0 %v3285, 32
    %v8611 = vpop.permute.xlu0 %8610
    %8612 = vrot.lane.b32.xlu0 %v3288, 32
    %v8613 = vpop.permute.xlu0 %8612
    %8614 = vrot.lane.b32.xlu0 %v3290, 32
    %v8615 = vpop.permute.xlu0 %8614
    %8616 = vrot.lane.b32.xlu0 %v3293, 32
    %v8617 = vpop.permute.xlu0 %8616
    %8618 = vrot.lane.b32.xlu0 %v3295, 32
    %v8619 = vpop.permute.xlu0 %8618
    %8620 = vrot.lane.b32.xlu0 %v3298, 32
    %v8621 = vpop.permute.xlu0 %8620
    %8622 = vrot.lane.b32.xlu0 %v3300, 32
    %v8623 = vpop.permute.xlu0 %8622
    %8624 = vrot.lane.b32.xlu0 %v3303, 32
    %v8625 = vpop.permute.xlu0 %8624
    %8626 = vrot.lane.b32.xlu0 %v3305, 32
    %v8627 = vpop.permute.xlu0 %8626
    %8628 = vrot.lane.b32.xlu0 %v3308, 32
    %v8629 = vpop.permute.xlu0 %8628
    %8630 = vrot.lane.b32.xlu0 %v3310, 32
    %v8631 = vpop.permute.xlu0 %8630
    %8632 = vrot.lane.b32.xlu0 %v3313, 32
    %v8633 = vpop.permute.xlu0 %8632
    %8634 = vrot.lane.b32.xlu0 %v3315, 32
    %v8635 = vpop.permute.xlu0 %8634
    %8636 = vrot.lane.b32.xlu0 %v5721, 32
    %v8637 = vpop.permute.xlu0 %8636
    %8638 = vrot.lane.b32.xlu0 %v5723, 32
    %v8639 = vpop.permute.xlu0 %8638
    %8640 = vrot.lane.b32.xlu0 %v8129, 32
    %v8641 = vpop.permute.xlu0 %8640
    %8642 = vrot.lane.b32.xlu0 %v8131, 32
    %v8643 = vpop.permute.xlu0 %8642
    %vm8900 = vcmask 31744
    %v8901 = vsel %vm8900, %v450, %v1908
    %v8902 = vsel %vm8900, %v451, %v1910
    %v8903 = vsel %vm8900, %v453, %v1912
    %v8904 = vsel %vm8900, %v454, %v1914
    %v8905 = vsel %vm8900, %v456, %v1916
    %v8906 = vsel %vm8900, %v457, %v1918
    %v8907 = vsel %vm8900, %v459, %v1920
    %v8908 = vsel %vm8900, %v460, %v1922
    %v8909 = vsel %vm8900, %v462, %v1924
    %v8910 = vsel %vm8900, %v463, %v1926
    %v8911 = vsel %vm8900, %v465, %v1928
    %v8912 = vsel %vm8900, %v466, %v1930
    %v8913 = vsel %vm8900, %v468, %v1932
    %v8914 = vsel %vm8900, %v469, %v1934
    %v8915 = vsel %vm8900, %v471, %v1936
    %v8916 = vsel %vm8900, %v472, %v1938
    %v8917 = vsel %vm8900, %v474, %v1940
    %v8918 = vsel %vm8900, %v475, %v1942
    %v8919 = vsel %vm8900, %v477, %v1944
    %v8920 = vsel %vm8900, %v478, %v1946
    %v8921 = vsel %vm8900, %v480, %v1948
    %v8922 = vsel %vm8900, %v481, %v1950
    %v8923 = vsel %vm8900, %v483, %v1952
    %v8924 = vsel %vm8900, %v484, %v1954
    %v8925 = vsel %vm8900, %v486, %v1956
    %v8926 = vsel %vm8900, %v487, %v1958
    %v8927 = vsel %vm8900, %v489, %v1960
    %v8928 = vsel %vm8900, %v490, %v1962
    %v8929 = vsel %vm8900, %v492, %v1964
    %v8930 = vsel %vm8900, %v493, %v1966
    %v8931 = vsel %vm8900, %v495, %v1968
    %v8932 = vsel %vm8900, %v496, %v1970
    %v8933 = vsel %vm8900, %v504, %v1972
    %v8934 = vsel %vm8900, %v505, %v1974
    %v8935 = vsel %vm8900, %v507, %v1976
    %v8936 = vsel %vm8900, %v508, %v1978
    %v8937 = vsel %vm8900, %v510, %v1980
    %v8938 = vsel %vm8900, %v511, %v1982
    %v8939 = vsel %vm8900, %v513, %v1984
    %v8940 = vsel %vm8900, %v514, %v1986
    %v8941 = vsel %vm8900, %v516, %v1988
    %v8942 = vsel %vm8900, %v517, %v1990
    %v8943 = vsel %vm8900, %v519, %v1992
    %v8944 = vsel %vm8900, %v520, %v1994
    %v8945 = vsel %vm8900, %v522, %v1996
    %v8946 = vsel %vm8900, %v523, %v1998
    %v8947 = vsel %vm8900, %v525, %v2000
    %v8948 = vsel %vm8900, %v526, %v2002
    %v8949 = vsel %vm8900, %v528, %v2004
    %v8950 = vsel %vm8900, %v529, %v2006
    %v8951 = vsel %vm8900, %v531, %v2008
    %v8952 = vsel %vm8900, %v532, %v2010
    %v8953 = vsel %vm8900, %v534, %v2012
    %v8954 = vsel %vm8900, %v535, %v2014
    %v8955 = vsel %vm8900, %v537, %v2016
    %v8956 = vsel %vm8900, %v538, %v2018
    %v8957 = vsel %vm8900, %v540, %v2020
    %v8958 = vsel %vm8900, %v541, %v2022
    %v8959 = vsel %vm8900, %v543, %v2024
    %v8960 = vsel %vm8900, %v544, %v2026
    %v8961 = vsel %vm8900, %v546, %v2028
    %v8962 = vsel %vm8900, %v547, %v2030
    %v8963 = vsel %vm8900, %v549, %v2032
    %v8964 = vsel %vm8900, %v550, %v2034
    %v8965 = vsel %vm8900, %v558, %v2036
    %v8966 = vsel %vm8900, %v559, %v2038
    %v8967 = vsel %vm8900, %v561, %v2040
    %v8968 = vsel %vm8900, %v562, %v2042
    %v8969 = vsel %vm8900, %v564, %v2044
    %v8970 = vsel %vm8900, %v565, %v2046
    %v8971 = vsel %vm8900, %v567, %v2048
    %v8972 = vsel %vm8900, %v568, %v2050
    %v8973 = vsel %vm8900, %v570, %v2052
    %v8974 = vsel %vm8900, %v571, %v2054
    %v8975 = vsel %vm8900, %v573, %v2056
    %v8976 = vsel %vm8900, %v574, %v2058
    %v8977 = vsel %vm8900, %v576, %v2060
    %v8978 = vsel %vm8900, %v577, %v2062
    %v8979 = vsel %vm8900, %v579, %v2064
    %v8980 = vsel %vm8900, %v580, %v2066
    %v8981 = vsel %vm8900, %v582, %v2068
    %v8982 = vsel %vm8900, %v583, %v2070
    %v8983 = vsel %vm8900, %v585, %v2072
    %v8984 = vsel %vm8900, %v586, %v2074
    %v8985 = vsel %vm8900, %v588, %v2076
    %v8986 = vsel %vm8900, %v589, %v2078
    %v8987 = vsel %vm8900, %v591, %v2080
    %v8988 = vsel %vm8900, %v592, %v2082
    %v8989 = vsel %vm8900, %v594, %v2084
    %v8990 = vsel %vm8900, %v595, %v2086
    %v8991 = vsel %vm8900, %v597, %v2088
    %v8992 = vsel %vm8900, %v598, %v2090
    %v8993 = vsel %vm8900, %v600, %v2092
    %v8994 = vsel %vm8900, %v601, %v2094
    %v8995 = vsel %vm8900, %v603, %v2096
    %v8996 = vsel %vm8900, %v604, %v2098
    %v8997 = vsel %vm8900, %v612, %v2100
    %v8998 = vsel %vm8900, %v613, %v2102
    %v8999 = vsel %vm8900, %v615, %v2104
    %v9000 = vsel %vm8900, %v616, %v2106
    %v9001 = vsel %vm8900, %v618, %v2108
    %v9002 = vsel %vm8900, %v619, %v2110
    %v9003 = vsel %vm8900, %v621, %v2112
    %v9004 = vsel %vm8900, %v622, %v2114
    %v9005 = vsel %vm8900, %v624, %v2116
    %v9006 = vsel %vm8900, %v625, %v2118
    %v9007 = vsel %vm8900, %v627, %v2120
    %v9008 = vsel %vm8900, %v628, %v2122
    %v9009 = vsel %vm8900, %v630, %v2124
    %v9010 = vsel %vm8900, %v631, %v2126
    %v9011 = vsel %vm8900, %v633, %v2128
    %v9012 = vsel %vm8900, %v634, %v2130
    %v9013 = vsel %vm8900, %v636, %v2132
    %v9014 = vsel %vm8900, %v637, %v2134
    %v9015 = vsel %vm8900, %v639, %v2136
    %v9016 = vsel %vm8900, %v640, %v2138
    %v9017 = vsel %vm8900, %v642, %v2140
    %v9018 = vsel %vm8900, %v643, %v2142
    %v9019 = vsel %vm8900, %v645, %v2144
    %v9020 = vsel %vm8900, %v646, %v2146
    %v9021 = vsel %vm8900, %v648, %v2148
    %v9022 = vsel %vm8900, %v649, %v2150
    %v9023 = vsel %vm8900, %v651, %v2152
    %v9024 = vsel %vm8900, %v652, %v2154
    %v9025 = vsel %vm8900, %v654, %v2156
    %v9026 = vsel %vm8900, %v655, %v2158
    %v9027 = vsel %vm8900, %v657, %v2160
    %v9028 = vsel %vm8900, %v658, %v2162
    %v9029 = vsel %vm8900, %v666, %v2164
    %v9030 = vsel %vm8900, %v667, %v2166
    %v9031 = vsel %vm8900, %v669, %v2168
    %v9032 = vsel %vm8900, %v670, %v2170
    %v9033 = vsel %vm8900, %v672, %v2172
    %v9034 = vsel %vm8900, %v673, %v2174
    %v9035 = vsel %vm8900, %v675, %v2176
    %v9036 = vsel %vm8900, %v676, %v2178
    %v9037 = vsel %vm8900, %v678, %v2180
    %v9038 = vsel %vm8900, %v679, %v2182
    %v9039 = vsel %vm8900, %v681, %v2184
    %v9040 = vsel %vm8900, %v682, %v2186
    %v9041 = vsel %vm8900, %v684, %v2188
    %v9042 = vsel %vm8900, %v685, %v2190
    %v9043 = vsel %vm8900, %v687, %v2192
    %v9044 = vsel %vm8900, %v688, %v2194
    %v9045 = vsel %vm8900, %v690, %v2196
    %v9046 = vsel %vm8900, %v691, %v2198
    %v9047 = vsel %vm8900, %v693, %v2200
    %v9048 = vsel %vm8900, %v694, %v2202
    %v9049 = vsel %vm8900, %v696, %v2204
    %v9050 = vsel %vm8900, %v697, %v2206
    %v9051 = vsel %vm8900, %v699, %v2208
    %v9052 = vsel %vm8900, %v700, %v2210
    %v9053 = vsel %vm8900, %v702, %v2212
    %v9054 = vsel %vm8900, %v703, %v2214
    %v9055 = vsel %vm8900, %v705, %v2216
    %v9056 = vsel %vm8900, %v706, %v2218
    %v9057 = vsel %vm8900, %v708, %v2220
    %v9058 = vsel %vm8900, %v709, %v2222
    %v9059 = vsel %vm8900, %v711, %v2224
    %v9060 = vsel %vm8900, %v712, %v2226
    %v9061 = vsel %vm8900, %v720, %v2228
    %v9062 = vsel %vm8900, %v721, %v2230
    %v9063 = vsel %vm8900, %v723, %v2232
    %v9064 = vsel %vm8900, %v724, %v2234
    %v9065 = vsel %vm8900, %v726, %v2236
    %v9066 = vsel %vm8900, %v727, %v2238
    %v9067 = vsel %vm8900, %v729, %v2240
    %v9068 = vsel %vm8900, %v730, %v2242
    %v9069 = vsel %vm8900, %v732, %v2244
    %v9070 = vsel %vm8900, %v733, %v2246
    %v9071 = vsel %vm8900, %v735, %v2248
    %v9072 = vsel %vm8900, %v736, %v2250
    %v9073 = vsel %vm8900, %v738, %v2252
    %v9074 = vsel %vm8900, %v739, %v2254
    %v9075 = vsel %vm8900, %v741, %v2256
    %v9076 = vsel %vm8900, %v742, %v2258
    %v9077 = vsel %vm8900, %v744, %v2260
    %v9078 = vsel %vm8900, %v745, %v2262
    %v9079 = vsel %vm8900, %v747, %v2264
    %v9080 = vsel %vm8900, %v748, %v2266
    %v9081 = vsel %vm8900, %v750, %v2268
    %v9082 = vsel %vm8900, %v751, %v2270
    %v9083 = vsel %vm8900, %v753, %v2272
    %v9084 = vsel %vm8900, %v754, %v2274
    %v9085 = vsel %vm8900, %v756, %v2276
    %v9086 = vsel %vm8900, %v757, %v2278
    %v9087 = vsel %vm8900, %v759, %v2280
    %v9088 = vsel %vm8900, %v760, %v2282
    %v9089 = vsel %vm8900, %v762, %v2284
    %v9090 = vsel %vm8900, %v763, %v2286
    %v9091 = vsel %vm8900, %v765, %v2288
    %v9092 = vsel %vm8900, %v766, %v2290
    %v9093 = vsel %vm8900, %v774, %v2292
    %v9094 = vsel %vm8900, %v775, %v2294
    %v9095 = vsel %vm8900, %v777, %v2296
    %v9096 = vsel %vm8900, %v778, %v2298
    %v9097 = vsel %vm8900, %v780, %v2300
    %v9098 = vsel %vm8900, %v781, %v2302
    %v9099 = vsel %vm8900, %v783, %v2304
    %v9100 = vsel %vm8900, %v784, %v2306
    %v9101 = vsel %vm8900, %v786, %v2308
    %v9102 = vsel %vm8900, %v787, %v2310
    %v9103 = vsel %vm8900, %v789, %v2312
    %v9104 = vsel %vm8900, %v790, %v2314
    %v9105 = vsel %vm8900, %v792, %v2316
    %v9106 = vsel %vm8900, %v793, %v2318
    %v9107 = vsel %vm8900, %v795, %v2320
    %v9108 = vsel %vm8900, %v796, %v2322
    %v9109 = vsel %vm8900, %v798, %v2324
    %v9110 = vsel %vm8900, %v799, %v2326
    %v9111 = vsel %vm8900, %v801, %v2328
    %v9112 = vsel %vm8900, %v802, %v2330
    %v9113 = vsel %vm8900, %v804, %v2332
    %v9114 = vsel %vm8900, %v805, %v2334
    %v9115 = vsel %vm8900, %v807, %v2336
    %v9116 = vsel %vm8900, %v808, %v2338
    %v9117 = vsel %vm8900, %v810, %v2340
    %v9118 = vsel %vm8900, %v811, %v2342
    %v9119 = vsel %vm8900, %v813, %v2344
    %v9120 = vsel %vm8900, %v814, %v2346
    %v9121 = vsel %vm8900, %v816, %v2348
    %v9122 = vsel %vm8900, %v817, %v2350
    %v9123 = vsel %vm8900, %v819, %v2352
    %v9124 = vsel %vm8900, %v820, %v2354
    %v9125 = vsel %vm8900, %v828, %v2356
    %v9126 = vsel %vm8900, %v829, %v2358
    %v9127 = vsel %vm8900, %v831, %v2360
    %v9128 = vsel %vm8900, %v832, %v2362
    %v9129 = vsel %vm8900, %v834, %v2364
    %v9130 = vsel %vm8900, %v835, %v2366
    %v9131 = vsel %vm8900, %v837, %v2368
    %v9132 = vsel %vm8900, %v838, %v2370
    %v9133 = vsel %vm8900, %v840, %v2372
    %v9134 = vsel %vm8900, %v841, %v2374
    %v9135 = vsel %vm8900, %v843, %v2376
    %v9136 = vsel %vm8900, %v844, %v2378
    %v9137 = vsel %vm8900, %v846, %v2380
    %v9138 = vsel %vm8900, %v847, %v2382
    %v9139 = vsel %vm8900, %v849, %v2384
    %v9140 = vsel %vm8900, %v850, %v2386
    %v9141 = vsel %vm8900, %v852, %v2388
    %v9142 = vsel %vm8900, %v853, %v2390
    %v9143 = vsel %vm8900, %v855, %v2392
    %v9144 = vsel %vm8900, %v856, %v2394
    %v9145 = vsel %vm8900, %v858, %v2396
    %v9146 = vsel %vm8900, %v859, %v2398
    %v9147 = vsel %vm8900, %v861, %v2400
    %v9148 = vsel %vm8900, %v862, %v2402
    %v9149 = vsel %vm8900, %v864, %v2404
    %v9150 = vsel %vm8900, %v865, %v2406
    %v9151 = vsel %vm8900, %v867, %v2408
    %v9152 = vsel %vm8900, %v868, %v2410
    %v9153 = vsel %vm8900, %v870, %v2412
    %v9154 = vsel %vm8900, %v871, %v2414
    %v9155 = vsel %vm8900, %v873, %v2416
    %v9156 = vsel %vm8900, %v874, %v2418
    %vm9157 = vcmask 64512
    %v9158 = vsel %vm9157, %v8901, %v3317
    %v9159 = vsel %vm9157, %v8902, %v3319
    %v9160 = vsel %vm9157, %v8903, %v3321
    %v9161 = vsel %vm9157, %v8904, %v3323
    %v9162 = vsel %vm9157, %v8905, %v3325
    %v9163 = vsel %vm9157, %v8906, %v3327
    %v9164 = vsel %vm9157, %v8907, %v3329
    %v9165 = vsel %vm9157, %v8908, %v3331
    %v9166 = vsel %vm9157, %v8909, %v3333
    %v9167 = vsel %vm9157, %v8910, %v3335
    %v9168 = vsel %vm9157, %v8911, %v3337
    %v9169 = vsel %vm9157, %v8912, %v3339
    %v9170 = vsel %vm9157, %v8913, %v3341
    %v9171 = vsel %vm9157, %v8914, %v3343
    %v9172 = vsel %vm9157, %v8915, %v3345
    %v9173 = vsel %vm9157, %v8916, %v3347
    %v9174 = vsel %vm9157, %v8917, %v3349
    %v9175 = vsel %vm9157, %v8918, %v3351
    %v9176 = vsel %vm9157, %v8919, %v3353
    %v9177 = vsel %vm9157, %v8920, %v3355
    %v9178 = vsel %vm9157, %v8921, %v3357
    %v9179 = vsel %vm9157, %v8922, %v3359
    %v9180 = vsel %vm9157, %v8923, %v3361
    %v9181 = vsel %vm9157, %v8924, %v3363
    %v9182 = vsel %vm9157, %v8925, %v3365
    %v9183 = vsel %vm9157, %v8926, %v3367
    %v9184 = vsel %vm9157, %v8927, %v3369
    %v9185 = vsel %vm9157, %v8928, %v3371
    %v9186 = vsel %vm9157, %v8929, %v3373
    %v9187 = vsel %vm9157, %v8930, %v3375
    %v9188 = vsel %vm9157, %v8931, %v3377
    %v9189 = vsel %vm9157, %v8932, %v3379
    %v9190 = vsel %vm9157, %v8933, %v3381
    %v9191 = vsel %vm9157, %v8934, %v3383
    %v9192 = vsel %vm9157, %v8935, %v3385
    %v9193 = vsel %vm9157, %v8936, %v3387
    %v9194 = vsel %vm9157, %v8937, %v3389
    %v9195 = vsel %vm9157, %v8938, %v3391
    %v9196 = vsel %vm9157, %v8939, %v3393
    %v9197 = vsel %vm9157, %v8940, %v3395
    %v9198 = vsel %vm9157, %v8941, %v3397
    %v9199 = vsel %vm9157, %v8942, %v3399
    %v9200 = vsel %vm9157, %v8943, %v3401
    %v9201 = vsel %vm9157, %v8944, %v3403
    %v9202 = vsel %vm9157, %v8945, %v3405
    %v9203 = vsel %vm9157, %v8946, %v3407
    %v9204 = vsel %vm9157, %v8947, %v3409
    %v9205 = vsel %vm9157, %v8948, %v3411
    %v9206 = vsel %vm9157, %v8949, %v3413
    %v9207 = vsel %vm9157, %v8950, %v3415
    %v9208 = vsel %vm9157, %v8951, %v3417
    %v9209 = vsel %vm9157, %v8952, %v3419
    %v9210 = vsel %vm9157, %v8953, %v3421
    %v9211 = vsel %vm9157, %v8954, %v3423
    %v9212 = vsel %vm9157, %v8955, %v3425
    %v9213 = vsel %vm9157, %v8956, %v3427
    %v9214 = vsel %vm9157, %v8957, %v3429
    %v9215 = vsel %vm9157, %v8958, %v3431
    %v9216 = vsel %vm9157, %v8959, %v3433
    %v9217 = vsel %vm9157, %v8960, %v3435
    %v9218 = vsel %vm9157, %v8961, %v3437
    %v9219 = vsel %vm9157, %v8962, %v3439
    %v9220 = vsel %vm9157, %v8963, %v3441
    %v9221 = vsel %vm9157, %v8964, %v3443
    %v9222 = vsel %vm9157, %v8965, %v3445
    %v9223 = vsel %vm9157, %v8966, %v3447
    %v9224 = vsel %vm9157, %v8967, %v3449
    %v9225 = vsel %vm9157, %v8968, %v3451
    %v9226 = vsel %vm9157, %v8969, %v3453
    %v9227 = vsel %vm9157, %v8970, %v3455
    %v9228 = vsel %vm9157, %v8971, %v3457
    %v9229 = vsel %vm9157, %v8972, %v3459
    %v9230 = vsel %vm9157, %v8973, %v3461
    %v9231 = vsel %vm9157, %v8974, %v3463
    %v9232 = vsel %vm9157, %v8975, %v3465
    %v9233 = vsel %vm9157, %v8976, %v3467
    %v9234 = vsel %vm9157, %v8977, %v3469
    %v9235 = vsel %vm9157, %v8978, %v3471
    %v9236 = vsel %vm9157, %v8979, %v3473
    %v9237 = vsel %vm9157, %v8980, %v3475
    %v9238 = vsel %vm9157, %v8981, %v3477
    %v9239 = vsel %vm9157, %v8982, %v3479
    %v9240 = vsel %vm9157, %v8983, %v3481
    %v9241 = vsel %vm9157, %v8984, %v3483
    %v9242 = vsel %vm9157, %v8985, %v3485
    %v9243 = vsel %vm9157, %v8986, %v3487
    %v9244 = vsel %vm9157, %v8987, %v3489
    %v9245 = vsel %vm9157, %v8988, %v3491
    %v9246 = vsel %vm9157, %v8989, %v3493
    %v9247 = vsel %vm9157, %v8990, %v3495
    %v9248 = vsel %vm9157, %v8991, %v3497
    %v9249 = vsel %vm9157, %v8992, %v3499
    %v9250 = vsel %vm9157, %v8993, %v3501
    %v9251 = vsel %vm9157, %v8994, %v3503
    %v9252 = vsel %vm9157, %v8995, %v3505
    %v9253 = vsel %vm9157, %v8996, %v3507
    %v9254 = vsel %vm9157, %v8997, %v3509
    %v9255 = vsel %vm9157, %v8998, %v3511
    %v9256 = vsel %vm9157, %v8999, %v3513
    %v9257 = vsel %vm9157, %v9000, %v3515
    %v9258 = vsel %vm9157, %v9001, %v3517
    %v9259 = vsel %vm9157, %v9002, %v3519
    %v9260 = vsel %vm9157, %v9003, %v3521
    %v9261 = vsel %vm9157, %v9004, %v3523
    %v9262 = vsel %vm9157, %v9005, %v3525
    %v9263 = vsel %vm9157, %v9006, %v3527
    %v9264 = vsel %vm9157, %v9007, %v3529
    %v9265 = vsel %vm9157, %v9008, %v3531
    %v9266 = vsel %vm9157, %v9009, %v3533
    %v9267 = vsel %vm9157, %v9010, %v3535
    %v9268 = vsel %vm9157, %v9011, %v3537
    %v9269 = vsel %vm9157, %v9012, %v3539
    %v9270 = vsel %vm9157, %v9013, %v3541
    %v9271 = vsel %vm9157, %v9014, %v3543
    %v9272 = vsel %vm9157, %v9015, %v3545
    %v9273 = vsel %vm9157, %v9016, %v3547
    %v9274 = vsel %vm9157, %v9017, %v3549
    %v9275 = vsel %vm9157, %v9018, %v3551
    %v9276 = vsel %vm9157, %v9019, %v3553
    %v9277 = vsel %vm9157, %v9020, %v3555
    %v9278 = vsel %vm9157, %v9021, %v3557
    %v9279 = vsel %vm9157, %v9022, %v3559
    %v9280 = vsel %vm9157, %v9023, %v3561
    %v9281 = vsel %vm9157, %v9024, %v3563
    %v9282 = vsel %vm9157, %v9025, %v3565
    %v9283 = vsel %vm9157, %v9026, %v3567
    %v9284 = vsel %vm9157, %v9027, %v3569
    %v9285 = vsel %vm9157, %v9028, %v3571
    %v9286 = vsel %vm9157, %v9029, %v3573
    %v9287 = vsel %vm9157, %v9030, %v3575
    %v9288 = vsel %vm9157, %v9031, %v3577
    %v9289 = vsel %vm9157, %v9032, %v3579
    %v9290 = vsel %vm9157, %v9033, %v3581
    %v9291 = vsel %vm9157, %v9034, %v3583
    %v9292 = vsel %vm9157, %v9035, %v3585
    %v9293 = vsel %vm9157, %v9036, %v3587
    %v9294 = vsel %vm9157, %v9037, %v3589
    %v9295 = vsel %vm9157, %v9038, %v3591
    %v9296 = vsel %vm9157, %v9039, %v3593
    %v9297 = vsel %vm9157, %v9040, %v3595
    %v9298 = vsel %vm9157, %v9041, %v3597
    %v9299 = vsel %vm9157, %v9042, %v3599
    %v9300 = vsel %vm9157, %v9043, %v3601
    %v9301 = vsel %vm9157, %v9044, %v3603
    %v9302 = vsel %vm9157, %v9045, %v3605
    %v9303 = vsel %vm9157, %v9046, %v3607
    %v9304 = vsel %vm9157, %v9047, %v3609
    %v9305 = vsel %vm9157, %v9048, %v3611
    %v9306 = vsel %vm9157, %v9049, %v3613
    %v9307 = vsel %vm9157, %v9050, %v3615
    %v9308 = vsel %vm9157, %v9051, %v3617
    %v9309 = vsel %vm9157, %v9052, %v3619
    %v9310 = vsel %vm9157, %v9053, %v3621
    %v9311 = vsel %vm9157, %v9054, %v3623
    %v9312 = vsel %vm9157, %v9055, %v3625
    %v9313 = vsel %vm9157, %v9056, %v3627
    %v9314 = vsel %vm9157, %v9057, %v3629
    %v9315 = vsel %vm9157, %v9058, %v3631
    %v9316 = vsel %vm9157, %v9059, %v3633
    %v9317 = vsel %vm9157, %v9060, %v3635
    %v9318 = vsel %vm9157, %v9061, %v3637
    %v9319 = vsel %vm9157, %v9062, %v3639
    %v9320 = vsel %vm9157, %v9063, %v3641
    %v9321 = vsel %vm9157, %v9064, %v3643
    %v9322 = vsel %vm9157, %v9065, %v3645
    %v9323 = vsel %vm9157, %v9066, %v3647
    %v9324 = vsel %vm9157, %v9067, %v3649
    %v9325 = vsel %vm9157, %v9068, %v3651
    %v9326 = vsel %vm9157, %v9069, %v3653
    %v9327 = vsel %vm9157, %v9070, %v3655
    %v9328 = vsel %vm9157, %v9071, %v3657
    %v9329 = vsel %vm9157, %v9072, %v3659
    %v9330 = vsel %vm9157, %v9073, %v3661
    %v9331 = vsel %vm9157, %v9074, %v3663
    %v9332 = vsel %vm9157, %v9075, %v3665
    %v9333 = vsel %vm9157, %v9076, %v3667
    %v9334 = vsel %vm9157, %v9077, %v3669
    %v9335 = vsel %vm9157, %v9078, %v3671
    %v9336 = vsel %vm9157, %v9079, %v3673
    %v9337 = vsel %vm9157, %v9080, %v3675
    %v9338 = vsel %vm9157, %v9081, %v3677
    %v9339 = vsel %vm9157, %v9082, %v3679
    %v9340 = vsel %vm9157, %v9083, %v3681
    %v9341 = vsel %vm9157, %v9084, %v3683
    %v9342 = vsel %vm9157, %v9085, %v3685
    %v9343 = vsel %vm9157, %v9086, %v3687
    %v9344 = vsel %vm9157, %v9087, %v3689
    %v9345 = vsel %vm9157, %v9088, %v3691
    %v9346 = vsel %vm9157, %v9089, %v3693
    %v9347 = vsel %vm9157, %v9090, %v3695
    %v9348 = vsel %vm9157, %v9091, %v3697
    %v9349 = vsel %vm9157, %v9092, %v3699
    %v9350 = vsel %vm9157, %v9093, %v3701
    %v9351 = vsel %vm9157, %v9094, %v3703
    %v9352 = vsel %vm9157, %v9095, %v3705
    %v9353 = vsel %vm9157, %v9096, %v3707
    %v9354 = vsel %vm9157, %v9097, %v3709
    %v9355 = vsel %vm9157, %v9098, %v3711
    %v9356 = vsel %vm9157, %v9099, %v3713
    %v9357 = vsel %vm9157, %v9100, %v3715
    %v9358 = vsel %vm9157, %v9101, %v3717
    %v9359 = vsel %vm9157, %v9102, %v3719
    %v9360 = vsel %vm9157, %v9103, %v3721
    %v9361 = vsel %vm9157, %v9104, %v3723
    %v9362 = vsel %vm9157, %v9105, %v3725
    %v9363 = vsel %vm9157, %v9106, %v3727
    %v9364 = vsel %vm9157, %v9107, %v3729
    %v9365 = vsel %vm9157, %v9108, %v3731
    %v9366 = vsel %vm9157, %v9109, %v3733
    %v9367 = vsel %vm9157, %v9110, %v3735
    %v9368 = vsel %vm9157, %v9111, %v3737
    %v9369 = vsel %vm9157, %v9112, %v3739
    %v9370 = vsel %vm9157, %v9113, %v3741
    %v9371 = vsel %vm9157, %v9114, %v3743
    %v9372 = vsel %vm9157, %v9115, %v3745
    %v9373 = vsel %vm9157, %v9116, %v3747
    %v9374 = vsel %vm9157, %v9117, %v3749
    %v9375 = vsel %vm9157, %v9118, %v3751
    %v9376 = vsel %vm9157, %v9119, %v3753
    %v9377 = vsel %vm9157, %v9120, %v3755
    %v9378 = vsel %vm9157, %v9121, %v3757
    %v9379 = vsel %vm9157, %v9122, %v3759
    %v9380 = vsel %vm9157, %v9123, %v3761
    %v9381 = vsel %vm9157, %v9124, %v3763
    %v9382 = vsel %vm9157, %v9125, %v3765
    %v9383 = vsel %vm9157, %v9126, %v3767
    %v9384 = vsel %vm9157, %v9127, %v3769
    %v9385 = vsel %vm9157, %v9128, %v3771
    %v9386 = vsel %vm9157, %v9129, %v3773
    %v9387 = vsel %vm9157, %v9130, %v3775
    %v9388 = vsel %vm9157, %v9131, %v3777
    %v9389 = vsel %vm9157, %v9132, %v3779
    %v9390 = vsel %vm9157, %v9133, %v3781
    %v9391 = vsel %vm9157, %v9134, %v3783
    %v9392 = vsel %vm9157, %v9135, %v3785
    %v9393 = vsel %vm9157, %v9136, %v3787
    %v9394 = vsel %vm9157, %v9137, %v3789
    %v9395 = vsel %vm9157, %v9138, %v3791
    %v9396 = vsel %vm9157, %v9139, %v3793
    %v9397 = vsel %vm9157, %v9140, %v3795
    %v9398 = vsel %vm9157, %v9141, %v3797
    %v9399 = vsel %vm9157, %v9142, %v3799
    %v9400 = vsel %vm9157, %v9143, %v3801
    %v9401 = vsel %vm9157, %v9144, %v3803
    %v9402 = vsel %vm9157, %v9145, %v3805
    %v9403 = vsel %vm9157, %v9146, %v3807
    %v9404 = vsel %vm9157, %v9147, %v3809
    %v9405 = vsel %vm9157, %v9148, %v3811
    %v9406 = vsel %vm9157, %v9149, %v3813
    %v9407 = vsel %vm9157, %v9150, %v3815
    %v9408 = vsel %vm9157, %v9151, %v3817
    %v9409 = vsel %vm9157, %v9152, %v3819
    %v9410 = vsel %vm9157, %v9153, %v3821
    %v9411 = vsel %vm9157, %v9154, %v3823
    %v9412 = vsel %vm9157, %v9155, %v3825
    %v9413 = vsel %vm9157, %v9156, %v3827
    %vm9414 = vcmask 97280
    %v9415 = vsel %vm9414, %v9158, %v4101
    %v9416 = vsel %vm9414, %v9159, %v4103
    %v9417 = vsel %vm9414, %v9160, %v4105
    %v9418 = vsel %vm9414, %v9161, %v4107
    %v9419 = vsel %vm9414, %v9162, %v4109
    %v9420 = vsel %vm9414, %v9163, %v4111
    %v9421 = vsel %vm9414, %v9164, %v4113
    %v9422 = vsel %vm9414, %v9165, %v4115
    %v9423 = vsel %vm9414, %v9166, %v4117
    %v9424 = vsel %vm9414, %v9167, %v4119
    %v9425 = vsel %vm9414, %v9168, %v4121
    %v9426 = vsel %vm9414, %v9169, %v4123
    %v9427 = vsel %vm9414, %v9170, %v4125
    %v9428 = vsel %vm9414, %v9171, %v4127
    %v9429 = vsel %vm9414, %v9172, %v4129
    %v9430 = vsel %vm9414, %v9173, %v4131
    %v9431 = vsel %vm9414, %v9174, %v4133
    %v9432 = vsel %vm9414, %v9175, %v4135
    %v9433 = vsel %vm9414, %v9176, %v4137
    %v9434 = vsel %vm9414, %v9177, %v4139
    %v9435 = vsel %vm9414, %v9178, %v4141
    %v9436 = vsel %vm9414, %v9179, %v4143
    %v9437 = vsel %vm9414, %v9180, %v4145
    %v9438 = vsel %vm9414, %v9181, %v4147
    %v9439 = vsel %vm9414, %v9182, %v4149
    %v9440 = vsel %vm9414, %v9183, %v4151
    %v9441 = vsel %vm9414, %v9184, %v4153
    %v9442 = vsel %vm9414, %v9185, %v4155
    %v9443 = vsel %vm9414, %v9186, %v4157
    %v9444 = vsel %vm9414, %v9187, %v4159
    %v9445 = vsel %vm9414, %v9188, %v4161
    %v9446 = vsel %vm9414, %v9189, %v4163
    %v9447 = vsel %vm9414, %v9190, %v4165
    %v9448 = vsel %vm9414, %v9191, %v4167
    %v9449 = vsel %vm9414, %v9192, %v4169
    %v9450 = vsel %vm9414, %v9193, %v4171
    %v9451 = vsel %vm9414, %v9194, %v4173
    %v9452 = vsel %vm9414, %v9195, %v4175
    %v9453 = vsel %vm9414, %v9196, %v4177
    %v9454 = vsel %vm9414, %v9197, %v4179
    %v9455 = vsel %vm9414, %v9198, %v4181
    %v9456 = vsel %vm9414, %v9199, %v4183
    %v9457 = vsel %vm9414, %v9200, %v4185
    %v9458 = vsel %vm9414, %v9201, %v4187
    %v9459 = vsel %vm9414, %v9202, %v4189
    %v9460 = vsel %vm9414, %v9203, %v4191
    %v9461 = vsel %vm9414, %v9204, %v4193
    %v9462 = vsel %vm9414, %v9205, %v4195
    %v9463 = vsel %vm9414, %v9206, %v4197
    %v9464 = vsel %vm9414, %v9207, %v4199
    %v9465 = vsel %vm9414, %v9208, %v4201
    %v9466 = vsel %vm9414, %v9209, %v4203
    %v9467 = vsel %vm9414, %v9210, %v4205
    %v9468 = vsel %vm9414, %v9211, %v4207
    %v9469 = vsel %vm9414, %v9212, %v4209
    %v9470 = vsel %vm9414, %v9213, %v4211
    %v9471 = vsel %vm9414, %v9214, %v4213
    %v9472 = vsel %vm9414, %v9215, %v4215
    %v9473 = vsel %vm9414, %v9216, %v4217
    %v9474 = vsel %vm9414, %v9217, %v4219
    %v9475 = vsel %vm9414, %v9218, %v4221
    %v9476 = vsel %vm9414, %v9219, %v4223
    %v9477 = vsel %vm9414, %v9220, %v4225
    %v9478 = vsel %vm9414, %v9221, %v4227
    %v9479 = vsel %vm9414, %v9222, %v4229
    %v9480 = vsel %vm9414, %v9223, %v4231
    %v9481 = vsel %vm9414, %v9224, %v4233
    %v9482 = vsel %vm9414, %v9225, %v4235
    %v9483 = vsel %vm9414, %v9226, %v4237
    %v9484 = vsel %vm9414, %v9227, %v4239
    %v9485 = vsel %vm9414, %v9228, %v4241
    %v9486 = vsel %vm9414, %v9229, %v4243
    %v9487 = vsel %vm9414, %v9230, %v4245
    %v9488 = vsel %vm9414, %v9231, %v4247
    %v9489 = vsel %vm9414, %v9232, %v4249
    %v9490 = vsel %vm9414, %v9233, %v4251
    %v9491 = vsel %vm9414, %v9234, %v4253
    %v9492 = vsel %vm9414, %v9235, %v4255
    %v9493 = vsel %vm9414, %v9236, %v4257
    %v9494 = vsel %vm9414, %v9237, %v4259
    %v9495 = vsel %vm9414, %v9238, %v4261
    %v9496 = vsel %vm9414, %v9239, %v4263
    %v9497 = vsel %vm9414, %v9240, %v4265
    %v9498 = vsel %vm9414, %v9241, %v4267
    %v9499 = vsel %vm9414, %v9242, %v4269
    %v9500 = vsel %vm9414, %v9243, %v4271
    %v9501 = vsel %vm9414, %v9244, %v4273
    %v9502 = vsel %vm9414, %v9245, %v4275
    %v9503 = vsel %vm9414, %v9246, %v4277
    %v9504 = vsel %vm9414, %v9247, %v4279
    %v9505 = vsel %vm9414, %v9248, %v4281
    %v9506 = vsel %vm9414, %v9249, %v4283
    %v9507 = vsel %vm9414, %v9250, %v4285
    %v9508 = vsel %vm9414, %v9251, %v4287
    %v9509 = vsel %vm9414, %v9252, %v4289
    %v9510 = vsel %vm9414, %v9253, %v4291
    %v9511 = vsel %vm9414, %v9254, %v4293
    %v9512 = vsel %vm9414, %v9255, %v4295
    %v9513 = vsel %vm9414, %v9256, %v4297
    %v9514 = vsel %vm9414, %v9257, %v4299
    %v9515 = vsel %vm9414, %v9258, %v4301
    %v9516 = vsel %vm9414, %v9259, %v4303
    %v9517 = vsel %vm9414, %v9260, %v4305
    %v9518 = vsel %vm9414, %v9261, %v4307
    %v9519 = vsel %vm9414, %v9262, %v4309
    %v9520 = vsel %vm9414, %v9263, %v4311
    %v9521 = vsel %vm9414, %v9264, %v4313
    %v9522 = vsel %vm9414, %v9265, %v4315
    %v9523 = vsel %vm9414, %v9266, %v4317
    %v9524 = vsel %vm9414, %v9267, %v4319
    %v9525 = vsel %vm9414, %v9268, %v4321
    %v9526 = vsel %vm9414, %v9269, %v4323
    %v9527 = vsel %vm9414, %v9270, %v4325
    %v9528 = vsel %vm9414, %v9271, %v4327
    %v9529 = vsel %vm9414, %v9272, %v4329
    %v9530 = vsel %vm9414, %v9273, %v4331
    %v9531 = vsel %vm9414, %v9274, %v4333
    %v9532 = vsel %vm9414, %v9275, %v4335
    %v9533 = vsel %vm9414, %v9276, %v4337
    %v9534 = vsel %vm9414, %v9277, %v4339
    %v9535 = vsel %vm9414, %v9278, %v4341
    %v9536 = vsel %vm9414, %v9279, %v4343
    %v9537 = vsel %vm9414, %v9280, %v4345
    %v9538 = vsel %vm9414, %v9281, %v4347
    %v9539 = vsel %vm9414, %v9282, %v4349
    %v9540 = vsel %vm9414, %v9283, %v4351
    %v9541 = vsel %vm9414, %v9284, %v4353
    %v9542 = vsel %vm9414, %v9285, %v4355
    %v9543 = vsel %vm9414, %v9286, %v4357
    %v9544 = vsel %vm9414, %v9287, %v4359
    %v9545 = vsel %vm9414, %v9288, %v4361
    %v9546 = vsel %vm9414, %v9289, %v4363
    %v9547 = vsel %vm9414, %v9290, %v4365
    %v9548 = vsel %vm9414, %v9291, %v4367
    %v9549 = vsel %vm9414, %v9292, %v4369
    %v9550 = vsel %vm9414, %v9293, %v4371
    %v9551 = vsel %vm9414, %v9294, %v4373
    %v9552 = vsel %vm9414, %v9295, %v4375
    %v9553 = vsel %vm9414, %v9296, %v4377
    %v9554 = vsel %vm9414, %v9297, %v4379
    %v9555 = vsel %vm9414, %v9298, %v4381
    %v9556 = vsel %vm9414, %v9299, %v4383
    %v9557 = vsel %vm9414, %v9300, %v4385
    %v9558 = vsel %vm9414, %v9301, %v4387
    %v9559 = vsel %vm9414, %v9302, %v4389
    %v9560 = vsel %vm9414, %v9303, %v4391
    %v9561 = vsel %vm9414, %v9304, %v4393
    %v9562 = vsel %vm9414, %v9305, %v4395
    %v9563 = vsel %vm9414, %v9306, %v4397
    %v9564 = vsel %vm9414, %v9307, %v4399
    %v9565 = vsel %vm9414, %v9308, %v4401
    %v9566 = vsel %vm9414, %v9309, %v4403
    %v9567 = vsel %vm9414, %v9310, %v4405
    %v9568 = vsel %vm9414, %v9311, %v4407
    %v9569 = vsel %vm9414, %v9312, %v4409
    %v9570 = vsel %vm9414, %v9313, %v4411
    %v9571 = vsel %vm9414, %v9314, %v4413
    %v9572 = vsel %vm9414, %v9315, %v4415
    %v9573 = vsel %vm9414, %v9316, %v4417
    %v9574 = vsel %vm9414, %v9317, %v4419
    %v9575 = vsel %vm9414, %v9318, %v4421
    %v9576 = vsel %vm9414, %v9319, %v4423
    %v9577 = vsel %vm9414, %v9320, %v4425
    %v9578 = vsel %vm9414, %v9321, %v4427
    %v9579 = vsel %vm9414, %v9322, %v4429
    %v9580 = vsel %vm9414, %v9323, %v4431
    %v9581 = vsel %vm9414, %v9324, %v4433
    %v9582 = vsel %vm9414, %v9325, %v4435
    %v9583 = vsel %vm9414, %v9326, %v4437
    %v9584 = vsel %vm9414, %v9327, %v4439
    %v9585 = vsel %vm9414, %v9328, %v4441
    %v9586 = vsel %vm9414, %v9329, %v4443
    %v9587 = vsel %vm9414, %v9330, %v4445
    %v9588 = vsel %vm9414, %v9331, %v4447
    %v9589 = vsel %vm9414, %v9332, %v4449
    %v9590 = vsel %vm9414, %v9333, %v4451
    %v9591 = vsel %vm9414, %v9334, %v4453
    %v9592 = vsel %vm9414, %v9335, %v4455
    %v9593 = vsel %vm9414, %v9336, %v4457
    %v9594 = vsel %vm9414, %v9337, %v4459
    %v9595 = vsel %vm9414, %v9338, %v4461
    %v9596 = vsel %vm9414, %v9339, %v4463
    %v9597 = vsel %vm9414, %v9340, %v4465
    %v9598 = vsel %vm9414, %v9341, %v4467
    %v9599 = vsel %vm9414, %v9342, %v4469
    %v9600 = vsel %vm9414, %v9343, %v4471
    %v9601 = vsel %vm9414, %v9344, %v4473
    %v9602 = vsel %vm9414, %v9345, %v4475
    %v9603 = vsel %vm9414, %v9346, %v4477
    %v9604 = vsel %vm9414, %v9347, %v4479
    %v9605 = vsel %vm9414, %v9348, %v4481
    %v9606 = vsel %vm9414, %v9349, %v4483
    %v9607 = vsel %vm9414, %v9350, %v4485
    %v9608 = vsel %vm9414, %v9351, %v4487
    %v9609 = vsel %vm9414, %v9352, %v4489
    %v9610 = vsel %vm9414, %v9353, %v4491
    %v9611 = vsel %vm9414, %v9354, %v4493
    %v9612 = vsel %vm9414, %v9355, %v4495
    %v9613 = vsel %vm9414, %v9356, %v4497
    %v9614 = vsel %vm9414, %v9357, %v4499
    %v9615 = vsel %vm9414, %v9358, %v4501
    %v9616 = vsel %vm9414, %v9359, %v4503
    %v9617 = vsel %vm9414, %v9360, %v4505
    %v9618 = vsel %vm9414, %v9361, %v4507
    %v9619 = vsel %vm9414, %v9362, %v4509
    %v9620 = vsel %vm9414, %v9363, %v4511
    %v9621 = vsel %vm9414, %v9364, %v4513
    %v9622 = vsel %vm9414, %v9365, %v4515
    %v9623 = vsel %vm9414, %v9366, %v4517
    %v9624 = vsel %vm9414, %v9367, %v4519
    %v9625 = vsel %vm9414, %v9368, %v4521
    %v9626 = vsel %vm9414, %v9369, %v4523
    %v9627 = vsel %vm9414, %v9370, %v4525
    %v9628 = vsel %vm9414, %v9371, %v4527
    %v9629 = vsel %vm9414, %v9372, %v4529
    %v9630 = vsel %vm9414, %v9373, %v4531
    %v9631 = vsel %vm9414, %v9374, %v4533
    %v9632 = vsel %vm9414, %v9375, %v4535
    %v9633 = vsel %vm9414, %v9376, %v4537
    %v9634 = vsel %vm9414, %v9377, %v4539
    %v9635 = vsel %vm9414, %v9378, %v4541
    %v9636 = vsel %vm9414, %v9379, %v4543
    %v9637 = vsel %vm9414, %v9380, %v4545
    %v9638 = vsel %vm9414, %v9381, %v4547
    %v9639 = vsel %vm9414, %v9382, %v4549
    %v9640 = vsel %vm9414, %v9383, %v4551
    %v9641 = vsel %vm9414, %v9384, %v4553
    %v9642 = vsel %vm9414, %v9385, %v4555
    %v9643 = vsel %vm9414, %v9386, %v4557
    %v9644 = vsel %vm9414, %v9387, %v4559
    %v9645 = vsel %vm9414, %v9388, %v4561
    %v9646 = vsel %vm9414, %v9389, %v4563
    %v9647 = vsel %vm9414, %v9390, %v4565
    %v9648 = vsel %vm9414, %v9391, %v4567
    %v9649 = vsel %vm9414, %v9392, %v4569
    %v9650 = vsel %vm9414, %v9393, %v4571
    %v9651 = vsel %vm9414, %v9394, %v4573
    %v9652 = vsel %vm9414, %v9395, %v4575
    %v9653 = vsel %vm9414, %v9396, %v4577
    %v9654 = vsel %vm9414, %v9397, %v4579
    %v9655 = vsel %vm9414, %v9398, %v4581
    %v9656 = vsel %vm9414, %v9399, %v4583
    %v9657 = vsel %vm9414, %v9400, %v4585
    %v9658 = vsel %vm9414, %v9401, %v4587
    %v9659 = vsel %vm9414, %v9402, %v4589
    %v9660 = vsel %vm9414, %v9403, %v4591
    %v9661 = vsel %vm9414, %v9404, %v4593
    %v9662 = vsel %vm9414, %v9405, %v4595
    %v9663 = vsel %vm9414, %v9406, %v4597
    %v9664 = vsel %vm9414, %v9407, %v4599
    %v9665 = vsel %vm9414, %v9408, %v4601
    %v9666 = vsel %vm9414, %v9409, %v4603
    %v9667 = vsel %vm9414, %v9410, %v4605
    %v9668 = vsel %vm9414, %v9411, %v4607
    %v9669 = vsel %vm9414, %v9412, %v4609
    %v9670 = vsel %vm9414, %v9413, %v4611
    %vm9671 = vcmask 130048
    %v9672 = vsel %vm9671, %v9415, %v4917
    %v9673 = vsel %vm9671, %v9416, %v4919
    %v9674 = vsel %vm9671, %v9417, %v4921
    %v9675 = vsel %vm9671, %v9418, %v4923
    %v9676 = vsel %vm9671, %v9419, %v4925
    %v9677 = vsel %vm9671, %v9420, %v4927
    %v9678 = vsel %vm9671, %v9421, %v4929
    %v9679 = vsel %vm9671, %v9422, %v4931
    %v9680 = vsel %vm9671, %v9423, %v4933
    %v9681 = vsel %vm9671, %v9424, %v4935
    %v9682 = vsel %vm9671, %v9425, %v4937
    %v9683 = vsel %vm9671, %v9426, %v4939
    %v9684 = vsel %vm9671, %v9427, %v4941
    %v9685 = vsel %vm9671, %v9428, %v4943
    %v9686 = vsel %vm9671, %v9429, %v4945
    %v9687 = vsel %vm9671, %v9430, %v4947
    %v9688 = vsel %vm9671, %v9431, %v4949
    %v9689 = vsel %vm9671, %v9432, %v4951
    %v9690 = vsel %vm9671, %v9433, %v4953
    %v9691 = vsel %vm9671, %v9434, %v4955
    %v9692 = vsel %vm9671, %v9435, %v4957
    %v9693 = vsel %vm9671, %v9436, %v4959
    %v9694 = vsel %vm9671, %v9437, %v4961
    %v9695 = vsel %vm9671, %v9438, %v4963
    %v9696 = vsel %vm9671, %v9439, %v4965
    %v9697 = vsel %vm9671, %v9440, %v4967
    %v9698 = vsel %vm9671, %v9441, %v4969
    %v9699 = vsel %vm9671, %v9442, %v4971
    %v9700 = vsel %vm9671, %v9443, %v4973
    %v9701 = vsel %vm9671, %v9444, %v4975
    %v9702 = vsel %vm9671, %v9445, %v4977
    %v9703 = vsel %vm9671, %v9446, %v4979
    %v9704 = vsel %vm9671, %v9447, %v4981
    %v9705 = vsel %vm9671, %v9448, %v4983
    %v9706 = vsel %vm9671, %v9449, %v4985
    %v9707 = vsel %vm9671, %v9450, %v4987
    %v9708 = vsel %vm9671, %v9451, %v4989
    %v9709 = vsel %vm9671, %v9452, %v4991
    %v9710 = vsel %vm9671, %v9453, %v4993
    %v9711 = vsel %vm9671, %v9454, %v4995
    %v9712 = vsel %vm9671, %v9455, %v4997
    %v9713 = vsel %vm9671, %v9456, %v4999
    %v9714 = vsel %vm9671, %v9457, %v5001
    %v9715 = vsel %vm9671, %v9458, %v5003
    %v9716 = vsel %vm9671, %v9459, %v5005
    %v9717 = vsel %vm9671, %v9460, %v5007
    %v9718 = vsel %vm9671, %v9461, %v5009
    %v9719 = vsel %vm9671, %v9462, %v5011
    %v9720 = vsel %vm9671, %v9463, %v5013
    %v9721 = vsel %vm9671, %v9464, %v5015
    %v9722 = vsel %vm9671, %v9465, %v5017
    %v9723 = vsel %vm9671, %v9466, %v5019
    %v9724 = vsel %vm9671, %v9467, %v5021
    %v9725 = vsel %vm9671, %v9468, %v5023
    %v9726 = vsel %vm9671, %v9469, %v5025
    %v9727 = vsel %vm9671, %v9470, %v5027
    %v9728 = vsel %vm9671, %v9471, %v5029
    %v9729 = vsel %vm9671, %v9472, %v5031
    %v9730 = vsel %vm9671, %v9473, %v5033
    %v9731 = vsel %vm9671, %v9474, %v5035
    %v9732 = vsel %vm9671, %v9475, %v5037
    %v9733 = vsel %vm9671, %v9476, %v5039
    %v9734 = vsel %vm9671, %v9477, %v5041
    %v9735 = vsel %vm9671, %v9478, %v5043
    %v9736 = vsel %vm9671, %v9479, %v5045
    %v9737 = vsel %vm9671, %v9480, %v5047
    %v9738 = vsel %vm9671, %v9481, %v5049
    %v9739 = vsel %vm9671, %v9482, %v5051
    %v9740 = vsel %vm9671, %v9483, %v5053
    %v9741 = vsel %vm9671, %v9484, %v5055
    %v9742 = vsel %vm9671, %v9485, %v5057
    %v9743 = vsel %vm9671, %v9486, %v5059
    %v9744 = vsel %vm9671, %v9487, %v5061
    %v9745 = vsel %vm9671, %v9488, %v5063
    %v9746 = vsel %vm9671, %v9489, %v5065
    %v9747 = vsel %vm9671, %v9490, %v5067
    %v9748 = vsel %vm9671, %v9491, %v5069
    %v9749 = vsel %vm9671, %v9492, %v5071
    %v9750 = vsel %vm9671, %v9493, %v5073
    %v9751 = vsel %vm9671, %v9494, %v5075
    %v9752 = vsel %vm9671, %v9495, %v5077
    %v9753 = vsel %vm9671, %v9496, %v5079
    %v9754 = vsel %vm9671, %v9497, %v5081
    %v9755 = vsel %vm9671, %v9498, %v5083
    %v9756 = vsel %vm9671, %v9499, %v5085
    %v9757 = vsel %vm9671, %v9500, %v5087
    %v9758 = vsel %vm9671, %v9501, %v5089
    %v9759 = vsel %vm9671, %v9502, %v5091
    %v9760 = vsel %vm9671, %v9503, %v5093
    %v9761 = vsel %vm9671, %v9504, %v5095
    %v9762 = vsel %vm9671, %v9505, %v5097
    %v9763 = vsel %vm9671, %v9506, %v5099
    %v9764 = vsel %vm9671, %v9507, %v5101
    %v9765 = vsel %vm9671, %v9508, %v5103
    %v9766 = vsel %vm9671, %v9509, %v5105
    %v9767 = vsel %vm9671, %v9510, %v5107
    %v9768 = vsel %vm9671, %v9511, %v5109
    %v9769 = vsel %vm9671, %v9512, %v5111
    %v9770 = vsel %vm9671, %v9513, %v5113
    %v9771 = vsel %vm9671, %v9514, %v5115
    %v9772 = vsel %vm9671, %v9515, %v5117
    %v9773 = vsel %vm9671, %v9516, %v5119
    %v9774 = vsel %vm9671, %v9517, %v5121
    %v9775 = vsel %vm9671, %v9518, %v5123
    %v9776 = vsel %vm9671, %v9519, %v5125
    %v9777 = vsel %vm9671, %v9520, %v5127
    %v9778 = vsel %vm9671, %v9521, %v5129
    %v9779 = vsel %vm9671, %v9522, %v5131
    %v9780 = vsel %vm9671, %v9523, %v5133
    %v9781 = vsel %vm9671, %v9524, %v5135
    %v9782 = vsel %vm9671, %v9525, %v5137
    %v9783 = vsel %vm9671, %v9526, %v5139
    %v9784 = vsel %vm9671, %v9527, %v5141
    %v9785 = vsel %vm9671, %v9528, %v5143
    %v9786 = vsel %vm9671, %v9529, %v5145
    %v9787 = vsel %vm9671, %v9530, %v5147
    %v9788 = vsel %vm9671, %v9531, %v5149
    %v9789 = vsel %vm9671, %v9532, %v5151
    %v9790 = vsel %vm9671, %v9533, %v5153
    %v9791 = vsel %vm9671, %v9534, %v5155
    %v9792 = vsel %vm9671, %v9535, %v5157
    %v9793 = vsel %vm9671, %v9536, %v5159
    %v9794 = vsel %vm9671, %v9537, %v5161
    %v9795 = vsel %vm9671, %v9538, %v5163
    %v9796 = vsel %vm9671, %v9539, %v5165
    %v9797 = vsel %vm9671, %v9540, %v5167
    %v9798 = vsel %vm9671, %v9541, %v5169
    %v9799 = vsel %vm9671, %v9542, %v5171
    %v9800 = vsel %vm9671, %v9543, %v5173
    %v9801 = vsel %vm9671, %v9544, %v5175
    %v9802 = vsel %vm9671, %v9545, %v5177
    %v9803 = vsel %vm9671, %v9546, %v5179
    %v9804 = vsel %vm9671, %v9547, %v5181
    %v9805 = vsel %vm9671, %v9548, %v5183
    %v9806 = vsel %vm9671, %v9549, %v5185
    %v9807 = vsel %vm9671, %v9550, %v5187
    %v9808 = vsel %vm9671, %v9551, %v5189
    %v9809 = vsel %vm9671, %v9552, %v5191
    %v9810 = vsel %vm9671, %v9553, %v5193
    %v9811 = vsel %vm9671, %v9554, %v5195
    %v9812 = vsel %vm9671, %v9555, %v5197
    %v9813 = vsel %vm9671, %v9556, %v5199
    %v9814 = vsel %vm9671, %v9557, %v5201
    %v9815 = vsel %vm9671, %v9558, %v5203
    %v9816 = vsel %vm9671, %v9559, %v5205
    %v9817 = vsel %vm9671, %v9560, %v5207
    %v9818 = vsel %vm9671, %v9561, %v5209
    %v9819 = vsel %vm9671, %v9562, %v5211
    %v9820 = vsel %vm9671, %v9563, %v5213
    %v9821 = vsel %vm9671, %v9564, %v5215
    %v9822 = vsel %vm9671, %v9565, %v5217
    %v9823 = vsel %vm9671, %v9566, %v5219
    %v9824 = vsel %vm9671, %v9567, %v5221
    %v9825 = vsel %vm9671, %v9568, %v5223
    %v9826 = vsel %vm9671, %v9569, %v5225
    %v9827 = vsel %vm9671, %v9570, %v5227
    %v9828 = vsel %vm9671, %v9571, %v5229
    %v9829 = vsel %vm9671, %v9572, %v5231
    %v9830 = vsel %vm9671, %v9573, %v5233
    %v9831 = vsel %vm9671, %v9574, %v5235
    %v9832 = vsel %vm9671, %v9575, %v5237
    %v9833 = vsel %vm9671, %v9576, %v5239
    %v9834 = vsel %vm9671, %v9577, %v5241
    %v9835 = vsel %vm9671, %v9578, %v5243
    %v9836 = vsel %vm9671, %v9579, %v5245
    %v9837 = vsel %vm9671, %v9580, %v5247
    %v9838 = vsel %vm9671, %v9581, %v5249
    %v9839 = vsel %vm9671, %v9582, %v5251
    %v9840 = vsel %vm9671, %v9583, %v5253
    %v9841 = vsel %vm9671, %v9584, %v5255
    %v9842 = vsel %vm9671, %v9585, %v5257
    %v9843 = vsel %vm9671, %v9586, %v5259
    %v9844 = vsel %vm9671, %v9587, %v5261
    %v9845 = vsel %vm9671, %v9588, %v5263
    %v9846 = vsel %vm9671, %v9589, %v5265
    %v9847 = vsel %vm9671, %v9590, %v5267
    %v9848 = vsel %vm9671, %v9591, %v5269
    %v9849 = vsel %vm9671, %v9592, %v5271
    %v9850 = vsel %vm9671, %v9593, %v5273
    %v9851 = vsel %vm9671, %v9594, %v5275
    %v9852 = vsel %vm9671, %v9595, %v5277
    %v9853 = vsel %vm9671, %v9596, %v5279
    %v9854 = vsel %vm9671, %v9597, %v5281
    %v9855 = vsel %vm9671, %v9598, %v5283
    %v9856 = vsel %vm9671, %v9599, %v5285
    %v9857 = vsel %vm9671, %v9600, %v5287
    %v9858 = vsel %vm9671, %v9601, %v5289
    %v9859 = vsel %vm9671, %v9602, %v5291
    %v9860 = vsel %vm9671, %v9603, %v5293
    %v9861 = vsel %vm9671, %v9604, %v5295
    %v9862 = vsel %vm9671, %v9605, %v5297
    %v9863 = vsel %vm9671, %v9606, %v5299
    %v9864 = vsel %vm9671, %v9607, %v5301
    %v9865 = vsel %vm9671, %v9608, %v5303
    %v9866 = vsel %vm9671, %v9609, %v5305
    %v9867 = vsel %vm9671, %v9610, %v5307
    %v9868 = vsel %vm9671, %v9611, %v5309
    %v9869 = vsel %vm9671, %v9612, %v5311
    %v9870 = vsel %vm9671, %v9613, %v5313
    %v9871 = vsel %vm9671, %v9614, %v5315
    %v9872 = vsel %vm9671, %v9615, %v5317
    %v9873 = vsel %vm9671, %v9616, %v5319
    %v9874 = vsel %vm9671, %v9617, %v5321
    %v9875 = vsel %vm9671, %v9618, %v5323
    %v9876 = vsel %vm9671, %v9619, %v5325
    %v9877 = vsel %vm9671, %v9620, %v5327
    %v9878 = vsel %vm9671, %v9621, %v5329
    %v9879 = vsel %vm9671, %v9622, %v5331
    %v9880 = vsel %vm9671, %v9623, %v5333
    %v9881 = vsel %vm9671, %v9624, %v5335
    %v9882 = vsel %vm9671, %v9625, %v5337
    %v9883 = vsel %vm9671, %v9626, %v5339
    %v9884 = vsel %vm9671, %v9627, %v5341
    %v9885 = vsel %vm9671, %v9628, %v5343
    %v9886 = vsel %vm9671, %v9629, %v5345
    %v9887 = vsel %vm9671, %v9630, %v5347
    %v9888 = vsel %vm9671, %v9631, %v5349
    %v9889 = vsel %vm9671, %v9632, %v5351
    %v9890 = vsel %vm9671, %v9633, %v5353
    %v9891 = vsel %vm9671, %v9634, %v5355
    %v9892 = vsel %vm9671, %v9635, %v5357
    %v9893 = vsel %vm9671, %v9636, %v5359
    %v9894 = vsel %vm9671, %v9637, %v5361
    %v9895 = vsel %vm9671, %v9638, %v5363
    %v9896 = vsel %vm9671, %v9639, %v5365
    %v9897 = vsel %vm9671, %v9640, %v5367
    %v9898 = vsel %vm9671, %v9641, %v5369
    %v9899 = vsel %vm9671, %v9642, %v5371
    %v9900 = vsel %vm9671, %v9643, %v5373
    %v9901 = vsel %vm9671, %v9644, %v5375
    %v9902 = vsel %vm9671, %v9645, %v5377
    %v9903 = vsel %vm9671, %v9646, %v5379
    %v9904 = vsel %vm9671, %v9647, %v5381
    %v9905 = vsel %vm9671, %v9648, %v5383
    %v9906 = vsel %vm9671, %v9649, %v5385
    %v9907 = vsel %vm9671, %v9650, %v5387
    %v9908 = vsel %vm9671, %v9651, %v5389
    %v9909 = vsel %vm9671, %v9652, %v5391
    %v9910 = vsel %vm9671, %v9653, %v5393
    %v9911 = vsel %vm9671, %v9654, %v5395
    %v9912 = vsel %vm9671, %v9655, %v5397
    %v9913 = vsel %vm9671, %v9656, %v5399
    %v9914 = vsel %vm9671, %v9657, %v5401
    %v9915 = vsel %vm9671, %v9658, %v5403
    %v9916 = vsel %vm9671, %v9659, %v5405
    %v9917 = vsel %vm9671, %v9660, %v5407
    %v9918 = vsel %vm9671, %v9661, %v5409
    %v9919 = vsel %vm9671, %v9662, %v5411
    %v9920 = vsel %vm9671, %v9663, %v5413
    %v9921 = vsel %vm9671, %v9664, %v5415
    %v9922 = vsel %vm9671, %v9665, %v5417
    %v9923 = vsel %vm9671, %v9666, %v5419
    %v9924 = vsel %vm9671, %v9667, %v5421
    %v9925 = vsel %vm9671, %v9668, %v5423
    %v9926 = vsel %vm9671, %v9669, %v5425
    %v9927 = vsel %vm9671, %v9670, %v5427
    %vm9928 = vcmask 162816
    %v9929 = vsel %vm9928, %v9672, %v5725
    %v9930 = vsel %vm9928, %v9673, %v5727
    %v9931 = vsel %vm9928, %v9674, %v5729
    %v9932 = vsel %vm9928, %v9675, %v5731
    %v9933 = vsel %vm9928, %v9676, %v5733
    %v9934 = vsel %vm9928, %v9677, %v5735
    %v9935 = vsel %vm9928, %v9678, %v5737
    %v9936 = vsel %vm9928, %v9679, %v5739
    %v9937 = vsel %vm9928, %v9680, %v5741
    %v9938 = vsel %vm9928, %v9681, %v5743
    %v9939 = vsel %vm9928, %v9682, %v5745
    %v9940 = vsel %vm9928, %v9683, %v5747
    %v9941 = vsel %vm9928, %v9684, %v5749
    %v9942 = vsel %vm9928, %v9685, %v5751
    %v9943 = vsel %vm9928, %v9686, %v5753
    %v9944 = vsel %vm9928, %v9687, %v5755
    %v9945 = vsel %vm9928, %v9688, %v5757
    %v9946 = vsel %vm9928, %v9689, %v5759
    %v9947 = vsel %vm9928, %v9690, %v5761
    %v9948 = vsel %vm9928, %v9691, %v5763
    %v9949 = vsel %vm9928, %v9692, %v5765
    %v9950 = vsel %vm9928, %v9693, %v5767
    %v9951 = vsel %vm9928, %v9694, %v5769
    %v9952 = vsel %vm9928, %v9695, %v5771
    %v9953 = vsel %vm9928, %v9696, %v5773
    %v9954 = vsel %vm9928, %v9697, %v5775
    %v9955 = vsel %vm9928, %v9698, %v5777
    %v9956 = vsel %vm9928, %v9699, %v5779
    %v9957 = vsel %vm9928, %v9700, %v5781
    %v9958 = vsel %vm9928, %v9701, %v5783
    %v9959 = vsel %vm9928, %v9702, %v5785
    %v9960 = vsel %vm9928, %v9703, %v5787
    %v9961 = vsel %vm9928, %v9704, %v5789
    %v9962 = vsel %vm9928, %v9705, %v5791
    %v9963 = vsel %vm9928, %v9706, %v5793
    %v9964 = vsel %vm9928, %v9707, %v5795
    %v9965 = vsel %vm9928, %v9708, %v5797
    %v9966 = vsel %vm9928, %v9709, %v5799
    %v9967 = vsel %vm9928, %v9710, %v5801
    %v9968 = vsel %vm9928, %v9711, %v5803
    %v9969 = vsel %vm9928, %v9712, %v5805
    %v9970 = vsel %vm9928, %v9713, %v5807
    %v9971 = vsel %vm9928, %v9714, %v5809
    %v9972 = vsel %vm9928, %v9715, %v5811
    %v9973 = vsel %vm9928, %v9716, %v5813
    %v9974 = vsel %vm9928, %v9717, %v5815
    %v9975 = vsel %vm9928, %v9718, %v5817
    %v9976 = vsel %vm9928, %v9719, %v5819
    %v9977 = vsel %vm9928, %v9720, %v5821
    %v9978 = vsel %vm9928, %v9721, %v5823
    %v9979 = vsel %vm9928, %v9722, %v5825
    %v9980 = vsel %vm9928, %v9723, %v5827
    %v9981 = vsel %vm9928, %v9724, %v5829
    %v9982 = vsel %vm9928, %v9725, %v5831
    %v9983 = vsel %vm9928, %v9726, %v5833
    %v9984 = vsel %vm9928, %v9727, %v5835
    %v9985 = vsel %vm9928, %v9728, %v5837
    %v9986 = vsel %vm9928, %v9729, %v5839
    %v9987 = vsel %vm9928, %v9730, %v5841
    %v9988 = vsel %vm9928, %v9731, %v5843
    %v9989 = vsel %vm9928, %v9732, %v5845
    %v9990 = vsel %vm9928, %v9733, %v5847
    %v9991 = vsel %vm9928, %v9734, %v5849
    %v9992 = vsel %vm9928, %v9735, %v5851
    %v9993 = vsel %vm9928, %v9736, %v5853
    %v9994 = vsel %vm9928, %v9737, %v5855
    %v9995 = vsel %vm9928, %v9738, %v5857
    %v9996 = vsel %vm9928, %v9739, %v5859
    %v9997 = vsel %vm9928, %v9740, %v5861
    %v9998 = vsel %vm9928, %v9741, %v5863
    %v9999 = vsel %vm9928, %v9742, %v5865
    %v10000 = vsel %vm9928, %v9743, %v5867
    %v10001 = vsel %vm9928, %v9744, %v5869
    %v10002 = vsel %vm9928, %v9745, %v5871
    %v10003 = vsel %vm9928, %v9746, %v5873
    %v10004 = vsel %vm9928, %v9747, %v5875
    %v10005 = vsel %vm9928, %v9748, %v5877
    %v10006 = vsel %vm9928, %v9749, %v5879
    %v10007 = vsel %vm9928, %v9750, %v5881
    %v10008 = vsel %vm9928, %v9751, %v5883
    %v10009 = vsel %vm9928, %v9752, %v5885
    %v10010 = vsel %vm9928, %v9753, %v5887
    %v10011 = vsel %vm9928, %v9754, %v5889
    %v10012 = vsel %vm9928, %v9755, %v5891
    %v10013 = vsel %vm9928, %v9756, %v5893
    %v10014 = vsel %vm9928, %v9757, %v5895
    %v10015 = vsel %vm9928, %v9758, %v5897
    %v10016 = vsel %vm9928, %v9759, %v5899
    %v10017 = vsel %vm9928, %v9760, %v5901
    %v10018 = vsel %vm9928, %v9761, %v5903
    %v10019 = vsel %vm9928, %v9762, %v5905
    %v10020 = vsel %vm9928, %v9763, %v5907
    %v10021 = vsel %vm9928, %v9764, %v5909
    %v10022 = vsel %vm9928, %v9765, %v5911
    %v10023 = vsel %vm9928, %v9766, %v5913
    %v10024 = vsel %vm9928, %v9767, %v5915
    %v10025 = vsel %vm9928, %v9768, %v5917
    %v10026 = vsel %vm9928, %v9769, %v5919
    %v10027 = vsel %vm9928, %v9770, %v5921
    %v10028 = vsel %vm9928, %v9771, %v5923
    %v10029 = vsel %vm9928, %v9772, %v5925
    %v10030 = vsel %vm9928, %v9773, %v5927
    %v10031 = vsel %vm9928, %v9774, %v5929
    %v10032 = vsel %vm9928, %v9775, %v5931
    %v10033 = vsel %vm9928, %v9776, %v5933
    %v10034 = vsel %vm9928, %v9777, %v5935
    %v10035 = vsel %vm9928, %v9778, %v5937
    %v10036 = vsel %vm9928, %v9779, %v5939
    %v10037 = vsel %vm9928, %v9780, %v5941
    %v10038 = vsel %vm9928, %v9781, %v5943
    %v10039 = vsel %vm9928, %v9782, %v5945
    %v10040 = vsel %vm9928, %v9783, %v5947
    %v10041 = vsel %vm9928, %v9784, %v5949
    %v10042 = vsel %vm9928, %v9785, %v5951
    %v10043 = vsel %vm9928, %v9786, %v5953
    %v10044 = vsel %vm9928, %v9787, %v5955
    %v10045 = vsel %vm9928, %v9788, %v5957
    %v10046 = vsel %vm9928, %v9789, %v5959
    %v10047 = vsel %vm9928, %v9790, %v5961
    %v10048 = vsel %vm9928, %v9791, %v5963
    %v10049 = vsel %vm9928, %v9792, %v5965
    %v10050 = vsel %vm9928, %v9793, %v5967
    %v10051 = vsel %vm9928, %v9794, %v5969
    %v10052 = vsel %vm9928, %v9795, %v5971
    %v10053 = vsel %vm9928, %v9796, %v5973
    %v10054 = vsel %vm9928, %v9797, %v5975
    %v10055 = vsel %vm9928, %v9798, %v5977
    %v10056 = vsel %vm9928, %v9799, %v5979
    %v10057 = vsel %vm9928, %v9800, %v5981
    %v10058 = vsel %vm9928, %v9801, %v5983
    %v10059 = vsel %vm9928, %v9802, %v5985
    %v10060 = vsel %vm9928, %v9803, %v5987
    %v10061 = vsel %vm9928, %v9804, %v5989
    %v10062 = vsel %vm9928, %v9805, %v5991
    %v10063 = vsel %vm9928, %v9806, %v5993
    %v10064 = vsel %vm9928, %v9807, %v5995
    %v10065 = vsel %vm9928, %v9808, %v5997
    %v10066 = vsel %vm9928, %v9809, %v5999
    %v10067 = vsel %vm9928, %v9810, %v6001
    %v10068 = vsel %vm9928, %v9811, %v6003
    %v10069 = vsel %vm9928, %v9812, %v6005
    %v10070 = vsel %vm9928, %v9813, %v6007
    %v10071 = vsel %vm9928, %v9814, %v6009
    %v10072 = vsel %vm9928, %v9815, %v6011
    %v10073 = vsel %vm9928, %v9816, %v6013
    %v10074 = vsel %vm9928, %v9817, %v6015
    %v10075 = vsel %vm9928, %v9818, %v6017
    %v10076 = vsel %vm9928, %v9819, %v6019
    %v10077 = vsel %vm9928, %v9820, %v6021
    %v10078 = vsel %vm9928, %v9821, %v6023
    %v10079 = vsel %vm9928, %v9822, %v6025
    %v10080 = vsel %vm9928, %v9823, %v6027
    %v10081 = vsel %vm9928, %v9824, %v6029
    %v10082 = vsel %vm9928, %v9825, %v6031
    %v10083 = vsel %vm9928, %v9826, %v6033
    %v10084 = vsel %vm9928, %v9827, %v6035
    %v10085 = vsel %vm9928, %v9828, %v6037
    %v10086 = vsel %vm9928, %v9829, %v6039
    %v10087 = vsel %vm9928, %v9830, %v6041
    %v10088 = vsel %vm9928, %v9831, %v6043
    %v10089 = vsel %vm9928, %v9832, %v6045
    %v10090 = vsel %vm9928, %v9833, %v6047
    %v10091 = vsel %vm9928, %v9834, %v6049
    %v10092 = vsel %vm9928, %v9835, %v6051
    %v10093 = vsel %vm9928, %v9836, %v6053
    %v10094 = vsel %vm9928, %v9837, %v6055
    %v10095 = vsel %vm9928, %v9838, %v6057
    %v10096 = vsel %vm9928, %v9839, %v6059
    %v10097 = vsel %vm9928, %v9840, %v6061
    %v10098 = vsel %vm9928, %v9841, %v6063
    %v10099 = vsel %vm9928, %v9842, %v6065
    %v10100 = vsel %vm9928, %v9843, %v6067
    %v10101 = vsel %vm9928, %v9844, %v6069
    %v10102 = vsel %vm9928, %v9845, %v6071
    %v10103 = vsel %vm9928, %v9846, %v6073
    %v10104 = vsel %vm9928, %v9847, %v6075
    %v10105 = vsel %vm9928, %v9848, %v6077
    %v10106 = vsel %vm9928, %v9849, %v6079
    %v10107 = vsel %vm9928, %v9850, %v6081
    %v10108 = vsel %vm9928, %v9851, %v6083
    %v10109 = vsel %vm9928, %v9852, %v6085
    %v10110 = vsel %vm9928, %v9853, %v6087
    %v10111 = vsel %vm9928, %v9854, %v6089
    %v10112 = vsel %vm9928, %v9855, %v6091
    %v10113 = vsel %vm9928, %v9856, %v6093
    %v10114 = vsel %vm9928, %v9857, %v6095
    %v10115 = vsel %vm9928, %v9858, %v6097
    %v10116 = vsel %vm9928, %v9859, %v6099
    %v10117 = vsel %vm9928, %v9860, %v6101
    %v10118 = vsel %vm9928, %v9861, %v6103
    %v10119 = vsel %vm9928, %v9862, %v6105
    %v10120 = vsel %vm9928, %v9863, %v6107
    %v10121 = vsel %vm9928, %v9864, %v6109
    %v10122 = vsel %vm9928, %v9865, %v6111
    %v10123 = vsel %vm9928, %v9866, %v6113
    %v10124 = vsel %vm9928, %v9867, %v6115
    %v10125 = vsel %vm9928, %v9868, %v6117
    %v10126 = vsel %vm9928, %v9869, %v6119
    %v10127 = vsel %vm9928, %v9870, %v6121
    %v10128 = vsel %vm9928, %v9871, %v6123
    %v10129 = vsel %vm9928, %v9872, %v6125
    %v10130 = vsel %vm9928, %v9873, %v6127
    %v10131 = vsel %vm9928, %v9874, %v6129
    %v10132 = vsel %vm9928, %v9875, %v6131
    %v10133 = vsel %vm9928, %v9876, %v6133
    %v10134 = vsel %vm9928, %v9877, %v6135
    %v10135 = vsel %vm9928, %v9878, %v6137
    %v10136 = vsel %vm9928, %v9879, %v6139
    %v10137 = vsel %vm9928, %v9880, %v6141
    %v10138 = vsel %vm9928, %v9881, %v6143
    %v10139 = vsel %vm9928, %v9882, %v6145
    %v10140 = vsel %vm9928, %v9883, %v6147
    %v10141 = vsel %vm9928, %v9884, %v6149
    %v10142 = vsel %vm9928, %v9885, %v6151
    %v10143 = vsel %vm9928, %v9886, %v6153
    %v10144 = vsel %vm9928, %v9887, %v6155
    %v10145 = vsel %vm9928, %v9888, %v6157
    %v10146 = vsel %vm9928, %v9889, %v6159
    %v10147 = vsel %vm9928, %v9890, %v6161
    %v10148 = vsel %vm9928, %v9891, %v6163
    %v10149 = vsel %vm9928, %v9892, %v6165
    %v10150 = vsel %vm9928, %v9893, %v6167
    %v10151 = vsel %vm9928, %v9894, %v6169
    %v10152 = vsel %vm9928, %v9895, %v6171
    %v10153 = vsel %vm9928, %v9896, %v6173
    %v10154 = vsel %vm9928, %v9897, %v6175
    %v10155 = vsel %vm9928, %v9898, %v6177
    %v10156 = vsel %vm9928, %v9899, %v6179
    %v10157 = vsel %vm9928, %v9900, %v6181
    %v10158 = vsel %vm9928, %v9901, %v6183
    %v10159 = vsel %vm9928, %v9902, %v6185
    %v10160 = vsel %vm9928, %v9903, %v6187
    %v10161 = vsel %vm9928, %v9904, %v6189
    %v10162 = vsel %vm9928, %v9905, %v6191
    %v10163 = vsel %vm9928, %v9906, %v6193
    %v10164 = vsel %vm9928, %v9907, %v6195
    %v10165 = vsel %vm9928, %v9908, %v6197
    %v10166 = vsel %vm9928, %v9909, %v6199
    %v10167 = vsel %vm9928, %v9910, %v6201
    %v10168 = vsel %vm9928, %v9911, %v6203
    %v10169 = vsel %vm9928, %v9912, %v6205
    %v10170 = vsel %vm9928, %v9913, %v6207
    %v10171 = vsel %vm9928, %v9914, %v6209
    %v10172 = vsel %vm9928, %v9915, %v6211
    %v10173 = vsel %vm9928, %v9916, %v6213
    %v10174 = vsel %vm9928, %v9917, %v6215
    %v10175 = vsel %vm9928, %v9918, %v6217
    %v10176 = vsel %vm9928, %v9919, %v6219
    %v10177 = vsel %vm9928, %v9920, %v6221
    %v10178 = vsel %vm9928, %v9921, %v6223
    %v10179 = vsel %vm9928, %v9922, %v6225
    %v10180 = vsel %vm9928, %v9923, %v6227
    %v10181 = vsel %vm9928, %v9924, %v6229
    %v10182 = vsel %vm9928, %v9925, %v6231
    %v10183 = vsel %vm9928, %v9926, %v6233
    %v10184 = vsel %vm9928, %v9927, %v6235
    %vm10185 = vcmask 195584
    %v10186 = vsel %vm10185, %v9929, %v6509
    %v10187 = vsel %vm10185, %v9930, %v6511
    %v10188 = vsel %vm10185, %v9931, %v6513
    %v10189 = vsel %vm10185, %v9932, %v6515
    %v10190 = vsel %vm10185, %v9933, %v6517
    %v10191 = vsel %vm10185, %v9934, %v6519
    %v10192 = vsel %vm10185, %v9935, %v6521
    %v10193 = vsel %vm10185, %v9936, %v6523
    %v10194 = vsel %vm10185, %v9937, %v6525
    %v10195 = vsel %vm10185, %v9938, %v6527
    %v10196 = vsel %vm10185, %v9939, %v6529
    %v10197 = vsel %vm10185, %v9940, %v6531
    %v10198 = vsel %vm10185, %v9941, %v6533
    %v10199 = vsel %vm10185, %v9942, %v6535
    %v10200 = vsel %vm10185, %v9943, %v6537
    %v10201 = vsel %vm10185, %v9944, %v6539
    %v10202 = vsel %vm10185, %v9945, %v6541
    %v10203 = vsel %vm10185, %v9946, %v6543
    %v10204 = vsel %vm10185, %v9947, %v6545
    %v10205 = vsel %vm10185, %v9948, %v6547
    %v10206 = vsel %vm10185, %v9949, %v6549
    %v10207 = vsel %vm10185, %v9950, %v6551
    %v10208 = vsel %vm10185, %v9951, %v6553
    %v10209 = vsel %vm10185, %v9952, %v6555
    %v10210 = vsel %vm10185, %v9953, %v6557
    %v10211 = vsel %vm10185, %v9954, %v6559
    %v10212 = vsel %vm10185, %v9955, %v6561
    %v10213 = vsel %vm10185, %v9956, %v6563
    %v10214 = vsel %vm10185, %v9957, %v6565
    %v10215 = vsel %vm10185, %v9958, %v6567
    %v10216 = vsel %vm10185, %v9959, %v6569
    %v10217 = vsel %vm10185, %v9960, %v6571
    %v10218 = vsel %vm10185, %v9961, %v6573
    %v10219 = vsel %vm10185, %v9962, %v6575
    %v10220 = vsel %vm10185, %v9963, %v6577
    %v10221 = vsel %vm10185, %v9964, %v6579
    %v10222 = vsel %vm10185, %v9965, %v6581
    %v10223 = vsel %vm10185, %v9966, %v6583
    %v10224 = vsel %vm10185, %v9967, %v6585
    %v10225 = vsel %vm10185, %v9968, %v6587
    %v10226 = vsel %vm10185, %v9969, %v6589
    %v10227 = vsel %vm10185, %v9970, %v6591
    %v10228 = vsel %vm10185, %v9971, %v6593
    %v10229 = vsel %vm10185, %v9972, %v6595
    %v10230 = vsel %vm10185, %v9973, %v6597
    %v10231 = vsel %vm10185, %v9974, %v6599
    %v10232 = vsel %vm10185, %v9975, %v6601
    %v10233 = vsel %vm10185, %v9976, %v6603
    %v10234 = vsel %vm10185, %v9977, %v6605
    %v10235 = vsel %vm10185, %v9978, %v6607
    %v10236 = vsel %vm10185, %v9979, %v6609
    %v10237 = vsel %vm10185, %v9980, %v6611
    %v10238 = vsel %vm10185, %v9981, %v6613
    %v10239 = vsel %vm10185, %v9982, %v6615
    %v10240 = vsel %vm10185, %v9983, %v6617
    %v10241 = vsel %vm10185, %v9984, %v6619
    %v10242 = vsel %vm10185, %v9985, %v6621
    %v10243 = vsel %vm10185, %v9986, %v6623
    %v10244 = vsel %vm10185, %v9987, %v6625
    %v10245 = vsel %vm10185, %v9988, %v6627
    %v10246 = vsel %vm10185, %v9989, %v6629
    %v10247 = vsel %vm10185, %v9990, %v6631
    %v10248 = vsel %vm10185, %v9991, %v6633
    %v10249 = vsel %vm10185, %v9992, %v6635
    %v10250 = vsel %vm10185, %v9993, %v6637
    %v10251 = vsel %vm10185, %v9994, %v6639
    %v10252 = vsel %vm10185, %v9995, %v6641
    %v10253 = vsel %vm10185, %v9996, %v6643
    %v10254 = vsel %vm10185, %v9997, %v6645
    %v10255 = vsel %vm10185, %v9998, %v6647
    %v10256 = vsel %vm10185, %v9999, %v6649
    %v10257 = vsel %vm10185, %v10000, %v6651
    %v10258 = vsel %vm10185, %v10001, %v6653
    %v10259 = vsel %vm10185, %v10002, %v6655
    %v10260 = vsel %vm10185, %v10003, %v6657
    %v10261 = vsel %vm10185, %v10004, %v6659
    %v10262 = vsel %vm10185, %v10005, %v6661
    %v10263 = vsel %vm10185, %v10006, %v6663
    %v10264 = vsel %vm10185, %v10007, %v6665
    %v10265 = vsel %vm10185, %v10008, %v6667
    %v10266 = vsel %vm10185, %v10009, %v6669
    %v10267 = vsel %vm10185, %v10010, %v6671
    %v10268 = vsel %vm10185, %v10011, %v6673
    %v10269 = vsel %vm10185, %v10012, %v6675
    %v10270 = vsel %vm10185, %v10013, %v6677
    %v10271 = vsel %vm10185, %v10014, %v6679
    %v10272 = vsel %vm10185, %v10015, %v6681
    %v10273 = vsel %vm10185, %v10016, %v6683
    %v10274 = vsel %vm10185, %v10017, %v6685
    %v10275 = vsel %vm10185, %v10018, %v6687
    %v10276 = vsel %vm10185, %v10019, %v6689
    %v10277 = vsel %vm10185, %v10020, %v6691
    %v10278 = vsel %vm10185, %v10021, %v6693
    %v10279 = vsel %vm10185, %v10022, %v6695
    %v10280 = vsel %vm10185, %v10023, %v6697
    %v10281 = vsel %vm10185, %v10024, %v6699
    %v10282 = vsel %vm10185, %v10025, %v6701
    %v10283 = vsel %vm10185, %v10026, %v6703
    %v10284 = vsel %vm10185, %v10027, %v6705
    %v10285 = vsel %vm10185, %v10028, %v6707
    %v10286 = vsel %vm10185, %v10029, %v6709
    %v10287 = vsel %vm10185, %v10030, %v6711
    %v10288 = vsel %vm10185, %v10031, %v6713
    %v10289 = vsel %vm10185, %v10032, %v6715
    %v10290 = vsel %vm10185, %v10033, %v6717
    %v10291 = vsel %vm10185, %v10034, %v6719
    %v10292 = vsel %vm10185, %v10035, %v6721
    %v10293 = vsel %vm10185, %v10036, %v6723
    %v10294 = vsel %vm10185, %v10037, %v6725
    %v10295 = vsel %vm10185, %v10038, %v6727
    %v10296 = vsel %vm10185, %v10039, %v6729
    %v10297 = vsel %vm10185, %v10040, %v6731
    %v10298 = vsel %vm10185, %v10041, %v6733
    %v10299 = vsel %vm10185, %v10042, %v6735
    %v10300 = vsel %vm10185, %v10043, %v6737
    %v10301 = vsel %vm10185, %v10044, %v6739
    %v10302 = vsel %vm10185, %v10045, %v6741
    %v10303 = vsel %vm10185, %v10046, %v6743
    %v10304 = vsel %vm10185, %v10047, %v6745
    %v10305 = vsel %vm10185, %v10048, %v6747
    %v10306 = vsel %vm10185, %v10049, %v6749
    %v10307 = vsel %vm10185, %v10050, %v6751
    %v10308 = vsel %vm10185, %v10051, %v6753
    %v10309 = vsel %vm10185, %v10052, %v6755
    %v10310 = vsel %vm10185, %v10053, %v6757
    %v10311 = vsel %vm10185, %v10054, %v6759
    %v10312 = vsel %vm10185, %v10055, %v6761
    %v10313 = vsel %vm10185, %v10056, %v6763
    %v10314 = vsel %vm10185, %v10057, %v6765
    %v10315 = vsel %vm10185, %v10058, %v6767
    %v10316 = vsel %vm10185, %v10059, %v6769
    %v10317 = vsel %vm10185, %v10060, %v6771
    %v10318 = vsel %vm10185, %v10061, %v6773
    %v10319 = vsel %vm10185, %v10062, %v6775
    %v10320 = vsel %vm10185, %v10063, %v6777
    %v10321 = vsel %vm10185, %v10064, %v6779
    %v10322 = vsel %vm10185, %v10065, %v6781
    %v10323 = vsel %vm10185, %v10066, %v6783
    %v10324 = vsel %vm10185, %v10067, %v6785
    %v10325 = vsel %vm10185, %v10068, %v6787
    %v10326 = vsel %vm10185, %v10069, %v6789
    %v10327 = vsel %vm10185, %v10070, %v6791
    %v10328 = vsel %vm10185, %v10071, %v6793
    %v10329 = vsel %vm10185, %v10072, %v6795
    %v10330 = vsel %vm10185, %v10073, %v6797
    %v10331 = vsel %vm10185, %v10074, %v6799
    %v10332 = vsel %vm10185, %v10075, %v6801
    %v10333 = vsel %vm10185, %v10076, %v6803
    %v10334 = vsel %vm10185, %v10077, %v6805
    %v10335 = vsel %vm10185, %v10078, %v6807
    %v10336 = vsel %vm10185, %v10079, %v6809
    %v10337 = vsel %vm10185, %v10080, %v6811
    %v10338 = vsel %vm10185, %v10081, %v6813
    %v10339 = vsel %vm10185, %v10082, %v6815
    %v10340 = vsel %vm10185, %v10083, %v6817
    %v10341 = vsel %vm10185, %v10084, %v6819
    %v10342 = vsel %vm10185, %v10085, %v6821
    %v10343 = vsel %vm10185, %v10086, %v6823
    %v10344 = vsel %vm10185, %v10087, %v6825
    %v10345 = vsel %vm10185, %v10088, %v6827
    %v10346 = vsel %vm10185, %v10089, %v6829
    %v10347 = vsel %vm10185, %v10090, %v6831
    %v10348 = vsel %vm10185, %v10091, %v6833
    %v10349 = vsel %vm10185, %v10092, %v6835
    %v10350 = vsel %vm10185, %v10093, %v6837
    %v10351 = vsel %vm10185, %v10094, %v6839
    %v10352 = vsel %vm10185, %v10095, %v6841
    %v10353 = vsel %vm10185, %v10096, %v6843
    %v10354 = vsel %vm10185, %v10097, %v6845
    %v10355 = vsel %vm10185, %v10098, %v6847
    %v10356 = vsel %vm10185, %v10099, %v6849
    %v10357 = vsel %vm10185, %v10100, %v6851
    %v10358 = vsel %vm10185, %v10101, %v6853
    %v10359 = vsel %vm10185, %v10102, %v6855
    %v10360 = vsel %vm10185, %v10103, %v6857
    %v10361 = vsel %vm10185, %v10104, %v6859
    %v10362 = vsel %vm10185, %v10105, %v6861
    %v10363 = vsel %vm10185, %v10106, %v6863
    %v10364 = vsel %vm10185, %v10107, %v6865
    %v10365 = vsel %vm10185, %v10108, %v6867
    %v10366 = vsel %vm10185, %v10109, %v6869
    %v10367 = vsel %vm10185, %v10110, %v6871
    %v10368 = vsel %vm10185, %v10111, %v6873
    %v10369 = vsel %vm10185, %v10112, %v6875
    %v10370 = vsel %vm10185, %v10113, %v6877
    %v10371 = vsel %vm10185, %v10114, %v6879
    %v10372 = vsel %vm10185, %v10115, %v6881
    %v10373 = vsel %vm10185, %v10116, %v6883
    %v10374 = vsel %vm10185, %v10117, %v6885
    %v10375 = vsel %vm10185, %v10118, %v6887
    %v10376 = vsel %vm10185, %v10119, %v6889
    %v10377 = vsel %vm10185, %v10120, %v6891
    %v10378 = vsel %vm10185, %v10121, %v6893
    %v10379 = vsel %vm10185, %v10122, %v6895
    %v10380 = vsel %vm10185, %v10123, %v6897
    %v10381 = vsel %vm10185, %v10124, %v6899
    %v10382 = vsel %vm10185, %v10125, %v6901
    %v10383 = vsel %vm10185, %v10126, %v6903
    %v10384 = vsel %vm10185, %v10127, %v6905
    %v10385 = vsel %vm10185, %v10128, %v6907
    %v10386 = vsel %vm10185, %v10129, %v6909
    %v10387 = vsel %vm10185, %v10130, %v6911
    %v10388 = vsel %vm10185, %v10131, %v6913
    %v10389 = vsel %vm10185, %v10132, %v6915
    %v10390 = vsel %vm10185, %v10133, %v6917
    %v10391 = vsel %vm10185, %v10134, %v6919
    %v10392 = vsel %vm10185, %v10135, %v6921
    %v10393 = vsel %vm10185, %v10136, %v6923
    %v10394 = vsel %vm10185, %v10137, %v6925
    %v10395 = vsel %vm10185, %v10138, %v6927
    %v10396 = vsel %vm10185, %v10139, %v6929
    %v10397 = vsel %vm10185, %v10140, %v6931
    %v10398 = vsel %vm10185, %v10141, %v6933
    %v10399 = vsel %vm10185, %v10142, %v6935
    %v10400 = vsel %vm10185, %v10143, %v6937
    %v10401 = vsel %vm10185, %v10144, %v6939
    %v10402 = vsel %vm10185, %v10145, %v6941
    %v10403 = vsel %vm10185, %v10146, %v6943
    %v10404 = vsel %vm10185, %v10147, %v6945
    %v10405 = vsel %vm10185, %v10148, %v6947
    %v10406 = vsel %vm10185, %v10149, %v6949
    %v10407 = vsel %vm10185, %v10150, %v6951
    %v10408 = vsel %vm10185, %v10151, %v6953
    %v10409 = vsel %vm10185, %v10152, %v6955
    %v10410 = vsel %vm10185, %v10153, %v6957
    %v10411 = vsel %vm10185, %v10154, %v6959
    %v10412 = vsel %vm10185, %v10155, %v6961
    %v10413 = vsel %vm10185, %v10156, %v6963
    %v10414 = vsel %vm10185, %v10157, %v6965
    %v10415 = vsel %vm10185, %v10158, %v6967
    %v10416 = vsel %vm10185, %v10159, %v6969
    %v10417 = vsel %vm10185, %v10160, %v6971
    %v10418 = vsel %vm10185, %v10161, %v6973
    %v10419 = vsel %vm10185, %v10162, %v6975
    %v10420 = vsel %vm10185, %v10163, %v6977
    %v10421 = vsel %vm10185, %v10164, %v6979
    %v10422 = vsel %vm10185, %v10165, %v6981
    %v10423 = vsel %vm10185, %v10166, %v6983
    %v10424 = vsel %vm10185, %v10167, %v6985
    %v10425 = vsel %vm10185, %v10168, %v6987
    %v10426 = vsel %vm10185, %v10169, %v6989
    %v10427 = vsel %vm10185, %v10170, %v6991
    %v10428 = vsel %vm10185, %v10171, %v6993
    %v10429 = vsel %vm10185, %v10172, %v6995
    %v10430 = vsel %vm10185, %v10173, %v6997
    %v10431 = vsel %vm10185, %v10174, %v6999
    %v10432 = vsel %vm10185, %v10175, %v7001
    %v10433 = vsel %vm10185, %v10176, %v7003
    %v10434 = vsel %vm10185, %v10177, %v7005
    %v10435 = vsel %vm10185, %v10178, %v7007
    %v10436 = vsel %vm10185, %v10179, %v7009
    %v10437 = vsel %vm10185, %v10180, %v7011
    %v10438 = vsel %vm10185, %v10181, %v7013
    %v10439 = vsel %vm10185, %v10182, %v7015
    %v10440 = vsel %vm10185, %v10183, %v7017
    %v10441 = vsel %vm10185, %v10184, %v7019
    %vm10442 = vcmask 228352
    %v10443 = vsel %vm10442, %v10186, %v7325
    %v10444 = vsel %vm10442, %v10187, %v7327
    %v10445 = vsel %vm10442, %v10188, %v7329
    %v10446 = vsel %vm10442, %v10189, %v7331
    %v10447 = vsel %vm10442, %v10190, %v7333
    %v10448 = vsel %vm10442, %v10191, %v7335
    %v10449 = vsel %vm10442, %v10192, %v7337
    %v10450 = vsel %vm10442, %v10193, %v7339
    %v10451 = vsel %vm10442, %v10194, %v7341
    %v10452 = vsel %vm10442, %v10195, %v7343
    %v10453 = vsel %vm10442, %v10196, %v7345
    %v10454 = vsel %vm10442, %v10197, %v7347
    %v10455 = vsel %vm10442, %v10198, %v7349
    %v10456 = vsel %vm10442, %v10199, %v7351
    %v10457 = vsel %vm10442, %v10200, %v7353
    %v10458 = vsel %vm10442, %v10201, %v7355
    %v10459 = vsel %vm10442, %v10202, %v7357
    %v10460 = vsel %vm10442, %v10203, %v7359
    %v10461 = vsel %vm10442, %v10204, %v7361
    %v10462 = vsel %vm10442, %v10205, %v7363
    %v10463 = vsel %vm10442, %v10206, %v7365
    %v10464 = vsel %vm10442, %v10207, %v7367
    %v10465 = vsel %vm10442, %v10208, %v7369
    %v10466 = vsel %vm10442, %v10209, %v7371
    %v10467 = vsel %vm10442, %v10210, %v7373
    %v10468 = vsel %vm10442, %v10211, %v7375
    %v10469 = vsel %vm10442, %v10212, %v7377
    %v10470 = vsel %vm10442, %v10213, %v7379
    %v10471 = vsel %vm10442, %v10214, %v7381
    %v10472 = vsel %vm10442, %v10215, %v7383
    %v10473 = vsel %vm10442, %v10216, %v7385
    %v10474 = vsel %vm10442, %v10217, %v7387
    %v10475 = vsel %vm10442, %v10218, %v7389
    %v10476 = vsel %vm10442, %v10219, %v7391
    %v10477 = vsel %vm10442, %v10220, %v7393
    %v10478 = vsel %vm10442, %v10221, %v7395
    %v10479 = vsel %vm10442, %v10222, %v7397
    %v10480 = vsel %vm10442, %v10223, %v7399
    %v10481 = vsel %vm10442, %v10224, %v7401
    %v10482 = vsel %vm10442, %v10225, %v7403
    %v10483 = vsel %vm10442, %v10226, %v7405
    %v10484 = vsel %vm10442, %v10227, %v7407
    %v10485 = vsel %vm10442, %v10228, %v7409
    %v10486 = vsel %vm10442, %v10229, %v7411
    %v10487 = vsel %vm10442, %v10230, %v7413
    %v10488 = vsel %vm10442, %v10231, %v7415
    %v10489 = vsel %vm10442, %v10232, %v7417
    %v10490 = vsel %vm10442, %v10233, %v7419
    %v10491 = vsel %vm10442, %v10234, %v7421
    %v10492 = vsel %vm10442, %v10235, %v7423
    %v10493 = vsel %vm10442, %v10236, %v7425
    %v10494 = vsel %vm10442, %v10237, %v7427
    %v10495 = vsel %vm10442, %v10238, %v7429
    %v10496 = vsel %vm10442, %v10239, %v7431
    %v10497 = vsel %vm10442, %v10240, %v7433
    %v10498 = vsel %vm10442, %v10241, %v7435
    %v10499 = vsel %vm10442, %v10242, %v7437
    %v10500 = vsel %vm10442, %v10243, %v7439
    %v10501 = vsel %vm10442, %v10244, %v7441
    %v10502 = vsel %vm10442, %v10245, %v7443
    %v10503 = vsel %vm10442, %v10246, %v7445
    %v10504 = vsel %vm10442, %v10247, %v7447
    %v10505 = vsel %vm10442, %v10248, %v7449
    %v10506 = vsel %vm10442, %v10249, %v7451
    %v10507 = vsel %vm10442, %v10250, %v7453
    %v10508 = vsel %vm10442, %v10251, %v7455
    %v10509 = vsel %vm10442, %v10252, %v7457
    %v10510 = vsel %vm10442, %v10253, %v7459
    %v10511 = vsel %vm10442, %v10254, %v7461
    %v10512 = vsel %vm10442, %v10255, %v7463
    %v10513 = vsel %vm10442, %v10256, %v7465
    %v10514 = vsel %vm10442, %v10257, %v7467
    %v10515 = vsel %vm10442, %v10258, %v7469
    %v10516 = vsel %vm10442, %v10259, %v7471
    %v10517 = vsel %vm10442, %v10260, %v7473
    %v10518 = vsel %vm10442, %v10261, %v7475
    %v10519 = vsel %vm10442, %v10262, %v7477
    %v10520 = vsel %vm10442, %v10263, %v7479
    %v10521 = vsel %vm10442, %v10264, %v7481
    %v10522 = vsel %vm10442, %v10265, %v7483
    %v10523 = vsel %vm10442, %v10266, %v7485
    %v10524 = vsel %vm10442, %v10267, %v7487
    %v10525 = vsel %vm10442, %v10268, %v7489
    %v10526 = vsel %vm10442, %v10269, %v7491
    %v10527 = vsel %vm10442, %v10270, %v7493
    %v10528 = vsel %vm10442, %v10271, %v7495
    %v10529 = vsel %vm10442, %v10272, %v7497
    %v10530 = vsel %vm10442, %v10273, %v7499
    %v10531 = vsel %vm10442, %v10274, %v7501
    %v10532 = vsel %vm10442, %v10275, %v7503
    %v10533 = vsel %vm10442, %v10276, %v7505
    %v10534 = vsel %vm10442, %v10277, %v7507
    %v10535 = vsel %vm10442, %v10278, %v7509
    %v10536 = vsel %vm10442, %v10279, %v7511
    %v10537 = vsel %vm10442, %v10280, %v7513
    %v10538 = vsel %vm10442, %v10281, %v7515
    %v10539 = vsel %vm10442, %v10282, %v7517
    %v10540 = vsel %vm10442, %v10283, %v7519
    %v10541 = vsel %vm10442, %v10284, %v7521
    %v10542 = vsel %vm10442, %v10285, %v7523
    %v10543 = vsel %vm10442, %v10286, %v7525
    %v10544 = vsel %vm10442, %v10287, %v7527
    %v10545 = vsel %vm10442, %v10288, %v7529
    %v10546 = vsel %vm10442, %v10289, %v7531
    %v10547 = vsel %vm10442, %v10290, %v7533
    %v10548 = vsel %vm10442, %v10291, %v7535
    %v10549 = vsel %vm10442, %v10292, %v7537
    %v10550 = vsel %vm10442, %v10293, %v7539
    %v10551 = vsel %vm10442, %v10294, %v7541
    %v10552 = vsel %vm10442, %v10295, %v7543
    %v10553 = vsel %vm10442, %v10296, %v7545
    %v10554 = vsel %vm10442, %v10297, %v7547
    %v10555 = vsel %vm10442, %v10298, %v7549
    %v10556 = vsel %vm10442, %v10299, %v7551
    %v10557 = vsel %vm10442, %v10300, %v7553
    %v10558 = vsel %vm10442, %v10301, %v7555
    %v10559 = vsel %vm10442, %v10302, %v7557
    %v10560 = vsel %vm10442, %v10303, %v7559
    %v10561 = vsel %vm10442, %v10304, %v7561
    %v10562 = vsel %vm10442, %v10305, %v7563
    %v10563 = vsel %vm10442, %v10306, %v7565
    %v10564 = vsel %vm10442, %v10307, %v7567
    %v10565 = vsel %vm10442, %v10308, %v7569
    %v10566 = vsel %vm10442, %v10309, %v7571
    %v10567 = vsel %vm10442, %v10310, %v7573
    %v10568 = vsel %vm10442, %v10311, %v7575
    %v10569 = vsel %vm10442, %v10312, %v7577
    %v10570 = vsel %vm10442, %v10313, %v7579
    %v10571 = vsel %vm10442, %v10314, %v7581
    %v10572 = vsel %vm10442, %v10315, %v7583
    %v10573 = vsel %vm10442, %v10316, %v7585
    %v10574 = vsel %vm10442, %v10317, %v7587
    %v10575 = vsel %vm10442, %v10318, %v7589
    %v10576 = vsel %vm10442, %v10319, %v7591
    %v10577 = vsel %vm10442, %v10320, %v7593
    %v10578 = vsel %vm10442, %v10321, %v7595
    %v10579 = vsel %vm10442, %v10322, %v7597
    %v10580 = vsel %vm10442, %v10323, %v7599
    %v10581 = vsel %vm10442, %v10324, %v7601
    %v10582 = vsel %vm10442, %v10325, %v7603
    %v10583 = vsel %vm10442, %v10326, %v7605
    %v10584 = vsel %vm10442, %v10327, %v7607
    %v10585 = vsel %vm10442, %v10328, %v7609
    %v10586 = vsel %vm10442, %v10329, %v7611
    %v10587 = vsel %vm10442, %v10330, %v7613
    %v10588 = vsel %vm10442, %v10331, %v7615
    %v10589 = vsel %vm10442, %v10332, %v7617
    %v10590 = vsel %vm10442, %v10333, %v7619
    %v10591 = vsel %vm10442, %v10334, %v7621
    %v10592 = vsel %vm10442, %v10335, %v7623
    %v10593 = vsel %vm10442, %v10336, %v7625
    %v10594 = vsel %vm10442, %v10337, %v7627
    %v10595 = vsel %vm10442, %v10338, %v7629
    %v10596 = vsel %vm10442, %v10339, %v7631
    %v10597 = vsel %vm10442, %v10340, %v7633
    %v10598 = vsel %vm10442, %v10341, %v7635
    %v10599 = vsel %vm10442, %v10342, %v7637
    %v10600 = vsel %vm10442, %v10343, %v7639
    %v10601 = vsel %vm10442, %v10344, %v7641
    %v10602 = vsel %vm10442, %v10345, %v7643
    %v10603 = vsel %vm10442, %v10346, %v7645
    %v10604 = vsel %vm10442, %v10347, %v7647
    %v10605 = vsel %vm10442, %v10348, %v7649
    %v10606 = vsel %vm10442, %v10349, %v7651
    %v10607 = vsel %vm10442, %v10350, %v7653
    %v10608 = vsel %vm10442, %v10351, %v7655
    %v10609 = vsel %vm10442, %v10352, %v7657
    %v10610 = vsel %vm10442, %v10353, %v7659
    %v10611 = vsel %vm10442, %v10354, %v7661
    %v10612 = vsel %vm10442, %v10355, %v7663
    %v10613 = vsel %vm10442, %v10356, %v7665
    %v10614 = vsel %vm10442, %v10357, %v7667
    %v10615 = vsel %vm10442, %v10358, %v7669
    %v10616 = vsel %vm10442, %v10359, %v7671
    %v10617 = vsel %vm10442, %v10360, %v7673
    %v10618 = vsel %vm10442, %v10361, %v7675
    %v10619 = vsel %vm10442, %v10362, %v7677
    %v10620 = vsel %vm10442, %v10363, %v7679
    %v10621 = vsel %vm10442, %v10364, %v7681
    %v10622 = vsel %vm10442, %v10365, %v7683
    %v10623 = vsel %vm10442, %v10366, %v7685
    %v10624 = vsel %vm10442, %v10367, %v7687
    %v10625 = vsel %vm10442, %v10368, %v7689
    %v10626 = vsel %vm10442, %v10369, %v7691
    %v10627 = vsel %vm10442, %v10370, %v7693
    %v10628 = vsel %vm10442, %v10371, %v7695
    %v10629 = vsel %vm10442, %v10372, %v7697
    %v10630 = vsel %vm10442, %v10373, %v7699
    %v10631 = vsel %vm10442, %v10374, %v7701
    %v10632 = vsel %vm10442, %v10375, %v7703
    %v10633 = vsel %vm10442, %v10376, %v7705
    %v10634 = vsel %vm10442, %v10377, %v7707
    %v10635 = vsel %vm10442, %v10378, %v7709
    %v10636 = vsel %vm10442, %v10379, %v7711
    %v10637 = vsel %vm10442, %v10380, %v7713
    %v10638 = vsel %vm10442, %v10381, %v7715
    %v10639 = vsel %vm10442, %v10382, %v7717
    %v10640 = vsel %vm10442, %v10383, %v7719
    %v10641 = vsel %vm10442, %v10384, %v7721
    %v10642 = vsel %vm10442, %v10385, %v7723
    %v10643 = vsel %vm10442, %v10386, %v7725
    %v10644 = vsel %vm10442, %v10387, %v7727
    %v10645 = vsel %vm10442, %v10388, %v7729
    %v10646 = vsel %vm10442, %v10389, %v7731
    %v10647 = vsel %vm10442, %v10390, %v7733
    %v10648 = vsel %vm10442, %v10391, %v7735
    %v10649 = vsel %vm10442, %v10392, %v7737
    %v10650 = vsel %vm10442, %v10393, %v7739
    %v10651 = vsel %vm10442, %v10394, %v7741
    %v10652 = vsel %vm10442, %v10395, %v7743
    %v10653 = vsel %vm10442, %v10396, %v7745
    %v10654 = vsel %vm10442, %v10397, %v7747
    %v10655 = vsel %vm10442, %v10398, %v7749
    %v10656 = vsel %vm10442, %v10399, %v7751
    %v10657 = vsel %vm10442, %v10400, %v7753
    %v10658 = vsel %vm10442, %v10401, %v7755
    %v10659 = vsel %vm10442, %v10402, %v7757
    %v10660 = vsel %vm10442, %v10403, %v7759
    %v10661 = vsel %vm10442, %v10404, %v7761
    %v10662 = vsel %vm10442, %v10405, %v7763
    %v10663 = vsel %vm10442, %v10406, %v7765
    %v10664 = vsel %vm10442, %v10407, %v7767
    %v10665 = vsel %vm10442, %v10408, %v7769
    %v10666 = vsel %vm10442, %v10409, %v7771
    %v10667 = vsel %vm10442, %v10410, %v7773
    %v10668 = vsel %vm10442, %v10411, %v7775
    %v10669 = vsel %vm10442, %v10412, %v7777
    %v10670 = vsel %vm10442, %v10413, %v7779
    %v10671 = vsel %vm10442, %v10414, %v7781
    %v10672 = vsel %vm10442, %v10415, %v7783
    %v10673 = vsel %vm10442, %v10416, %v7785
    %v10674 = vsel %vm10442, %v10417, %v7787
    %v10675 = vsel %vm10442, %v10418, %v7789
    %v10676 = vsel %vm10442, %v10419, %v7791
    %v10677 = vsel %vm10442, %v10420, %v7793
    %v10678 = vsel %vm10442, %v10421, %v7795
    %v10679 = vsel %vm10442, %v10422, %v7797
    %v10680 = vsel %vm10442, %v10423, %v7799
    %v10681 = vsel %vm10442, %v10424, %v7801
    %v10682 = vsel %vm10442, %v10425, %v7803
    %v10683 = vsel %vm10442, %v10426, %v7805
    %v10684 = vsel %vm10442, %v10427, %v7807
    %v10685 = vsel %vm10442, %v10428, %v7809
    %v10686 = vsel %vm10442, %v10429, %v7811
    %v10687 = vsel %vm10442, %v10430, %v7813
    %v10688 = vsel %vm10442, %v10431, %v7815
    %v10689 = vsel %vm10442, %v10432, %v7817
    %v10690 = vsel %vm10442, %v10433, %v7819
    %v10691 = vsel %vm10442, %v10434, %v7821
    %v10692 = vsel %vm10442, %v10435, %v7823
    %v10693 = vsel %vm10442, %v10436, %v7825
    %v10694 = vsel %vm10442, %v10437, %v7827
    %v10695 = vsel %vm10442, %v10438, %v7829
    %v10696 = vsel %vm10442, %v10439, %v7831
    %v10697 = vsel %vm10442, %v10440, %v7833
    %v10698 = vsel %vm10442, %v10441, %v7835
    %vm10699 = vcmask 261120
    %v10700 = vsel %vm10699, %v10443, %v8133
    %v10701 = vsel %vm10699, %v10444, %v8135
    %v10702 = vsel %vm10699, %v10445, %v8137
    %v10703 = vsel %vm10699, %v10446, %v8139
    %v10704 = vsel %vm10699, %v10447, %v8141
    %v10705 = vsel %vm10699, %v10448, %v8143
    %v10706 = vsel %vm10699, %v10449, %v8145
    %v10707 = vsel %vm10699, %v10450, %v8147
    %v10708 = vsel %vm10699, %v10451, %v8149
    %v10709 = vsel %vm10699, %v10452, %v8151
    %v10710 = vsel %vm10699, %v10453, %v8153
    %v10711 = vsel %vm10699, %v10454, %v8155
    %v10712 = vsel %vm10699, %v10455, %v8157
    %v10713 = vsel %vm10699, %v10456, %v8159
    %v10714 = vsel %vm10699, %v10457, %v8161
    %v10715 = vsel %vm10699, %v10458, %v8163
    %v10716 = vsel %vm10699, %v10459, %v8165
    %v10717 = vsel %vm10699, %v10460, %v8167
    %v10718 = vsel %vm10699, %v10461, %v8169
    %v10719 = vsel %vm10699, %v10462, %v8171
    %v10720 = vsel %vm10699, %v10463, %v8173
    %v10721 = vsel %vm10699, %v10464, %v8175
    %v10722 = vsel %vm10699, %v10465, %v8177
    %v10723 = vsel %vm10699, %v10466, %v8179
    %v10724 = vsel %vm10699, %v10467, %v8181
    %v10725 = vsel %vm10699, %v10468, %v8183
    %v10726 = vsel %vm10699, %v10469, %v8185
    %v10727 = vsel %vm10699, %v10470, %v8187
    %v10728 = vsel %vm10699, %v10471, %v8189
    %v10729 = vsel %vm10699, %v10472, %v8191
    %v10730 = vsel %vm10699, %v10473, %v8193
    %v10731 = vsel %vm10699, %v10474, %v8195
    %v10732 = vsel %vm10699, %v10475, %v8197
    %v10733 = vsel %vm10699, %v10476, %v8199
    %v10734 = vsel %vm10699, %v10477, %v8201
    %v10735 = vsel %vm10699, %v10478, %v8203
    %v10736 = vsel %vm10699, %v10479, %v8205
    %v10737 = vsel %vm10699, %v10480, %v8207
    %v10738 = vsel %vm10699, %v10481, %v8209
    %v10739 = vsel %vm10699, %v10482, %v8211
    %v10740 = vsel %vm10699, %v10483, %v8213
    %v10741 = vsel %vm10699, %v10484, %v8215
    %v10742 = vsel %vm10699, %v10485, %v8217
    %v10743 = vsel %vm10699, %v10486, %v8219
    %v10744 = vsel %vm10699, %v10487, %v8221
    %v10745 = vsel %vm10699, %v10488, %v8223
    %v10746 = vsel %vm10699, %v10489, %v8225
    %v10747 = vsel %vm10699, %v10490, %v8227
    %v10748 = vsel %vm10699, %v10491, %v8229
    %v10749 = vsel %vm10699, %v10492, %v8231
    %v10750 = vsel %vm10699, %v10493, %v8233
    %v10751 = vsel %vm10699, %v10494, %v8235
    %v10752 = vsel %vm10699, %v10495, %v8237
    %v10753 = vsel %vm10699, %v10496, %v8239
    %v10754 = vsel %vm10699, %v10497, %v8241
    %v10755 = vsel %vm10699, %v10498, %v8243
    %v10756 = vsel %vm10699, %v10499, %v8245
    %v10757 = vsel %vm10699, %v10500, %v8247
    %v10758 = vsel %vm10699, %v10501, %v8249
    %v10759 = vsel %vm10699, %v10502, %v8251
    %v10760 = vsel %vm10699, %v10503, %v8253
    %v10761 = vsel %vm10699, %v10504, %v8255
    %v10762 = vsel %vm10699, %v10505, %v8257
    %v10763 = vsel %vm10699, %v10506, %v8259
    %v10764 = vsel %vm10699, %v10507, %v8261
    %v10765 = vsel %vm10699, %v10508, %v8263
    %v10766 = vsel %vm10699, %v10509, %v8265
    %v10767 = vsel %vm10699, %v10510, %v8267
    %v10768 = vsel %vm10699, %v10511, %v8269
    %v10769 = vsel %vm10699, %v10512, %v8271
    %v10770 = vsel %vm10699, %v10513, %v8273
    %v10771 = vsel %vm10699, %v10514, %v8275
    %v10772 = vsel %vm10699, %v10515, %v8277
    %v10773 = vsel %vm10699, %v10516, %v8279
    %v10774 = vsel %vm10699, %v10517, %v8281
    %v10775 = vsel %vm10699, %v10518, %v8283
    %v10776 = vsel %vm10699, %v10519, %v8285
    %v10777 = vsel %vm10699, %v10520, %v8287
    %v10778 = vsel %vm10699, %v10521, %v8289
    %v10779 = vsel %vm10699, %v10522, %v8291
    %v10780 = vsel %vm10699, %v10523, %v8293
    %v10781 = vsel %vm10699, %v10524, %v8295
    %v10782 = vsel %vm10699, %v10525, %v8297
    %v10783 = vsel %vm10699, %v10526, %v8299
    %v10784 = vsel %vm10699, %v10527, %v8301
    %v10785 = vsel %vm10699, %v10528, %v8303
    %v10786 = vsel %vm10699, %v10529, %v8305
    %v10787 = vsel %vm10699, %v10530, %v8307
    %v10788 = vsel %vm10699, %v10531, %v8309
    %v10789 = vsel %vm10699, %v10532, %v8311
    %v10790 = vsel %vm10699, %v10533, %v8313
    %v10791 = vsel %vm10699, %v10534, %v8315
    %v10792 = vsel %vm10699, %v10535, %v8317
    %v10793 = vsel %vm10699, %v10536, %v8319
    %v10794 = vsel %vm10699, %v10537, %v8321
    %v10795 = vsel %vm10699, %v10538, %v8323
    %v10796 = vsel %vm10699, %v10539, %v8325
    %v10797 = vsel %vm10699, %v10540, %v8327
    %v10798 = vsel %vm10699, %v10541, %v8329
    %v10799 = vsel %vm10699, %v10542, %v8331
    %v10800 = vsel %vm10699, %v10543, %v8333
    %v10801 = vsel %vm10699, %v10544, %v8335
    %v10802 = vsel %vm10699, %v10545, %v8337
    %v10803 = vsel %vm10699, %v10546, %v8339
    %v10804 = vsel %vm10699, %v10547, %v8341
    %v10805 = vsel %vm10699, %v10548, %v8343
    %v10806 = vsel %vm10699, %v10549, %v8345
    %v10807 = vsel %vm10699, %v10550, %v8347
    %v10808 = vsel %vm10699, %v10551, %v8349
    %v10809 = vsel %vm10699, %v10552, %v8351
    %v10810 = vsel %vm10699, %v10553, %v8353
    %v10811 = vsel %vm10699, %v10554, %v8355
    %v10812 = vsel %vm10699, %v10555, %v8357
    %v10813 = vsel %vm10699, %v10556, %v8359
    %v10814 = vsel %vm10699, %v10557, %v8361
    %v10815 = vsel %vm10699, %v10558, %v8363
    %v10816 = vsel %vm10699, %v10559, %v8365
    %v10817 = vsel %vm10699, %v10560, %v8367
    %v10818 = vsel %vm10699, %v10561, %v8369
    %v10819 = vsel %vm10699, %v10562, %v8371
    %v10820 = vsel %vm10699, %v10563, %v8373
    %v10821 = vsel %vm10699, %v10564, %v8375
    %v10822 = vsel %vm10699, %v10565, %v8377
    %v10823 = vsel %vm10699, %v10566, %v8379
    %v10824 = vsel %vm10699, %v10567, %v8381
    %v10825 = vsel %vm10699, %v10568, %v8383
    %v10826 = vsel %vm10699, %v10569, %v8385
    %v10827 = vsel %vm10699, %v10570, %v8387
    %v10828 = vsel %vm10699, %v10571, %v8389
    %v10829 = vsel %vm10699, %v10572, %v8391
    %v10830 = vsel %vm10699, %v10573, %v8393
    %v10831 = vsel %vm10699, %v10574, %v8395
    %v10832 = vsel %vm10699, %v10575, %v8397
    %v10833 = vsel %vm10699, %v10576, %v8399
    %v10834 = vsel %vm10699, %v10577, %v8401
    %v10835 = vsel %vm10699, %v10578, %v8403
    %v10836 = vsel %vm10699, %v10579, %v8405
    %v10837 = vsel %vm10699, %v10580, %v8407
    %v10838 = vsel %vm10699, %v10581, %v8409
    %v10839 = vsel %vm10699, %v10582, %v8411
    %v10840 = vsel %vm10699, %v10583, %v8413
    %v10841 = vsel %vm10699, %v10584, %v8415
    %v10842 = vsel %vm10699, %v10585, %v8417
    %v10843 = vsel %vm10699, %v10586, %v8419
    %v10844 = vsel %vm10699, %v10587, %v8421
    %v10845 = vsel %vm10699, %v10588, %v8423
    %v10846 = vsel %vm10699, %v10589, %v8425
    %v10847 = vsel %vm10699, %v10590, %v8427
    %v10848 = vsel %vm10699, %v10591, %v8429
    %v10849 = vsel %vm10699, %v10592, %v8431
    %v10850 = vsel %vm10699, %v10593, %v8433
    %v10851 = vsel %vm10699, %v10594, %v8435
    %v10852 = vsel %vm10699, %v10595, %v8437
    %v10853 = vsel %vm10699, %v10596, %v8439
    %v10854 = vsel %vm10699, %v10597, %v8441
    %v10855 = vsel %vm10699, %v10598, %v8443
    %v10856 = vsel %vm10699, %v10599, %v8445
    %v10857 = vsel %vm10699, %v10600, %v8447
    %v10858 = vsel %vm10699, %v10601, %v8449
    %v10859 = vsel %vm10699, %v10602, %v8451
    %v10860 = vsel %vm10699, %v10603, %v8453
    %v10861 = vsel %vm10699, %v10604, %v8455
    %v10862 = vsel %vm10699, %v10605, %v8457
    %v10863 = vsel %vm10699, %v10606, %v8459
    %v10864 = vsel %vm10699, %v10607, %v8461
    %v10865 = vsel %vm10699, %v10608, %v8463
    %v10866 = vsel %vm10699, %v10609, %v8465
    %v10867 = vsel %vm10699, %v10610, %v8467
    %v10868 = vsel %vm10699, %v10611, %v8469
    %v10869 = vsel %vm10699, %v10612, %v8471
    %v10870 = vsel %vm10699, %v10613, %v8473
    %v10871 = vsel %vm10699, %v10614, %v8475
    %v10872 = vsel %vm10699, %v10615, %v8477
    %v10873 = vsel %vm10699, %v10616, %v8479
    %v10874 = vsel %vm10699, %v10617, %v8481
    %v10875 = vsel %vm10699, %v10618, %v8483
    %v10876 = vsel %vm10699, %v10619, %v8485
    %v10877 = vsel %vm10699, %v10620, %v8487
    %v10878 = vsel %vm10699, %v10621, %v8489
    %v10879 = vsel %vm10699, %v10622, %v8491
    %v10880 = vsel %vm10699, %v10623, %v8493
    %v10881 = vsel %vm10699, %v10624, %v8495
    %v10882 = vsel %vm10699, %v10625, %v8497
    %v10883 = vsel %vm10699, %v10626, %v8499
    %v10884 = vsel %vm10699, %v10627, %v8501
    %v10885 = vsel %vm10699, %v10628, %v8503
    %v10886 = vsel %vm10699, %v10629, %v8505
    %v10887 = vsel %vm10699, %v10630, %v8507
    %v10888 = vsel %vm10699, %v10631, %v8509
    %v10889 = vsel %vm10699, %v10632, %v8511
    %v10890 = vsel %vm10699, %v10633, %v8513
    %v10891 = vsel %vm10699, %v10634, %v8515
    %v10892 = vsel %vm10699, %v10635, %v8517
    %v10893 = vsel %vm10699, %v10636, %v8519
    %v10894 = vsel %vm10699, %v10637, %v8521
    %v10895 = vsel %vm10699, %v10638, %v8523
    %v10896 = vsel %vm10699, %v10639, %v8525
    %v10897 = vsel %vm10699, %v10640, %v8527
    %v10898 = vsel %vm10699, %v10641, %v8529
    %v10899 = vsel %vm10699, %v10642, %v8531
    %v10900 = vsel %vm10699, %v10643, %v8533
    %v10901 = vsel %vm10699, %v10644, %v8535
    %v10902 = vsel %vm10699, %v10645, %v8537
    %v10903 = vsel %vm10699, %v10646, %v8539
    %v10904 = vsel %vm10699, %v10647, %v8541
    %v10905 = vsel %vm10699, %v10648, %v8543
    %v10906 = vsel %vm10699, %v10649, %v8545
    %v10907 = vsel %vm10699, %v10650, %v8547
    %v10908 = vsel %vm10699, %v10651, %v8549
    %v10909 = vsel %vm10699, %v10652, %v8551
    %v10910 = vsel %vm10699, %v10653, %v8553
    %v10911 = vsel %vm10699, %v10654, %v8555
    %v10912 = vsel %vm10699, %v10655, %v8557
    %v10913 = vsel %vm10699, %v10656, %v8559
    %v10914 = vsel %vm10699, %v10657, %v8561
    %v10915 = vsel %vm10699, %v10658, %v8563
    %v10916 = vsel %vm10699, %v10659, %v8565
    %v10917 = vsel %vm10699, %v10660, %v8567
    %v10918 = vsel %vm10699, %v10661, %v8569
    %v10919 = vsel %vm10699, %v10662, %v8571
    %v10920 = vsel %vm10699, %v10663, %v8573
    %v10921 = vsel %vm10699, %v10664, %v8575
    %v10922 = vsel %vm10699, %v10665, %v8577
    %v10923 = vsel %vm10699, %v10666, %v8579
    %v10924 = vsel %vm10699, %v10667, %v8581
    %v10925 = vsel %vm10699, %v10668, %v8583
    %v10926 = vsel %vm10699, %v10669, %v8585
    %v10927 = vsel %vm10699, %v10670, %v8587
    %v10928 = vsel %vm10699, %v10671, %v8589
    %v10929 = vsel %vm10699, %v10672, %v8591
    %v10930 = vsel %vm10699, %v10673, %v8593
    %v10931 = vsel %vm10699, %v10674, %v8595
    %v10932 = vsel %vm10699, %v10675, %v8597
    %v10933 = vsel %vm10699, %v10676, %v8599
    %v10934 = vsel %vm10699, %v10677, %v8601
    %v10935 = vsel %vm10699, %v10678, %v8603
    %v10936 = vsel %vm10699, %v10679, %v8605
    %v10937 = vsel %vm10699, %v10680, %v8607
    %v10938 = vsel %vm10699, %v10681, %v8609
    %v10939 = vsel %vm10699, %v10682, %v8611
    %v10940 = vsel %vm10699, %v10683, %v8613
    %v10941 = vsel %vm10699, %v10684, %v8615
    %v10942 = vsel %vm10699, %v10685, %v8617
    %v10943 = vsel %vm10699, %v10686, %v8619
    %v10944 = vsel %vm10699, %v10687, %v8621
    %v10945 = vsel %vm10699, %v10688, %v8623
    %v10946 = vsel %vm10699, %v10689, %v8625
    %v10947 = vsel %vm10699, %v10690, %v8627
    %v10948 = vsel %vm10699, %v10691, %v8629
    %v10949 = vsel %vm10699, %v10692, %v8631
    %v10950 = vsel %vm10699, %v10693, %v8633
    %v10951 = vsel %vm10699, %v10694, %v8635
    %v10952 = vsel %vm10699, %v10695, %v8637
    %v10953 = vsel %vm10699, %v10696, %v8639
    %v10954 = vsel %vm10699, %v10697, %v8641
    %v10955 = vsel %vm10699, %v10698, %v8643
    %vm10956 = vcmask 293888
    %v10957 = vsel %vm10956, %v10700, 0.0
    %v10958 = vsel %vm10956, %v10701, 0.0
    %v10959 = vsel %vm10956, %v10702, 0.0
    %v10960 = vsel %vm10956, %v10703, 0.0
    %v10961 = vsel %vm10956, %v10704, 0.0
    %v10962 = vsel %vm10956, %v10705, 0.0
    %v10963 = vsel %vm10956, %v10706, 0.0
    %v10964 = vsel %vm10956, %v10707, 0.0
    %v10965 = vsel %vm10956, %v10708, 0.0
    %v10966 = vsel %vm10956, %v10709, 0.0
    %v10967 = vsel %vm10956, %v10710, 0.0
    %v10968 = vsel %vm10956, %v10711, 0.0
    %v10969 = vsel %vm10956, %v10712, 0.0
    %v10970 = vsel %vm10956, %v10713, 0.0
    %v10971 = vsel %vm10956, %v10714, 0.0
    %v10972 = vsel %vm10956, %v10715, 0.0
    %v10973 = vsel %vm10956, %v10716, 0.0
    %v10974 = vsel %vm10956, %v10717, 0.0
    %v10975 = vsel %vm10956, %v10718, 0.0
    %v10976 = vsel %vm10956, %v10719, 0.0
    %v10977 = vsel %vm10956, %v10720, 0.0
    %v10978 = vsel %vm10956, %v10721, 0.0
    %v10979 = vsel %vm10956, %v10722, 0.0
    %v10980 = vsel %vm10956, %v10723, 0.0
    %v10981 = vsel %vm10956, %v10724, 0.0
    %v10982 = vsel %vm10956, %v10725, 0.0
    %v10983 = vsel %vm10956, %v10726, 0.0
    %v10984 = vsel %vm10956, %v10727, 0.0
    %v10985 = vsel %vm10956, %v10728, 0.0
    %v10986 = vsel %vm10956, %v10729, 0.0
    %v10987 = vsel %vm10956, %v10730, 0.0
    %v10988 = vsel %vm10956, %v10731, 0.0
    %v10989 = vsel %vm10956, %v10732, 0.0
    %v10990 = vsel %vm10956, %v10733, 0.0
    %v10991 = vsel %vm10956, %v10734, 0.0
    %v10992 = vsel %vm10956, %v10735, 0.0
    %v10993 = vsel %vm10956, %v10736, 0.0
    %v10994 = vsel %vm10956, %v10737, 0.0
    %v10995 = vsel %vm10956, %v10738, 0.0
    %v10996 = vsel %vm10956, %v10739, 0.0
    %v10997 = vsel %vm10956, %v10740, 0.0
    %v10998 = vsel %vm10956, %v10741, 0.0
    %v10999 = vsel %vm10956, %v10742, 0.0
    %v11000 = vsel %vm10956, %v10743, 0.0
    %v11001 = vsel %vm10956, %v10744, 0.0
    %v11002 = vsel %vm10956, %v10745, 0.0
    %v11003 = vsel %vm10956, %v10746, 0.0
    %v11004 = vsel %vm10956, %v10747, 0.0
    %v11005 = vsel %vm10956, %v10748, 0.0
    %v11006 = vsel %vm10956, %v10749, 0.0
    %v11007 = vsel %vm10956, %v10750, 0.0
    %v11008 = vsel %vm10956, %v10751, 0.0
    %v11009 = vsel %vm10956, %v10752, 0.0
    %v11010 = vsel %vm10956, %v10753, 0.0
    %v11011 = vsel %vm10956, %v10754, 0.0
    %v11012 = vsel %vm10956, %v10755, 0.0
    %v11013 = vsel %vm10956, %v10756, 0.0
    %v11014 = vsel %vm10956, %v10757, 0.0
    %v11015 = vsel %vm10956, %v10758, 0.0
    %v11016 = vsel %vm10956, %v10759, 0.0
    %v11017 = vsel %vm10956, %v10760, 0.0
    %v11018 = vsel %vm10956, %v10761, 0.0
    %v11019 = vsel %vm10956, %v10762, 0.0
    %v11020 = vsel %vm10956, %v10763, 0.0
    %v11021 = vsel %vm10956, %v10764, 0.0
    %v11022 = vsel %vm10956, %v10765, 0.0
    %v11023 = vsel %vm10956, %v10766, 0.0
    %v11024 = vsel %vm10956, %v10767, 0.0
    %v11025 = vsel %vm10956, %v10768, 0.0
    %v11026 = vsel %vm10956, %v10769, 0.0
    %v11027 = vsel %vm10956, %v10770, 0.0
    %v11028 = vsel %vm10956, %v10771, 0.0
    %v11029 = vsel %vm10956, %v10772, 0.0
    %v11030 = vsel %vm10956, %v10773, 0.0
    %v11031 = vsel %vm10956, %v10774, 0.0
    %v11032 = vsel %vm10956, %v10775, 0.0
    %v11033 = vsel %vm10956, %v10776, 0.0
    %v11034 = vsel %vm10956, %v10777, 0.0
    %v11035 = vsel %vm10956, %v10778, 0.0
    %v11036 = vsel %vm10956, %v10779, 0.0
    %v11037 = vsel %vm10956, %v10780, 0.0
    %v11038 = vsel %vm10956, %v10781, 0.0
    %v11039 = vsel %vm10956, %v10782, 0.0
    %v11040 = vsel %vm10956, %v10783, 0.0
    %v11041 = vsel %vm10956, %v10784, 0.0
    %v11042 = vsel %vm10956, %v10785, 0.0
    %v11043 = vsel %vm10956, %v10786, 0.0
    %v11044 = vsel %vm10956, %v10787, 0.0
    %v11045 = vsel %vm10956, %v10788, 0.0
    %v11046 = vsel %vm10956, %v10789, 0.0
    %v11047 = vsel %vm10956, %v10790, 0.0
    %v11048 = vsel %vm10956, %v10791, 0.0
    %v11049 = vsel %vm10956, %v10792, 0.0
    %v11050 = vsel %vm10956, %v10793, 0.0
    %v11051 = vsel %vm10956, %v10794, 0.0
    %v11052 = vsel %vm10956, %v10795, 0.0
    %v11053 = vsel %vm10956, %v10796, 0.0
    %v11054 = vsel %vm10956, %v10797, 0.0
    %v11055 = vsel %vm10956, %v10798, 0.0
    %v11056 = vsel %vm10956, %v10799, 0.0
    %v11057 = vsel %vm10956, %v10800, 0.0
    %v11058 = vsel %vm10956, %v10801, 0.0
    %v11059 = vsel %vm10956, %v10802, 0.0
    %v11060 = vsel %vm10956, %v10803, 0.0
    %v11061 = vsel %vm10956, %v10804, 0.0
    %v11062 = vsel %vm10956, %v10805, 0.0
    %v11063 = vsel %vm10956, %v10806, 0.0
    %v11064 = vsel %vm10956, %v10807, 0.0
    %v11065 = vsel %vm10956, %v10808, 0.0
    %v11066 = vsel %vm10956, %v10809, 0.0
    %v11067 = vsel %vm10956, %v10810, 0.0
    %v11068 = vsel %vm10956, %v10811, 0.0
    %v11069 = vsel %vm10956, %v10812, 0.0
    %v11070 = vsel %vm10956, %v10813, 0.0
    %v11071 = vsel %vm10956, %v10814, 0.0
    %v11072 = vsel %vm10956, %v10815, 0.0
    %v11073 = vsel %vm10956, %v10816, 0.0
    %v11074 = vsel %vm10956, %v10817, 0.0
    %v11075 = vsel %vm10956, %v10818, 0.0
    %v11076 = vsel %vm10956, %v10819, 0.0
    %v11077 = vsel %vm10956, %v10820, 0.0
    %v11078 = vsel %vm10956, %v10821, 0.0
    %v11079 = vsel %vm10956, %v10822, 0.0
    %v11080 = vsel %vm10956, %v10823, 0.0
    %v11081 = vsel %vm10956, %v10824, 0.0
    %v11082 = vsel %vm10956, %v10825, 0.0
    %v11083 = vsel %vm10956, %v10826, 0.0
    %v11084 = vsel %vm10956, %v10827, 0.0
    %v11085 = vsel %vm10956, %v10828, 0.0
    %v11086 = vsel %vm10956, %v10829, 0.0
    %v11087 = vsel %vm10956, %v10830, 0.0
    %v11088 = vsel %vm10956, %v10831, 0.0
    %v11089 = vsel %vm10956, %v10832, 0.0
    %v11090 = vsel %vm10956, %v10833, 0.0
    %v11091 = vsel %vm10956, %v10834, 0.0
    %v11092 = vsel %vm10956, %v10835, 0.0
    %v11093 = vsel %vm10956, %v10836, 0.0
    %v11094 = vsel %vm10956, %v10837, 0.0
    %v11095 = vsel %vm10956, %v10838, 0.0
    %v11096 = vsel %vm10956, %v10839, 0.0
    %v11097 = vsel %vm10956, %v10840, 0.0
    %v11098 = vsel %vm10956, %v10841, 0.0
    %v11099 = vsel %vm10956, %v10842, 0.0
    %v11100 = vsel %vm10956, %v10843, 0.0
    %v11101 = vsel %vm10956, %v10844, 0.0
    %v11102 = vsel %vm10956, %v10845, 0.0
    %v11103 = vsel %vm10956, %v10846, 0.0
    %v11104 = vsel %vm10956, %v10847, 0.0
    %v11105 = vsel %vm10956, %v10848, 0.0
    %v11106 = vsel %vm10956, %v10849, 0.0
    %v11107 = vsel %vm10956, %v10850, 0.0
    %v11108 = vsel %vm10956, %v10851, 0.0
    %v11109 = vsel %vm10956, %v10852, 0.0
    %v11110 = vsel %vm10956, %v10853, 0.0
    %v11111 = vsel %vm10956, %v10854, 0.0
    %v11112 = vsel %vm10956, %v10855, 0.0
    %v11113 = vsel %vm10956, %v10856, 0.0
    %v11114 = vsel %vm10956, %v10857, 0.0
    %v11115 = vsel %vm10956, %v10858, 0.0
    %v11116 = vsel %vm10956, %v10859, 0.0
    %v11117 = vsel %vm10956, %v10860, 0.0
    %v11118 = vsel %vm10956, %v10861, 0.0
    %v11119 = vsel %vm10956, %v10862, 0.0
    %v11120 = vsel %vm10956, %v10863, 0.0
    %v11121 = vsel %vm10956, %v10864, 0.0
    %v11122 = vsel %vm10956, %v10865, 0.0
    %v11123 = vsel %vm10956, %v10866, 0.0
    %v11124 = vsel %vm10956, %v10867, 0.0
    %v11125 = vsel %vm10956, %v10868, 0.0
    %v11126 = vsel %vm10956, %v10869, 0.0
    %v11127 = vsel %vm10956, %v10870, 0.0
    %v11128 = vsel %vm10956, %v10871, 0.0
    %v11129 = vsel %vm10956, %v10872, 0.0
    %v11130 = vsel %vm10956, %v10873, 0.0
    %v11131 = vsel %vm10956, %v10874, 0.0
    %v11132 = vsel %vm10956, %v10875, 0.0
    %v11133 = vsel %vm10956, %v10876, 0.0
    %v11134 = vsel %vm10956, %v10877, 0.0
    %v11135 = vsel %vm10956, %v10878, 0.0
    %v11136 = vsel %vm10956, %v10879, 0.0
    %v11137 = vsel %vm10956, %v10880, 0.0
    %v11138 = vsel %vm10956, %v10881, 0.0
    %v11139 = vsel %vm10956, %v10882, 0.0
    %v11140 = vsel %vm10956, %v10883, 0.0
    %v11141 = vsel %vm10956, %v10884, 0.0
    %v11142 = vsel %vm10956, %v10885, 0.0
    %v11143 = vsel %vm10956, %v10886, 0.0
    %v11144 = vsel %vm10956, %v10887, 0.0
    %v11145 = vsel %vm10956, %v10888, 0.0
    %v11146 = vsel %vm10956, %v10889, 0.0
    %v11147 = vsel %vm10956, %v10890, 0.0
    %v11148 = vsel %vm10956, %v10891, 0.0
    %v11149 = vsel %vm10956, %v10892, 0.0
    %v11150 = vsel %vm10956, %v10893, 0.0
    %v11151 = vsel %vm10956, %v10894, 0.0
    %v11152 = vsel %vm10956, %v10895, 0.0
    %v11153 = vsel %vm10956, %v10896, 0.0
    %v11154 = vsel %vm10956, %v10897, 0.0
    %v11155 = vsel %vm10956, %v10898, 0.0
    %v11156 = vsel %vm10956, %v10899, 0.0
    %v11157 = vsel %vm10956, %v10900, 0.0
    %v11158 = vsel %vm10956, %v10901, 0.0
    %v11159 = vsel %vm10956, %v10902, 0.0
    %v11160 = vsel %vm10956, %v10903, 0.0
    %v11161 = vsel %vm10956, %v10904, 0.0
    %v11162 = vsel %vm10956, %v10905, 0.0
    %v11163 = vsel %vm10956, %v10906, 0.0
    %v11164 = vsel %vm10956, %v10907, 0.0
    %v11165 = vsel %vm10956, %v10908, 0.0
    %v11166 = vsel %vm10956, %v10909, 0.0
    %v11167 = vsel %vm10956, %v10910, 0.0
    %v11168 = vsel %vm10956, %v10911, 0.0
    %v11169 = vsel %vm10956, %v10912, 0.0
    %v11170 = vsel %vm10956, %v10913, 0.0
    %v11171 = vsel %vm10956, %v10914, 0.0
    %v11172 = vsel %vm10956, %v10915, 0.0
    %v11173 = vsel %vm10956, %v10916, 0.0
    %v11174 = vsel %vm10956, %v10917, 0.0
    %v11175 = vsel %vm10956, %v10918, 0.0
    %v11176 = vsel %vm10956, %v10919, 0.0
    %v11177 = vsel %vm10956, %v10920, 0.0
    %v11178 = vsel %vm10956, %v10921, 0.0
    %v11179 = vsel %vm10956, %v10922, 0.0
    %v11180 = vsel %vm10956, %v10923, 0.0
    %v11181 = vsel %vm10956, %v10924, 0.0
    %v11182 = vsel %vm10956, %v10925, 0.0
    %v11183 = vsel %vm10956, %v10926, 0.0
    %v11184 = vsel %vm10956, %v10927, 0.0
    %v11185 = vsel %vm10956, %v10928, 0.0
    %v11186 = vsel %vm10956, %v10929, 0.0
    %v11187 = vsel %vm10956, %v10930, 0.0
    %v11188 = vsel %vm10956, %v10931, 0.0
    %v11189 = vsel %vm10956, %v10932, 0.0
    %v11190 = vsel %vm10956, %v10933, 0.0
    %v11191 = vsel %vm10956, %v10934, 0.0
    %v11192 = vsel %vm10956, %v10935, 0.0
    %v11193 = vsel %vm10956, %v10936, 0.0
    %v11194 = vsel %vm10956, %v10937, 0.0
    %v11195 = vsel %vm10956, %v10938, 0.0
    %v11196 = vsel %vm10956, %v10939, 0.0
    %v11197 = vsel %vm10956, %v10940, 0.0
    %v11198 = vsel %vm10956, %v10941, 0.0
    %v11199 = vsel %vm10956, %v10942, 0.0
    %v11200 = vsel %vm10956, %v10943, 0.0
    %v11201 = vsel %vm10956, %v10944, 0.0
    %v11202 = vsel %vm10956, %v10945, 0.0
    %v11203 = vsel %vm10956, %v10946, 0.0
    %v11204 = vsel %vm10956, %v10947, 0.0
    %v11205 = vsel %vm10956, %v10948, 0.0
    %v11206 = vsel %vm10956, %v10949, 0.0
    %v11207 = vsel %vm10956, %v10950, 0.0
    %v11208 = vsel %vm10956, %v10951, 0.0
    %v11209 = vsel %vm10956, %v10952, 0.0
    %v11210 = vsel %vm10956, %v10953, 0.0
    %v11211 = vsel %vm10956, %v10954, 0.0
    %v11212 = vsel %vm10956, %v10955, 0.0
    %v11213 = vpack.c.bf16 %v10958, %v10957
    %v11214 = vpack.c.bf16 %v10960, %v10959
    %v11215 = vpack.c.bf16 %v10962, %v10961
    %v11216 = vpack.c.bf16 %v10964, %v10963
    %v11217 = vpack.c.bf16 %v10966, %v10965
    %v11218 = vpack.c.bf16 %v10968, %v10967
    %v11219 = vpack.c.bf16 %v10970, %v10969
    %v11220 = vpack.c.bf16 %v10972, %v10971
    %v11221 = vpack.c.bf16 %v10974, %v10973
    %v11222 = vpack.c.bf16 %v10976, %v10975
    %v11223 = vpack.c.bf16 %v10978, %v10977
    %v11224 = vpack.c.bf16 %v10980, %v10979
    %v11225 = vpack.c.bf16 %v10982, %v10981
    %v11226 = vpack.c.bf16 %v10984, %v10983
    %v11227 = vpack.c.bf16 %v10986, %v10985
    %v11228 = vpack.c.bf16 %v10988, %v10987
    %v11229 = vpack.c.bf16 %v10990, %v10989
    %v11230 = vpack.c.bf16 %v10992, %v10991
    %v11231 = vpack.c.bf16 %v10994, %v10993
    %v11232 = vpack.c.bf16 %v10996, %v10995
    %v11233 = vpack.c.bf16 %v10998, %v10997
    %v11234 = vpack.c.bf16 %v11000, %v10999
    %v11235 = vpack.c.bf16 %v11002, %v11001
    %v11236 = vpack.c.bf16 %v11004, %v11003
    %v11237 = vpack.c.bf16 %v11006, %v11005
    %v11238 = vpack.c.bf16 %v11008, %v11007
    %v11239 = vpack.c.bf16 %v11010, %v11009
    %v11240 = vpack.c.bf16 %v11012, %v11011
    %v11241 = vpack.c.bf16 %v11014, %v11013
    %v11242 = vpack.c.bf16 %v11016, %v11015
    %v11243 = vpack.c.bf16 %v11018, %v11017
    %v11244 = vpack.c.bf16 %v11020, %v11019
    %v11245 = vpack.c.bf16 %v11022, %v11021
    %v11246 = vpack.c.bf16 %v11024, %v11023
    %v11247 = vpack.c.bf16 %v11026, %v11025
    %v11248 = vpack.c.bf16 %v11028, %v11027
    %v11249 = vpack.c.bf16 %v11030, %v11029
    %v11250 = vpack.c.bf16 %v11032, %v11031
    %v11251 = vpack.c.bf16 %v11034, %v11033
    %v11252 = vpack.c.bf16 %v11036, %v11035
    %v11253 = vpack.c.bf16 %v11038, %v11037
    %v11254 = vpack.c.bf16 %v11040, %v11039
    %v11255 = vpack.c.bf16 %v11042, %v11041
    %v11256 = vpack.c.bf16 %v11044, %v11043
    %v11257 = vpack.c.bf16 %v11046, %v11045
    %v11258 = vpack.c.bf16 %v11048, %v11047
    %v11259 = vpack.c.bf16 %v11050, %v11049
    %v11260 = vpack.c.bf16 %v11052, %v11051
    %v11261 = vpack.c.bf16 %v11054, %v11053
    %v11262 = vpack.c.bf16 %v11056, %v11055
    %v11263 = vpack.c.bf16 %v11058, %v11057
    %v11264 = vpack.c.bf16 %v11060, %v11059
    %v11265 = vpack.c.bf16 %v11062, %v11061
    %v11266 = vpack.c.bf16 %v11064, %v11063
    %v11267 = vpack.c.bf16 %v11066, %v11065
    %v11268 = vpack.c.bf16 %v11068, %v11067
    %v11269 = vpack.c.bf16 %v11070, %v11069
    %v11270 = vpack.c.bf16 %v11072, %v11071
    %v11271 = vpack.c.bf16 %v11074, %v11073
    %v11272 = vpack.c.bf16 %v11076, %v11075
    %v11273 = vpack.c.bf16 %v11078, %v11077
    %v11274 = vpack.c.bf16 %v11080, %v11079
    %v11275 = vpack.c.bf16 %v11082, %v11081
    %v11276 = vpack.c.bf16 %v11084, %v11083
    %v11277 = vpack.c.bf16 %v11086, %v11085
    %v11278 = vpack.c.bf16 %v11088, %v11087
    %v11279 = vpack.c.bf16 %v11090, %v11089
    %v11280 = vpack.c.bf16 %v11092, %v11091
    %v11281 = vpack.c.bf16 %v11094, %v11093
    %v11282 = vpack.c.bf16 %v11096, %v11095
    %v11283 = vpack.c.bf16 %v11098, %v11097
    %v11284 = vpack.c.bf16 %v11100, %v11099
    %v11285 = vpack.c.bf16 %v11102, %v11101
    %v11286 = vpack.c.bf16 %v11104, %v11103
    %v11287 = vpack.c.bf16 %v11106, %v11105
    %v11288 = vpack.c.bf16 %v11108, %v11107
    %v11289 = vpack.c.bf16 %v11110, %v11109
    %v11290 = vpack.c.bf16 %v11112, %v11111
    %v11291 = vpack.c.bf16 %v11114, %v11113
    %v11292 = vpack.c.bf16 %v11116, %v11115
    %v11293 = vpack.c.bf16 %v11118, %v11117
    %v11294 = vpack.c.bf16 %v11120, %v11119
    %v11295 = vpack.c.bf16 %v11122, %v11121
    %v11296 = vpack.c.bf16 %v11124, %v11123
    %v11297 = vpack.c.bf16 %v11126, %v11125
    %v11298 = vpack.c.bf16 %v11128, %v11127
    %v11299 = vpack.c.bf16 %v11130, %v11129
    %v11300 = vpack.c.bf16 %v11132, %v11131
    %v11301 = vpack.c.bf16 %v11134, %v11133
    %v11302 = vpack.c.bf16 %v11136, %v11135
    %v11303 = vpack.c.bf16 %v11138, %v11137
    %v11304 = vpack.c.bf16 %v11140, %v11139
    %v11305 = vpack.c.bf16 %v11142, %v11141
    %v11306 = vpack.c.bf16 %v11144, %v11143
    %v11307 = vpack.c.bf16 %v11146, %v11145
    %v11308 = vpack.c.bf16 %v11148, %v11147
    %v11309 = vpack.c.bf16 %v11150, %v11149
    %v11310 = vpack.c.bf16 %v11152, %v11151
    %v11311 = vpack.c.bf16 %v11154, %v11153
    %v11312 = vpack.c.bf16 %v11156, %v11155
    %v11313 = vpack.c.bf16 %v11158, %v11157
    %v11314 = vpack.c.bf16 %v11160, %v11159
    %v11315 = vpack.c.bf16 %v11162, %v11161
    %v11316 = vpack.c.bf16 %v11164, %v11163
    %v11317 = vpack.c.bf16 %v11166, %v11165
    %v11318 = vpack.c.bf16 %v11168, %v11167
    %v11319 = vpack.c.bf16 %v11170, %v11169
    %v11320 = vpack.c.bf16 %v11172, %v11171
    %v11321 = vpack.c.bf16 %v11174, %v11173
    %v11322 = vpack.c.bf16 %v11176, %v11175
    %v11323 = vpack.c.bf16 %v11178, %v11177
    %v11324 = vpack.c.bf16 %v11180, %v11179
    %v11325 = vpack.c.bf16 %v11182, %v11181
    %v11326 = vpack.c.bf16 %v11184, %v11183
    %v11327 = vpack.c.bf16 %v11186, %v11185
    %v11328 = vpack.c.bf16 %v11188, %v11187
    %v11329 = vpack.c.bf16 %v11190, %v11189
    %v11330 = vpack.c.bf16 %v11192, %v11191
    %v11331 = vpack.c.bf16 %v11194, %v11193
    %v11332 = vpack.c.bf16 %v11196, %v11195
    %v11333 = vpack.c.bf16 %v11198, %v11197
    %v11334 = vpack.c.bf16 %v11200, %v11199
    %v11335 = vpack.c.bf16 %v11202, %v11201
    %v11336 = vpack.c.bf16 %v11204, %v11203
    %v11337 = vpack.c.bf16 %v11206, %v11205
    %v11338 = vpack.c.bf16 %v11208, %v11207
    %v11339 = vpack.c.bf16 %v11210, %v11209
    %v11340 = vpack.c.bf16 %v11212, %v11211
    %v11341 = vld [vmem:[%s1] sm:$0xf]
    %v11342 = vld [vmem:[%s1 + $0x4] sm:$0xf]
    %v11343 = vld [vmem:[%s1 + $0x8] sm:$0xf]
    %v11344 = vld [vmem:[%s1 + $0xc] sm:$0xf]
    %v11345 = vld [vmem:[%s1 + $0x10] sm:$0xf]
    %v11346 = vld [vmem:[%s1 + $0x14] sm:$0xf]
    %v11347 = vld [vmem:[%s1 + $0x18] sm:$0xf]
    %v11348 = vld [vmem:[%s1 + $0x1c] sm:$0xf]
    %v11349 = vld [vmem:[%s1 + $0x20] sm:$0xf]
    %v11350 = vld [vmem:[%s1 + $0x24] sm:$0xf]
    %v11351 = vld [vmem:[%s1 + $0x28] sm:$0xf]
    %v11352 = vld [vmem:[%s1 + $0x2c] sm:$0xf]
    %v11353 = vld [vmem:[%s1 + $0x30] sm:$0xf]
    %v11354 = vld [vmem:[%s1 + $0x34] sm:$0xf]
    %v11355 = vld [vmem:[%s1 + $0x38] sm:$0xf]
    %v11356 = vld [vmem:[%s1 + $0x3c] sm:$0xf]
    %v11373 = vunpack.c.l.b16 %v11341
    %v11374 = vunpack.c.l.b16 %v11342
    %v11375 = vunpack.c.l.b16 %v11343
    %v11376 = vunpack.c.l.b16 %v11344
    %v11377 = vunpack.c.l.b16 %v11345
    %v11378 = vunpack.c.l.b16 %v11346
    %v11379 = vunpack.c.l.b16 %v11347
    %v11380 = vunpack.c.l.b16 %v11348
    %v11381 = vunpack.c.l.b16 %v11349
    %v11382 = vunpack.c.l.b16 %v11350
    %v11383 = vunpack.c.l.b16 %v11351
    %v11384 = vunpack.c.l.b16 %v11352
    %v11385 = vunpack.c.l.b16 %v11353
    %v11386 = vunpack.c.l.b16 %v11354
    %v11387 = vunpack.c.l.b16 %v11355
    %v11388 = vunpack.c.l.b16 %v11356
    %v11389 = vpack.c.b16 %v11374, %v11373
    %v11390 = vpack.c.b16 %v11376, %v11375
    %v11391 = vpack.c.b16 %v11378, %v11377
    %v11392 = vpack.c.b16 %v11380, %v11379
    %v11393 = vpack.c.b16 %v11382, %v11381
    %v11394 = vpack.c.b16 %v11384, %v11383
    %v11395 = vpack.c.b16 %v11386, %v11385
    %v11396 = vpack.c.b16 %v11388, %v11387
    %11405 = vmatpush.bf16.msra.mxu0 %v11396
    %11406 = vmatpush.bf16.msra.mxu0 %v11395
    %11407 = vmatpush.bf16.msra.mxu0 %v11394
    %11408 = vmatpush.bf16.msra.mxu0 %v11393
    %11409 = vmatpush.bf16.msra.mxu0 %v11392
    %11410 = vmatpush.bf16.msra.mxu0 %v11391
    %11411 = vmatpush.bf16.msra.mxu0 %v11390
    %11412 = vmatpush.bf16.msra.mxu0 %v11389
    %11413 = vmatmul.bf16.gmra.mxu0 %v11213
    %v11414 = vpop.f32.mrf.mxu0
    %v11415 = vadd.f32 0.0, %v11414
    %v11416 = vpop.f32.mrf.mxu0
    %v11417 = vadd.f32 0.0, %v11416
    %11418 = vmatmul.bf16.gmra.mxu0 %v11214
    %v11419 = vpop.f32.mrf.mxu0
    %v11420 = vadd.f32 0.0, %v11419
    %v11421 = vpop.f32.mrf.mxu0
    %v11422 = vadd.f32 0.0, %v11421
    %11423 = vmatmul.bf16.gmra.mxu0 %v11215
    %v11424 = vpop.f32.mrf.mxu0
    %v11425 = vadd.f32 0.0, %v11424
    %v11426 = vpop.f32.mrf.mxu0
    %v11427 = vadd.f32 0.0, %v11426
    %11428 = vmatmul.bf16.gmra.mxu0 %v11216
    %v11429 = vpop.f32.mrf.mxu0
    %v11430 = vadd.f32 0.0, %v11429
    %v11431 = vpop.f32.mrf.mxu0
    %v11432 = vadd.f32 0.0, %v11431
    %11433 = vmatmul.bf16.gmra.mxu0 %v11217
    %v11434 = vpop.f32.mrf.mxu0
    %v11435 = vadd.f32 0.0, %v11434
    %v11436 = vpop.f32.mrf.mxu0
    %v11437 = vadd.f32 0.0, %v11436
    %11438 = vmatmul.bf16.gmra.mxu0 %v11218
    %v11439 = vpop.f32.mrf.mxu0
    %v11440 = vadd.f32 0.0, %v11439
    %v11441 = vpop.f32.mrf.mxu0
    %v11442 = vadd.f32 0.0, %v11441
    %11443 = vmatmul.bf16.gmra.mxu0 %v11219
    %v11444 = vpop.f32.mrf.mxu0
    %v11445 = vadd.f32 0.0, %v11444
    %v11446 = vpop.f32.mrf.mxu0
    %v11447 = vadd.f32 0.0, %v11446
    %11448 = vmatmul.bf16.gmra.mxu0 %v11220
    %v11449 = vpop.f32.mrf.mxu0
    %v11450 = vadd.f32 0.0, %v11449
    %v11451 = vpop.f32.mrf.mxu0
    %v11452 = vadd.f32 0.0, %v11451
    %11453 = vmatmul.bf16.gmra.mxu0 %v11221
    %v11454 = vpop.f32.mrf.mxu0
    %v11455 = vadd.f32 0.0, %v11454
    %v11456 = vpop.f32.mrf.mxu0
    %v11457 = vadd.f32 0.0, %v11456
    %11458 = vmatmul.bf16.gmra.mxu0 %v11222
    %v11459 = vpop.f32.mrf.mxu0
    %v11460 = vadd.f32 0.0, %v11459
    %v11461 = vpop.f32.mrf.mxu0
    %v11462 = vadd.f32 0.0, %v11461
    %11463 = vmatmul.bf16.gmra.mxu0 %v11223
    %v11464 = vpop.f32.mrf.mxu0
    %v11465 = vadd.f32 0.0, %v11464
    %v11466 = vpop.f32.mrf.mxu0
    %v11467 = vadd.f32 0.0, %v11466
    %11468 = vmatmul.bf16.gmra.mxu0 %v11224
    %v11469 = vpop.f32.mrf.mxu0
    %v11470 = vadd.f32 0.0, %v11469
    %v11471 = vpop.f32.mrf.mxu0
    %v11472 = vadd.f32 0.0, %v11471
    %11473 = vmatmul.bf16.gmra.mxu0 %v11225
    %v11474 = vpop.f32.mrf.mxu0
    %v11475 = vadd.f32 0.0, %v11474
    %v11476 = vpop.f32.mrf.mxu0
    %v11477 = vadd.f32 0.0, %v11476
    %11478 = vmatmul.bf16.gmra.mxu0 %v11226
    %v11479 = vpop.f32.mrf.mxu0
    %v11480 = vadd.f32 0.0, %v11479
    %v11481 = vpop.f32.mrf.mxu0
    %v11482 = vadd.f32 0.0, %v11481
    %11483 = vmatmul.bf16.gmra.mxu0 %v11227
    %v11484 = vpop.f32.mrf.mxu0
    %v11485 = vadd.f32 0.0, %v11484
    %v11486 = vpop.f32.mrf.mxu0
    %v11487 = vadd.f32 0.0, %v11486
    %11488 = vmatmul.bf16.gmra.mxu0 %v11228
    %v11489 = vpop.f32.mrf.mxu0
    %v11490 = vadd.f32 0.0, %v11489
    %v11491 = vpop.f32.mrf.mxu0
    %v11492 = vadd.f32 0.0, %v11491
    %11493 = vmatmul.bf16.gmra.mxu0 %v11229
    %v11494 = vpop.f32.mrf.mxu0
    %v11495 = vadd.f32 0.0, %v11494
    %v11496 = vpop.f32.mrf.mxu0
    %v11497 = vadd.f32 0.0, %v11496
    %11498 = vmatmul.bf16.gmra.mxu0 %v11230
    %v11499 = vpop.f32.mrf.mxu0
    %v11500 = vadd.f32 0.0, %v11499
    %v11501 = vpop.f32.mrf.mxu0
    %v11502 = vadd.f32 0.0, %v11501
    %11503 = vmatmul.bf16.gmra.mxu0 %v11231
    %v11504 = vpop.f32.mrf.mxu0
    %v11505 = vadd.f32 0.0, %v11504
    %v11506 = vpop.f32.mrf.mxu0
    %v11507 = vadd.f32 0.0, %v11506
    %11508 = vmatmul.bf16.gmra.mxu0 %v11232
    %v11509 = vpop.f32.mrf.mxu0
    %v11510 = vadd.f32 0.0, %v11509
    %v11511 = vpop.f32.mrf.mxu0
    %v11512 = vadd.f32 0.0, %v11511
    %11513 = vmatmul.bf16.gmra.mxu0 %v11233
    %v11514 = vpop.f32.mrf.mxu0
    %v11515 = vadd.f32 0.0, %v11514
    %v11516 = vpop.f32.mrf.mxu0
    %v11517 = vadd.f32 0.0, %v11516
    %11518 = vmatmul.bf16.gmra.mxu0 %v11234
    %v11519 = vpop.f32.mrf.mxu0
    %v11520 = vadd.f32 0.0, %v11519
    %v11521 = vpop.f32.mrf.mxu0
    %v11522 = vadd.f32 0.0, %v11521
    %11523 = vmatmul.bf16.gmra.mxu0 %v11235
    %v11524 = vpop.f32.mrf.mxu0
    %v11525 = vadd.f32 0.0, %v11524
    %v11526 = vpop.f32.mrf.mxu0
    %v11527 = vadd.f32 0.0, %v11526
    %11528 = vmatmul.bf16.gmra.mxu0 %v11236
    %v11529 = vpop.f32.mrf.mxu0
    %v11530 = vadd.f32 0.0, %v11529
    %v11531 = vpop.f32.mrf.mxu0
    %v11532 = vadd.f32 0.0, %v11531
    %11533 = vmatmul.bf16.gmra.mxu0 %v11237
    %v11534 = vpop.f32.mrf.mxu0
    %v11535 = vadd.f32 0.0, %v11534
    %v11536 = vpop.f32.mrf.mxu0
    %v11537 = vadd.f32 0.0, %v11536
    %11538 = vmatmul.bf16.gmra.mxu0 %v11238
    %v11539 = vpop.f32.mrf.mxu0
    %v11540 = vadd.f32 0.0, %v11539
    %v11541 = vpop.f32.mrf.mxu0
    %v11542 = vadd.f32 0.0, %v11541
    %11543 = vmatmul.bf16.gmra.mxu0 %v11239
    %v11544 = vpop.f32.mrf.mxu0
    %v11545 = vadd.f32 0.0, %v11544
    %v11546 = vpop.f32.mrf.mxu0
    %v11547 = vadd.f32 0.0, %v11546
    %11548 = vmatmul.bf16.gmra.mxu0 %v11240
    %v11549 = vpop.f32.mrf.mxu0
    %v11550 = vadd.f32 0.0, %v11549
    %v11551 = vpop.f32.mrf.mxu0
    %v11552 = vadd.f32 0.0, %v11551
    %11553 = vmatmul.bf16.gmra.mxu0 %v11241
    %v11554 = vpop.f32.mrf.mxu0
    %v11555 = vadd.f32 0.0, %v11554
    %v11556 = vpop.f32.mrf.mxu0
    %v11557 = vadd.f32 0.0, %v11556
    %11558 = vmatmul.bf16.gmra.mxu0 %v11242
    %v11559 = vpop.f32.mrf.mxu0
    %v11560 = vadd.f32 0.0, %v11559
    %v11561 = vpop.f32.mrf.mxu0
    %v11562 = vadd.f32 0.0, %v11561
    %11563 = vmatmul.bf16.gmra.mxu0 %v11243
    %v11564 = vpop.f32.mrf.mxu0
    %v11565 = vadd.f32 0.0, %v11564
    %v11566 = vpop.f32.mrf.mxu0
    %v11567 = vadd.f32 0.0, %v11566
    %11568 = vmatmul.bf16.gmra.mxu0 %v11244
    %v11569 = vpop.f32.mrf.mxu0
    %v11570 = vadd.f32 0.0, %v11569
    %v11571 = vpop.f32.mrf.mxu0
    %v11572 = vadd.f32 0.0, %v11571
    %11573 = vmatmul.bf16.gmra.mxu0 %v11245
    %v11574 = vpop.f32.mrf.mxu0
    %v11575 = vadd.f32 0.0, %v11574
    %v11576 = vpop.f32.mrf.mxu0
    %v11577 = vadd.f32 0.0, %v11576
    %11578 = vmatmul.bf16.gmra.mxu0 %v11246
    %v11579 = vpop.f32.mrf.mxu0
    %v11580 = vadd.f32 0.0, %v11579
    %v11581 = vpop.f32.mrf.mxu0
    %v11582 = vadd.f32 0.0, %v11581
    %11583 = vmatmul.bf16.gmra.mxu0 %v11247
    %v11584 = vpop.f32.mrf.mxu0
    %v11585 = vadd.f32 0.0, %v11584
    %v11586 = vpop.f32.mrf.mxu0
    %v11587 = vadd.f32 0.0, %v11586
    %11588 = vmatmul.bf16.gmra.mxu0 %v11248
    %v11589 = vpop.f32.mrf.mxu0
    %v11590 = vadd.f32 0.0, %v11589
    %v11591 = vpop.f32.mrf.mxu0
    %v11592 = vadd.f32 0.0, %v11591
    %11593 = vmatmul.bf16.gmra.mxu0 %v11249
    %v11594 = vpop.f32.mrf.mxu0
    %v11595 = vadd.f32 0.0, %v11594
    %v11596 = vpop.f32.mrf.mxu0
    %v11597 = vadd.f32 0.0, %v11596
    %11598 = vmatmul.bf16.gmra.mxu0 %v11250
    %v11599 = vpop.f32.mrf.mxu0
    %v11600 = vadd.f32 0.0, %v11599
    %v11601 = vpop.f32.mrf.mxu0
    %v11602 = vadd.f32 0.0, %v11601
    %11603 = vmatmul.bf16.gmra.mxu0 %v11251
    %v11604 = vpop.f32.mrf.mxu0
    %v11605 = vadd.f32 0.0, %v11604
    %v11606 = vpop.f32.mrf.mxu0
    %v11607 = vadd.f32 0.0, %v11606
    %11608 = vmatmul.bf16.gmra.mxu0 %v11252
    %v11609 = vpop.f32.mrf.mxu0
    %v11610 = vadd.f32 0.0, %v11609
    %v11611 = vpop.f32.mrf.mxu0
    %v11612 = vadd.f32 0.0, %v11611
    %11613 = vmatmul.bf16.gmra.mxu0 %v11253
    %v11614 = vpop.f32.mrf.mxu0
    %v11615 = vadd.f32 0.0, %v11614
    %v11616 = vpop.f32.mrf.mxu0
    %v11617 = vadd.f32 0.0, %v11616
    %11618 = vmatmul.bf16.gmra.mxu0 %v11254
    %v11619 = vpop.f32.mrf.mxu0
    %v11620 = vadd.f32 0.0, %v11619
    %v11621 = vpop.f32.mrf.mxu0
    %v11622 = vadd.f32 0.0, %v11621
    %11623 = vmatmul.bf16.gmra.mxu0 %v11255
    %v11624 = vpop.f32.mrf.mxu0
    %v11625 = vadd.f32 0.0, %v11624
    %v11626 = vpop.f32.mrf.mxu0
    %v11627 = vadd.f32 0.0, %v11626
    %11628 = vmatmul.bf16.gmra.mxu0 %v11256
    %v11629 = vpop.f32.mrf.mxu0
    %v11630 = vadd.f32 0.0, %v11629
    %v11631 = vpop.f32.mrf.mxu0
    %v11632 = vadd.f32 0.0, %v11631
    %11633 = vmatmul.bf16.gmra.mxu0 %v11257
    %v11634 = vpop.f32.mrf.mxu0
    %v11635 = vadd.f32 0.0, %v11634
    %v11636 = vpop.f32.mrf.mxu0
    %v11637 = vadd.f32 0.0, %v11636
    %11638 = vmatmul.bf16.gmra.mxu0 %v11258
    %v11639 = vpop.f32.mrf.mxu0
    %v11640 = vadd.f32 0.0, %v11639
    %v11641 = vpop.f32.mrf.mxu0
    %v11642 = vadd.f32 0.0, %v11641
    %11643 = vmatmul.bf16.gmra.mxu0 %v11259
    %v11644 = vpop.f32.mrf.mxu0
    %v11645 = vadd.f32 0.0, %v11644
    %v11646 = vpop.f32.mrf.mxu0
    %v11647 = vadd.f32 0.0, %v11646
    %11648 = vmatmul.bf16.gmra.mxu0 %v11260
    %v11649 = vpop.f32.mrf.mxu0
    %v11650 = vadd.f32 0.0, %v11649
    %v11651 = vpop.f32.mrf.mxu0
    %v11652 = vadd.f32 0.0, %v11651
    %11653 = vmatmul.bf16.gmra.mxu0 %v11261
    %v11654 = vpop.f32.mrf.mxu0
    %v11655 = vadd.f32 0.0, %v11654
    %v11656 = vpop.f32.mrf.mxu0
    %v11657 = vadd.f32 0.0, %v11656
    %11658 = vmatmul.bf16.gmra.mxu0 %v11262
    %v11659 = vpop.f32.mrf.mxu0
    %v11660 = vadd.f32 0.0, %v11659
    %v11661 = vpop.f32.mrf.mxu0
    %v11662 = vadd.f32 0.0, %v11661
    %11663 = vmatmul.bf16.gmra.mxu0 %v11263
    %v11664 = vpop.f32.mrf.mxu0
    %v11665 = vadd.f32 0.0, %v11664
    %v11666 = vpop.f32.mrf.mxu0
    %v11667 = vadd.f32 0.0, %v11666
    %11668 = vmatmul.bf16.gmra.mxu0 %v11264
    %v11669 = vpop.f32.mrf.mxu0
    %v11670 = vadd.f32 0.0, %v11669
    %v11671 = vpop.f32.mrf.mxu0
    %v11672 = vadd.f32 0.0, %v11671
    %11673 = vmatmul.bf16.gmra.mxu0 %v11265
    %v11674 = vpop.f32.mrf.mxu0
    %v11675 = vadd.f32 0.0, %v11674
    %v11676 = vpop.f32.mrf.mxu0
    %v11677 = vadd.f32 0.0, %v11676
    %11678 = vmatmul.bf16.gmra.mxu0 %v11266
    %v11679 = vpop.f32.mrf.mxu0
    %v11680 = vadd.f32 0.0, %v11679
    %v11681 = vpop.f32.mrf.mxu0
    %v11682 = vadd.f32 0.0, %v11681
    %11683 = vmatmul.bf16.gmra.mxu0 %v11267
    %v11684 = vpop.f32.mrf.mxu0
    %v11685 = vadd.f32 0.0, %v11684
    %v11686 = vpop.f32.mrf.mxu0
    %v11687 = vadd.f32 0.0, %v11686
    %11688 = vmatmul.bf16.gmra.mxu0 %v11268
    %v11689 = vpop.f32.mrf.mxu0
    %v11690 = vadd.f32 0.0, %v11689
    %v11691 = vpop.f32.mrf.mxu0
    %v11692 = vadd.f32 0.0, %v11691
    %11693 = vmatmul.bf16.gmra.mxu0 %v11269
    %v11694 = vpop.f32.mrf.mxu0
    %v11695 = vadd.f32 0.0, %v11694
    %v11696 = vpop.f32.mrf.mxu0
    %v11697 = vadd.f32 0.0, %v11696
    %11698 = vmatmul.bf16.gmra.mxu0 %v11270
    %v11699 = vpop.f32.mrf.mxu0
    %v11700 = vadd.f32 0.0, %v11699
    %v11701 = vpop.f32.mrf.mxu0
    %v11702 = vadd.f32 0.0, %v11701
    %11703 = vmatmul.bf16.gmra.mxu0 %v11271
    %v11704 = vpop.f32.mrf.mxu0
    %v11705 = vadd.f32 0.0, %v11704
    %v11706 = vpop.f32.mrf.mxu0
    %v11707 = vadd.f32 0.0, %v11706
    %11708 = vmatmul.bf16.gmra.mxu0 %v11272
    %v11709 = vpop.f32.mrf.mxu0
    %v11710 = vadd.f32 0.0, %v11709
    %v11711 = vpop.f32.mrf.mxu0
    %v11712 = vadd.f32 0.0, %v11711
    %11713 = vmatmul.bf16.gmra.mxu0 %v11273
    %v11714 = vpop.f32.mrf.mxu0
    %v11715 = vadd.f32 0.0, %v11714
    %v11716 = vpop.f32.mrf.mxu0
    %v11717 = vadd.f32 0.0, %v11716
    %11718 = vmatmul.bf16.gmra.mxu0 %v11274
    %v11719 = vpop.f32.mrf.mxu0
    %v11720 = vadd.f32 0.0, %v11719
    %v11721 = vpop.f32.mrf.mxu0
    %v11722 = vadd.f32 0.0, %v11721
    %11723 = vmatmul.bf16.gmra.mxu0 %v11275
    %v11724 = vpop.f32.mrf.mxu0
    %v11725 = vadd.f32 0.0, %v11724
    %v11726 = vpop.f32.mrf.mxu0
    %v11727 = vadd.f32 0.0, %v11726
    %11728 = vmatmul.bf16.gmra.mxu0 %v11276
    %v11729 = vpop.f32.mrf.mxu0
    %v11730 = vadd.f32 0.0, %v11729
    %v11731 = vpop.f32.mrf.mxu0
    %v11732 = vadd.f32 0.0, %v11731
    %11733 = vmatmul.bf16.gmra.mxu0 %v11277
    %v11734 = vpop.f32.mrf.mxu0
    %v11735 = vadd.f32 0.0, %v11734
    %v11736 = vpop.f32.mrf.mxu0
    %v11737 = vadd.f32 0.0, %v11736
    %11738 = vmatmul.bf16.gmra.mxu0 %v11278
    %v11739 = vpop.f32.mrf.mxu0
    %v11740 = vadd.f32 0.0, %v11739
    %v11741 = vpop.f32.mrf.mxu0
    %v11742 = vadd.f32 0.0, %v11741
    %11743 = vmatmul.bf16.gmra.mxu0 %v11279
    %v11744 = vpop.f32.mrf.mxu0
    %v11745 = vadd.f32 0.0, %v11744
    %v11746 = vpop.f32.mrf.mxu0
    %v11747 = vadd.f32 0.0, %v11746
    %11748 = vmatmul.bf16.gmra.mxu0 %v11280
    %v11749 = vpop.f32.mrf.mxu0
    %v11750 = vadd.f32 0.0, %v11749
    %v11751 = vpop.f32.mrf.mxu0
    %v11752 = vadd.f32 0.0, %v11751
    %11753 = vmatmul.bf16.gmra.mxu0 %v11281
    %v11754 = vpop.f32.mrf.mxu0
    %v11755 = vadd.f32 0.0, %v11754
    %v11756 = vpop.f32.mrf.mxu0
    %v11757 = vadd.f32 0.0, %v11756
    %11758 = vmatmul.bf16.gmra.mxu0 %v11282
    %v11759 = vpop.f32.mrf.mxu0
    %v11760 = vadd.f32 0.0, %v11759
    %v11761 = vpop.f32.mrf.mxu0
    %v11762 = vadd.f32 0.0, %v11761
    %11763 = vmatmul.bf16.gmra.mxu0 %v11283
    %v11764 = vpop.f32.mrf.mxu0
    %v11765 = vadd.f32 0.0, %v11764
    %v11766 = vpop.f32.mrf.mxu0
    %v11767 = vadd.f32 0.0, %v11766
    %11768 = vmatmul.bf16.gmra.mxu0 %v11284
    %v11769 = vpop.f32.mrf.mxu0
    %v11770 = vadd.f32 0.0, %v11769
    %v11771 = vpop.f32.mrf.mxu0
    %v11772 = vadd.f32 0.0, %v11771
    %11773 = vmatmul.bf16.gmra.mxu0 %v11285
    %v11774 = vpop.f32.mrf.mxu0
    %v11775 = vadd.f32 0.0, %v11774
    %v11776 = vpop.f32.mrf.mxu0
    %v11777 = vadd.f32 0.0, %v11776
    %11778 = vmatmul.bf16.gmra.mxu0 %v11286
    %v11779 = vpop.f32.mrf.mxu0
    %v11780 = vadd.f32 0.0, %v11779
    %v11781 = vpop.f32.mrf.mxu0
    %v11782 = vadd.f32 0.0, %v11781
    %11783 = vmatmul.bf16.gmra.mxu0 %v11287
    %v11784 = vpop.f32.mrf.mxu0
    %v11785 = vadd.f32 0.0, %v11784
    %v11786 = vpop.f32.mrf.mxu0
    %v11787 = vadd.f32 0.0, %v11786
    %11788 = vmatmul.bf16.gmra.mxu0 %v11288
    %v11789 = vpop.f32.mrf.mxu0
    %v11790 = vadd.f32 0.0, %v11789
    %v11791 = vpop.f32.mrf.mxu0
    %v11792 = vadd.f32 0.0, %v11791
    %11793 = vmatmul.bf16.gmra.mxu0 %v11289
    %v11794 = vpop.f32.mrf.mxu0
    %v11795 = vadd.f32 0.0, %v11794
    %v11796 = vpop.f32.mrf.mxu0
    %v11797 = vadd.f32 0.0, %v11796
    %11798 = vmatmul.bf16.gmra.mxu0 %v11290
    %v11799 = vpop.f32.mrf.mxu0
    %v11800 = vadd.f32 0.0, %v11799
    %v11801 = vpop.f32.mrf.mxu0
    %v11802 = vadd.f32 0.0, %v11801
    %11803 = vmatmul.bf16.gmra.mxu0 %v11291
    %v11804 = vpop.f32.mrf.mxu0
    %v11805 = vadd.f32 0.0, %v11804
    %v11806 = vpop.f32.mrf.mxu0
    %v11807 = vadd.f32 0.0, %v11806
    %11808 = vmatmul.bf16.gmra.mxu0 %v11292
    %v11809 = vpop.f32.mrf.mxu0
    %v11810 = vadd.f32 0.0, %v11809
    %v11811 = vpop.f32.mrf.mxu0
    %v11812 = vadd.f32 0.0, %v11811
    %11813 = vmatmul.bf16.gmra.mxu0 %v11293
    %v11814 = vpop.f32.mrf.mxu0
    %v11815 = vadd.f32 0.0, %v11814
    %v11816 = vpop.f32.mrf.mxu0
    %v11817 = vadd.f32 0.0, %v11816
    %11818 = vmatmul.bf16.gmra.mxu0 %v11294
    %v11819 = vpop.f32.mrf.mxu0
    %v11820 = vadd.f32 0.0, %v11819
    %v11821 = vpop.f32.mrf.mxu0
    %v11822 = vadd.f32 0.0, %v11821
    %11823 = vmatmul.bf16.gmra.mxu0 %v11295
    %v11824 = vpop.f32.mrf.mxu0
    %v11825 = vadd.f32 0.0, %v11824
    %v11826 = vpop.f32.mrf.mxu0
    %v11827 = vadd.f32 0.0, %v11826
    %11828 = vmatmul.bf16.gmra.mxu0 %v11296
    %v11829 = vpop.f32.mrf.mxu0
    %v11830 = vadd.f32 0.0, %v11829
    %v11831 = vpop.f32.mrf.mxu0
    %v11832 = vadd.f32 0.0, %v11831
    %11833 = vmatmul.bf16.gmra.mxu0 %v11297
    %v11834 = vpop.f32.mrf.mxu0
    %v11835 = vadd.f32 0.0, %v11834
    %v11836 = vpop.f32.mrf.mxu0
    %v11837 = vadd.f32 0.0, %v11836
    %11838 = vmatmul.bf16.gmra.mxu0 %v11298
    %v11839 = vpop.f32.mrf.mxu0
    %v11840 = vadd.f32 0.0, %v11839
    %v11841 = vpop.f32.mrf.mxu0
    %v11842 = vadd.f32 0.0, %v11841
    %11843 = vmatmul.bf16.gmra.mxu0 %v11299
    %v11844 = vpop.f32.mrf.mxu0
    %v11845 = vadd.f32 0.0, %v11844
    %v11846 = vpop.f32.mrf.mxu0
    %v11847 = vadd.f32 0.0, %v11846
    %11848 = vmatmul.bf16.gmra.mxu0 %v11300
    %v11849 = vpop.f32.mrf.mxu0
    %v11850 = vadd.f32 0.0, %v11849
    %v11851 = vpop.f32.mrf.mxu0
    %v11852 = vadd.f32 0.0, %v11851
    %11853 = vmatmul.bf16.gmra.mxu0 %v11301
    %v11854 = vpop.f32.mrf.mxu0
    %v11855 = vadd.f32 0.0, %v11854
    %v11856 = vpop.f32.mrf.mxu0
    %v11857 = vadd.f32 0.0, %v11856
    %11858 = vmatmul.bf16.gmra.mxu0 %v11302
    %v11859 = vpop.f32.mrf.mxu0
    %v11860 = vadd.f32 0.0, %v11859
    %v11861 = vpop.f32.mrf.mxu0
    %v11862 = vadd.f32 0.0, %v11861
    %11863 = vmatmul.bf16.gmra.mxu0 %v11303
    %v11864 = vpop.f32.mrf.mxu0
    %v11865 = vadd.f32 0.0, %v11864
    %v11866 = vpop.f32.mrf.mxu0
    %v11867 = vadd.f32 0.0, %v11866
    %11868 = vmatmul.bf16.gmra.mxu0 %v11304
    %v11869 = vpop.f32.mrf.mxu0
    %v11870 = vadd.f32 0.0, %v11869
    %v11871 = vpop.f32.mrf.mxu0
    %v11872 = vadd.f32 0.0, %v11871
    %11873 = vmatmul.bf16.gmra.mxu0 %v11305
    %v11874 = vpop.f32.mrf.mxu0
    %v11875 = vadd.f32 0.0, %v11874
    %v11876 = vpop.f32.mrf.mxu0
    %v11877 = vadd.f32 0.0, %v11876
    %11878 = vmatmul.bf16.gmra.mxu0 %v11306
    %v11879 = vpop.f32.mrf.mxu0
    %v11880 = vadd.f32 0.0, %v11879
    %v11881 = vpop.f32.mrf.mxu0
    %v11882 = vadd.f32 0.0, %v11881
    %11883 = vmatmul.bf16.gmra.mxu0 %v11307
    %v11884 = vpop.f32.mrf.mxu0
    %v11885 = vadd.f32 0.0, %v11884
    %v11886 = vpop.f32.mrf.mxu0
    %v11887 = vadd.f32 0.0, %v11886
    %11888 = vmatmul.bf16.gmra.mxu0 %v11308
    %v11889 = vpop.f32.mrf.mxu0
    %v11890 = vadd.f32 0.0, %v11889
    %v11891 = vpop.f32.mrf.mxu0
    %v11892 = vadd.f32 0.0, %v11891
    %11893 = vmatmul.bf16.gmra.mxu0 %v11309
    %v11894 = vpop.f32.mrf.mxu0
    %v11895 = vadd.f32 0.0, %v11894
    %v11896 = vpop.f32.mrf.mxu0
    %v11897 = vadd.f32 0.0, %v11896
    %11898 = vmatmul.bf16.gmra.mxu0 %v11310
    %v11899 = vpop.f32.mrf.mxu0
    %v11900 = vadd.f32 0.0, %v11899
    %v11901 = vpop.f32.mrf.mxu0
    %v11902 = vadd.f32 0.0, %v11901
    %11903 = vmatmul.bf16.gmra.mxu0 %v11311
    %v11904 = vpop.f32.mrf.mxu0
    %v11905 = vadd.f32 0.0, %v11904
    %v11906 = vpop.f32.mrf.mxu0
    %v11907 = vadd.f32 0.0, %v11906
    %11908 = vmatmul.bf16.gmra.mxu0 %v11312
    %v11909 = vpop.f32.mrf.mxu0
    %v11910 = vadd.f32 0.0, %v11909
    %v11911 = vpop.f32.mrf.mxu0
    %v11912 = vadd.f32 0.0, %v11911
    %11913 = vmatmul.bf16.gmra.mxu0 %v11313
    %v11914 = vpop.f32.mrf.mxu0
    %v11915 = vadd.f32 0.0, %v11914
    %v11916 = vpop.f32.mrf.mxu0
    %v11917 = vadd.f32 0.0, %v11916
    %11918 = vmatmul.bf16.gmra.mxu0 %v11314
    %v11919 = vpop.f32.mrf.mxu0
    %v11920 = vadd.f32 0.0, %v11919
    %v11921 = vpop.f32.mrf.mxu0
    %v11922 = vadd.f32 0.0, %v11921
    %11923 = vmatmul.bf16.gmra.mxu0 %v11315
    %v11924 = vpop.f32.mrf.mxu0
    %v11925 = vadd.f32 0.0, %v11924
    %v11926 = vpop.f32.mrf.mxu0
    %v11927 = vadd.f32 0.0, %v11926
    %11928 = vmatmul.bf16.gmra.mxu0 %v11316
    %v11929 = vpop.f32.mrf.mxu0
    %v11930 = vadd.f32 0.0, %v11929
    %v11931 = vpop.f32.mrf.mxu0
    %v11932 = vadd.f32 0.0, %v11931
    %11933 = vmatmul.bf16.gmra.mxu0 %v11317
    %v11934 = vpop.f32.mrf.mxu0
    %v11935 = vadd.f32 0.0, %v11934
    %v11936 = vpop.f32.mrf.mxu0
    %v11937 = vadd.f32 0.0, %v11936
    %11938 = vmatmul.bf16.gmra.mxu0 %v11318
    %v11939 = vpop.f32.mrf.mxu0
    %v11940 = vadd.f32 0.0, %v11939
    %v11941 = vpop.f32.mrf.mxu0
    %v11942 = vadd.f32 0.0, %v11941
    %11943 = vmatmul.bf16.gmra.mxu0 %v11319
    %v11944 = vpop.f32.mrf.mxu0
    %v11945 = vadd.f32 0.0, %v11944
    %v11946 = vpop.f32.mrf.mxu0
    %v11947 = vadd.f32 0.0, %v11946
    %11948 = vmatmul.bf16.gmra.mxu0 %v11320
    %v11949 = vpop.f32.mrf.mxu0
    %v11950 = vadd.f32 0.0, %v11949
    %v11951 = vpop.f32.mrf.mxu0
    %v11952 = vadd.f32 0.0, %v11951
    %11953 = vmatmul.bf16.gmra.mxu0 %v11321
    %v11954 = vpop.f32.mrf.mxu0
    %v11955 = vadd.f32 0.0, %v11954
    %v11956 = vpop.f32.mrf.mxu0
    %v11957 = vadd.f32 0.0, %v11956
    %11958 = vmatmul.bf16.gmra.mxu0 %v11322
    %v11959 = vpop.f32.mrf.mxu0
    %v11960 = vadd.f32 0.0, %v11959
    %v11961 = vpop.f32.mrf.mxu0
    %v11962 = vadd.f32 0.0, %v11961
    %11963 = vmatmul.bf16.gmra.mxu0 %v11323
    %v11964 = vpop.f32.mrf.mxu0
    %v11965 = vadd.f32 0.0, %v11964
    %v11966 = vpop.f32.mrf.mxu0
    %v11967 = vadd.f32 0.0, %v11966
    %11968 = vmatmul.bf16.gmra.mxu0 %v11324
    %v11969 = vpop.f32.mrf.mxu0
    %v11970 = vadd.f32 0.0, %v11969
    %v11971 = vpop.f32.mrf.mxu0
    %v11972 = vadd.f32 0.0, %v11971
    %11973 = vmatmul.bf16.gmra.mxu0 %v11325
    %v11974 = vpop.f32.mrf.mxu0
    %v11975 = vadd.f32 0.0, %v11974
    %v11976 = vpop.f32.mrf.mxu0
    %v11977 = vadd.f32 0.0, %v11976
    %11978 = vmatmul.bf16.gmra.mxu0 %v11326
    %v11979 = vpop.f32.mrf.mxu0
    %v11980 = vadd.f32 0.0, %v11979
    %v11981 = vpop.f32.mrf.mxu0
    %v11982 = vadd.f32 0.0, %v11981
    %11983 = vmatmul.bf16.gmra.mxu0 %v11327
    %v11984 = vpop.f32.mrf.mxu0
    %v11985 = vadd.f32 0.0, %v11984
    %v11986 = vpop.f32.mrf.mxu0
    %v11987 = vadd.f32 0.0, %v11986
    %11988 = vmatmul.bf16.gmra.mxu0 %v11328
    %v11989 = vpop.f32.mrf.mxu0
    %v11990 = vadd.f32 0.0, %v11989
    %v11991 = vpop.f32.mrf.mxu0
    %v11992 = vadd.f32 0.0, %v11991
    %11993 = vmatmul.bf16.gmra.mxu0 %v11329
    %v11994 = vpop.f32.mrf.mxu0
    %v11995 = vadd.f32 0.0, %v11994
    %v11996 = vpop.f32.mrf.mxu0
    %v11997 = vadd.f32 0.0, %v11996
    %11998 = vmatmul.bf16.gmra.mxu0 %v11330
    %v11999 = vpop.f32.mrf.mxu0
    %v12000 = vadd.f32 0.0, %v11999
    %v12001 = vpop.f32.mrf.mxu0
    %v12002 = vadd.f32 0.0, %v12001
    %12003 = vmatmul.bf16.gmra.mxu0 %v11331
    %v12004 = vpop.f32.mrf.mxu0
    %v12005 = vadd.f32 0.0, %v12004
    %v12006 = vpop.f32.mrf.mxu0
    %v12007 = vadd.f32 0.0, %v12006
    %12008 = vmatmul.bf16.gmra.mxu0 %v11332
    %v12009 = vpop.f32.mrf.mxu0
    %v12010 = vadd.f32 0.0, %v12009
    %v12011 = vpop.f32.mrf.mxu0
    %v12012 = vadd.f32 0.0, %v12011
    %12013 = vmatmul.bf16.gmra.mxu0 %v11333
    %v12014 = vpop.f32.mrf.mxu0
    %v12015 = vadd.f32 0.0, %v12014
    %v12016 = vpop.f32.mrf.mxu0
    %v12017 = vadd.f32 0.0, %v12016
    %12018 = vmatmul.bf16.gmra.mxu0 %v11334
    %v12019 = vpop.f32.mrf.mxu0
    %v12020 = vadd.f32 0.0, %v12019
    %v12021 = vpop.f32.mrf.mxu0
    %v12022 = vadd.f32 0.0, %v12021
    %12023 = vmatmul.bf16.gmra.mxu0 %v11335
    %v12024 = vpop.f32.mrf.mxu0
    %v12025 = vadd.f32 0.0, %v12024
    %v12026 = vpop.f32.mrf.mxu0
    %v12027 = vadd.f32 0.0, %v12026
    %12028 = vmatmul.bf16.gmra.mxu0 %v11336
    %v12029 = vpop.f32.mrf.mxu0
    %v12030 = vadd.f32 0.0, %v12029
    %v12031 = vpop.f32.mrf.mxu0
    %v12032 = vadd.f32 0.0, %v12031
    %12033 = vmatmul.bf16.gmra.mxu0 %v11337
    %v12034 = vpop.f32.mrf.mxu0
    %v12035 = vadd.f32 0.0, %v12034
    %v12036 = vpop.f32.mrf.mxu0
    %v12037 = vadd.f32 0.0, %v12036
    %12038 = vmatmul.bf16.gmra.mxu0 %v11338
    %v12039 = vpop.f32.mrf.mxu0
    %v12040 = vadd.f32 0.0, %v12039
    %v12041 = vpop.f32.mrf.mxu0
    %v12042 = vadd.f32 0.0, %v12041
    %12043 = vmatmul.bf16.gmra.mxu0 %v11339
    %v12044 = vpop.f32.mrf.mxu0
    %v12045 = vadd.f32 0.0, %v12044
    %v12046 = vpop.f32.mrf.mxu0
    %v12047 = vadd.f32 0.0, %v12046
    %12048 = vmatmul.bf16.gmra.mxu0 %v11340
    %v12049 = vpop.f32.mrf.mxu0
    %v12050 = vadd.f32 0.0, %v12049
    %v12051 = vpop.f32.mrf.mxu0
    %v12052 = vadd.f32 0.0, %v12051
    %12053 = vdwg.mxu0
    %v12054 = vmax.f32 %v11415, 0.0
    %v12055 = vmax.f32 %v11417, 0.0
    %v12056 = vmax.f32 %v11420, 0.0
    %v12057 = vmax.f32 %v11422, 0.0
    %v12058 = vmax.f32 %v11425, 0.0
    %v12059 = vmax.f32 %v11427, 0.0
    %v12060 = vmax.f32 %v11430, 0.0
    %v12061 = vmax.f32 %v11432, 0.0
    %v12062 = vmax.f32 %v11435, 0.0
    %v12063 = vmax.f32 %v11437, 0.0
    %v12064 = vmax.f32 %v11440, 0.0
    %v12065 = vmax.f32 %v11442, 0.0
    %v12066 = vmax.f32 %v11445, 0.0
    %v12067 = vmax.f32 %v11447, 0.0
    %v12068 = vmax.f32 %v11450, 0.0
    %v12069 = vmax.f32 %v11452, 0.0
    %v12070 = vmax.f32 %v11455, 0.0
    %v12071 = vmax.f32 %v11457, 0.0
    %v12072 = vmax.f32 %v11460, 0.0
    %v12073 = vmax.f32 %v11462, 0.0
    %v12074 = vmax.f32 %v11465, 0.0
    %v12075 = vmax.f32 %v11467, 0.0
    %v12076 = vmax.f32 %v11470, 0.0
    %v12077 = vmax.f32 %v11472, 0.0
    %v12078 = vmax.f32 %v11475, 0.0
    %v12079 = vmax.f32 %v11477, 0.0
    %v12080 = vmax.f32 %v11480, 0.0
    %v12081 = vmax.f32 %v11482, 0.0
    %v12082 = vmax.f32 %v11485, 0.0
    %v12083 = vmax.f32 %v11487, 0.0
    %v12084 = vmax.f32 %v11490, 0.0
    %v12085 = vmax.f32 %v11492, 0.0
    %v12086 = vmax.f32 %v11495, 0.0
    %v12087 = vmax.f32 %v11497, 0.0
    %v12088 = vmax.f32 %v11500, 0.0
    %v12089 = vmax.f32 %v11502, 0.0
    %v12090 = vmax.f32 %v11505, 0.0
    %v12091 = vmax.f32 %v11507, 0.0
    %v12092 = vmax.f32 %v11510, 0.0
    %v12093 = vmax.f32 %v11512, 0.0
    %v12094 = vmax.f32 %v11515, 0.0
    %v12095 = vmax.f32 %v11517, 0.0
    %v12096 = vmax.f32 %v11520, 0.0
    %v12097 = vmax.f32 %v11522, 0.0
    %v12098 = vmax.f32 %v11525, 0.0
    %v12099 = vmax.f32 %v11527, 0.0
    %v12100 = vmax.f32 %v11530, 0.0
    %v12101 = vmax.f32 %v11532, 0.0
    %v12102 = vmax.f32 %v11535, 0.0
    %v12103 = vmax.f32 %v11537, 0.0
    %v12104 = vmax.f32 %v11540, 0.0
    %v12105 = vmax.f32 %v11542, 0.0
    %v12106 = vmax.f32 %v11545, 0.0
    %v12107 = vmax.f32 %v11547, 0.0
    %v12108 = vmax.f32 %v11550, 0.0
    %v12109 = vmax.f32 %v11552, 0.0
    %v12110 = vmax.f32 %v11555, 0.0
    %v12111 = vmax.f32 %v11557, 0.0
    %v12112 = vmax.f32 %v11560, 0.0
    %v12113 = vmax.f32 %v11562, 0.0
    %v12114 = vmax.f32 %v11565, 0.0
    %v12115 = vmax.f32 %v11567, 0.0
    %v12116 = vmax.f32 %v11570, 0.0
    %v12117 = vmax.f32 %v11572, 0.0
    %v12118 = vmax.f32 %v11575, 0.0
    %v12119 = vmax.f32 %v11577, 0.0
    %v12120 = vmax.f32 %v11580, 0.0
    %v12121 = vmax.f32 %v11582, 0.0
    %v12122 = vmax.f32 %v11585, 0.0
    %v12123 = vmax.f32 %v11587, 0.0
    %v12124 = vmax.f32 %v11590, 0.0
    %v12125 = vmax.f32 %v11592, 0.0
    %v12126 = vmax.f32 %v11595, 0.0
    %v12127 = vmax.f32 %v11597, 0.0
    %v12128 = vmax.f32 %v11600, 0.0
    %v12129 = vmax.f32 %v11602, 0.0
    %v12130 = vmax.f32 %v11605, 0.0
    %v12131 = vmax.f32 %v11607, 0.0
    %v12132 = vmax.f32 %v11610, 0.0
    %v12133 = vmax.f32 %v11612, 0.0
    %v12134 = vmax.f32 %v11615, 0.0
    %v12135 = vmax.f32 %v11617, 0.0
    %v12136 = vmax.f32 %v11620, 0.0
    %v12137 = vmax.f32 %v11622, 0.0
    %v12138 = vmax.f32 %v11625, 0.0
    %v12139 = vmax.f32 %v11627, 0.0
    %v12140 = vmax.f32 %v11630, 0.0
    %v12141 = vmax.f32 %v11632, 0.0
    %v12142 = vmax.f32 %v11635, 0.0
    %v12143 = vmax.f32 %v11637, 0.0
    %v12144 = vmax.f32 %v11640, 0.0
    %v12145 = vmax.f32 %v11642, 0.0
    %v12146 = vmax.f32 %v11645, 0.0
    %v12147 = vmax.f32 %v11647, 0.0
    %v12148 = vmax.f32 %v11650, 0.0
    %v12149 = vmax.f32 %v11652, 0.0
    %v12150 = vmax.f32 %v11655, 0.0
    %v12151 = vmax.f32 %v11657, 0.0
    %v12152 = vmax.f32 %v11660, 0.0
    %v12153 = vmax.f32 %v11662, 0.0
    %v12154 = vmax.f32 %v11665, 0.0
    %v12155 = vmax.f32 %v11667, 0.0
    %v12156 = vmax.f32 %v11670, 0.0
    %v12157 = vmax.f32 %v11672, 0.0
    %v12158 = vmax.f32 %v11675, 0.0
    %v12159 = vmax.f32 %v11677, 0.0
    %v12160 = vmax.f32 %v11680, 0.0
    %v12161 = vmax.f32 %v11682, 0.0
    %v12162 = vmax.f32 %v11685, 0.0
    %v12163 = vmax.f32 %v11687, 0.0
    %v12164 = vmax.f32 %v11690, 0.0
    %v12165 = vmax.f32 %v11692, 0.0
    %v12166 = vmax.f32 %v11695, 0.0
    %v12167 = vmax.f32 %v11697, 0.0
    %v12168 = vmax.f32 %v11700, 0.0
    %v12169 = vmax.f32 %v11702, 0.0
    %v12170 = vmax.f32 %v11705, 0.0
    %v12171 = vmax.f32 %v11707, 0.0
    %v12172 = vmax.f32 %v11710, 0.0
    %v12173 = vmax.f32 %v11712, 0.0
    %v12174 = vmax.f32 %v11715, 0.0
    %v12175 = vmax.f32 %v11717, 0.0
    %v12176 = vmax.f32 %v11720, 0.0
    %v12177 = vmax.f32 %v11722, 0.0
    %v12178 = vmax.f32 %v11725, 0.0
    %v12179 = vmax.f32 %v11727, 0.0
    %v12180 = vmax.f32 %v11730, 0.0
    %v12181 = vmax.f32 %v11732, 0.0
    %v12182 = vmax.f32 %v11735, 0.0
    %v12183 = vmax.f32 %v11737, 0.0
    %v12184 = vmax.f32 %v11740, 0.0
    %v12185 = vmax.f32 %v11742, 0.0
    %v12186 = vmax.f32 %v11745, 0.0
    %v12187 = vmax.f32 %v11747, 0.0
    %v12188 = vmax.f32 %v11750, 0.0
    %v12189 = vmax.f32 %v11752, 0.0
    %v12190 = vmax.f32 %v11755, 0.0
    %v12191 = vmax.f32 %v11757, 0.0
    %v12192 = vmax.f32 %v11760, 0.0
    %v12193 = vmax.f32 %v11762, 0.0
    %v12194 = vmax.f32 %v11765, 0.0
    %v12195 = vmax.f32 %v11767, 0.0
    %v12196 = vmax.f32 %v11770, 0.0
    %v12197 = vmax.f32 %v11772, 0.0
    %v12198 = vmax.f32 %v11775, 0.0
    %v12199 = vmax.f32 %v11777, 0.0
    %v12200 = vmax.f32 %v11780, 0.0
    %v12201 = vmax.f32 %v11782, 0.0
    %v12202 = vmax.f32 %v11785, 0.0
    %v12203 = vmax.f32 %v11787, 0.0
    %v12204 = vmax.f32 %v11790, 0.0
    %v12205 = vmax.f32 %v11792, 0.0
    %v12206 = vmax.f32 %v11795, 0.0
    %v12207 = vmax.f32 %v11797, 0.0
    %v12208 = vmax.f32 %v11800, 0.0
    %v12209 = vmax.f32 %v11802, 0.0
    %v12210 = vmax.f32 %v11805, 0.0
    %v12211 = vmax.f32 %v11807, 0.0
    %v12212 = vmax.f32 %v11810, 0.0
    %v12213 = vmax.f32 %v11812, 0.0
    %v12214 = vmax.f32 %v11815, 0.0
    %v12215 = vmax.f32 %v11817, 0.0
    %v12216 = vmax.f32 %v11820, 0.0
    %v12217 = vmax.f32 %v11822, 0.0
    %v12218 = vmax.f32 %v11825, 0.0
    %v12219 = vmax.f32 %v11827, 0.0
    %v12220 = vmax.f32 %v11830, 0.0
    %v12221 = vmax.f32 %v11832, 0.0
    %v12222 = vmax.f32 %v11835, 0.0
    %v12223 = vmax.f32 %v11837, 0.0
    %v12224 = vmax.f32 %v11840, 0.0
    %v12225 = vmax.f32 %v11842, 0.0
    %v12226 = vmax.f32 %v11845, 0.0
    %v12227 = vmax.f32 %v11847, 0.0
    %v12228 = vmax.f32 %v11850, 0.0
    %v12229 = vmax.f32 %v11852, 0.0
    %v12230 = vmax.f32 %v11855, 0.0
    %v12231 = vmax.f32 %v11857, 0.0
    %v12232 = vmax.f32 %v11860, 0.0
    %v12233 = vmax.f32 %v11862, 0.0
    %v12234 = vmax.f32 %v11865, 0.0
    %v12235 = vmax.f32 %v11867, 0.0
    %v12236 = vmax.f32 %v11870, 0.0
    %v12237 = vmax.f32 %v11872, 0.0
    %v12238 = vmax.f32 %v11875, 0.0
    %v12239 = vmax.f32 %v11877, 0.0
    %v12240 = vmax.f32 %v11880, 0.0
    %v12241 = vmax.f32 %v11882, 0.0
    %v12242 = vmax.f32 %v11885, 0.0
    %v12243 = vmax.f32 %v11887, 0.0
    %v12244 = vmax.f32 %v11890, 0.0
    %v12245 = vmax.f32 %v11892, 0.0
    %v12246 = vmax.f32 %v11895, 0.0
    %v12247 = vmax.f32 %v11897, 0.0
    %v12248 = vmax.f32 %v11900, 0.0
    %v12249 = vmax.f32 %v11902, 0.0
    %v12250 = vmax.f32 %v11905, 0.0
    %v12251 = vmax.f32 %v11907, 0.0
    %v12252 = vmax.f32 %v11910, 0.0
    %v12253 = vmax.f32 %v11912, 0.0
    %v12254 = vmax.f32 %v11915, 0.0
    %v12255 = vmax.f32 %v11917, 0.0
    %v12256 = vmax.f32 %v11920, 0.0
    %v12257 = vmax.f32 %v11922, 0.0
    %v12258 = vmax.f32 %v11925, 0.0
    %v12259 = vmax.f32 %v11927, 0.0
    %v12260 = vmax.f32 %v11930, 0.0
    %v12261 = vmax.f32 %v11932, 0.0
    %v12262 = vmax.f32 %v11935, 0.0
    %v12263 = vmax.f32 %v11937, 0.0
    %v12264 = vmax.f32 %v11940, 0.0
    %v12265 = vmax.f32 %v11942, 0.0
    %v12266 = vmax.f32 %v11945, 0.0
    %v12267 = vmax.f32 %v11947, 0.0
    %v12268 = vmax.f32 %v11950, 0.0
    %v12269 = vmax.f32 %v11952, 0.0
    %v12270 = vmax.f32 %v11955, 0.0
    %v12271 = vmax.f32 %v11957, 0.0
    %v12272 = vmax.f32 %v11960, 0.0
    %v12273 = vmax.f32 %v11962, 0.0
    %v12274 = vmax.f32 %v11965, 0.0
    %v12275 = vmax.f32 %v11967, 0.0
    %v12276 = vmax.f32 %v11970, 0.0
    %v12277 = vmax.f32 %v11972, 0.0
    %v12278 = vmax.f32 %v11975, 0.0
    %v12279 = vmax.f32 %v11977, 0.0
    %v12280 = vmax.f32 %v11980, 0.0
    %v12281 = vmax.f32 %v11982, 0.0
    %v12282 = vmax.f32 %v11985, 0.0
    %v12283 = vmax.f32 %v11987, 0.0
    %v12284 = vmax.f32 %v11990, 0.0
    %v12285 = vmax.f32 %v11992, 0.0
    %v12286 = vmax.f32 %v11995, 0.0
    %v12287 = vmax.f32 %v11997, 0.0
    %v12288 = vmax.f32 %v12000, 0.0
    %v12289 = vmax.f32 %v12002, 0.0
    %v12290 = vmax.f32 %v12005, 0.0
    %v12291 = vmax.f32 %v12007, 0.0
    %v12292 = vmax.f32 %v12010, 0.0
    %v12293 = vmax.f32 %v12012, 0.0
    %v12294 = vmax.f32 %v12015, 0.0
    %v12295 = vmax.f32 %v12017, 0.0
    %v12296 = vmax.f32 %v12020, 0.0
    %v12297 = vmax.f32 %v12022, 0.0
    %v12298 = vmax.f32 %v12025, 0.0
    %v12299 = vmax.f32 %v12027, 0.0
    %v12300 = vmax.f32 %v12030, 0.0
    %v12301 = vmax.f32 %v12032, 0.0
    %v12302 = vmax.f32 %v12035, 0.0
    %v12303 = vmax.f32 %v12037, 0.0
    %v12304 = vmax.f32 %v12040, 0.0
    %v12305 = vmax.f32 %v12042, 0.0
    %v12306 = vmax.f32 %v12045, 0.0
    %v12307 = vmax.f32 %v12047, 0.0
    %v12308 = vmax.f32 %v12050, 0.0
    %v12309 = vmax.f32 %v12052, 0.0
    %v12310 = vadd.f32 %v12054, %v12055
    %v12311 = vadd.f32 %v12310, %v12056
    %v12312 = vadd.f32 %v12311, %v12057
    %v12313 = vadd.f32 %v12312, %v12058
    %v12314 = vadd.f32 %v12313, %v12059
    %v12315 = vadd.f32 %v12314, %v12060
    %v12316 = vadd.f32 %v12315, %v12061
    %v12317 = vadd.f32 %v12316, %v12062
    %v12318 = vadd.f32 %v12317, %v12063
    %v12319 = vadd.f32 %v12318, %v12064
    %v12320 = vadd.f32 %v12319, %v12065
    %v12321 = vadd.f32 %v12320, %v12066
    %v12322 = vadd.f32 %v12321, %v12067
    %v12323 = vadd.f32 %v12322, %v12068
    %v12324 = vadd.f32 %v12323, %v12069
    %v12325 = vadd.f32 %v12324, %v12070
    %v12326 = vadd.f32 %v12325, %v12071
    %v12327 = vadd.f32 %v12326, %v12072
    %v12328 = vadd.f32 %v12327, %v12073
    %v12329 = vadd.f32 %v12328, %v12074
    %v12330 = vadd.f32 %v12329, %v12075
    %v12331 = vadd.f32 %v12330, %v12076
    %v12332 = vadd.f32 %v12331, %v12077
    %v12333 = vadd.f32 %v12332, %v12078
    %v12334 = vadd.f32 %v12333, %v12079
    %v12335 = vadd.f32 %v12334, %v12080
    %v12336 = vadd.f32 %v12335, %v12081
    %v12337 = vadd.f32 %v12336, %v12082
    %v12338 = vadd.f32 %v12337, %v12083
    %v12339 = vadd.f32 %v12338, %v12084
    %v12340 = vadd.f32 %v12339, %v12085
    %v12341 = vrot.slane %v12340, 4
    %v12342 = vadd.f32 %v12340, %v12341
    %v12343 = vrot.slane %v12342, 2
    %v12344 = vadd.f32 %v12342, %v12343
    %v12345 = vrot.slane %v12344, 1
    %v12346 = vadd.f32 %v12344, %v12345
    %v12347 = vadd.f32 %v12086, %v12087
    %v12348 = vadd.f32 %v12347, %v12088
    %v12349 = vadd.f32 %v12348, %v12089
    %v12350 = vadd.f32 %v12349, %v12090
    %v12351 = vadd.f32 %v12350, %v12091
    %v12352 = vadd.f32 %v12351, %v12092
    %v12353 = vadd.f32 %v12352, %v12093
    %v12354 = vadd.f32 %v12353, %v12094
    %v12355 = vadd.f32 %v12354, %v12095
    %v12356 = vadd.f32 %v12355, %v12096
    %v12357 = vadd.f32 %v12356, %v12097
    %v12358 = vadd.f32 %v12357, %v12098
    %v12359 = vadd.f32 %v12358, %v12099
    %v12360 = vadd.f32 %v12359, %v12100
    %v12361 = vadd.f32 %v12360, %v12101
    %v12362 = vadd.f32 %v12361, %v12102
    %v12363 = vadd.f32 %v12362, %v12103
    %v12364 = vadd.f32 %v12363, %v12104
    %v12365 = vadd.f32 %v12364, %v12105
    %v12366 = vadd.f32 %v12365, %v12106
    %v12367 = vadd.f32 %v12366, %v12107
    %v12368 = vadd.f32 %v12367, %v12108
    %v12369 = vadd.f32 %v12368, %v12109
    %v12370 = vadd.f32 %v12369, %v12110
    %v12371 = vadd.f32 %v12370, %v12111
    %v12372 = vadd.f32 %v12371, %v12112
    %v12373 = vadd.f32 %v12372, %v12113
    %v12374 = vadd.f32 %v12373, %v12114
    %v12375 = vadd.f32 %v12374, %v12115
    %v12376 = vadd.f32 %v12375, %v12116
    %v12377 = vadd.f32 %v12376, %v12117
    %v12378 = vrot.slane %v12377, 4
    %v12379 = vadd.f32 %v12377, %v12378
    %v12380 = vrot.slane %v12379, 2
    %v12381 = vadd.f32 %v12379, %v12380
    %v12382 = vrot.slane %v12381, 1
    %v12383 = vadd.f32 %v12381, %v12382
    %v12384 = vadd.f32 %v12118, %v12119
    %v12385 = vadd.f32 %v12384, %v12120
    %v12386 = vadd.f32 %v12385, %v12121
    %v12387 = vadd.f32 %v12386, %v12122
    %v12388 = vadd.f32 %v12387, %v12123
    %v12389 = vadd.f32 %v12388, %v12124
    %v12390 = vadd.f32 %v12389, %v12125
    %v12391 = vadd.f32 %v12390, %v12126
    %v12392 = vadd.f32 %v12391, %v12127
    %v12393 = vadd.f32 %v12392, %v12128
    %v12394 = vadd.f32 %v12393, %v12129
    %v12395 = vadd.f32 %v12394, %v12130
    %v12396 = vadd.f32 %v12395, %v12131
    %v12397 = vadd.f32 %v12396, %v12132
    %v12398 = vadd.f32 %v12397, %v12133
    %v12399 = vadd.f32 %v12398, %v12134
    %v12400 = vadd.f32 %v12399, %v12135
    %v12401 = vadd.f32 %v12400, %v12136
    %v12402 = vadd.f32 %v12401, %v12137
    %v12403 = vadd.f32 %v12402, %v12138
    %v12404 = vadd.f32 %v12403, %v12139
    %v12405 = vadd.f32 %v12404, %v12140
    %v12406 = vadd.f32 %v12405, %v12141
    %v12407 = vadd.f32 %v12406, %v12142
    %v12408 = vadd.f32 %v12407, %v12143
    %v12409 = vadd.f32 %v12408, %v12144
    %v12410 = vadd.f32 %v12409, %v12145
    %v12411 = vadd.f32 %v12410, %v12146
    %v12412 = vadd.f32 %v12411, %v12147
    %v12413 = vadd.f32 %v12412, %v12148
    %v12414 = vadd.f32 %v12413, %v12149
    %v12415 = vrot.slane %v12414, 4
    %v12416 = vadd.f32 %v12414, %v12415
    %v12417 = vrot.slane %v12416, 2
    %v12418 = vadd.f32 %v12416, %v12417
    %v12419 = vrot.slane %v12418, 1
    %v12420 = vadd.f32 %v12418, %v12419
    %v12421 = vadd.f32 %v12150, %v12151
    %v12422 = vadd.f32 %v12421, %v12152
    %v12423 = vadd.f32 %v12422, %v12153
    %v12424 = vadd.f32 %v12423, %v12154
    %v12425 = vadd.f32 %v12424, %v12155
    %v12426 = vadd.f32 %v12425, %v12156
    %v12427 = vadd.f32 %v12426, %v12157
    %v12428 = vadd.f32 %v12427, %v12158
    %v12429 = vadd.f32 %v12428, %v12159
    %v12430 = vadd.f32 %v12429, %v12160
    %v12431 = vadd.f32 %v12430, %v12161
    %v12432 = vadd.f32 %v12431, %v12162
    %v12433 = vadd.f32 %v12432, %v12163
    %v12434 = vadd.f32 %v12433, %v12164
    %v12435 = vadd.f32 %v12434, %v12165
    %v12436 = vadd.f32 %v12435, %v12166
    %v12437 = vadd.f32 %v12436, %v12167
    %v12438 = vadd.f32 %v12437, %v12168
    %v12439 = vadd.f32 %v12438, %v12169
    %v12440 = vadd.f32 %v12439, %v12170
    %v12441 = vadd.f32 %v12440, %v12171
    %v12442 = vadd.f32 %v12441, %v12172
    %v12443 = vadd.f32 %v12442, %v12173
    %v12444 = vadd.f32 %v12443, %v12174
    %v12445 = vadd.f32 %v12444, %v12175
    %v12446 = vadd.f32 %v12445, %v12176
    %v12447 = vadd.f32 %v12446, %v12177
    %v12448 = vadd.f32 %v12447, %v12178
    %v12449 = vadd.f32 %v12448, %v12179
    %v12450 = vadd.f32 %v12449, %v12180
    %v12451 = vadd.f32 %v12450, %v12181
    %v12452 = vrot.slane %v12451, 4
    %v12453 = vadd.f32 %v12451, %v12452
    %v12454 = vrot.slane %v12453, 2
    %v12455 = vadd.f32 %v12453, %v12454
    %v12456 = vrot.slane %v12455, 1
    %v12457 = vadd.f32 %v12455, %v12456
    %v12458 = vadd.f32 %v12182, %v12183
    %v12459 = vadd.f32 %v12458, %v12184
    %v12460 = vadd.f32 %v12459, %v12185
    %v12461 = vadd.f32 %v12460, %v12186
    %v12462 = vadd.f32 %v12461, %v12187
    %v12463 = vadd.f32 %v12462, %v12188
    %v12464 = vadd.f32 %v12463, %v12189
    %v12465 = vadd.f32 %v12464, %v12190
    %v12466 = vadd.f32 %v12465, %v12191
    %v12467 = vadd.f32 %v12466, %v12192
    %v12468 = vadd.f32 %v12467, %v12193
    %v12469 = vadd.f32 %v12468, %v12194
    %v12470 = vadd.f32 %v12469, %v12195
    %v12471 = vadd.f32 %v12470, %v12196
    %v12472 = vadd.f32 %v12471, %v12197
    %v12473 = vadd.f32 %v12472, %v12198
    %v12474 = vadd.f32 %v12473, %v12199
    %v12475 = vadd.f32 %v12474, %v12200
    %v12476 = vadd.f32 %v12475, %v12201
    %v12477 = vadd.f32 %v12476, %v12202
    %v12478 = vadd.f32 %v12477, %v12203
    %v12479 = vadd.f32 %v12478, %v12204
    %v12480 = vadd.f32 %v12479, %v12205
    %v12481 = vadd.f32 %v12480, %v12206
    %v12482 = vadd.f32 %v12481, %v12207
    %v12483 = vadd.f32 %v12482, %v12208
    %v12484 = vadd.f32 %v12483, %v12209
    %v12485 = vadd.f32 %v12484, %v12210
    %v12486 = vadd.f32 %v12485, %v12211
    %v12487 = vadd.f32 %v12486, %v12212
    %v12488 = vadd.f32 %v12487, %v12213
    %v12489 = vrot.slane %v12488, 4
    %v12490 = vadd.f32 %v12488, %v12489
    %v12491 = vrot.slane %v12490, 2
    %v12492 = vadd.f32 %v12490, %v12491
    %v12493 = vrot.slane %v12492, 1
    %v12494 = vadd.f32 %v12492, %v12493
    %v12495 = vadd.f32 %v12214, %v12215
    %v12496 = vadd.f32 %v12495, %v12216
    %v12497 = vadd.f32 %v12496, %v12217
    %v12498 = vadd.f32 %v12497, %v12218
    %v12499 = vadd.f32 %v12498, %v12219
    %v12500 = vadd.f32 %v12499, %v12220
    %v12501 = vadd.f32 %v12500, %v12221
    %v12502 = vadd.f32 %v12501, %v12222
    %v12503 = vadd.f32 %v12502, %v12223
    %v12504 = vadd.f32 %v12503, %v12224
    %v12505 = vadd.f32 %v12504, %v12225
    %v12506 = vadd.f32 %v12505, %v12226
    %v12507 = vadd.f32 %v12506, %v12227
    %v12508 = vadd.f32 %v12507, %v12228
    %v12509 = vadd.f32 %v12508, %v12229
    %v12510 = vadd.f32 %v12509, %v12230
    %v12511 = vadd.f32 %v12510, %v12231
    %v12512 = vadd.f32 %v12511, %v12232
    %v12513 = vadd.f32 %v12512, %v12233
    %v12514 = vadd.f32 %v12513, %v12234
    %v12515 = vadd.f32 %v12514, %v12235
    %v12516 = vadd.f32 %v12515, %v12236
    %v12517 = vadd.f32 %v12516, %v12237
    %v12518 = vadd.f32 %v12517, %v12238
    %v12519 = vadd.f32 %v12518, %v12239
    %v12520 = vadd.f32 %v12519, %v12240
    %v12521 = vadd.f32 %v12520, %v12241
    %v12522 = vadd.f32 %v12521, %v12242
    %v12523 = vadd.f32 %v12522, %v12243
    %v12524 = vadd.f32 %v12523, %v12244
    %v12525 = vadd.f32 %v12524, %v12245
    %v12526 = vrot.slane %v12525, 4
    %v12527 = vadd.f32 %v12525, %v12526
    %v12528 = vrot.slane %v12527, 2
    %v12529 = vadd.f32 %v12527, %v12528
    %v12530 = vrot.slane %v12529, 1
    %v12531 = vadd.f32 %v12529, %v12530
    %v12532 = vadd.f32 %v12246, %v12247
    %v12533 = vadd.f32 %v12532, %v12248
    %v12534 = vadd.f32 %v12533, %v12249
    %v12535 = vadd.f32 %v12534, %v12250
    %v12536 = vadd.f32 %v12535, %v12251
    %v12537 = vadd.f32 %v12536, %v12252
    %v12538 = vadd.f32 %v12537, %v12253
    %v12539 = vadd.f32 %v12538, %v12254
    %v12540 = vadd.f32 %v12539, %v12255
    %v12541 = vadd.f32 %v12540, %v12256
    %v12542 = vadd.f32 %v12541, %v12257
    %v12543 = vadd.f32 %v12542, %v12258
    %v12544 = vadd.f32 %v12543, %v12259
    %v12545 = vadd.f32 %v12544, %v12260
    %v12546 = vadd.f32 %v12545, %v12261
    %v12547 = vadd.f32 %v12546, %v12262
    %v12548 = vadd.f32 %v12547, %v12263
    %v12549 = vadd.f32 %v12548, %v12264
    %v12550 = vadd.f32 %v12549, %v12265
    %v12551 = vadd.f32 %v12550, %v12266
    %v12552 = vadd.f32 %v12551, %v12267
    %v12553 = vadd.f32 %v12552, %v12268
    %v12554 = vadd.f32 %v12553, %v12269
    %v12555 = vadd.f32 %v12554, %v12270
    %v12556 = vadd.f32 %v12555, %v12271
    %v12557 = vadd.f32 %v12556, %v12272
    %v12558 = vadd.f32 %v12557, %v12273
    %v12559 = vadd.f32 %v12558, %v12274
    %v12560 = vadd.f32 %v12559, %v12275
    %v12561 = vadd.f32 %v12560, %v12276
    %v12562 = vadd.f32 %v12561, %v12277
    %v12563 = vrot.slane %v12562, 4
    %v12564 = vadd.f32 %v12562, %v12563
    %v12565 = vrot.slane %v12564, 2
    %v12566 = vadd.f32 %v12564, %v12565
    %v12567 = vrot.slane %v12566, 1
    %v12568 = vadd.f32 %v12566, %v12567
    %v12569 = vadd.f32 %v12278, %v12279
    %v12570 = vadd.f32 %v12569, %v12280
    %v12571 = vadd.f32 %v12570, %v12281
    %v12572 = vadd.f32 %v12571, %v12282
    %v12573 = vadd.f32 %v12572, %v12283
    %v12574 = vadd.f32 %v12573, %v12284
    %v12575 = vadd.f32 %v12574, %v12285
    %v12576 = vadd.f32 %v12575, %v12286
    %v12577 = vadd.f32 %v12576, %v12287
    %v12578 = vadd.f32 %v12577, %v12288
    %v12579 = vadd.f32 %v12578, %v12289
    %v12580 = vadd.f32 %v12579, %v12290
    %v12581 = vadd.f32 %v12580, %v12291
    %v12582 = vadd.f32 %v12581, %v12292
    %v12583 = vadd.f32 %v12582, %v12293
    %v12584 = vadd.f32 %v12583, %v12294
    %v12585 = vadd.f32 %v12584, %v12295
    %v12586 = vadd.f32 %v12585, %v12296
    %v12587 = vadd.f32 %v12586, %v12297
    %v12588 = vadd.f32 %v12587, %v12298
    %v12589 = vadd.f32 %v12588, %v12299
    %v12590 = vadd.f32 %v12589, %v12300
    %v12591 = vadd.f32 %v12590, %v12301
    %v12592 = vadd.f32 %v12591, %v12302
    %v12593 = vadd.f32 %v12592, %v12303
    %v12594 = vadd.f32 %v12593, %v12304
    %v12595 = vadd.f32 %v12594, %v12305
    %v12596 = vadd.f32 %v12595, %v12306
    %v12597 = vadd.f32 %v12596, %v12307
    %v12598 = vadd.f32 %v12597, %v12308
    %v12599 = vadd.f32 %v12598, %v12309
    %v12600 = vrot.slane %v12599, 4
    %v12601 = vadd.f32 %v12599, %v12600
    %v12602 = vrot.slane %v12601, 2
    %v12603 = vadd.f32 %v12601, %v12602
    %v12604 = vrot.slane %v12603, 1
    %v12605 = vadd.f32 %v12603, %v12604
    %vm12606 = vcmask 1040384
    %v12607 = vsel %vm12606, %v12346, %v12383
    %vm12608 = vcmask 1041408
    %v12609 = vsel %vm12608, %v12607, %v12420
    %vm12610 = vcmask 1042432
    %v12611 = vsel %vm12610, %v12609, %v12457
    %vm12612 = vcmask 1043456
    %v12613 = vsel %vm12612, %v12611, %v12494
    %vm12614 = vcmask 1044480
    %v12615 = vsel %vm12614, %v12613, %v12531
    %v12616 = vsel %vm2675, %v12615, %v12568
    %v12617 = vsel %vm1266, %v12616, %v12605
    %v12618 = vmul.f32 %v12617, 0.00390625
    %v12619 = vpack.c.bf16 %v12618, %v12618
    %v12620 = vld [vmem:[%s2] sm:$0xf]
    %v12621 = vld [vmem:[%s2 + $0x4] sm:$0xf]
    %v12622 = vld [vmem:[%s2 + $0x8] sm:$0xf]
    %v12623 = vld [vmem:[%s2 + $0xc] sm:$0xf]
    %v12624 = vld [vmem:[%s2 + $0x10] sm:$0xf]
    %v12625 = vld [vmem:[%s2 + $0x14] sm:$0xf]
    %v12626 = vld [vmem:[%s2 + $0x18] sm:$0xf]
    %v12627 = vld [vmem:[%s2 + $0x1c] sm:$0xf]
    %v12628 = vld [vmem:[%s2 + $0x20] sm:$0xf]
    %v12629 = vld [vmem:[%s2 + $0x24] sm:$0xf]
    %v12630 = vld [vmem:[%s2 + $0x28] sm:$0xf]
    %v12631 = vld [vmem:[%s2 + $0x2c] sm:$0xf]
    %v12632 = vld [vmem:[%s2 + $0x30] sm:$0xf]
    %v12633 = vld [vmem:[%s2 + $0x34] sm:$0xf]
    %v12634 = vld [vmem:[%s2 + $0x38] sm:$0xf]
    %v12635 = vld [vmem:[%s2 + $0x3c] sm:$0xf]
    %v12636 = vld [vmem:[%s3] sm:$0x1]
    %v12638 = vperm.slane %v12636, 0
    %v12656 = vunpack.c.l.b16 %v12620
    %v12657 = vunpack.c.l.b16 %v12621
    %v12658 = vunpack.c.l.b16 %v12622
    %v12659 = vunpack.c.l.b16 %v12623
    %v12660 = vunpack.c.l.b16 %v12624
    %v12661 = vunpack.c.l.b16 %v12625
    %v12662 = vunpack.c.l.b16 %v12626
    %v12663 = vunpack.c.l.b16 %v12627
    %v12664 = vunpack.c.l.b16 %v12628
    %v12665 = vunpack.c.l.b16 %v12629
    %v12666 = vunpack.c.l.b16 %v12630
    %v12667 = vunpack.c.l.b16 %v12631
    %v12668 = vunpack.c.l.b16 %v12632
    %v12669 = vunpack.c.l.b16 %v12633
    %v12670 = vunpack.c.l.b16 %v12634
    %v12671 = vunpack.c.l.b16 %v12635
    %v12672 = vpack.c.b16 %v12657, %v12656
    %v12673 = vpack.c.b16 %v12659, %v12658
    %v12674 = vpack.c.b16 %v12661, %v12660
    %v12675 = vpack.c.b16 %v12663, %v12662
    %v12676 = vpack.c.b16 %v12665, %v12664
    %v12677 = vpack.c.b16 %v12667, %v12666
    %v12678 = vpack.c.b16 %v12669, %v12668
    %v12679 = vpack.c.b16 %v12671, %v12670
    %12688 = vmatpush.bf16.msra.mxu0 %v12679
    %12689 = vmatpush.bf16.msra.mxu0 %v12678
    %12690 = vmatpush.bf16.msra.mxu0 %v12677
    %12691 = vmatpush.bf16.msra.mxu0 %v12676
    %12692 = vmatpush.bf16.msra.mxu0 %v12675
    %12693 = vmatpush.bf16.msra.mxu0 %v12674
    %12694 = vmatpush.bf16.msra.mxu0 %v12673
    %12695 = vmatpush.bf16.msra.mxu0 %v12672
    %12696 = vmatmul.bf16.gmra.mxu0 %v12619
    %v12697 = vpop.f32.mrf.mxu0
    %v12698 = vadd.f32 %v12638, %v12697
    %v12699 = vpop.f32.mrf.mxu0
    %12700 = vdwg.mxu0
    %12701 = vst [vmem:[#allocation2] sm:$0xff] %v12698
    // Predicated region
    $region18: #{tpu_custom_call.1} parent=1 // pred_check
      _
    $region19: #{tpu_custom_call.1} parent=1 // pred_check_branch
      %12703 = sbr.rel (0) target = $region21
    $region20: #{tpu_custom_call.1} parent=1 // pred_region
      %12705 = vsyncadd [#allocation3], 0
      %s12707 = sshll.u32 [#allocation2], 4
      %s12708 = int_to_ptr.vmem [resolvable:$true] %s12707
      %s12709 = sshll.u32 %s4, 4
      %s12710 = int_to_ptr.hbm [resolvable:$true] %s12709
      %12712 = dma.vmem_to_hbm [thread:$0]  %s12708, 128, %s12710, [#allocation3]
    $region21: #{tpu_custom_call.1} parent=1 // pred_fallthru
      _
    // Predicated region
    $region22: #{tpu_custom_call.1} parent=1 // pred_check
      _
    $region23: #{tpu_custom_call.1} parent=1 // pred_check_branch
      %12714 = sbr.rel (0) target = $region25
    $region24: #{tpu_custom_call.1} parent=1 // pred_region
      %12716 = dma.done [#allocation3], 128
    $region25: #{tpu_custom_call.1} parent=1 // pred_fallthru
      _
    %12717 = vsyncpa [#allocation3], 1

</llo_original>
